<compile_context>
chip_gen: v7x
topology: tpu7x:2x2x1
jax: 0.10.0
libtpu: 0.0.40
codegen_flags: <defaults>
</compile_context>

<pallas_src>
import jax
import jax.numpy as jnp
from jax import lax
from jax.experimental import pallas as pl
from jax.experimental.pallas import tpu as pltpu

LANES = 128


def _round_up(x, m):
    return (x + m - 1) // m * m


def _pick_tile_h(h, max_tile=64):
    for t in range(min(h, max_tile), 0, -1):
        if h % t == 0:
            return t
    return h


def _vmem_limit_bytes():
    try:
        return int(pltpu.get_tpu_info().vmem_capacity_bytes) // 2
    except Exception:
        return None


def double_conv_kernel(x_ref, w1_ref, b1_ref, w2_ref, b2_ref, out_ref, hp_ref):
    # x_ref:  (1, 1, TH+2, W+2, Cin)  zero-padded input window (one batch elem, one H tile)
    # w1_ref: (9, Cin, Cmid)          conv1 taps (BN scale folded in), k = 3*dy + dx
    # w2_ref: (9, Cmid, Cout)         conv2 taps (BN scale folded in)
    # b*_ref: (1, C)                  folded BN bias (f32)
    # out_ref:(1, 1, TH, W, Cout)
    # hp_ref: (TH+2, W+2, Cmid)       VMEM scratch: zero-padded conv1 output
    TH = out_ref.shape[2]
    W = out_ref.shape[3]
    Cin = x_ref.shape[4]
    Cmid = w1_ref.shape[2]
    Cout = w2_ref.shape[2]

    # ---- conv1 (3x3, pad=1, no bias) as 9 shifted matmuls on the MXU ----
    # each tap is sliced directly from the ref; accumulation stays f32.
    acc1 = jnp.zeros((TH * W, Cmid), jnp.float32)
    for k in range(9):
        dy, dx = divmod(k, 3)
        patch = x_ref[0, 0, dy:dy + TH, dx:dx + W, :].reshape(TH * W, Cin)
        acc1 = acc1 + jnp.dot(patch, w1_ref[k],
                              preferred_element_type=jnp.float32)
    # BN scale is folded into w1; only bias + ReLU remain.
    h = jnp.maximum(acc1 + b1_ref[...], 0.0)                      # (TH*W, Cmid) f32

    # re-pad the intermediate via the persistent VMEM scratch (no concatenates).
    # Zero the whole scratch every step (cheap vector stores, megacore-safe), then
    # overwrite only the interior.
    hp_ref[...] = jnp.zeros_like(hp_ref)
    hp_ref[1:TH + 1, 1:W + 1, :] = h.reshape(TH, W, Cmid).astype(hp_ref.dtype)

    # ---- conv2 (3x3, pad=1, no bias) ----
    acc2 = jnp.zeros((TH * W, Cout), jnp.float32)
    for k in range(9):
        dy, dx = divmod(k, 3)
        patch = hp_ref[dy:dy + TH, dx:dx + W, :].reshape(TH * W, Cmid)
        acc2 = acc2 + jnp.dot(patch, w2_ref[k],
                              preferred_element_type=jnp.float32)
    y = jnp.maximum(acc2 + b2_ref[...], 0.0)                      # (TH*W, Cout) f32

    out_ref[0, 0] = y.reshape(TH, W, Cout).astype(out_ref.dtype)


def double_conv(x_nchw, w1, g1, be1, m1, v1, w2, g2, be2, m2, v2,
                eps=1e-5, compute_dtype=jnp.bfloat16, tile_h=None):
    """x_nchw: (N, Cin, H, W). w1: (Cmid, Cin, 3, 3). w2: (Cout, Cmid, 3, 3)."""
    N, Cin, H, W = x_nchw.shape
    Cmid = w1.shape[0]
    Cout = w2.shape[0]

    # lane-dense channel padding (unmasked stores, full-width MXU operands).
    # No-op when the channel counts are already multiples of 128.
    Cin_p = _round_up(Cin, LANES)
    Cmid_p = _round_up(Cmid, LANES)
    Cout_p = _round_up(Cout, LANES)

    if tile_h is None:
        tile_h = _pick_tile_h(H)
    assert H % tile_h == 0, (H, tile_h)
    T = H // tile_h

    # ---- glue (plain JAX): layout conversion, padding, BN folding, halo windows ----
    x = jnp.transpose(x_nchw, (0, 2, 3, 1))                               # NHWC
    x = jnp.pad(x, ((0, 0), (0, 0), (0, 0), (0, Cin_p - Cin)))            # lane pad
    x = x.astype(compute_dtype)
    xpad = jnp.pad(x, ((0, 0), (1, 1), (1, 1), (0, 0)))                   # spatial halo
    # overlapping (tile_h + 2)-row windows -> non-overlapping BlockSpec blocks.
    xt = jnp.stack([xpad[:, t * tile_h: t * tile_h + tile_h + 2]
                    for t in range(T)], axis=1)          # (N, T, TH+2, W+2, Cin_p)

    def fold(w, g, be, m, v, cin, cin_p, cout, cout_p):
        inv = g / jnp.sqrt(v + eps)                                       # (cout,)
        wt = jnp.transpose(w, (2, 3, 1, 0)).reshape(9, cin, cout)         # k = 3*dy + dx
        wt = wt * inv[None, None, :]                                      # fold BN scale
        wt = jnp.pad(wt, ((0, 0), (0, cin_p - cin), (0, cout_p - cout)))
        b = jnp.pad(be - m * inv, ((0, cout_p - cout),)).reshape(1, cout_p)
        return wt.astype(compute_dtype), b.astype(jnp.float32)

    w1t, b1 = fold(w1, g1, be1, m1, v1, Cin, Cin_p, Cmid, Cmid_p)
    w2t, b2 = fold(w2, g2, be2, m2, v2, Cmid, Cmid_p, Cout, Cout_p)

    cp_kwargs = dict(dimension_semantics=("parallel", "parallel"))
    vmem_limit = _vmem_limit_bytes()
    if vmem_limit is not None:
        cp_kwargs["vmem_limit_bytes"] = vmem_limit

    out = pl.pallas_call(
        double_conv_kernel,
        out_shape=jax.ShapeDtypeStruct((N, T, tile_h, W, Cout_p), x_nchw.dtype),
        grid_spec=pltpu.PrefetchScalarGridSpec(
            num_scalar_prefetch=0,
            grid=(N, T),
            in_specs=[
                pl.BlockSpec((1, 1, tile_h + 2, W + 2, Cin_p),
                             lambda n, t: (n, t, 0, 0, 0)),
                pl.BlockSpec((9, Cin_p, Cmid_p), lambda n, t: (0, 0, 0)),
                pl.BlockSpec((1, Cmid_p), lambda n, t: (0, 0)),
                pl.BlockSpec((9, Cmid_p, Cout_p), lambda n, t: (0, 0, 0)),
                pl.BlockSpec((1, Cout_p), lambda n, t: (0, 0)),
            ],
            out_specs=pl.BlockSpec((1, 1, tile_h, W, Cout_p),
                                   lambda n, t: (n, t, 0, 0, 0)),
            scratch_shapes=[pltpu.VMEM((tile_h + 2, W + 2, Cmid_p), compute_dtype)],
        ),
        compiler_params=pltpu.CompilerParams(**cp_kwargs),
    )(xt, w1t, b1, w2t, b2)

    out = out[..., :Cout].reshape(N, H, W, Cout)        # drop lane padding, un-tile H
    return jnp.transpose(out, (0, 3, 1, 2))             # back to NCHW


def double_conv_reference(x_nchw, w1, g1, be1, m1, v1, w2, g2, be2, m2, v2, eps=1e-5):
    def conv(x, w):
        return lax.conv_general_dilated(
            x, w, window_strides=(1, 1), padding=((1, 1), (1, 1)),
            dimension_numbers=("NCHW", "OIHW", "NCHW"))

    def bn(x, g, b, m, v):
        g = g[None, :, None, None]
        b = b[None, :, None, None]
        m = m[None, :, None, None]
        v = v[None, :, None, None]
        return (x - m) / jnp.sqrt(v + eps) * g + b

    h = jax.nn.relu(bn(conv(x_nchw, w1), g1, be1, m1, v1))
    return jax.nn.relu(bn(conv(h, w2), g2, be2, m2, v2))


if __name__ == "__main__":
    N, Cin, Cmid, Cout, H, W = 2, 4, 8, 8, 16, 16

    key = jax.random.PRNGKey(0)
    ks = jax.random.split(key, 11)
    x = jax.random.normal(ks[0], (N, Cin, H, W), jnp.float32)

    # deterministic synthetic parameters (shapes match nn.Conv2d / nn.BatchNorm2d)
    w1 = 0.1 * jax.random.normal(ks[1], (Cmid, Cin, 3, 3), jnp.float32)
    g1 = jax.random.uniform(ks[2], (Cmid,), jnp.float32, 0.5, 1.5)
    be1 = 0.1 * jax.random.normal(ks[3], (Cmid,), jnp.float32)
    m1 = 0.1 * jax.random.normal(ks[4], (Cmid,), jnp.float32)
    v1 = jax.random.uniform(ks[5], (Cmid,), jnp.float32, 0.5, 1.5)

    w2 = 0.1 * jax.random.normal(ks[6], (Cout, Cmid, 3, 3), jnp.float32)
    g2 = jax.random.uniform(ks[7], (Cout,), jnp.float32, 0.5, 1.5)
    be2 = 0.1 * jax.random.normal(ks[8], (Cout,), jnp.float32)
    m2 = 0.1 * jax.random.normal(ks[9], (Cout,), jnp.float32)
    v2 = jax.random.uniform(ks[10], (Cout,), jnp.float32, 0.5, 1.5)

    ref = double_conv_reference(x, w1, g1, be1, m1, v1, w2, g2, be2, m2, v2)

    # f32 MXU path: tight check of the kernel algebra (BN fold, padding, tiling).
    out_f32 = jax.block_until_ready(
        double_conv(x, w1, g1, be1, m1, v1, w2, g2, be2, m2, v2,
                    compute_dtype=jnp.float32))
    assert out_f32.shape == (N, Cout, H, W), out_f32.shape
    assert jnp.allclose(out_f32, ref, atol=1e-4, rtol=1e-4), \
        float(jnp.max(jnp.abs(out_f32 - ref)))

    # bf16 MXU path (default; fast path on v6e/v7x): f32 accumulation, looser tolerance.
    out_bf16 = jax.block_until_ready(
        double_conv(x, w1, g1, be1, m1, v1, w2, g2, be2, m2, v2))
    assert out_bf16.shape == (N, Cout, H, W), out_bf16.shape
    assert jnp.allclose(out_bf16, ref, atol=1e-1, rtol=1e-1), \
        float(jnp.max(jnp.abs(out_bf16 - ref)))

    print("KERNEL_OK")
</pallas_src>

<mosaic_0001>
module attributes {stable_mosaic.version = 11 : i64} {
  func.func @double_conv_kernel(%arg0: i32, %arg1: i32, %arg2: memref<1x1x18x18x128xf32, #tpu.memory_space<vmem>>, %arg3: memref<9x128x128xf32, #tpu.memory_space<vmem>>, %arg4: memref<1x128xf32, #tpu.memory_space<vmem>>, %arg5: memref<9x128x128xf32, #tpu.memory_space<vmem>>, %arg6: memref<1x128xf32, #tpu.memory_space<vmem>>, %arg7: memref<1x1x16x16x128xf32, #tpu.memory_space<vmem>>, %arg8: memref<18x18x128xf32, #tpu.memory_space<vmem>>) attributes {dimension_semantics = [#tpu.dimension_semantics<parallel>, #tpu.dimension_semantics<parallel>], iteration_bounds = array<i64: 2, 1>, scalar_prefetch = 0 : i64, scratch_operands = 1 : i64, tpu.core_type = #tpu.core_type<tc>, window_params = [{transform_indices = @transform_0, window_bounds = array<i64: 1, 1, 18, 18, 128>}, {pipeline_mode = #tpu.pipeline_mode<synchronous>, transform_indices = @transform_1, window_bounds = array<i64: 9, 128, 128>}, {pipeline_mode = #tpu.pipeline_mode<synchronous>, transform_indices = @transform_2, window_bounds = array<i64: 1, 128>}, {pipeline_mode = #tpu.pipeline_mode<synchronous>, transform_indices = @transform_3, window_bounds = array<i64: 9, 128, 128>}, {pipeline_mode = #tpu.pipeline_mode<synchronous>, transform_indices = @transform_4, window_bounds = array<i64: 1, 128>}, {transform_indices = @transform_5, window_bounds = array<i64: 1, 1, 16, 16, 128>}]} {
    %cst = arith.constant 0.000000e+00 : f32
    %0 = vector.broadcast %cst : f32 to vector<256x128xf32>
    %c0 = arith.constant 0 : index
    %c0_0 = arith.constant 0 : index
    %c0_1 = arith.constant 0 : index
    %c0_2 = arith.constant 0 : index
    %c0_3 = arith.constant 0 : index
    %1 = vector.load %arg2[%c0, %c0_0, %c0_1, %c0_2, %c0_3] : memref<1x1x18x18x128xf32, #tpu.memory_space<vmem>>, vector<1x1x16x16x128xf32>
    %2 = vector.shape_cast %1 : vector<1x1x16x16x128xf32> to vector<16x16x128xf32>
    %3 = vector.shape_cast %2 : vector<16x16x128xf32> to vector<256x128xf32>
    %c0_4 = arith.constant 0 : index
    %c0_5 = arith.constant 0 : index
    %c0_6 = arith.constant 0 : index
    %4 = vector.load %arg3[%c0_4, %c0_5, %c0_6] : memref<9x128x128xf32, #tpu.memory_space<vmem>>, vector<1x128x128xf32>
    %5 = vector.shape_cast %4 : vector<1x128x128xf32> to vector<128x128xf32>
    %cst_7 = arith.constant dense<0.000000e+00> : vector<256x128xf32>
    %6 = tpu.matmul %3, %5, %cst_7 {dimension_numbers = #tpu.dot_dimension_numbers<[1], [0], [0], [1], [0, 0, 1, 1], [], []>} : vector<256x128xf32>, vector<128x128xf32>, vector<256x128xf32> -> vector<256x128xf32>
    %7 = arith.addf %0, %6 : vector<256x128xf32>
    %c0_8 = arith.constant 0 : index
    %c0_9 = arith.constant 0 : index
    %c0_10 = arith.constant 0 : index
    %c1 = arith.constant 1 : index
    %c0_11 = arith.constant 0 : index
    %8 = vector.load %arg2[%c0_8, %c0_9, %c0_10, %c1, %c0_11] : memref<1x1x18x18x128xf32, #tpu.memory_space<vmem>>, vector<1x1x16x16x128xf32>
    %9 = vector.shape_cast %8 : vector<1x1x16x16x128xf32> to vector<16x16x128xf32>
    %10 = vector.shape_cast %9 : vector<16x16x128xf32> to vector<256x128xf32>
    %c1_12 = arith.constant 1 : index
    %c0_13 = arith.constant 0 : index
    %c0_14 = arith.constant 0 : index
    %11 = vector.load %arg3[%c1_12, %c0_13, %c0_14] : memref<9x128x128xf32, #tpu.memory_space<vmem>>, vector<1x128x128xf32>
    %12 = vector.shape_cast %11 : vector<1x128x128xf32> to vector<128x128xf32>
    %cst_15 = arith.constant dense<0.000000e+00> : vector<256x128xf32>
    %13 = tpu.matmul %10, %12, %cst_15 {dimension_numbers = #tpu.dot_dimension_numbers<[1], [0], [0], [1], [0, 0, 1, 1], [], []>} : vector<256x128xf32>, vector<128x128xf32>, vector<256x128xf32> -> vector<256x128xf32>
    %14 = arith.addf %7, %13 : vector<256x128xf32>
    %c0_16 = arith.constant 0 : index
    %c0_17 = arith.constant 0 : index
    %c0_18 = arith.constant 0 : index
    %c2 = arith.constant 2 : index
    %c0_19 = arith.constant 0 : index
    %15 = vector.load %arg2[%c0_16, %c0_17, %c0_18, %c2, %c0_19] : memref<1x1x18x18x128xf32, #tpu.memory_space<vmem>>, vector<1x1x16x16x128xf32>
    %16 = vector.shape_cast %15 : vector<1x1x16x16x128xf32> to vector<16x16x128xf32>
    %17 = vector.shape_cast %16 : vector<16x16x128xf32> to vector<256x128xf32>
    %c2_20 = arith.constant 2 : index
    %c0_21 = arith.constant 0 : index
    %c0_22 = arith.constant 0 : index
    %18 = vector.load %arg3[%c2_20, %c0_21, %c0_22] : memref<9x128x128xf32, #tpu.memory_space<vmem>>, vector<1x128x128xf32>
    %19 = vector.shape_cast %18 : vector<1x128x128xf32> to vector<128x128xf32>
    %cst_23 = arith.constant dense<0.000000e+00> : vector<256x128xf32>
    %20 = tpu.matmul %17, %19, %cst_23 {dimension_numbers = #tpu.dot_dimension_numbers<[1], [0], [0], [1], [0, 0, 1, 1], [], []>} : vector<256x128xf32>, vector<128x128xf32>, vector<256x128xf32> -> vector<256x128xf32>
    %21 = arith.addf %14, %20 : vector<256x128xf32>
    %c0_24 = arith.constant 0 : index
    %c0_25 = arith.constant 0 : index
    %c1_26 = arith.constant 1 : index
    %c0_27 = arith.constant 0 : index
    %c0_28 = arith.constant 0 : index
    %22 = vector.load %arg2[%c0_24, %c0_25, %c1_26, %c0_27, %c0_28] : memref<1x1x18x18x128xf32, #tpu.memory_space<vmem>>, vector<1x1x16x16x128xf32>
    %23 = vector.shape_cast %22 : vector<1x1x16x16x128xf32> to vector<16x16x128xf32>
    %24 = vector.shape_cast %23 : vector<16x16x128xf32> to vector<256x128xf32>
    %c3 = arith.constant 3 : index
    %c0_29 = arith.constant 0 : index
    %c0_30 = arith.constant 0 : index
    %25 = vector.load %arg3[%c3, %c0_29, %c0_30] : memref<9x128x128xf32, #tpu.memory_space<vmem>>, vector<1x128x128xf32>
    %26 = vector.shape_cast %25 : vector<1x128x128xf32> to vector<128x128xf32>
    %cst_31 = arith.constant dense<0.000000e+00> : vector<256x128xf32>
    %27 = tpu.matmul %24, %26, %cst_31 {dimension_numbers = #tpu.dot_dimension_numbers<[1], [0], [0], [1], [0, 0, 1, 1], [], []>} : vector<256x128xf32>, vector<128x128xf32>, vector<256x128xf32> -> vector<256x128xf32>
    %28 = arith.addf %21, %27 : vector<256x128xf32>
    %c0_32 = arith.constant 0 : index
    %c0_33 = arith.constant 0 : index
    %c1_34 = arith.constant 1 : index
    %c1_35 = arith.constant 1 : index
    %c0_36 = arith.constant 0 : index
    %29 = vector.load %arg2[%c0_32, %c0_33, %c1_34, %c1_35, %c0_36] : memref<1x1x18x18x128xf32, #tpu.memory_space<vmem>>, vector<1x1x16x16x128xf32>
    %30 = vector.shape_cast %29 : vector<1x1x16x16x128xf32> to vector<16x16x128xf32>
    %31 = vector.shape_cast %30 : vector<16x16x128xf32> to vector<256x128xf32>
    %c4 = arith.constant 4 : index
    %c0_37 = arith.constant 0 : index
    %c0_38 = arith.constant 0 : index
    %32 = vector.load %arg3[%c4, %c0_37, %c0_38] : memref<9x128x128xf32, #tpu.memory_space<vmem>>, vector<1x128x128xf32>
    %33 = vector.shape_cast %32 : vector<1x128x128xf32> to vector<128x128xf32>
    %cst_39 = arith.constant dense<0.000000e+00> : vector<256x128xf32>
    %34 = tpu.matmul %31, %33, %cst_39 {dimension_numbers = #tpu.dot_dimension_numbers<[1], [0], [0], [1], [0, 0, 1, 1], [], []>} : vector<256x128xf32>, vector<128x128xf32>, vector<256x128xf32> -> vector<256x128xf32>
    %35 = arith.addf %28, %34 : vector<256x128xf32>
    %c0_40 = arith.constant 0 : index
    %c0_41 = arith.constant 0 : index
    %c1_42 = arith.constant 1 : index
    %c2_43 = arith.constant 2 : index
    %c0_44 = arith.constant 0 : index
    %36 = vector.load %arg2[%c0_40, %c0_41, %c1_42, %c2_43, %c0_44] : memref<1x1x18x18x128xf32, #tpu.memory_space<vmem>>, vector<1x1x16x16x128xf32>
    %37 = vector.shape_cast %36 : vector<1x1x16x16x128xf32> to vector<16x16x128xf32>
    %38 = vector.shape_cast %37 : vector<16x16x128xf32> to vector<256x128xf32>
    %c5 = arith.constant 5 : index
    %c0_45 = arith.constant 0 : index
    %c0_46 = arith.constant 0 : index
    %39 = vector.load %arg3[%c5, %c0_45, %c0_46] : memref<9x128x128xf32, #tpu.memory_space<vmem>>, vector<1x128x128xf32>
    %40 = vector.shape_cast %39 : vector<1x128x128xf32> to vector<128x128xf32>
    %cst_47 = arith.constant dense<0.000000e+00> : vector<256x128xf32>
    %41 = tpu.matmul %38, %40, %cst_47 {dimension_numbers = #tpu.dot_dimension_numbers<[1], [0], [0], [1], [0, 0, 1, 1], [], []>} : vector<256x128xf32>, vector<128x128xf32>, vector<256x128xf32> -> vector<256x128xf32>
    %42 = arith.addf %35, %41 : vector<256x128xf32>
    %c0_48 = arith.constant 0 : index
    %c0_49 = arith.constant 0 : index
    %c2_50 = arith.constant 2 : index
    %c0_51 = arith.constant 0 : index
    %c0_52 = arith.constant 0 : index
    %43 = vector.load %arg2[%c0_48, %c0_49, %c2_50, %c0_51, %c0_52] : memref<1x1x18x18x128xf32, #tpu.memory_space<vmem>>, vector<1x1x16x16x128xf32>
    %44 = vector.shape_cast %43 : vector<1x1x16x16x128xf32> to vector<16x16x128xf32>
    %45 = vector.shape_cast %44 : vector<16x16x128xf32> to vector<256x128xf32>
    %c6 = arith.constant 6 : index
    %c0_53 = arith.constant 0 : index
    %c0_54 = arith.constant 0 : index
    %46 = vector.load %arg3[%c6, %c0_53, %c0_54] : memref<9x128x128xf32, #tpu.memory_space<vmem>>, vector<1x128x128xf32>
    %47 = vector.shape_cast %46 : vector<1x128x128xf32> to vector<128x128xf32>
    %cst_55 = arith.constant dense<0.000000e+00> : vector<256x128xf32>
    %48 = tpu.matmul %45, %47, %cst_55 {dimension_numbers = #tpu.dot_dimension_numbers<[1], [0], [0], [1], [0, 0, 1, 1], [], []>} : vector<256x128xf32>, vector<128x128xf32>, vector<256x128xf32> -> vector<256x128xf32>
    %49 = arith.addf %42, %48 : vector<256x128xf32>
    %c0_56 = arith.constant 0 : index
    %c0_57 = arith.constant 0 : index
    %c2_58 = arith.constant 2 : index
    %c1_59 = arith.constant 1 : index
    %c0_60 = arith.constant 0 : index
    %50 = vector.load %arg2[%c0_56, %c0_57, %c2_58, %c1_59, %c0_60] : memref<1x1x18x18x128xf32, #tpu.memory_space<vmem>>, vector<1x1x16x16x128xf32>
    %51 = vector.shape_cast %50 : vector<1x1x16x16x128xf32> to vector<16x16x128xf32>
    %52 = vector.shape_cast %51 : vector<16x16x128xf32> to vector<256x128xf32>
    %c7 = arith.constant 7 : index
    %c0_61 = arith.constant 0 : index
    %c0_62 = arith.constant 0 : index
    %53 = vector.load %arg3[%c7, %c0_61, %c0_62] : memref<9x128x128xf32, #tpu.memory_space<vmem>>, vector<1x128x128xf32>
    %54 = vector.shape_cast %53 : vector<1x128x128xf32> to vector<128x128xf32>
    %cst_63 = arith.constant dense<0.000000e+00> : vector<256x128xf32>
    %55 = tpu.matmul %52, %54, %cst_63 {dimension_numbers = #tpu.dot_dimension_numbers<[1], [0], [0], [1], [0, 0, 1, 1], [], []>} : vector<256x128xf32>, vector<128x128xf32>, vector<256x128xf32> -> vector<256x128xf32>
    %56 = arith.addf %49, %55 : vector<256x128xf32>
    %c0_64 = arith.constant 0 : index
    %c0_65 = arith.constant 0 : index
    %c2_66 = arith.constant 2 : index
    %c2_67 = arith.constant 2 : index
    %c0_68 = arith.constant 0 : index
    %57 = vector.load %arg2[%c0_64, %c0_65, %c2_66, %c2_67, %c0_68] : memref<1x1x18x18x128xf32, #tpu.memory_space<vmem>>, vector<1x1x16x16x128xf32>
    %58 = vector.shape_cast %57 : vector<1x1x16x16x128xf32> to vector<16x16x128xf32>
    %59 = vector.shape_cast %58 : vector<16x16x128xf32> to vector<256x128xf32>
    %c8 = arith.constant 8 : index
    %c0_69 = arith.constant 0 : index
    %c0_70 = arith.constant 0 : index
    %60 = vector.load %arg3[%c8, %c0_69, %c0_70] : memref<9x128x128xf32, #tpu.memory_space<vmem>>, vector<1x128x128xf32>
    %61 = vector.shape_cast %60 : vector<1x128x128xf32> to vector<128x128xf32>
    %cst_71 = arith.constant dense<0.000000e+00> : vector<256x128xf32>
    %62 = tpu.matmul %59, %61, %cst_71 {dimension_numbers = #tpu.dot_dimension_numbers<[1], [0], [0], [1], [0, 0, 1, 1], [], []>} : vector<256x128xf32>, vector<128x128xf32>, vector<256x128xf32> -> vector<256x128xf32>
    %63 = arith.addf %56, %62 : vector<256x128xf32>
    %c0_72 = arith.constant 0 : index
    %c0_73 = arith.constant 0 : index
    %64 = vector.load %arg4[%c0_72, %c0_73] : memref<1x128xf32, #tpu.memory_space<vmem>>, vector<1x128xf32>
    %65 = vector.broadcast %64 : vector<1x128xf32> to vector<256x128xf32>
    %66 = arith.addf %63, %65 : vector<256x128xf32>
    %cst_74 = arith.constant 0.000000e+00 : f32
    %67 = vector.broadcast %cst_74 : f32 to vector<256x128xf32>
    %68 = arith.maximumf %66, %67 : vector<256x128xf32>
    %cst_75 = arith.constant 0.000000e+00 : f32
    %69 = vector.broadcast %cst_75 : f32 to vector<18x18x128xf32>
    %c0_76 = arith.constant 0 : index
    %c0_77 = arith.constant 0 : index
    %c0_78 = arith.constant 0 : index
    %70 = vector.load %arg8[%c0_76, %c0_77, %c0_78] : memref<18x18x128xf32, #tpu.memory_space<vmem>>, vector<18x18x128xf32>
    tpu.vector_store %arg8[%c0_76, %c0_77, %c0_78], %69 {strides = array<i32>} : memref<18x18x128xf32, #tpu.memory_space<vmem>>, vector<18x18x128xf32>,
    %71 = vector.shape_cast %68 : vector<256x128xf32> to vector<16x16x128xf32>
    %c1_79 = arith.constant 1 : index
    %c1_80 = arith.constant 1 : index
    %c0_81 = arith.constant 0 : index
    %72 = vector.load %arg8[%c1_79, %c1_80, %c0_81] : memref<18x18x128xf32, #tpu.memory_space<vmem>>, vector<16x16x128xf32>
    tpu.vector_store %arg8[%c1_79, %c1_80, %c0_81], %71 {strides = array<i32>} : memref<18x18x128xf32, #tpu.memory_space<vmem>>, vector<16x16x128xf32>,
    %cst_82 = arith.constant 0.000000e+00 : f32
    %73 = vector.broadcast %cst_82 : f32 to vector<256x128xf32>
    %c0_83 = arith.constant 0 : index
    %c0_84 = arith.constant 0 : index
    %c0_85 = arith.constant 0 : index
    %74 = vector.load %arg8[%c0_83, %c0_84, %c0_85] : memref<18x18x128xf32, #tpu.memory_space<vmem>>, vector<16x16x128xf32>
    %75 = vector.shape_cast %74 : vector<16x16x128xf32> to vector<256x128xf32>
    %c0_86 = arith.constant 0 : index
    %c0_87 = arith.constant 0 : index
    %c0_88 = arith.constant 0 : index
    %76 = vector.load %arg5[%c0_86, %c0_87, %c0_88] : memref<9x128x128xf32, #tpu.memory_space<vmem>>, vector<1x128x128xf32>
    %77 = vector.shape_cast %76 : vector<1x128x128xf32> to vector<128x128xf32>
    %cst_89 = arith.constant dense<0.000000e+00> : vector<256x128xf32>
    %78 = tpu.matmul %75, %77, %cst_89 {dimension_numbers = #tpu.dot_dimension_numbers<[1], [0], [0], [1], [0, 0, 1, 1], [], []>} : vector<256x128xf32>, vector<128x128xf32>, vector<256x128xf32> -> vector<256x128xf32>
    %79 = arith.addf %73, %78 : vector<256x128xf32>
    %c0_90 = arith.constant 0 : index
    %c1_91 = arith.constant 1 : index
    %c0_92 = arith.constant 0 : index
    %80 = vector.load %arg8[%c0_90, %c1_91, %c0_92] : memref<18x18x128xf32, #tpu.memory_space<vmem>>, vector<16x16x128xf32>
    %81 = vector.shape_cast %80 : vector<16x16x128xf32> to vector<256x128xf32>
    %c1_93 = arith.constant 1 : index
    %c0_94 = arith.constant 0 : index
    %c0_95 = arith.constant 0 : index
    %82 = vector.load %arg5[%c1_93, %c0_94, %c0_95] : memref<9x128x128xf32, #tpu.memory_space<vmem>>, vector<1x128x128xf32>
    %83 = vector.shape_cast %82 : vector<1x128x128xf32> to vector<128x128xf32>
    %cst_96 = arith.constant dense<0.000000e+00> : vector<256x128xf32>
    %84 = tpu.matmul %81, %83, %cst_96 {dimension_numbers = #tpu.dot_dimension_numbers<[1], [0], [0], [1], [0, 0, 1, 1], [], []>} : vector<256x128xf32>, vector<128x128xf32>, vector<256x128xf32> -> vector<256x128xf32>
    %85 = arith.addf %79, %84 : vector<256x128xf32>
    %c0_97 = arith.constant 0 : index
    %c2_98 = arith.constant 2 : index
    %c0_99 = arith.constant 0 : index
    %86 = vector.load %arg8[%c0_97, %c2_98, %c0_99] : memref<18x18x128xf32, #tpu.memory_space<vmem>>, vector<16x16x128xf32>
    %87 = vector.shape_cast %86 : vector<16x16x128xf32> to vector<256x128xf32>
    %c2_100 = arith.constant 2 : index
    %c0_101 = arith.constant 0 : index
    %c0_102 = arith.constant 0 : index
    %88 = vector.load %arg5[%c2_100, %c0_101, %c0_102] : memref<9x128x128xf32, #tpu.memory_space<vmem>>, vector<1x128x128xf32>
    %89 = vector.shape_cast %88 : vector<1x128x128xf32> to vector<128x128xf32>
    %cst_103 = arith.constant dense<0.000000e+00> : vector<256x128xf32>
    %90 = tpu.matmul %87, %89, %cst_103 {dimension_numbers = #tpu.dot_dimension_numbers<[1], [0], [0], [1], [0, 0, 1, 1], [], []>} : vector<256x128xf32>, vector<128x128xf32>, vector<256x128xf32> -> vector<256x128xf32>
    %91 = arith.addf %85, %90 : vector<256x128xf32>
    %c1_104 = arith.constant 1 : index
    %c0_105 = arith.constant 0 : index
    %c0_106 = arith.constant 0 : index
    %92 = vector.load %arg8[%c1_104, %c0_105, %c0_106] : memref<18x18x128xf32, #tpu.memory_space<vmem>>, vector<16x16x128xf32>
    %93 = vector.shape_cast %92 : vector<16x16x128xf32> to vector<256x128xf32>
    %c3_107 = arith.constant 3 : index
    %c0_108 = arith.constant 0 : index
    %c0_109 = arith.constant 0 : index
    %94 = vector.load %arg5[%c3_107, %c0_108, %c0_109] : memref<9x128x128xf32, #tpu.memory_space<vmem>>, vector<1x128x128xf32>
    %95 = vector.shape_cast %94 : vector<1x128x128xf32> to vector<128x128xf32>
    %cst_110 = arith.constant dense<0.000000e+00> : vector<256x128xf32>
    %96 = tpu.matmul %93, %95, %cst_110 {dimension_numbers = #tpu.dot_dimension_numbers<[1], [0], [0], [1], [0, 0, 1, 1], [], []>} : vector<256x128xf32>, vector<128x128xf32>, vector<256x128xf32> -> vector<256x128xf32>
    %97 = arith.addf %91, %96 : vector<256x128xf32>
    %c1_111 = arith.constant 1 : index
    %c1_112 = arith.constant 1 : index
    %c0_113 = arith.constant 0 : index
    %98 = vector.load %arg8[%c1_111, %c1_112, %c0_113] : memref<18x18x128xf32, #tpu.memory_space<vmem>>, vector<16x16x128xf32>
    %99 = vector.shape_cast %98 : vector<16x16x128xf32> to vector<256x128xf32>
    %c4_114 = arith.constant 4 : index
    %c0_115 = arith.constant 0 : index
    %c0_116 = arith.constant 0 : index
    %100 = vector.load %arg5[%c4_114, %c0_115, %c0_116] : memref<9x128x128xf32, #tpu.memory_space<vmem>>, vector<1x128x128xf32>
    %101 = vector.shape_cast %100 : vector<1x128x128xf32> to vector<128x128xf32>
    %cst_117 = arith.constant dense<0.000000e+00> : vector<256x128xf32>
    %102 = tpu.matmul %99, %101, %cst_117 {dimension_numbers = #tpu.dot_dimension_numbers<[1], [0], [0], [1], [0, 0, 1, 1], [], []>} : vector<256x128xf32>, vector<128x128xf32>, vector<256x128xf32> -> vector<256x128xf32>
    %103 = arith.addf %97, %102 : vector<256x128xf32>
    %c1_118 = arith.constant 1 : index
    %c2_119 = arith.constant 2 : index
    %c0_120 = arith.constant 0 : index
    %104 = vector.load %arg8[%c1_118, %c2_119, %c0_120] : memref<18x18x128xf32, #tpu.memory_space<vmem>>, vector<16x16x128xf32>
    %105 = vector.shape_cast %104 : vector<16x16x128xf32> to vector<256x128xf32>
    %c5_121 = arith.constant 5 : index
    %c0_122 = arith.constant 0 : index
    %c0_123 = arith.constant 0 : index
    %106 = vector.load %arg5[%c5_121, %c0_122, %c0_123] : memref<9x128x128xf32, #tpu.memory_space<vmem>>, vector<1x128x128xf32>
    %107 = vector.shape_cast %106 : vector<1x128x128xf32> to vector<128x128xf32>
    %cst_124 = arith.constant dense<0.000000e+00> : vector<256x128xf32>
    %108 = tpu.matmul %105, %107, %cst_124 {dimension_numbers = #tpu.dot_dimension_numbers<[1], [0], [0], [1], [0, 0, 1, 1], [], []>} : vector<256x128xf32>, vector<128x128xf32>, vector<256x128xf32> -> vector<256x128xf32>
    %109 = arith.addf %103, %108 : vector<256x128xf32>
    %c2_125 = arith.constant 2 : index
    %c0_126 = arith.constant 0 : index
    %c0_127 = arith.constant 0 : index
    %110 = vector.load %arg8[%c2_125, %c0_126, %c0_127] : memref<18x18x128xf32, #tpu.memory_space<vmem>>, vector<16x16x128xf32>
    %111 = vector.shape_cast %110 : vector<16x16x128xf32> to vector<256x128xf32>
    %c6_128 = arith.constant 6 : index
    %c0_129 = arith.constant 0 : index
    %c0_130 = arith.constant 0 : index
    %112 = vector.load %arg5[%c6_128, %c0_129, %c0_130] : memref<9x128x128xf32, #tpu.memory_space<vmem>>, vector<1x128x128xf32>
    %113 = vector.shape_cast %112 : vector<1x128x128xf32> to vector<128x128xf32>
    %cst_131 = arith.constant dense<0.000000e+00> : vector<256x128xf32>
    %114 = tpu.matmul %111, %113, %cst_131 {dimension_numbers = #tpu.dot_dimension_numbers<[1], [0], [0], [1], [0, 0, 1, 1], [], []>} : vector<256x128xf32>, vector<128x128xf32>, vector<256x128xf32> -> vector<256x128xf32>
    %115 = arith.addf %109, %114 : vector<256x128xf32>
    %c2_132 = arith.constant 2 : index
    %c1_133 = arith.constant 1 : index
    %c0_134 = arith.constant 0 : index
    %116 = vector.load %arg8[%c2_132, %c1_133, %c0_134] : memref<18x18x128xf32, #tpu.memory_space<vmem>>, vector<16x16x128xf32>
    %117 = vector.shape_cast %116 : vector<16x16x128xf32> to vector<256x128xf32>
    %c7_135 = arith.constant 7 : index
    %c0_136 = arith.constant 0 : index
    %c0_137 = arith.constant 0 : index
    %118 = vector.load %arg5[%c7_135, %c0_136, %c0_137] : memref<9x128x128xf32, #tpu.memory_space<vmem>>, vector<1x128x128xf32>
    %119 = vector.shape_cast %118 : vector<1x128x128xf32> to vector<128x128xf32>
    %cst_138 = arith.constant dense<0.000000e+00> : vector<256x128xf32>
    %120 = tpu.matmul %117, %119, %cst_138 {dimension_numbers = #tpu.dot_dimension_numbers<[1], [0], [0], [1], [0, 0, 1, 1], [], []>} : vector<256x128xf32>, vector<128x128xf32>, vector<256x128xf32> -> vector<256x128xf32>
    %121 = arith.addf %115, %120 : vector<256x128xf32>
    %c2_139 = arith.constant 2 : index
    %c2_140 = arith.constant 2 : index
    %c0_141 = arith.constant 0 : index
    %122 = vector.load %arg8[%c2_139, %c2_140, %c0_141] : memref<18x18x128xf32, #tpu.memory_space<vmem>>, vector<16x16x128xf32>
    %123 = vector.shape_cast %122 : vector<16x16x128xf32> to vector<256x128xf32>
    %c8_142 = arith.constant 8 : index
    %c0_143 = arith.constant 0 : index
    %c0_144 = arith.constant 0 : index
    %124 = vector.load %arg5[%c8_142, %c0_143, %c0_144] : memref<9x128x128xf32, #tpu.memory_space<vmem>>, vector<1x128x128xf32>
    %125 = vector.shape_cast %124 : vector<1x128x128xf32> to vector<128x128xf32>
    %cst_145 = arith.constant dense<0.000000e+00> : vector<256x128xf32>
    %126 = tpu.matmul %123, %125, %cst_145 {dimension_numbers = #tpu.dot_dimension_numbers<[1], [0], [0], [1], [0, 0, 1, 1], [], []>} : vector<256x128xf32>, vector<128x128xf32>, vector<256x128xf32> -> vector<256x128xf32>
    %127 = arith.addf %121, %126 : vector<256x128xf32>
    %c0_146 = arith.constant 0 : index
    %c0_147 = arith.constant 0 : index
    %128 = vector.load %arg6[%c0_146, %c0_147] : memref<1x128xf32, #tpu.memory_space<vmem>>, vector<1x128xf32>
    %129 = vector.broadcast %128 : vector<1x128xf32> to vector<256x128xf32>
    %130 = arith.addf %127, %129 : vector<256x128xf32>
    %cst_148 = arith.constant 0.000000e+00 : f32
    %131 = vector.broadcast %cst_148 : f32 to vector<256x128xf32>
    %132 = arith.maximumf %130, %131 : vector<256x128xf32>
    %133 = vector.shape_cast %132 : vector<256x128xf32> to vector<16x16x128xf32>
    %c0_149 = arith.constant 0 : index
    %c0_150 = arith.constant 0 : index
    %c0_151 = arith.constant 0 : index
    %c0_152 = arith.constant 0 : index
    %c0_153 = arith.constant 0 : index
    %134 = vector.load %arg7[%c0_149, %c0_150, %c0_151, %c0_152, %c0_153] : memref<1x1x16x16x128xf32, #tpu.memory_space<vmem>>, vector<1x1x16x16x128xf32>
    %135 = vector.shape_cast %134 : vector<1x1x16x16x128xf32> to vector<16x16x128xf32>
    %136 = vector.shape_cast %133 : vector<16x16x128xf32> to vector<1x1x16x16x128xf32>
    tpu.vector_store %arg7[%c0_149, %c0_150, %c0_151, %c0_152, %c0_153], %136 {strides = array<i32>} : memref<1x1x16x16x128xf32, #tpu.memory_space<vmem>>, vector<1x1x16x16x128xf32>,
    return
  }
  func.func @transform_0(%arg0: i32, %arg1: i32) -> (i32, i32, i32, i32, i32) {
    %c0_i32 = arith.constant 0 : i32
    %c0_i32_0 = arith.constant 0 : i32
    %c0_i32_1 = arith.constant 0 : i32
    %c0_i32_2 = arith.constant 0 : i32
    return %arg0, %arg1, %c0_i32, %c0_i32_0, %c0_i32_1 : i32, i32, i32, i32, i32
  }
  func.func @transform_1(%arg0: i32, %arg1: i32) -> (i32, i32, i32) {
    %c0_i32 = arith.constant 0 : i32
    %c0_i32_0 = arith.constant 0 : i32
    %c0_i32_1 = arith.constant 0 : i32
    %c0_i32_2 = arith.constant 0 : i32
    return %c0_i32, %c0_i32_0, %c0_i32_1 : i32, i32, i32
  }
  func.func @transform_2(%arg0: i32, %arg1: i32) -> (i32, i32) {
    %c0_i32 = arith.constant 0 : i32
    %c0_i32_0 = arith.constant 0 : i32
    %c0_i32_1 = arith.constant 0 : i32
    return %c0_i32, %c0_i32_0 : i32, i32
  }
  func.func @transform_3(%arg0: i32, %arg1: i32) -> (i32, i32, i32) {
    %c0_i32 = arith.constant 0 : i32
    %c0_i32_0 = arith.constant 0 : i32
    %c0_i32_1 = arith.constant 0 : i32
    %c0_i32_2 = arith.constant 0 : i32
    return %c0_i32, %c0_i32_0, %c0_i32_1 : i32, i32, i32
  }
  func.func @transform_4(%arg0: i32, %arg1: i32) -> (i32, i32) {
    %c0_i32 = arith.constant 0 : i32
    %c0_i32_0 = arith.constant 0 : i32
    %c0_i32_1 = arith.constant 0 : i32
    return %c0_i32, %c0_i32_0 : i32, i32
  }
  func.func @transform_5(%arg0: i32, %arg1: i32) -> (i32, i32, i32, i32, i32) {
    %c0_i32 = arith.constant 0 : i32
    %c0_i32_0 = arith.constant 0 : i32
    %c0_i32_1 = arith.constant 0 : i32
    %c0_i32_2 = arith.constant 0 : i32
    return %arg0, %arg1, %c0_i32, %c0_i32_0, %c0_i32_1 : i32, i32, i32, i32, i32
  }
}

</mosaic_0001>

<llo_original>
// kernel: tpu_custom_call.1
$region0: #{tpu_custom_call.1}
  #allocation0 [shape = 'u32[]', space=smem, size = 0x4, offset = 0x4, fixed_abs, tag = 'smem constant byte address 0x4 - core index']
  #allocation1 [shape = 'u32[144,128]{1,0:T(1,128)}', space=vmem, size = 0x12000, scoped, tag = 'internal scratch']
  #allocation2 [shape = 'f32[18,18,128]{2,1,0:T(8,128)}', space=vmem, size = 0x36000, scoped, tag = 'scratch operand']
  %s0 = inlined_call_operand.vmem [shape: f32[2,1,18,18,128], index: 0, kind: input, shape index: {}]
  %s1 = inlined_call_operand.vmem [shape: f32[9,128,128], index: 1, kind: input, shape index: {}]
  %s2 = inlined_call_operand.vmem [shape: f32[1,128], index: 2, kind: input, shape index: {}]
  %s3 = inlined_call_operand.hbm [shape: f32[9,128,128], index: 3, kind: input, shape index: {}]
  %s4 = inlined_call_operand.vmem [shape: f32[1,128], index: 4, kind: input, shape index: {}]
  %s5 = inlined_call_operand.hbm [shape: f32[2,1,16,16,128], index: 5, kind: output, shape index: {}]
  %s6 = sld [smem:[#allocation0]]
  $region57: #{tpu_custom_call.1} parent=0
    _
  %s8 = ssub.s32 1, %s6
  %s9 = scalar_select 0, %s8, %s6
  $region1: #{tpu_custom_call.1} parent=0
    #allocation3 [shape = 'u8[589824]{0}', space=vmem, size = 0x90000, scoped, tag = 'input window, operand 3, single buffered']
    #allocation4 [shape = 's32[2]{0}', space=sflag, size = 0x8, scoped, tag = 'scoped memory for tpu_custom_call.1']
    #allocation5 [shape = 's32[2]{0}', space=sflag, size = 0x8, scoped, tag = 'scoped memory for tpu_custom_call.1']
    #allocation6 [shape = 'u8[262144]{0}', space=vmem, size = 0x40000, scoped, tag = 'output window, operand 0']
    %10 = vsyncpa [#allocation4], 0
    %11 = vsyncpa [#allocation5], 0
    %s12 = scalar_lea.sflag [#allocation5], 1
    %13 = vsyncpa %s12, 0
    loop: start=0, step=1, limit=4
    $region2: #{tpu_custom_call.1} parent=1 // loop_pre_header
      _
    $region3: #{tpu_custom_call.1} parent=1 // loop_header
      %s15 = sphi 0, %s19
      %p16 = scmp.ge.s32.totalorder %s15, 4
      %s22 = sphi 0, %s34
      %s23 = sphi 0, %s30
      %s24 = sphi 0, %s22
      %s25 = sphi 0, %s23
      %s26 = sphi 0, %s24
      %s27 = sphi 0, %s25
      %s39 = sphi 0, %s41
      %s42 = sphi 0, %s39
      %s43 = sphi 0, %s42
      %s59 = sphi 0, %s43
      %s63 = sphi 0, %s63
      %s65 = sphi 0, %s63
      %s66 = sphi 0, %s65
      %s80 = sphi 0, %s66
      %s84 = sphi 0, %s84
      %s86 = sphi 0, %s84
      %s87 = sphi 0, %s86
      %s101 = sphi 0, %s87
      %s105 = sphi 0, %s105
      %s107 = sphi 0, %s105
      %s108 = sphi 0, %s107
      %s122 = sphi 0, %s108
      %s126 = sphi 0, %s126
      %s128 = sphi 0, %s126
      %s129 = sphi 0, %s128
      %s143 = sphi 0, %s129
      %s151 = sphi 0, %s153
      %s154 = sphi 0, %s151
      %s155 = sphi 0, %s154
      %s171 = sphi 0, %s155
    $region4: #{tpu_custom_call.1} parent=1 // loop_header_branch
      %18 = sbr.rel (%p16) target = $region8
    $region5: #{tpu_custom_call.1} parent=1 // loop_body
      %s20 = ssub.s32 %s15, 1
      %s21 = ssub.s32 %s15, 2
      %s28 = sadd.s32 1, %s23
      %p29 = scmp.ge.s32.totalorder %s28, 1
      %s30 = scalar_select %p29, 0, %s28
      %s31 = sadd.s32 1, %s22
      %s32 = scalar_select %p29, %s31, %s22
      %p33 = scmp.ge.s32.totalorder %s32, 2
      %s34 = scalar_select %p33, 0, %s32
      %s35 = ssub.s32 %s22, %s34
      %s36 = ssub.s32 %s23, %s30
      %s37 = sor.u32 %s35, %s36
      %p38 = scmp.eq.s32.totalorder %s37, 0
      %s40 = sadd.s32 %s39, 1
      %s41 = scalar_select %p38, %s39, %s40
      %p44 = pneg %p38
      %p45 = scmp.eq.s32.totalorder %s15, 1
      %p46 = por %p44, %p45
      %p47 = scmp.ne.s32.totalorder %s39, %s42
      %p48 = scmp.eq.s32.totalorder %s15, 0
      %p49 = por %p47, %p48
      %p50 = scmp.ne.s32.totalorder %s39, %s42
      %p51 = scmp.eq.s32.totalorder %s20, 1
      %p52 = por %p50, %p51
      %p53 = scmp.ne.s32.totalorder %s42, %s43
      %p54 = scmp.eq.s32.totalorder %s20, 0
      %p55 = por %p53, %p54
      %p56 = scmp.ne.s32.totalorder %s42, %s43
      %p57 = scmp.eq.s32.totalorder %s21, 1
      %p58 = por %p56, %p57
      %p60 = scmp.ne.s32.totalorder %s43, %s59
      %p61 = scmp.eq.s32.totalorder %s21, 0
      %p62 = por %p60, %p61
      %s64 = sadd.s32 %s63, 1
      %p67 = scmp.eq.s32.totalorder %s15, 1
      %p68 = scmp.ne.s32.totalorder %s63, %s65
      %p69 = scmp.eq.s32.totalorder %s15, 0
      %p70 = por %p68, %p69
      %p71 = scmp.ne.s32.totalorder %s63, %s65
      %p72 = scmp.eq.s32.totalorder %s20, 1
      %p73 = por %p71, %p72
      %p74 = scmp.ne.s32.totalorder %s65, %s66
      %p75 = scmp.eq.s32.totalorder %s20, 0
      %p76 = por %p74, %p75
      %p77 = scmp.ne.s32.totalorder %s65, %s66
      %p78 = scmp.eq.s32.totalorder %s21, 1
      %p79 = por %p77, %p78
      %p81 = scmp.ne.s32.totalorder %s66, %s80
      %p82 = scmp.eq.s32.totalorder %s21, 0
      %p83 = por %p81, %p82
      %s85 = sadd.s32 %s84, 1
      %p88 = scmp.eq.s32.totalorder %s15, 1
      %p89 = scmp.ne.s32.totalorder %s84, %s86
      %p90 = scmp.eq.s32.totalorder %s15, 0
      %p91 = por %p89, %p90
      %p92 = scmp.ne.s32.totalorder %s84, %s86
      %p93 = scmp.eq.s32.totalorder %s20, 1
      %p94 = por %p92, %p93
      %p95 = scmp.ne.s32.totalorder %s86, %s87
      %p96 = scmp.eq.s32.totalorder %s20, 0
      %p97 = por %p95, %p96
      %p98 = scmp.ne.s32.totalorder %s86, %s87
      %p99 = scmp.eq.s32.totalorder %s21, 1
      %p100 = por %p98, %p99
      %p102 = scmp.ne.s32.totalorder %s87, %s101
      %p103 = scmp.eq.s32.totalorder %s21, 0
      %p104 = por %p102, %p103
      %s106 = sadd.s32 %s105, 1
      %p109 = scmp.eq.s32.totalorder %s15, 1
      %p110 = scmp.ne.s32.totalorder %s105, %s107
      %p111 = scmp.eq.s32.totalorder %s15, 0
      %p112 = por %p110, %p111
      %p113 = scmp.ne.s32.totalorder %s105, %s107
      %p114 = scmp.eq.s32.totalorder %s20, 1
      %p115 = por %p113, %p114
      %p116 = scmp.ne.s32.totalorder %s107, %s108
      %p117 = scmp.eq.s32.totalorder %s20, 0
      %p118 = por %p116, %p117
      %p119 = scmp.ne.s32.totalorder %s107, %s108
      %p120 = scmp.eq.s32.totalorder %s21, 1
      %p121 = por %p119, %p120
      %p123 = scmp.ne.s32.totalorder %s108, %s122
      %p124 = scmp.eq.s32.totalorder %s21, 0
      %p125 = por %p123, %p124
      %s127 = sadd.s32 %s126, 1
      %p130 = scmp.eq.s32.totalorder %s15, 1
      %p131 = scmp.ne.s32.totalorder %s126, %s128
      %p132 = scmp.eq.s32.totalorder %s15, 0
      %p133 = por %p131, %p132
      %p134 = scmp.ne.s32.totalorder %s126, %s128
      %p135 = scmp.eq.s32.totalorder %s20, 1
      %p136 = por %p134, %p135
      %p137 = scmp.ne.s32.totalorder %s128, %s129
      %p138 = scmp.eq.s32.totalorder %s20, 0
      %p139 = por %p137, %p138
      %p140 = scmp.ne.s32.totalorder %s128, %s129
      %p141 = scmp.eq.s32.totalorder %s21, 1
      %p142 = por %p140, %p141
      %p144 = scmp.ne.s32.totalorder %s129, %s143
      %p145 = scmp.eq.s32.totalorder %s21, 0
      %p146 = por %p144, %p145
      %s147 = ssub.s32 %s22, %s34
      %s148 = ssub.s32 %s23, %s30
      %s149 = sor.u32 %s147, %s148
      %p150 = scmp.eq.s32.totalorder %s149, 0
      %s152 = sadd.s32 %s151, 1
      %s153 = scalar_select %p150, %s151, %s152
      %p156 = pneg %p150
      %p157 = scmp.eq.s32.totalorder %s15, 1
      %p158 = por %p156, %p157
      %p159 = scmp.ne.s32.totalorder %s151, %s154
      %p160 = scmp.eq.s32.totalorder %s15, 0
      %p161 = por %p159, %p160
      %p162 = scmp.ne.s32.totalorder %s151, %s154
      %p163 = scmp.eq.s32.totalorder %s20, 1
      %p164 = por %p162, %p163
      %p165 = scmp.ne.s32.totalorder %s154, %s155
      %p166 = scmp.eq.s32.totalorder %s20, 0
      %p167 = por %p165, %p166
      %p168 = scmp.ne.s32.totalorder %s154, %s155
      %p169 = scmp.eq.s32.totalorder %s21, 1
      %p170 = por %p168, %p169
      %p172 = scmp.ne.s32.totalorder %s155, %s171
      %p173 = scmp.eq.s32.totalorder %s21, 0
      %p174 = por %p172, %p173
      %p175 = scmp.le.s32.totalorder 1, %s15
      %p176 = scmp.lt.s32.totalorder %s15, 3
      %p177 = pnand %p175, %p176
      %p178 = pneg %p177
      // Predicated region
      $region9: #{tpu_custom_call.1} parent=5 // pred_check
        _
      $region10: #{tpu_custom_call.1} parent=5 // pred_check_branch
        %180 = sbr.rel (%p177) target = $region12
      $region11: #{tpu_custom_call.1} parent=5 // pred_region
        %s181 = ssub.s32 %s15, 1
        // Predicated region
        $region13: #{tpu_custom_call.1} parent=11 // pred_check
          %p182 = pneg %p76
        $region14: #{tpu_custom_call.1} parent=11 // pred_check_branch
          %184 = sbr.rel (%p182) target = $region16
        $region15: #{tpu_custom_call.1} parent=11 // pred_region
          _
        $region16: #{tpu_custom_call.1} parent=11 // pred_fallthru
          _
        // Predicated region
        $region17: #{tpu_custom_call.1} parent=11 // pred_check
          %p185 = pneg %p97
        $region18: #{tpu_custom_call.1} parent=11 // pred_check_branch
          %187 = sbr.rel (%p185) target = $region20
        $region19: #{tpu_custom_call.1} parent=11 // pred_region
          _
        $region20: #{tpu_custom_call.1} parent=11 // pred_fallthru
          _
        // Predicated region
        $region21: #{tpu_custom_call.1} parent=11 // pred_check
          %p188 = pneg %p118
        $region22: #{tpu_custom_call.1} parent=11 // pred_check_branch
          %190 = sbr.rel (%p188) target = $region24
        $region23: #{tpu_custom_call.1} parent=11 // pred_region
          %s192 = ssub.s32 18432, 18432
          %193 = vsyncadd [#allocation4], %s192
          %s194 = sshll.u32 [#allocation3], 4
          %s195 = int_to_ptr.vmem [resolvable:$true] %s194
          %200 = dma.hbm_to_vmem [thread:$0]  %s3, 18432, %s195, [#allocation4], 128, 128, 8
        $region24: #{tpu_custom_call.1} parent=11 // pred_fallthru
          _
        // Predicated region
        $region25: #{tpu_custom_call.1} parent=11 // pred_check
          %p201 = pneg %p139
        $region26: #{tpu_custom_call.1} parent=11 // pred_check_branch
          %203 = sbr.rel (%p201) target = $region28
        $region27: #{tpu_custom_call.1} parent=11 // pred_region
          _
        $region28: #{tpu_custom_call.1} parent=11 // pred_fallthru
          _
      $region12: #{tpu_custom_call.1} parent=5 // pred_fallthru
        _
      %p204 = scmp.lt.s32.totalorder %s15, 2
      // Predicated region
      $region29: #{tpu_custom_call.1} parent=5 // pred_check
        %p205 = pneg %p204
      $region30: #{tpu_custom_call.1} parent=5 // pred_check_branch
        %207 = sbr.rel (%p205) target = $region32
      $region31: #{tpu_custom_call.1} parent=5 // pred_region
        // Predicated region
        $region33: #{tpu_custom_call.1} parent=31 // pred_check
          %p208 = pneg %p49
        $region34: #{tpu_custom_call.1} parent=31 // pred_check_branch
          %210 = sbr.rel (%p208) target = $region36
        $region35: #{tpu_custom_call.1} parent=31 // pred_region
          %p211 = scmp.lt.s32.totalorder %s22, 1
          %s212 = scalar_select %p211, %s22, 1
          %p213 = scmp.lt.s32.totalorder %s23, 0
          %s214 = scalar_select %p213, %s23, 0
          %s215 = smul.addr %s214, 54
          %s216 = smul.addr %s212, 54
          %s217 = sadd.s32 %s215, %s216
          %s218 = smul.addr %s217, 8
          %s219 = scalar_lea.vmem %s0, %s218
        $region36: #{tpu_custom_call.1} parent=31 // pred_fallthru
          _
      $region32: #{tpu_custom_call.1} parent=5 // pred_fallthru
        _
      %p220 = scmp.le.s32.totalorder 1, %s15
      %p221 = scmp.lt.s32.totalorder %s15, 3
      %p222 = pnand %p220, %p221
      %p223 = pneg %p222
      // Predicated region
      $region37: #{tpu_custom_call.1} parent=5 // pred_check
        _
      $region38: #{tpu_custom_call.1} parent=5 // pred_check_branch
        %225 = sbr.rel (%p222) target = $region40
      $region39: #{tpu_custom_call.1} parent=5 // pred_region
        %s226 = ssub.s32 %s15, 1
        // Predicated region
        $region41: #{tpu_custom_call.1} parent=39 // pred_check
          %p227 = pneg %p118
        $region42: #{tpu_custom_call.1} parent=39 // pred_check_branch
          %229 = sbr.rel (%p227) target = $region44
        $region43: #{tpu_custom_call.1} parent=39 // pred_region
          %230 = dma.done [#allocation4], 18432
        $region44: #{tpu_custom_call.1} parent=39 // pred_fallthru
          _
        %p231 = scmp.lt.s32.totalorder %s24, 1
        %s232 = scalar_select %p231, %s24, 1
        %p233 = scmp.lt.s32.totalorder %s25, 0
        %s234 = scalar_select %p233, %s25, 0
        %s235 = smul.addr %s234, 54
        %s236 = smul.addr %s232, 54
        %s237 = sadd.s32 %s235, %s236
        %s238 = smul.addr %s237, 8
        %s239 = scalar_lea.vmem %s0, %s238
        %p240 = pneg %p55
        %p241 = pneg %p52
        %p242 = pneg %p76
        %p243 = pneg %p73
        %p244 = pneg %p97
        %p245 = pneg %p94
        %p246 = pneg %p118
        %p247 = pneg %p115
        %p248 = pneg %p139
        %p249 = pneg %p136
        %p250 = pneg %p167
        %p251 = pneg %p164
        %s252 = sand.u32 %s154, 1
        %s253 = scalar_lea.sflag [#allocation5], %s252
        %s254 = sand.u32 %s154, 1
        %s255 = smul.addr %s254, 256
        %s256 = scalar_lea.vmem [#allocation6], %s255
        %p257 = scmp.lt.s32.totalorder %s24, 1
        %s258 = scalar_select %p257, %s24, 1
        %p259 = scmp.lt.s32.totalorder %s25, 0
        %s260 = scalar_select %p259, %s25, 0
        %s261 = smul.addr %s260, 54
        %s262 = smul.addr %s258, 54
        %s263 = sadd.s32 %s261, %s262
        %s264 = smul.addr %s263, 8
        %s265 = scalar_lea.vmem %s0, %s264
        %v266 = vld [vmem:[%s265] sm:$0xff]
        %v267 = vld [vmem:[%s265 + $0x8] sm:$0xff]
        %v268 = vld [vmem:[%s265 + $0x18] sm:$0xff]
        %v269 = vld [vmem:[%s265 + $0x20] sm:$0xff]
        %v270 = vld [vmem:[%s265 + $0x30] sm:$0xff]
        %v271 = vld [vmem:[%s265 + $0x38] sm:$0xff]
        %v272 = vld [vmem:[%s265 + $0x48] sm:$0xff]
        %v273 = vld [vmem:[%s265 + $0x50] sm:$0xff]
        %v274 = vld [vmem:[%s265 + $0x60] sm:$0xff]
        %v275 = vld [vmem:[%s265 + $0x68] sm:$0xff]
        %v276 = vld [vmem:[%s265 + $0x78] sm:$0xff]
        %v277 = vld [vmem:[%s265 + $0x80] sm:$0xff]
        %v278 = vld [vmem:[%s265 + $0x90] sm:$0xff]
        %v279 = vld [vmem:[%s265 + $0x98] sm:$0xff]
        %v280 = vld [vmem:[%s265 + $0xa8] sm:$0xff]
        %v281 = vld [vmem:[%s265 + $0xb0] sm:$0xff]
        %v282 = vld [vmem:[%s265 + $0xc0] sm:$0xff]
        %v283 = vld [vmem:[%s265 + $0xc8] sm:$0xff]
        %v284 = vld [vmem:[%s265 + $0xd8] sm:$0xff]
        %v285 = vld [vmem:[%s265 + $0xe0] sm:$0xff]
        %v286 = vld [vmem:[%s265 + $0xf0] sm:$0xff]
        %v287 = vld [vmem:[%s265 + $0xf8] sm:$0xff]
        %v288 = vld [vmem:[%s265 + $0x108] sm:$0xff]
        %v289 = vld [vmem:[%s265 + $0x110] sm:$0xff]
        %v290 = vld [vmem:[%s265 + $0x120] sm:$0xff]
        %v291 = vld [vmem:[%s265 + $0x128] sm:$0xff]
        %v292 = vld [vmem:[%s265 + $0x138] sm:$0xff]
        %v293 = vld [vmem:[%s265 + $0x140] sm:$0xff]
        %v294 = vld [vmem:[%s265 + $0x150] sm:$0xff]
        %v295 = vld [vmem:[%s265 + $0x158] sm:$0xff]
        %v296 = vld [vmem:[%s265 + $0x168] sm:$0xff]
        %v297 = vld [vmem:[%s265 + $0x170] sm:$0xff]
        %v298 = vld [vmem:[%s1] sm:$0xff]
        %v299 = vld [vmem:[%s1 + $0x8] sm:$0xff]
        %v300 = vld [vmem:[%s1 + $0x10] sm:$0xff]
        %v301 = vld [vmem:[%s1 + $0x18] sm:$0xff]
        %v302 = vld [vmem:[%s1 + $0x20] sm:$0xff]
        %v303 = vld [vmem:[%s1 + $0x28] sm:$0xff]
        %v304 = vld [vmem:[%s1 + $0x30] sm:$0xff]
        %v305 = vld [vmem:[%s1 + $0x38] sm:$0xff]
        %v306 = vld [vmem:[%s1 + $0x40] sm:$0xff]
        %v307 = vld [vmem:[%s1 + $0x48] sm:$0xff]
        %v308 = vld [vmem:[%s1 + $0x50] sm:$0xff]
        %v309 = vld [vmem:[%s1 + $0x58] sm:$0xff]
        %v310 = vld [vmem:[%s1 + $0x60] sm:$0xff]
        %v311 = vld [vmem:[%s1 + $0x68] sm:$0xff]
        %v312 = vld [vmem:[%s1 + $0x70] sm:$0xff]
        %v313 = vld [vmem:[%s1 + $0x78] sm:$0xff]
        %v314 = vld [vmem:[%s265 + $0x1] sm:$0xff]
        %v315 = vld [vmem:[%s265 + $0x9] sm:$0xff]
        %v316 = vld [vmem:[%s265 + $0x19] sm:$0xff]
        %v317 = vld [vmem:[%s265 + $0x21] sm:$0xff]
        %v318 = vld [vmem:[%s265 + $0x31] sm:$0xff]
        %v319 = vld [vmem:[%s265 + $0x39] sm:$0xff]
        %v320 = vld [vmem:[%s265 + $0x49] sm:$0xff]
        %v321 = vld [vmem:[%s265 + $0x51] sm:$0xff]
        %v322 = vld [vmem:[%s265 + $0x61] sm:$0xff]
        %v323 = vld [vmem:[%s265 + $0x69] sm:$0xff]
        %v324 = vld [vmem:[%s265 + $0x79] sm:$0xff]
        %v325 = vld [vmem:[%s265 + $0x81] sm:$0xff]
        %v326 = vld [vmem:[%s265 + $0x91] sm:$0xff]
        %v327 = vld [vmem:[%s265 + $0x99] sm:$0xff]
        %v328 = vld [vmem:[%s265 + $0xa9] sm:$0xff]
        %v329 = vld [vmem:[%s265 + $0xb1] sm:$0xff]
        %v330 = vld [vmem:[%s265 + $0xc1] sm:$0xff]
        %v331 = vld [vmem:[%s265 + $0xc9] sm:$0xff]
        %v332 = vld [vmem:[%s265 + $0xd9] sm:$0xff]
        %v333 = vld [vmem:[%s265 + $0xe1] sm:$0xff]
        %v334 = vld [vmem:[%s265 + $0xf1] sm:$0xff]
        %v335 = vld [vmem:[%s265 + $0xf9] sm:$0xff]
        %v336 = vld [vmem:[%s265 + $0x109] sm:$0xff]
        %v337 = vld [vmem:[%s265 + $0x111] sm:$0xff]
        %v338 = vld [vmem:[%s265 + $0x121] sm:$0xff]
        %v339 = vld [vmem:[%s265 + $0x129] sm:$0xff]
        %v340 = vld [vmem:[%s265 + $0x139] sm:$0xff]
        %v341 = vld [vmem:[%s265 + $0x141] sm:$0xff]
        %v342 = vld [vmem:[%s265 + $0x151] sm:$0xff]
        %v343 = vld [vmem:[%s265 + $0x159] sm:$0xff]
        %v344 = vld [vmem:[%s265 + $0x169] sm:$0xff]
        %v345 = vld [vmem:[%s265 + $0x171] sm:$0xff]
        %s346 = scalar_lea.vmem %s1, 128
        %v347 = vld [vmem:[%s346] sm:$0xff]
        %v348 = vld [vmem:[%s346 + $0x8] sm:$0xff]
        %v349 = vld [vmem:[%s346 + $0x10] sm:$0xff]
        %v350 = vld [vmem:[%s346 + $0x18] sm:$0xff]
        %v351 = vld [vmem:[%s346 + $0x20] sm:$0xff]
        %v352 = vld [vmem:[%s346 + $0x28] sm:$0xff]
        %v353 = vld [vmem:[%s346 + $0x30] sm:$0xff]
        %v354 = vld [vmem:[%s346 + $0x38] sm:$0xff]
        %v355 = vld [vmem:[%s346 + $0x40] sm:$0xff]
        %v356 = vld [vmem:[%s346 + $0x48] sm:$0xff]
        %v357 = vld [vmem:[%s346 + $0x50] sm:$0xff]
        %v358 = vld [vmem:[%s346 + $0x58] sm:$0xff]
        %v359 = vld [vmem:[%s346 + $0x60] sm:$0xff]
        %v360 = vld [vmem:[%s346 + $0x68] sm:$0xff]
        %v361 = vld [vmem:[%s346 + $0x70] sm:$0xff]
        %v362 = vld [vmem:[%s346 + $0x78] sm:$0xff]
        %363 = vmatprep.subr.mxu0 0.0
        %364 = vmatpush1.msra.mxu0 %v347
        %365 = vmatprep.subr.mxu0 0.0
        %366 = vmatpush1.msra.mxu0 %v348
        %367 = vmatprep.subr.mxu0 0.0
        %368 = vmatpush1.msra.mxu0 %v349
        %369 = vmatprep.subr.mxu0 0.0
        %370 = vmatpush1.msra.mxu0 %v350
        %371 = vmatprep.subr.mxu0 0.0
        %372 = vmatpush1.msra.mxu0 %v351
        %373 = vmatprep.subr.mxu0 0.0
        %374 = vmatpush1.msra.mxu0 %v352
        %375 = vmatprep.subr.mxu0 0.0
        %376 = vmatpush1.msra.mxu0 %v353
        %377 = vmatprep.subr.mxu0 0.0
        %378 = vmatpush1.msra.mxu0 %v354
        %379 = vmatprep.subr.mxu0 0.0
        %380 = vmatpush1.msra.mxu0 %v355
        %381 = vmatprep.subr.mxu0 0.0
        %382 = vmatpush1.msra.mxu0 %v356
        %383 = vmatprep.subr.mxu0 0.0
        %384 = vmatpush1.msra.mxu0 %v357
        %385 = vmatprep.subr.mxu0 0.0
        %386 = vmatpush1.msra.mxu0 %v358
        %387 = vmatprep.subr.mxu0 0.0
        %388 = vmatpush1.msra.mxu0 %v359
        %389 = vmatprep.subr.mxu0 0.0
        %390 = vmatpush1.msra.mxu0 %v360
        %391 = vmatprep.subr.mxu0 0.0
        %392 = vmatpush1.msra.mxu0 %v361
        %393 = vmatprep.subr.mxu0 0.0
        %394 = vmatpush1.msra.mxu0 %v362
        %395 = vmatprep.subr.mxu0 0.0
        %396 = vmatpush1.msra.mxu0 0.0
        %397 = vmatprep.subr.mxu0 0.0
        %398 = vmatpush1.msra.mxu0 0.0
        %399 = vmatprep.subr.mxu0 0.0
        %400 = vmatpush1.msra.mxu0 0.0
        %401 = vmatprep.subr.mxu0 0.0
        %402 = vmatpush1.msra.mxu0 0.0
        %403 = vmatprep.subr.mxu0 0.0
        %404 = vmatpush1.msra.mxu0 0.0
        %405 = vmatprep.subr.mxu0 0.0
        %406 = vmatpush1.msra.mxu0 0.0
        %407 = vmatprep.subr.mxu0 0.0
        %408 = vmatpush1.msra.mxu0 0.0
        %409 = vmatprep.subr.mxu0 0.0
        %410 = vmatpush1.msra.mxu0 0.0
        %411 = vmatprep.subr.mxu0 0.0
        %412 = vmatpush1.msra.mxu0 0.0
        %413 = vmatprep.subr.mxu0 0.0
        %414 = vmatpush1.msra.mxu0 0.0
        %415 = vmatprep.subr.mxu0 0.0
        %416 = vmatpush1.msra.mxu0 0.0
        %417 = vmatprep.subr.mxu0 0.0
        %418 = vmatpush1.msra.mxu0 0.0
        %419 = vmatprep.subr.mxu0 0.0
        %420 = vmatpush1.msra.mxu0 0.0
        %421 = vmatprep.subr.mxu0 0.0
        %422 = vmatpush1.msra.mxu0 0.0
        %423 = vmatprep.subr.mxu0 0.0
        %424 = vmatpush1.msra.mxu0 0.0
        %425 = vmatprep.subr.mxu0 0.0
        %426 = vmatpush1.msra.mxu0 0.0
        %427 = vmatprep.mubr.f32.mxu0 0.0
        %428 = vmatmul.mubr.f32.gmra.mrb[0].mxu0 %v314
        %v429 = vpop.f32.mrb[0].mxu0
        %v430 = vadd.f32 0.0, %v429
        %v431 = vpop.f32.mrb[0].mxu0
        %432 = vmatprep.mubr.f32.mxu0 0.0
        %433 = vmatmul.mubr.f32.gmra.mrb[0].mxu0 %v315
        %v434 = vpop.f32.mrb[0].mxu0
        %v435 = vadd.f32 0.0, %v434
        %v436 = vpop.f32.mrb[0].mxu0
        %437 = vmatprep.mubr.f32.mxu0 0.0
        %438 = vmatmul.mubr.f32.gmra.mrb[0].mxu0 %v316
        %v439 = vpop.f32.mrb[0].mxu0
        %v440 = vadd.f32 0.0, %v439
        %v441 = vpop.f32.mrb[0].mxu0
        %442 = vmatprep.mubr.f32.mxu0 0.0
        %443 = vmatmul.mubr.f32.gmra.mrb[0].mxu0 %v317
        %v444 = vpop.f32.mrb[0].mxu0
        %v445 = vadd.f32 0.0, %v444
        %v446 = vpop.f32.mrb[0].mxu0
        %447 = vmatprep.mubr.f32.mxu0 0.0
        %448 = vmatmul.mubr.f32.gmra.mrb[0].mxu0 %v318
        %v449 = vpop.f32.mrb[0].mxu0
        %v450 = vadd.f32 0.0, %v449
        %v451 = vpop.f32.mrb[0].mxu0
        %452 = vmatprep.mubr.f32.mxu0 0.0
        %453 = vmatmul.mubr.f32.gmra.mrb[0].mxu0 %v319
        %v454 = vpop.f32.mrb[0].mxu0
        %v455 = vadd.f32 0.0, %v454
        %v456 = vpop.f32.mrb[0].mxu0
        %457 = vmatprep.mubr.f32.mxu0 0.0
        %458 = vmatmul.mubr.f32.gmra.mrb[0].mxu0 %v320
        %v459 = vpop.f32.mrb[0].mxu0
        %v460 = vadd.f32 0.0, %v459
        %v461 = vpop.f32.mrb[0].mxu0
        %462 = vmatprep.mubr.f32.mxu0 0.0
        %463 = vmatmul.mubr.f32.gmra.mrb[0].mxu0 %v321
        %v464 = vpop.f32.mrb[0].mxu0
        %v465 = vadd.f32 0.0, %v464
        %v466 = vpop.f32.mrb[0].mxu0
        %467 = vmatprep.mubr.f32.mxu0 0.0
        %468 = vmatmul.mubr.f32.gmra.mrb[0].mxu0 %v322
        %v469 = vpop.f32.mrb[0].mxu0
        %v470 = vadd.f32 0.0, %v469
        %v471 = vpop.f32.mrb[0].mxu0
        %472 = vmatprep.mubr.f32.mxu0 0.0
        %473 = vmatmul.mubr.f32.gmra.mrb[0].mxu0 %v323
        %v474 = vpop.f32.mrb[0].mxu0
        %v475 = vadd.f32 0.0, %v474
        %v476 = vpop.f32.mrb[0].mxu0
        %477 = vmatprep.mubr.f32.mxu0 0.0
        %478 = vmatmul.mubr.f32.gmra.mrb[0].mxu0 %v324
        %v479 = vpop.f32.mrb[0].mxu0
        %v480 = vadd.f32 0.0, %v479
        %v481 = vpop.f32.mrb[0].mxu0
        %482 = vmatprep.mubr.f32.mxu0 0.0
        %483 = vmatmul.mubr.f32.gmra.mrb[0].mxu0 %v325
        %v484 = vpop.f32.mrb[0].mxu0
        %v485 = vadd.f32 0.0, %v484
        %v486 = vpop.f32.mrb[0].mxu0
        %487 = vmatprep.mubr.f32.mxu0 0.0
        %488 = vmatmul.mubr.f32.gmra.mrb[0].mxu0 %v326
        %v489 = vpop.f32.mrb[0].mxu0
        %v490 = vadd.f32 0.0, %v489
        %v491 = vpop.f32.mrb[0].mxu0
        %492 = vmatprep.mubr.f32.mxu0 0.0
        %493 = vmatmul.mubr.f32.gmra.mrb[0].mxu0 %v327
        %v494 = vpop.f32.mrb[0].mxu0
        %v495 = vadd.f32 0.0, %v494
        %v496 = vpop.f32.mrb[0].mxu0
        %497 = vmatprep.mubr.f32.mxu0 0.0
        %498 = vmatmul.mubr.f32.gmra.mrb[0].mxu0 %v328
        %v499 = vpop.f32.mrb[0].mxu0
        %v500 = vadd.f32 0.0, %v499
        %v501 = vpop.f32.mrb[0].mxu0
        %502 = vmatprep.mubr.f32.mxu0 0.0
        %503 = vmatmul.mubr.f32.gmra.mrb[0].mxu0 %v329
        %v504 = vpop.f32.mrb[0].mxu0
        %v505 = vadd.f32 0.0, %v504
        %v506 = vpop.f32.mrb[0].mxu0
        %507 = vmatprep.mubr.f32.mxu0 0.0
        %508 = vmatmul.mubr.f32.gmra.mrb[0].mxu0 %v330
        %v509 = vpop.f32.mrb[0].mxu0
        %v510 = vadd.f32 0.0, %v509
        %v511 = vpop.f32.mrb[0].mxu0
        %512 = vmatprep.mubr.f32.mxu0 0.0
        %513 = vmatmul.mubr.f32.gmra.mrb[0].mxu0 %v331
        %v514 = vpop.f32.mrb[0].mxu0
        %v515 = vadd.f32 0.0, %v514
        %v516 = vpop.f32.mrb[0].mxu0
        %517 = vmatprep.mubr.f32.mxu0 0.0
        %518 = vmatmul.mubr.f32.gmra.mrb[0].mxu0 %v332
        %v519 = vpop.f32.mrb[0].mxu0
        %v520 = vadd.f32 0.0, %v519
        %v521 = vpop.f32.mrb[0].mxu0
        %522 = vmatprep.mubr.f32.mxu0 0.0
        %523 = vmatmul.mubr.f32.gmra.mrb[0].mxu0 %v333
        %v524 = vpop.f32.mrb[0].mxu0
        %v525 = vadd.f32 0.0, %v524
        %v526 = vpop.f32.mrb[0].mxu0
        %527 = vmatprep.mubr.f32.mxu0 0.0
        %528 = vmatmul.mubr.f32.gmra.mrb[0].mxu0 %v334
        %v529 = vpop.f32.mrb[0].mxu0
        %v530 = vadd.f32 0.0, %v529
        %v531 = vpop.f32.mrb[0].mxu0
        %532 = vmatprep.mubr.f32.mxu0 0.0
        %533 = vmatmul.mubr.f32.gmra.mrb[0].mxu0 %v335
        %v534 = vpop.f32.mrb[0].mxu0
        %v535 = vadd.f32 0.0, %v534
        %v536 = vpop.f32.mrb[0].mxu0
        %537 = vmatprep.mubr.f32.mxu0 0.0
        %538 = vmatmul.mubr.f32.gmra.mrb[0].mxu0 %v336
        %v539 = vpop.f32.mrb[0].mxu0
        %v540 = vadd.f32 0.0, %v539
        %v541 = vpop.f32.mrb[0].mxu0
        %542 = vmatprep.mubr.f32.mxu0 0.0
        %543 = vmatmul.mubr.f32.gmra.mrb[0].mxu0 %v337
        %v544 = vpop.f32.mrb[0].mxu0
        %v545 = vadd.f32 0.0, %v544
        %v546 = vpop.f32.mrb[0].mxu0
        %547 = vmatprep.mubr.f32.mxu0 0.0
        %548 = vmatmul.mubr.f32.gmra.mrb[0].mxu0 %v338
        %v549 = vpop.f32.mrb[0].mxu0
        %v550 = vadd.f32 0.0, %v549
        %v551 = vpop.f32.mrb[0].mxu0
        %552 = vmatprep.mubr.f32.mxu0 0.0
        %553 = vmatmul.mubr.f32.gmra.mrb[0].mxu0 %v339
        %v554 = vpop.f32.mrb[0].mxu0
        %v555 = vadd.f32 0.0, %v554
        %v556 = vpop.f32.mrb[0].mxu0
        %557 = vmatprep.mubr.f32.mxu0 0.0
        %558 = vmatmul.mubr.f32.gmra.mrb[0].mxu0 %v340
        %v559 = vpop.f32.mrb[0].mxu0
        %v560 = vadd.f32 0.0, %v559
        %v561 = vpop.f32.mrb[0].mxu0
        %562 = vmatprep.mubr.f32.mxu0 0.0
        %563 = vmatmul.mubr.f32.gmra.mrb[0].mxu0 %v341
        %v564 = vpop.f32.mrb[0].mxu0
        %v565 = vadd.f32 0.0, %v564
        %v566 = vpop.f32.mrb[0].mxu0
        %567 = vmatprep.mubr.f32.mxu0 0.0
        %568 = vmatmul.mubr.f32.gmra.mrb[0].mxu0 %v342
        %v569 = vpop.f32.mrb[0].mxu0
        %v570 = vadd.f32 0.0, %v569
        %v571 = vpop.f32.mrb[0].mxu0
        %572 = vmatprep.mubr.f32.mxu0 0.0
        %573 = vmatmul.mubr.f32.gmra.mrb[0].mxu0 %v343
        %v574 = vpop.f32.mrb[0].mxu0
        %v575 = vadd.f32 0.0, %v574
        %v576 = vpop.f32.mrb[0].mxu0
        %577 = vmatprep.mubr.f32.mxu0 0.0
        %578 = vmatmul.mubr.f32.gmra.mrb[0].mxu0 %v344
        %v579 = vpop.f32.mrb[0].mxu0
        %v580 = vadd.f32 0.0, %v579
        %v581 = vpop.f32.mrb[0].mxu0
        %582 = vmatprep.mubr.f32.mxu0 0.0
        %583 = vmatmul.mubr.f32.gmra.mrb[0].mxu0 %v345
        %v584 = vpop.f32.mrb[0].mxu0
        %v585 = vadd.f32 0.0, %v584
        %v586 = vpop.f32.mrb[0].mxu0
        %587 = vdwg.mxu0
        %588 = vmatprep.subr.mxu0 0.0
        %589 = vmatpush1.msra.mxu0 %v298
        %590 = vmatprep.subr.mxu0 0.0
        %591 = vmatpush1.msra.mxu0 %v299
        %592 = vmatprep.subr.mxu0 0.0
        %593 = vmatpush1.msra.mxu0 %v300
        %594 = vmatprep.subr.mxu0 0.0
        %595 = vmatpush1.msra.mxu0 %v301
        %596 = vmatprep.subr.mxu0 0.0
        %597 = vmatpush1.msra.mxu0 %v302
        %598 = vmatprep.subr.mxu0 0.0
        %599 = vmatpush1.msra.mxu0 %v303
        %600 = vmatprep.subr.mxu0 0.0
        %601 = vmatpush1.msra.mxu0 %v304
        %602 = vmatprep.subr.mxu0 0.0
        %603 = vmatpush1.msra.mxu0 %v305
        %604 = vmatprep.subr.mxu0 0.0
        %605 = vmatpush1.msra.mxu0 %v306
        %606 = vmatprep.subr.mxu0 0.0
        %607 = vmatpush1.msra.mxu0 %v307
        %608 = vmatprep.subr.mxu0 0.0
        %609 = vmatpush1.msra.mxu0 %v308
        %610 = vmatprep.subr.mxu0 0.0
        %611 = vmatpush1.msra.mxu0 %v309
        %612 = vmatprep.subr.mxu0 0.0
        %613 = vmatpush1.msra.mxu0 %v310
        %614 = vmatprep.subr.mxu0 0.0
        %615 = vmatpush1.msra.mxu0 %v311
        %616 = vmatprep.subr.mxu0 0.0
        %617 = vmatpush1.msra.mxu0 %v312
        %618 = vmatprep.subr.mxu0 0.0
        %619 = vmatpush1.msra.mxu0 %v313
        %620 = vmatprep.subr.mxu0 0.0
        %621 = vmatpush1.msra.mxu0 0.0
        %622 = vmatprep.subr.mxu0 0.0
        %623 = vmatpush1.msra.mxu0 0.0
        %624 = vmatprep.subr.mxu0 0.0
        %625 = vmatpush1.msra.mxu0 0.0
        %626 = vmatprep.subr.mxu0 0.0
        %627 = vmatpush1.msra.mxu0 0.0
        %628 = vmatprep.subr.mxu0 0.0
        %629 = vmatpush1.msra.mxu0 0.0
        %630 = vmatprep.subr.mxu0 0.0
        %631 = vmatpush1.msra.mxu0 0.0
        %632 = vmatprep.subr.mxu0 0.0
        %633 = vmatpush1.msra.mxu0 0.0
        %634 = vmatprep.subr.mxu0 0.0
        %635 = vmatpush1.msra.mxu0 0.0
        %636 = vmatprep.subr.mxu0 0.0
        %637 = vmatpush1.msra.mxu0 0.0
        %638 = vmatprep.subr.mxu0 0.0
        %639 = vmatpush1.msra.mxu0 0.0
        %640 = vmatprep.subr.mxu0 0.0
        %641 = vmatpush1.msra.mxu0 0.0
        %642 = vmatprep.subr.mxu0 0.0
        %643 = vmatpush1.msra.mxu0 0.0
        %644 = vmatprep.subr.mxu0 0.0
        %645 = vmatpush1.msra.mxu0 0.0
        %646 = vmatprep.subr.mxu0 0.0
        %647 = vmatpush1.msra.mxu0 0.0
        %648 = vmatprep.subr.mxu0 0.0
        %649 = vmatpush1.msra.mxu0 0.0
        %650 = vmatprep.subr.mxu0 0.0
        %651 = vmatpush1.msra.mxu0 0.0
        %652 = vmatprep.mubr.f32.mxu0 0.0
        %653 = vmatmul.mubr.f32.gmra.mrb[0].mxu0 %v266
        %v654 = vpop.f32.mrb[0].mxu0
        %v655 = vadd.f32 %v430, %v654
        %v656 = vpop.f32.mrb[0].mxu0
        %657 = vmatprep.mubr.f32.mxu0 0.0
        %658 = vmatmul.mubr.f32.gmra.mrb[0].mxu0 %v267
        %v659 = vpop.f32.mrb[0].mxu0
        %v660 = vadd.f32 %v435, %v659
        %v661 = vpop.f32.mrb[0].mxu0
        %662 = vmatprep.mubr.f32.mxu0 0.0
        %663 = vmatmul.mubr.f32.gmra.mrb[0].mxu0 %v268
        %v664 = vpop.f32.mrb[0].mxu0
        %v665 = vadd.f32 %v440, %v664
        %v666 = vpop.f32.mrb[0].mxu0
        %667 = vmatprep.mubr.f32.mxu0 0.0
        %668 = vmatmul.mubr.f32.gmra.mrb[0].mxu0 %v269
        %v669 = vpop.f32.mrb[0].mxu0
        %v670 = vadd.f32 %v445, %v669
        %v671 = vpop.f32.mrb[0].mxu0
        %672 = vmatprep.mubr.f32.mxu0 0.0
        %673 = vmatmul.mubr.f32.gmra.mrb[0].mxu0 %v270
        %v674 = vpop.f32.mrb[0].mxu0
        %v675 = vadd.f32 %v450, %v674
        %v676 = vpop.f32.mrb[0].mxu0
        %677 = vmatprep.mubr.f32.mxu0 0.0
        %678 = vmatmul.mubr.f32.gmra.mrb[0].mxu0 %v271
        %v679 = vpop.f32.mrb[0].mxu0
        %v680 = vadd.f32 %v455, %v679
        %v681 = vpop.f32.mrb[0].mxu0
        %682 = vmatprep.mubr.f32.mxu0 0.0
        %683 = vmatmul.mubr.f32.gmra.mrb[0].mxu0 %v272
        %v684 = vpop.f32.mrb[0].mxu0
        %v685 = vadd.f32 %v460, %v684
        %v686 = vpop.f32.mrb[0].mxu0
        %687 = vmatprep.mubr.f32.mxu0 0.0
        %688 = vmatmul.mubr.f32.gmra.mrb[0].mxu0 %v273
        %v689 = vpop.f32.mrb[0].mxu0
        %v690 = vadd.f32 %v465, %v689
        %v691 = vpop.f32.mrb[0].mxu0
        %692 = vmatprep.mubr.f32.mxu0 0.0
        %693 = vmatmul.mubr.f32.gmra.mrb[0].mxu0 %v274
        %v694 = vpop.f32.mrb[0].mxu0
        %v695 = vadd.f32 %v470, %v694
        %v696 = vpop.f32.mrb[0].mxu0
        %697 = vmatprep.mubr.f32.mxu0 0.0
        %698 = vmatmul.mubr.f32.gmra.mrb[0].mxu0 %v275
        %v699 = vpop.f32.mrb[0].mxu0
        %v700 = vadd.f32 %v475, %v699
        %v701 = vpop.f32.mrb[0].mxu0
        %702 = vmatprep.mubr.f32.mxu0 0.0
        %703 = vmatmul.mubr.f32.gmra.mrb[0].mxu0 %v276
        %v704 = vpop.f32.mrb[0].mxu0
        %v705 = vadd.f32 %v480, %v704
        %v706 = vpop.f32.mrb[0].mxu0
        %707 = vmatprep.mubr.f32.mxu0 0.0
        %708 = vmatmul.mubr.f32.gmra.mrb[0].mxu0 %v277
        %v709 = vpop.f32.mrb[0].mxu0
        %v710 = vadd.f32 %v485, %v709
        %v711 = vpop.f32.mrb[0].mxu0
        %712 = vmatprep.mubr.f32.mxu0 0.0
        %713 = vmatmul.mubr.f32.gmra.mrb[0].mxu0 %v278
        %v714 = vpop.f32.mrb[0].mxu0
        %v715 = vadd.f32 %v490, %v714
        %v716 = vpop.f32.mrb[0].mxu0
        %717 = vmatprep.mubr.f32.mxu0 0.0
        %718 = vmatmul.mubr.f32.gmra.mrb[0].mxu0 %v279
        %v719 = vpop.f32.mrb[0].mxu0
        %v720 = vadd.f32 %v495, %v719
        %v721 = vpop.f32.mrb[0].mxu0
        %722 = vmatprep.mubr.f32.mxu0 0.0
        %723 = vmatmul.mubr.f32.gmra.mrb[0].mxu0 %v280
        %v724 = vpop.f32.mrb[0].mxu0
        %v725 = vadd.f32 %v500, %v724
        %v726 = vpop.f32.mrb[0].mxu0
        %727 = vmatprep.mubr.f32.mxu0 0.0
        %728 = vmatmul.mubr.f32.gmra.mrb[0].mxu0 %v281
        %v729 = vpop.f32.mrb[0].mxu0
        %v730 = vadd.f32 %v505, %v729
        %v731 = vpop.f32.mrb[0].mxu0
        %732 = vmatprep.mubr.f32.mxu0 0.0
        %733 = vmatmul.mubr.f32.gmra.mrb[0].mxu0 %v282
        %v734 = vpop.f32.mrb[0].mxu0
        %v735 = vadd.f32 %v510, %v734
        %v736 = vpop.f32.mrb[0].mxu0
        %737 = vmatprep.mubr.f32.mxu0 0.0
        %738 = vmatmul.mubr.f32.gmra.mrb[0].mxu0 %v283
        %v739 = vpop.f32.mrb[0].mxu0
        %v740 = vadd.f32 %v515, %v739
        %v741 = vpop.f32.mrb[0].mxu0
        %742 = vmatprep.mubr.f32.mxu0 0.0
        %743 = vmatmul.mubr.f32.gmra.mrb[0].mxu0 %v284
        %v744 = vpop.f32.mrb[0].mxu0
        %v745 = vadd.f32 %v520, %v744
        %v746 = vpop.f32.mrb[0].mxu0
        %747 = vmatprep.mubr.f32.mxu0 0.0
        %748 = vmatmul.mubr.f32.gmra.mrb[0].mxu0 %v285
        %v749 = vpop.f32.mrb[0].mxu0
        %v750 = vadd.f32 %v525, %v749
        %v751 = vpop.f32.mrb[0].mxu0
        %752 = vmatprep.mubr.f32.mxu0 0.0
        %753 = vmatmul.mubr.f32.gmra.mrb[0].mxu0 %v286
        %v754 = vpop.f32.mrb[0].mxu0
        %v755 = vadd.f32 %v530, %v754
        %v756 = vpop.f32.mrb[0].mxu0
        %757 = vmatprep.mubr.f32.mxu0 0.0
        %758 = vmatmul.mubr.f32.gmra.mrb[0].mxu0 %v287
        %v759 = vpop.f32.mrb[0].mxu0
        %v760 = vadd.f32 %v535, %v759
        %v761 = vpop.f32.mrb[0].mxu0
        %762 = vmatprep.mubr.f32.mxu0 0.0
        %763 = vmatmul.mubr.f32.gmra.mrb[0].mxu0 %v288
        %v764 = vpop.f32.mrb[0].mxu0
        %v765 = vadd.f32 %v540, %v764
        %v766 = vpop.f32.mrb[0].mxu0
        %767 = vmatprep.mubr.f32.mxu0 0.0
        %768 = vmatmul.mubr.f32.gmra.mrb[0].mxu0 %v289
        %v769 = vpop.f32.mrb[0].mxu0
        %v770 = vadd.f32 %v545, %v769
        %v771 = vpop.f32.mrb[0].mxu0
        %772 = vmatprep.mubr.f32.mxu0 0.0
        %773 = vmatmul.mubr.f32.gmra.mrb[0].mxu0 %v290
        %v774 = vpop.f32.mrb[0].mxu0
        %v775 = vadd.f32 %v550, %v774
        %v776 = vpop.f32.mrb[0].mxu0
        %777 = vmatprep.mubr.f32.mxu0 0.0
        %778 = vmatmul.mubr.f32.gmra.mrb[0].mxu0 %v291
        %v779 = vpop.f32.mrb[0].mxu0
        %v780 = vadd.f32 %v555, %v779
        %v781 = vpop.f32.mrb[0].mxu0
        %782 = vmatprep.mubr.f32.mxu0 0.0
        %783 = vmatmul.mubr.f32.gmra.mrb[0].mxu0 %v292
        %v784 = vpop.f32.mrb[0].mxu0
        %v785 = vadd.f32 %v560, %v784
        %v786 = vpop.f32.mrb[0].mxu0
        %787 = vmatprep.mubr.f32.mxu0 0.0
        %788 = vmatmul.mubr.f32.gmra.mrb[0].mxu0 %v293
        %v789 = vpop.f32.mrb[0].mxu0
        %v790 = vadd.f32 %v565, %v789
        %v791 = vpop.f32.mrb[0].mxu0
        %792 = vmatprep.mubr.f32.mxu0 0.0
        %793 = vmatmul.mubr.f32.gmra.mrb[0].mxu0 %v294
        %v794 = vpop.f32.mrb[0].mxu0
        %v795 = vadd.f32 %v570, %v794
        %v796 = vpop.f32.mrb[0].mxu0
        %797 = vmatprep.mubr.f32.mxu0 0.0
        %798 = vmatmul.mubr.f32.gmra.mrb[0].mxu0 %v295
        %v799 = vpop.f32.mrb[0].mxu0
        %v800 = vadd.f32 %v575, %v799
        %v801 = vpop.f32.mrb[0].mxu0
        %802 = vmatprep.mubr.f32.mxu0 0.0
        %803 = vmatmul.mubr.f32.gmra.mrb[0].mxu0 %v296
        %v804 = vpop.f32.mrb[0].mxu0
        %v805 = vadd.f32 %v580, %v804
        %v806 = vpop.f32.mrb[0].mxu0
        %807 = vmatprep.mubr.f32.mxu0 0.0
        %808 = vmatmul.mubr.f32.gmra.mrb[0].mxu0 %v297
        %v809 = vpop.f32.mrb[0].mxu0
        %v810 = vadd.f32 %v585, %v809
        %v811 = vpop.f32.mrb[0].mxu0
        %812 = vdwg.mxu0
        %v813 = vld [vmem:[%s265 + $0x2] sm:$0xff]
        %v814 = vld [vmem:[%s265 + $0xa] sm:$0xff]
        %v815 = vld [vmem:[%s265 + $0x1a] sm:$0xff]
        %v816 = vld [vmem:[%s265 + $0x22] sm:$0xff]
        %v817 = vld [vmem:[%s265 + $0x32] sm:$0xff]
        %v818 = vld [vmem:[%s265 + $0x3a] sm:$0xff]
        %v819 = vld [vmem:[%s265 + $0x4a] sm:$0xff]
        %v820 = vld [vmem:[%s265 + $0x52] sm:$0xff]
        %v821 = vld [vmem:[%s265 + $0x62] sm:$0xff]
        %v822 = vld [vmem:[%s265 + $0x6a] sm:$0xff]
        %v823 = vld [vmem:[%s265 + $0x7a] sm:$0xff]
        %v824 = vld [vmem:[%s265 + $0x82] sm:$0xff]
        %v825 = vld [vmem:[%s265 + $0x92] sm:$0xff]
        %v826 = vld [vmem:[%s265 + $0x9a] sm:$0xff]
        %v827 = vld [vmem:[%s265 + $0xaa] sm:$0xff]
        %v828 = vld [vmem:[%s265 + $0xb2] sm:$0xff]
        %v829 = vld [vmem:[%s265 + $0xc2] sm:$0xff]
        %v830 = vld [vmem:[%s265 + $0xca] sm:$0xff]
        %v831 = vld [vmem:[%s265 + $0xda] sm:$0xff]
        %v832 = vld [vmem:[%s265 + $0xe2] sm:$0xff]
        %v833 = vld [vmem:[%s265 + $0xf2] sm:$0xff]
        %v834 = vld [vmem:[%s265 + $0xfa] sm:$0xff]
        %v835 = vld [vmem:[%s265 + $0x10a] sm:$0xff]
        %v836 = vld [vmem:[%s265 + $0x112] sm:$0xff]
        %v837 = vld [vmem:[%s265 + $0x122] sm:$0xff]
        %v838 = vld [vmem:[%s265 + $0x12a] sm:$0xff]
        %v839 = vld [vmem:[%s265 + $0x13a] sm:$0xff]
        %v840 = vld [vmem:[%s265 + $0x142] sm:$0xff]
        %v841 = vld [vmem:[%s265 + $0x152] sm:$0xff]
        %v842 = vld [vmem:[%s265 + $0x15a] sm:$0xff]
        %v843 = vld [vmem:[%s265 + $0x16a] sm:$0xff]
        %v844 = vld [vmem:[%s265 + $0x172] sm:$0xff]
        %s845 = scalar_lea.vmem %s1, 256
        %v846 = vld [vmem:[%s845] sm:$0xff]
        %v847 = vld [vmem:[%s845 + $0x8] sm:$0xff]
        %v848 = vld [vmem:[%s845 + $0x10] sm:$0xff]
        %v849 = vld [vmem:[%s845 + $0x18] sm:$0xff]
        %v850 = vld [vmem:[%s845 + $0x20] sm:$0xff]
        %v851 = vld [vmem:[%s845 + $0x28] sm:$0xff]
        %v852 = vld [vmem:[%s845 + $0x30] sm:$0xff]
        %v853 = vld [vmem:[%s845 + $0x38] sm:$0xff]
        %v854 = vld [vmem:[%s845 + $0x40] sm:$0xff]
        %v855 = vld [vmem:[%s845 + $0x48] sm:$0xff]
        %v856 = vld [vmem:[%s845 + $0x50] sm:$0xff]
        %v857 = vld [vmem:[%s845 + $0x58] sm:$0xff]
        %v858 = vld [vmem:[%s845 + $0x60] sm:$0xff]
        %v859 = vld [vmem:[%s845 + $0x68] sm:$0xff]
        %v860 = vld [vmem:[%s845 + $0x70] sm:$0xff]
        %v861 = vld [vmem:[%s845 + $0x78] sm:$0xff]
        %862 = vmatprep.subr.mxu0 0.0
        %863 = vmatpush1.msra.mxu0 %v846
        %864 = vmatprep.subr.mxu0 0.0
        %865 = vmatpush1.msra.mxu0 %v847
        %866 = vmatprep.subr.mxu0 0.0
        %867 = vmatpush1.msra.mxu0 %v848
        %868 = vmatprep.subr.mxu0 0.0
        %869 = vmatpush1.msra.mxu0 %v849
        %870 = vmatprep.subr.mxu0 0.0
        %871 = vmatpush1.msra.mxu0 %v850
        %872 = vmatprep.subr.mxu0 0.0
        %873 = vmatpush1.msra.mxu0 %v851
        %874 = vmatprep.subr.mxu0 0.0
        %875 = vmatpush1.msra.mxu0 %v852
        %876 = vmatprep.subr.mxu0 0.0
        %877 = vmatpush1.msra.mxu0 %v853
        %878 = vmatprep.subr.mxu0 0.0
        %879 = vmatpush1.msra.mxu0 %v854
        %880 = vmatprep.subr.mxu0 0.0
        %881 = vmatpush1.msra.mxu0 %v855
        %882 = vmatprep.subr.mxu0 0.0
        %883 = vmatpush1.msra.mxu0 %v856
        %884 = vmatprep.subr.mxu0 0.0
        %885 = vmatpush1.msra.mxu0 %v857
        %886 = vmatprep.subr.mxu0 0.0
        %887 = vmatpush1.msra.mxu0 %v858
        %888 = vmatprep.subr.mxu0 0.0
        %889 = vmatpush1.msra.mxu0 %v859
        %890 = vmatprep.subr.mxu0 0.0
        %891 = vmatpush1.msra.mxu0 %v860
        %892 = vmatprep.subr.mxu0 0.0
        %893 = vmatpush1.msra.mxu0 %v861
        %894 = vmatprep.subr.mxu0 0.0
        %895 = vmatpush1.msra.mxu0 0.0
        %896 = vmatprep.subr.mxu0 0.0
        %897 = vmatpush1.msra.mxu0 0.0
        %898 = vmatprep.subr.mxu0 0.0
        %899 = vmatpush1.msra.mxu0 0.0
        %900 = vmatprep.subr.mxu0 0.0
        %901 = vmatpush1.msra.mxu0 0.0
        %902 = vmatprep.subr.mxu0 0.0
        %903 = vmatpush1.msra.mxu0 0.0
        %904 = vmatprep.subr.mxu0 0.0
        %905 = vmatpush1.msra.mxu0 0.0
        %906 = vmatprep.subr.mxu0 0.0
        %907 = vmatpush1.msra.mxu0 0.0
        %908 = vmatprep.subr.mxu0 0.0
        %909 = vmatpush1.msra.mxu0 0.0
        %910 = vmatprep.subr.mxu0 0.0
        %911 = vmatpush1.msra.mxu0 0.0
        %912 = vmatprep.subr.mxu0 0.0
        %913 = vmatpush1.msra.mxu0 0.0
        %914 = vmatprep.subr.mxu0 0.0
        %915 = vmatpush1.msra.mxu0 0.0
        %916 = vmatprep.subr.mxu0 0.0
        %917 = vmatpush1.msra.mxu0 0.0
        %918 = vmatprep.subr.mxu0 0.0
        %919 = vmatpush1.msra.mxu0 0.0
        %920 = vmatprep.subr.mxu0 0.0
        %921 = vmatpush1.msra.mxu0 0.0
        %922 = vmatprep.subr.mxu0 0.0
        %923 = vmatpush1.msra.mxu0 0.0
        %924 = vmatprep.subr.mxu0 0.0
        %925 = vmatpush1.msra.mxu0 0.0
        %926 = vmatprep.mubr.f32.mxu0 0.0
        %927 = vmatmul.mubr.f32.gmra.mrb[0].mxu0 %v813
        %v928 = vpop.f32.mrb[0].mxu0
        %v929 = vadd.f32 0.0, %v928
        %v930 = vpop.f32.mrb[0].mxu0
        %931 = vmatprep.mubr.f32.mxu0 0.0
        %932 = vmatmul.mubr.f32.gmra.mrb[0].mxu0 %v814
        %v933 = vpop.f32.mrb[0].mxu0
        %v934 = vadd.f32 0.0, %v933
        %v935 = vpop.f32.mrb[0].mxu0
        %936 = vmatprep.mubr.f32.mxu0 0.0
        %937 = vmatmul.mubr.f32.gmra.mrb[0].mxu0 %v815
        %v938 = vpop.f32.mrb[0].mxu0
        %v939 = vadd.f32 0.0, %v938
        %v940 = vpop.f32.mrb[0].mxu0
        %941 = vmatprep.mubr.f32.mxu0 0.0
        %942 = vmatmul.mubr.f32.gmra.mrb[0].mxu0 %v816
        %v943 = vpop.f32.mrb[0].mxu0
        %v944 = vadd.f32 0.0, %v943
        %v945 = vpop.f32.mrb[0].mxu0
        %946 = vmatprep.mubr.f32.mxu0 0.0
        %947 = vmatmul.mubr.f32.gmra.mrb[0].mxu0 %v817
        %v948 = vpop.f32.mrb[0].mxu0
        %v949 = vadd.f32 0.0, %v948
        %v950 = vpop.f32.mrb[0].mxu0
        %951 = vmatprep.mubr.f32.mxu0 0.0
        %952 = vmatmul.mubr.f32.gmra.mrb[0].mxu0 %v818
        %v953 = vpop.f32.mrb[0].mxu0
        %v954 = vadd.f32 0.0, %v953
        %v955 = vpop.f32.mrb[0].mxu0
        %956 = vmatprep.mubr.f32.mxu0 0.0
        %957 = vmatmul.mubr.f32.gmra.mrb[0].mxu0 %v819
        %v958 = vpop.f32.mrb[0].mxu0
        %v959 = vadd.f32 0.0, %v958
        %v960 = vpop.f32.mrb[0].mxu0
        %961 = vmatprep.mubr.f32.mxu0 0.0
        %962 = vmatmul.mubr.f32.gmra.mrb[0].mxu0 %v820
        %v963 = vpop.f32.mrb[0].mxu0
        %v964 = vadd.f32 0.0, %v963
        %v965 = vpop.f32.mrb[0].mxu0
        %966 = vmatprep.mubr.f32.mxu0 0.0
        %967 = vmatmul.mubr.f32.gmra.mrb[0].mxu0 %v821
        %v968 = vpop.f32.mrb[0].mxu0
        %v969 = vadd.f32 0.0, %v968
        %v970 = vpop.f32.mrb[0].mxu0
        %971 = vmatprep.mubr.f32.mxu0 0.0
        %972 = vmatmul.mubr.f32.gmra.mrb[0].mxu0 %v822
        %v973 = vpop.f32.mrb[0].mxu0
        %v974 = vadd.f32 0.0, %v973
        %v975 = vpop.f32.mrb[0].mxu0
        %976 = vmatprep.mubr.f32.mxu0 0.0
        %977 = vmatmul.mubr.f32.gmra.mrb[0].mxu0 %v823
        %v978 = vpop.f32.mrb[0].mxu0
        %v979 = vadd.f32 0.0, %v978
        %v980 = vpop.f32.mrb[0].mxu0
        %981 = vmatprep.mubr.f32.mxu0 0.0
        %982 = vmatmul.mubr.f32.gmra.mrb[0].mxu0 %v824
        %v983 = vpop.f32.mrb[0].mxu0
        %v984 = vadd.f32 0.0, %v983
        %v985 = vpop.f32.mrb[0].mxu0
        %986 = vmatprep.mubr.f32.mxu0 0.0
        %987 = vmatmul.mubr.f32.gmra.mrb[0].mxu0 %v825
        %v988 = vpop.f32.mrb[0].mxu0
        %v989 = vadd.f32 0.0, %v988
        %v990 = vpop.f32.mrb[0].mxu0
        %991 = vmatprep.mubr.f32.mxu0 0.0
        %992 = vmatmul.mubr.f32.gmra.mrb[0].mxu0 %v826
        %v993 = vpop.f32.mrb[0].mxu0
        %v994 = vadd.f32 0.0, %v993
        %v995 = vpop.f32.mrb[0].mxu0
        %996 = vmatprep.mubr.f32.mxu0 0.0
        %997 = vmatmul.mubr.f32.gmra.mrb[0].mxu0 %v827
        %v998 = vpop.f32.mrb[0].mxu0
        %v999 = vadd.f32 0.0, %v998
        %v1000 = vpop.f32.mrb[0].mxu0
        %1001 = vmatprep.mubr.f32.mxu0 0.0
        %1002 = vmatmul.mubr.f32.gmra.mrb[0].mxu0 %v828
        %v1003 = vpop.f32.mrb[0].mxu0
        %v1004 = vadd.f32 0.0, %v1003
        %v1005 = vpop.f32.mrb[0].mxu0
        %1006 = vmatprep.mubr.f32.mxu0 0.0
        %1007 = vmatmul.mubr.f32.gmra.mrb[0].mxu0 %v829
        %v1008 = vpop.f32.mrb[0].mxu0
        %v1009 = vadd.f32 0.0, %v1008
        %v1010 = vpop.f32.mrb[0].mxu0
        %1011 = vmatprep.mubr.f32.mxu0 0.0
        %1012 = vmatmul.mubr.f32.gmra.mrb[0].mxu0 %v830
        %v1013 = vpop.f32.mrb[0].mxu0
        %v1014 = vadd.f32 0.0, %v1013
        %v1015 = vpop.f32.mrb[0].mxu0
        %1016 = vmatprep.mubr.f32.mxu0 0.0
        %1017 = vmatmul.mubr.f32.gmra.mrb[0].mxu0 %v831
        %v1018 = vpop.f32.mrb[0].mxu0
        %v1019 = vadd.f32 0.0, %v1018
        %v1020 = vpop.f32.mrb[0].mxu0
        %1021 = vmatprep.mubr.f32.mxu0 0.0
        %1022 = vmatmul.mubr.f32.gmra.mrb[0].mxu0 %v832
        %v1023 = vpop.f32.mrb[0].mxu0
        %v1024 = vadd.f32 0.0, %v1023
        %v1025 = vpop.f32.mrb[0].mxu0
        %1026 = vmatprep.mubr.f32.mxu0 0.0
        %1027 = vmatmul.mubr.f32.gmra.mrb[0].mxu0 %v833
        %v1028 = vpop.f32.mrb[0].mxu0
        %v1029 = vadd.f32 0.0, %v1028
        %v1030 = vpop.f32.mrb[0].mxu0
        %1031 = vmatprep.mubr.f32.mxu0 0.0
        %1032 = vmatmul.mubr.f32.gmra.mrb[0].mxu0 %v834
        %v1033 = vpop.f32.mrb[0].mxu0
        %v1034 = vadd.f32 0.0, %v1033
        %v1035 = vpop.f32.mrb[0].mxu0
        %1036 = vmatprep.mubr.f32.mxu0 0.0
        %1037 = vmatmul.mubr.f32.gmra.mrb[0].mxu0 %v835
        %v1038 = vpop.f32.mrb[0].mxu0
        %v1039 = vadd.f32 0.0, %v1038
        %v1040 = vpop.f32.mrb[0].mxu0
        %1041 = vmatprep.mubr.f32.mxu0 0.0
        %1042 = vmatmul.mubr.f32.gmra.mrb[0].mxu0 %v836
        %v1043 = vpop.f32.mrb[0].mxu0
        %v1044 = vadd.f32 0.0, %v1043
        %v1045 = vpop.f32.mrb[0].mxu0
        %1046 = vmatprep.mubr.f32.mxu0 0.0
        %1047 = vmatmul.mubr.f32.gmra.mrb[0].mxu0 %v837
        %v1048 = vpop.f32.mrb[0].mxu0
        %v1049 = vadd.f32 0.0, %v1048
        %v1050 = vpop.f32.mrb[0].mxu0
        %1051 = vmatprep.mubr.f32.mxu0 0.0
        %1052 = vmatmul.mubr.f32.gmra.mrb[0].mxu0 %v838
        %v1053 = vpop.f32.mrb[0].mxu0
        %v1054 = vadd.f32 0.0, %v1053
        %v1055 = vpop.f32.mrb[0].mxu0
        %1056 = vmatprep.mubr.f32.mxu0 0.0
        %1057 = vmatmul.mubr.f32.gmra.mrb[0].mxu0 %v839
        %v1058 = vpop.f32.mrb[0].mxu0
        %v1059 = vadd.f32 0.0, %v1058
        %v1060 = vpop.f32.mrb[0].mxu0
        %1061 = vmatprep.mubr.f32.mxu0 0.0
        %1062 = vmatmul.mubr.f32.gmra.mrb[0].mxu0 %v840
        %v1063 = vpop.f32.mrb[0].mxu0
        %v1064 = vadd.f32 0.0, %v1063
        %v1065 = vpop.f32.mrb[0].mxu0
        %1066 = vmatprep.mubr.f32.mxu0 0.0
        %1067 = vmatmul.mubr.f32.gmra.mrb[0].mxu0 %v841
        %v1068 = vpop.f32.mrb[0].mxu0
        %v1069 = vadd.f32 0.0, %v1068
        %v1070 = vpop.f32.mrb[0].mxu0
        %1071 = vmatprep.mubr.f32.mxu0 0.0
        %1072 = vmatmul.mubr.f32.gmra.mrb[0].mxu0 %v842
        %v1073 = vpop.f32.mrb[0].mxu0
        %v1074 = vadd.f32 0.0, %v1073
        %v1075 = vpop.f32.mrb[0].mxu0
        %1076 = vmatprep.mubr.f32.mxu0 0.0
        %1077 = vmatmul.mubr.f32.gmra.mrb[0].mxu0 %v843
        %v1078 = vpop.f32.mrb[0].mxu0
        %v1079 = vadd.f32 0.0, %v1078
        %v1080 = vpop.f32.mrb[0].mxu0
        %1081 = vmatprep.mubr.f32.mxu0 0.0
        %1082 = vmatmul.mubr.f32.gmra.mrb[0].mxu0 %v844
        %v1083 = vpop.f32.mrb[0].mxu0
        %v1084 = vadd.f32 0.0, %v1083
        %v1085 = vpop.f32.mrb[0].mxu0
        %1086 = vdwg.mxu0
        %v1087 = vadd.f32 %v655, %v929
        %v1088 = vadd.f32 %v660, %v934
        %v1089 = vadd.f32 %v665, %v939
        %v1090 = vadd.f32 %v670, %v944
        %v1091 = vadd.f32 %v675, %v949
        %v1092 = vadd.f32 %v680, %v954
        %v1093 = vadd.f32 %v685, %v959
        %v1094 = vadd.f32 %v690, %v964
        %v1095 = vadd.f32 %v695, %v969
        %v1096 = vadd.f32 %v700, %v974
        %v1097 = vadd.f32 %v705, %v979
        %v1098 = vadd.f32 %v710, %v984
        %v1099 = vadd.f32 %v715, %v989
        %v1100 = vadd.f32 %v720, %v994
        %v1101 = vadd.f32 %v725, %v999
        %v1102 = vadd.f32 %v730, %v1004
        %v1103 = vadd.f32 %v735, %v1009
        %v1104 = vadd.f32 %v740, %v1014
        %v1105 = vadd.f32 %v745, %v1019
        %v1106 = vadd.f32 %v750, %v1024
        %v1107 = vadd.f32 %v755, %v1029
        %v1108 = vadd.f32 %v760, %v1034
        %v1109 = vadd.f32 %v765, %v1039
        %v1110 = vadd.f32 %v770, %v1044
        %v1111 = vadd.f32 %v775, %v1049
        %v1112 = vadd.f32 %v780, %v1054
        %v1113 = vadd.f32 %v785, %v1059
        %v1114 = vadd.f32 %v790, %v1064
        %v1115 = vadd.f32 %v795, %v1069
        %v1116 = vadd.f32 %v800, %v1074
        %v1117 = vadd.f32 %v805, %v1079
        %v1118 = vadd.f32 %v810, %v1084
        %s1119 = scalar_lea.vmem %s265, 24
        %v1120 = vld [vmem:[%s1119] sm:$0xff]
        %v1121 = vld [vmem:[%s1119 + $0x8] sm:$0xff]
        %v1122 = vld [vmem:[%s1119 + $0x18] sm:$0xff]
        %v1123 = vld [vmem:[%s1119 + $0x20] sm:$0xff]
        %v1124 = vld [vmem:[%s1119 + $0x30] sm:$0xff]
        %v1125 = vld [vmem:[%s1119 + $0x38] sm:$0xff]
        %v1126 = vld [vmem:[%s1119 + $0x48] sm:$0xff]
        %v1127 = vld [vmem:[%s1119 + $0x50] sm:$0xff]
        %v1128 = vld [vmem:[%s1119 + $0x60] sm:$0xff]
        %v1129 = vld [vmem:[%s1119 + $0x68] sm:$0xff]
        %v1130 = vld [vmem:[%s1119 + $0x78] sm:$0xff]
        %v1131 = vld [vmem:[%s1119 + $0x80] sm:$0xff]
        %v1132 = vld [vmem:[%s1119 + $0x90] sm:$0xff]
        %v1133 = vld [vmem:[%s1119 + $0x98] sm:$0xff]
        %v1134 = vld [vmem:[%s1119 + $0xa8] sm:$0xff]
        %v1135 = vld [vmem:[%s1119 + $0xb0] sm:$0xff]
        %v1136 = vld [vmem:[%s1119 + $0xc0] sm:$0xff]
        %v1137 = vld [vmem:[%s1119 + $0xc8] sm:$0xff]
        %v1138 = vld [vmem:[%s1119 + $0xd8] sm:$0xff]
        %v1139 = vld [vmem:[%s1119 + $0xe0] sm:$0xff]
        %v1140 = vld [vmem:[%s1119 + $0xf0] sm:$0xff]
        %v1141 = vld [vmem:[%s1119 + $0xf8] sm:$0xff]
        %v1142 = vld [vmem:[%s1119 + $0x108] sm:$0xff]
        %v1143 = vld [vmem:[%s1119 + $0x110] sm:$0xff]
        %v1144 = vld [vmem:[%s1119 + $0x120] sm:$0xff]
        %v1145 = vld [vmem:[%s1119 + $0x128] sm:$0xff]
        %v1146 = vld [vmem:[%s1119 + $0x138] sm:$0xff]
        %v1147 = vld [vmem:[%s1119 + $0x140] sm:$0xff]
        %v1148 = vld [vmem:[%s1119 + $0x150] sm:$0xff]
        %v1149 = vld [vmem:[%s1119 + $0x158] sm:$0xff]
        %v1150 = vld [vmem:[%s1119 + $0x168] sm:$0xff]
        %v1151 = vld [vmem:[%s1119 + $0x170] sm:$0xff]
        %s1152 = scalar_lea.vmem %s1, 384
        %v1153 = vld [vmem:[%s1152] sm:$0xff]
        %v1154 = vld [vmem:[%s1152 + $0x8] sm:$0xff]
        %v1155 = vld [vmem:[%s1152 + $0x10] sm:$0xff]
        %v1156 = vld [vmem:[%s1152 + $0x18] sm:$0xff]
        %v1157 = vld [vmem:[%s1152 + $0x20] sm:$0xff]
        %v1158 = vld [vmem:[%s1152 + $0x28] sm:$0xff]
        %v1159 = vld [vmem:[%s1152 + $0x30] sm:$0xff]
        %v1160 = vld [vmem:[%s1152 + $0x38] sm:$0xff]
        %v1161 = vld [vmem:[%s1152 + $0x40] sm:$0xff]
        %v1162 = vld [vmem:[%s1152 + $0x48] sm:$0xff]
        %v1163 = vld [vmem:[%s1152 + $0x50] sm:$0xff]
        %v1164 = vld [vmem:[%s1152 + $0x58] sm:$0xff]
        %v1165 = vld [vmem:[%s1152 + $0x60] sm:$0xff]
        %v1166 = vld [vmem:[%s1152 + $0x68] sm:$0xff]
        %v1167 = vld [vmem:[%s1152 + $0x70] sm:$0xff]
        %v1168 = vld [vmem:[%s1152 + $0x78] sm:$0xff]
        %1169 = vmatprep.subr.mxu0 0.0
        %1170 = vmatpush1.msra.mxu0 %v1153
        %1171 = vmatprep.subr.mxu0 0.0
        %1172 = vmatpush1.msra.mxu0 %v1154
        %1173 = vmatprep.subr.mxu0 0.0
        %1174 = vmatpush1.msra.mxu0 %v1155
        %1175 = vmatprep.subr.mxu0 0.0
        %1176 = vmatpush1.msra.mxu0 %v1156
        %1177 = vmatprep.subr.mxu0 0.0
        %1178 = vmatpush1.msra.mxu0 %v1157
        %1179 = vmatprep.subr.mxu0 0.0
        %1180 = vmatpush1.msra.mxu0 %v1158
        %1181 = vmatprep.subr.mxu0 0.0
        %1182 = vmatpush1.msra.mxu0 %v1159
        %1183 = vmatprep.subr.mxu0 0.0
        %1184 = vmatpush1.msra.mxu0 %v1160
        %1185 = vmatprep.subr.mxu0 0.0
        %1186 = vmatpush1.msra.mxu0 %v1161
        %1187 = vmatprep.subr.mxu0 0.0
        %1188 = vmatpush1.msra.mxu0 %v1162
        %1189 = vmatprep.subr.mxu0 0.0
        %1190 = vmatpush1.msra.mxu0 %v1163
        %1191 = vmatprep.subr.mxu0 0.0
        %1192 = vmatpush1.msra.mxu0 %v1164
        %1193 = vmatprep.subr.mxu0 0.0
        %1194 = vmatpush1.msra.mxu0 %v1165
        %1195 = vmatprep.subr.mxu0 0.0
        %1196 = vmatpush1.msra.mxu0 %v1166
        %1197 = vmatprep.subr.mxu0 0.0
        %1198 = vmatpush1.msra.mxu0 %v1167
        %1199 = vmatprep.subr.mxu0 0.0
        %1200 = vmatpush1.msra.mxu0 %v1168
        %1201 = vmatprep.subr.mxu0 0.0
        %1202 = vmatpush1.msra.mxu0 0.0
        %1203 = vmatprep.subr.mxu0 0.0
        %1204 = vmatpush1.msra.mxu0 0.0
        %1205 = vmatprep.subr.mxu0 0.0
        %1206 = vmatpush1.msra.mxu0 0.0
        %1207 = vmatprep.subr.mxu0 0.0
        %1208 = vmatpush1.msra.mxu0 0.0
        %1209 = vmatprep.subr.mxu0 0.0
        %1210 = vmatpush1.msra.mxu0 0.0
        %1211 = vmatprep.subr.mxu0 0.0
        %1212 = vmatpush1.msra.mxu0 0.0
        %1213 = vmatprep.subr.mxu0 0.0
        %1214 = vmatpush1.msra.mxu0 0.0
        %1215 = vmatprep.subr.mxu0 0.0
        %1216 = vmatpush1.msra.mxu0 0.0
        %1217 = vmatprep.subr.mxu0 0.0
        %1218 = vmatpush1.msra.mxu0 0.0
        %1219 = vmatprep.subr.mxu0 0.0
        %1220 = vmatpush1.msra.mxu0 0.0
        %1221 = vmatprep.subr.mxu0 0.0
        %1222 = vmatpush1.msra.mxu0 0.0
        %1223 = vmatprep.subr.mxu0 0.0
        %1224 = vmatpush1.msra.mxu0 0.0
        %1225 = vmatprep.subr.mxu0 0.0
        %1226 = vmatpush1.msra.mxu0 0.0
        %1227 = vmatprep.subr.mxu0 0.0
        %1228 = vmatpush1.msra.mxu0 0.0
        %1229 = vmatprep.subr.mxu0 0.0
        %1230 = vmatpush1.msra.mxu0 0.0
        %1231 = vmatprep.subr.mxu0 0.0
        %1232 = vmatpush1.msra.mxu0 0.0
        %1233 = vmatprep.mubr.f32.mxu0 0.0
        %1234 = vmatmul.mubr.f32.gmra.mrb[0].mxu0 %v1120
        %v1235 = vpop.f32.mrb[0].mxu0
        %v1236 = vadd.f32 0.0, %v1235
        %v1237 = vpop.f32.mrb[0].mxu0
        %1238 = vmatprep.mubr.f32.mxu0 0.0
        %1239 = vmatmul.mubr.f32.gmra.mrb[0].mxu0 %v1121
        %v1240 = vpop.f32.mrb[0].mxu0
        %v1241 = vadd.f32 0.0, %v1240
        %v1242 = vpop.f32.mrb[0].mxu0
        %1243 = vmatprep.mubr.f32.mxu0 0.0
        %1244 = vmatmul.mubr.f32.gmra.mrb[0].mxu0 %v1122
        %v1245 = vpop.f32.mrb[0].mxu0
        %v1246 = vadd.f32 0.0, %v1245
        %v1247 = vpop.f32.mrb[0].mxu0
        %1248 = vmatprep.mubr.f32.mxu0 0.0
        %1249 = vmatmul.mubr.f32.gmra.mrb[0].mxu0 %v1123
        %v1250 = vpop.f32.mrb[0].mxu0
        %v1251 = vadd.f32 0.0, %v1250
        %v1252 = vpop.f32.mrb[0].mxu0
        %1253 = vmatprep.mubr.f32.mxu0 0.0
        %1254 = vmatmul.mubr.f32.gmra.mrb[0].mxu0 %v1124
        %v1255 = vpop.f32.mrb[0].mxu0
        %v1256 = vadd.f32 0.0, %v1255
        %v1257 = vpop.f32.mrb[0].mxu0
        %1258 = vmatprep.mubr.f32.mxu0 0.0
        %1259 = vmatmul.mubr.f32.gmra.mrb[0].mxu0 %v1125
        %v1260 = vpop.f32.mrb[0].mxu0
        %v1261 = vadd.f32 0.0, %v1260
        %v1262 = vpop.f32.mrb[0].mxu0
        %1263 = vmatprep.mubr.f32.mxu0 0.0
        %1264 = vmatmul.mubr.f32.gmra.mrb[0].mxu0 %v1126
        %v1265 = vpop.f32.mrb[0].mxu0
        %v1266 = vadd.f32 0.0, %v1265
        %v1267 = vpop.f32.mrb[0].mxu0
        %1268 = vmatprep.mubr.f32.mxu0 0.0
        %1269 = vmatmul.mubr.f32.gmra.mrb[0].mxu0 %v1127
        %v1270 = vpop.f32.mrb[0].mxu0
        %v1271 = vadd.f32 0.0, %v1270
        %v1272 = vpop.f32.mrb[0].mxu0
        %1273 = vmatprep.mubr.f32.mxu0 0.0
        %1274 = vmatmul.mubr.f32.gmra.mrb[0].mxu0 %v1128
        %v1275 = vpop.f32.mrb[0].mxu0
        %v1276 = vadd.f32 0.0, %v1275
        %v1277 = vpop.f32.mrb[0].mxu0
        %1278 = vmatprep.mubr.f32.mxu0 0.0
        %1279 = vmatmul.mubr.f32.gmra.mrb[0].mxu0 %v1129
        %v1280 = vpop.f32.mrb[0].mxu0
        %v1281 = vadd.f32 0.0, %v1280
        %v1282 = vpop.f32.mrb[0].mxu0
        %1283 = vmatprep.mubr.f32.mxu0 0.0
        %1284 = vmatmul.mubr.f32.gmra.mrb[0].mxu0 %v1130
        %v1285 = vpop.f32.mrb[0].mxu0
        %v1286 = vadd.f32 0.0, %v1285
        %v1287 = vpop.f32.mrb[0].mxu0
        %1288 = vmatprep.mubr.f32.mxu0 0.0
        %1289 = vmatmul.mubr.f32.gmra.mrb[0].mxu0 %v1131
        %v1290 = vpop.f32.mrb[0].mxu0
        %v1291 = vadd.f32 0.0, %v1290
        %v1292 = vpop.f32.mrb[0].mxu0
        %1293 = vmatprep.mubr.f32.mxu0 0.0
        %1294 = vmatmul.mubr.f32.gmra.mrb[0].mxu0 %v1132
        %v1295 = vpop.f32.mrb[0].mxu0
        %v1296 = vadd.f32 0.0, %v1295
        %v1297 = vpop.f32.mrb[0].mxu0
        %1298 = vmatprep.mubr.f32.mxu0 0.0
        %1299 = vmatmul.mubr.f32.gmra.mrb[0].mxu0 %v1133
        %v1300 = vpop.f32.mrb[0].mxu0
        %v1301 = vadd.f32 0.0, %v1300
        %v1302 = vpop.f32.mrb[0].mxu0
        %1303 = vmatprep.mubr.f32.mxu0 0.0
        %1304 = vmatmul.mubr.f32.gmra.mrb[0].mxu0 %v1134
        %v1305 = vpop.f32.mrb[0].mxu0
        %v1306 = vadd.f32 0.0, %v1305
        %v1307 = vpop.f32.mrb[0].mxu0
        %1308 = vmatprep.mubr.f32.mxu0 0.0
        %1309 = vmatmul.mubr.f32.gmra.mrb[0].mxu0 %v1135
        %v1310 = vpop.f32.mrb[0].mxu0
        %v1311 = vadd.f32 0.0, %v1310
        %v1312 = vpop.f32.mrb[0].mxu0
        %1313 = vmatprep.mubr.f32.mxu0 0.0
        %1314 = vmatmul.mubr.f32.gmra.mrb[0].mxu0 %v1136
        %v1315 = vpop.f32.mrb[0].mxu0
        %v1316 = vadd.f32 0.0, %v1315
        %v1317 = vpop.f32.mrb[0].mxu0
        %1318 = vmatprep.mubr.f32.mxu0 0.0
        %1319 = vmatmul.mubr.f32.gmra.mrb[0].mxu0 %v1137
        %v1320 = vpop.f32.mrb[0].mxu0
        %v1321 = vadd.f32 0.0, %v1320
        %v1322 = vpop.f32.mrb[0].mxu0
        %1323 = vmatprep.mubr.f32.mxu0 0.0
        %1324 = vmatmul.mubr.f32.gmra.mrb[0].mxu0 %v1138
        %v1325 = vpop.f32.mrb[0].mxu0
        %v1326 = vadd.f32 0.0, %v1325
        %v1327 = vpop.f32.mrb[0].mxu0
        %1328 = vmatprep.mubr.f32.mxu0 0.0
        %1329 = vmatmul.mubr.f32.gmra.mrb[0].mxu0 %v1139
        %v1330 = vpop.f32.mrb[0].mxu0
        %v1331 = vadd.f32 0.0, %v1330
        %v1332 = vpop.f32.mrb[0].mxu0
        %1333 = vmatprep.mubr.f32.mxu0 0.0
        %1334 = vmatmul.mubr.f32.gmra.mrb[0].mxu0 %v1140
        %v1335 = vpop.f32.mrb[0].mxu0
        %v1336 = vadd.f32 0.0, %v1335
        %v1337 = vpop.f32.mrb[0].mxu0
        %1338 = vmatprep.mubr.f32.mxu0 0.0
        %1339 = vmatmul.mubr.f32.gmra.mrb[0].mxu0 %v1141
        %v1340 = vpop.f32.mrb[0].mxu0
        %v1341 = vadd.f32 0.0, %v1340
        %v1342 = vpop.f32.mrb[0].mxu0
        %1343 = vmatprep.mubr.f32.mxu0 0.0
        %1344 = vmatmul.mubr.f32.gmra.mrb[0].mxu0 %v1142
        %v1345 = vpop.f32.mrb[0].mxu0
        %v1346 = vadd.f32 0.0, %v1345
        %v1347 = vpop.f32.mrb[0].mxu0
        %1348 = vmatprep.mubr.f32.mxu0 0.0
        %1349 = vmatmul.mubr.f32.gmra.mrb[0].mxu0 %v1143
        %v1350 = vpop.f32.mrb[0].mxu0
        %v1351 = vadd.f32 0.0, %v1350
        %v1352 = vpop.f32.mrb[0].mxu0
        %1353 = vmatprep.mubr.f32.mxu0 0.0
        %1354 = vmatmul.mubr.f32.gmra.mrb[0].mxu0 %v1144
        %v1355 = vpop.f32.mrb[0].mxu0
        %v1356 = vadd.f32 0.0, %v1355
        %v1357 = vpop.f32.mrb[0].mxu0
        %1358 = vmatprep.mubr.f32.mxu0 0.0
        %1359 = vmatmul.mubr.f32.gmra.mrb[0].mxu0 %v1145
        %v1360 = vpop.f32.mrb[0].mxu0
        %v1361 = vadd.f32 0.0, %v1360
        %v1362 = vpop.f32.mrb[0].mxu0
        %1363 = vmatprep.mubr.f32.mxu0 0.0
        %1364 = vmatmul.mubr.f32.gmra.mrb[0].mxu0 %v1146
        %v1365 = vpop.f32.mrb[0].mxu0
        %v1366 = vadd.f32 0.0, %v1365
        %v1367 = vpop.f32.mrb[0].mxu0
        %1368 = vmatprep.mubr.f32.mxu0 0.0
        %1369 = vmatmul.mubr.f32.gmra.mrb[0].mxu0 %v1147
        %v1370 = vpop.f32.mrb[0].mxu0
        %v1371 = vadd.f32 0.0, %v1370
        %v1372 = vpop.f32.mrb[0].mxu0
        %1373 = vmatprep.mubr.f32.mxu0 0.0
        %1374 = vmatmul.mubr.f32.gmra.mrb[0].mxu0 %v1148
        %v1375 = vpop.f32.mrb[0].mxu0
        %v1376 = vadd.f32 0.0, %v1375
        %v1377 = vpop.f32.mrb[0].mxu0
        %1378 = vmatprep.mubr.f32.mxu0 0.0
        %1379 = vmatmul.mubr.f32.gmra.mrb[0].mxu0 %v1149
        %v1380 = vpop.f32.mrb[0].mxu0
        %v1381 = vadd.f32 0.0, %v1380
        %v1382 = vpop.f32.mrb[0].mxu0
        %1383 = vmatprep.mubr.f32.mxu0 0.0
        %1384 = vmatmul.mubr.f32.gmra.mrb[0].mxu0 %v1150
        %v1385 = vpop.f32.mrb[0].mxu0
        %v1386 = vadd.f32 0.0, %v1385
        %v1387 = vpop.f32.mrb[0].mxu0
        %1388 = vmatprep.mubr.f32.mxu0 0.0
        %1389 = vmatmul.mubr.f32.gmra.mrb[0].mxu0 %v1151
        %v1390 = vpop.f32.mrb[0].mxu0
        %v1391 = vadd.f32 0.0, %v1390
        %v1392 = vpop.f32.mrb[0].mxu0
        %1393 = vdwg.mxu0
        %v1394 = vadd.f32 %v1087, %v1236
        %v1395 = vadd.f32 %v1088, %v1241
        %v1396 = vadd.f32 %v1089, %v1246
        %v1397 = vadd.f32 %v1090, %v1251
        %v1398 = vadd.f32 %v1091, %v1256
        %v1399 = vadd.f32 %v1092, %v1261
        %v1400 = vadd.f32 %v1093, %v1266
        %v1401 = vadd.f32 %v1094, %v1271
        %v1402 = vadd.f32 %v1095, %v1276
        %v1403 = vadd.f32 %v1096, %v1281
        %v1404 = vadd.f32 %v1097, %v1286
        %v1405 = vadd.f32 %v1098, %v1291
        %v1406 = vadd.f32 %v1099, %v1296
        %v1407 = vadd.f32 %v1100, %v1301
        %v1408 = vadd.f32 %v1101, %v1306
        %v1409 = vadd.f32 %v1102, %v1311
        %v1410 = vadd.f32 %v1103, %v1316
        %v1411 = vadd.f32 %v1104, %v1321
        %v1412 = vadd.f32 %v1105, %v1326
        %v1413 = vadd.f32 %v1106, %v1331
        %v1414 = vadd.f32 %v1107, %v1336
        %v1415 = vadd.f32 %v1108, %v1341
        %v1416 = vadd.f32 %v1109, %v1346
        %v1417 = vadd.f32 %v1110, %v1351
        %v1418 = vadd.f32 %v1111, %v1356
        %v1419 = vadd.f32 %v1112, %v1361
        %v1420 = vadd.f32 %v1113, %v1366
        %v1421 = vadd.f32 %v1114, %v1371
        %v1422 = vadd.f32 %v1115, %v1376
        %v1423 = vadd.f32 %v1116, %v1381
        %v1424 = vadd.f32 %v1117, %v1386
        %v1425 = vadd.f32 %v1118, %v1391
        %v1426 = vld [vmem:[%s1119 + $0x1] sm:$0xff]
        %v1427 = vld [vmem:[%s1119 + $0x9] sm:$0xff]
        %v1428 = vld [vmem:[%s1119 + $0x19] sm:$0xff]
        %v1429 = vld [vmem:[%s1119 + $0x21] sm:$0xff]
        %v1430 = vld [vmem:[%s1119 + $0x31] sm:$0xff]
        %v1431 = vld [vmem:[%s1119 + $0x39] sm:$0xff]
        %v1432 = vld [vmem:[%s1119 + $0x49] sm:$0xff]
        %v1433 = vld [vmem:[%s1119 + $0x51] sm:$0xff]
        %v1434 = vld [vmem:[%s1119 + $0x61] sm:$0xff]
        %v1435 = vld [vmem:[%s1119 + $0x69] sm:$0xff]
        %v1436 = vld [vmem:[%s1119 + $0x79] sm:$0xff]
        %v1437 = vld [vmem:[%s1119 + $0x81] sm:$0xff]
        %v1438 = vld [vmem:[%s1119 + $0x91] sm:$0xff]
        %v1439 = vld [vmem:[%s1119 + $0x99] sm:$0xff]
        %v1440 = vld [vmem:[%s1119 + $0xa9] sm:$0xff]
        %v1441 = vld [vmem:[%s1119 + $0xb1] sm:$0xff]
        %v1442 = vld [vmem:[%s1119 + $0xc1] sm:$0xff]
        %v1443 = vld [vmem:[%s1119 + $0xc9] sm:$0xff]
        %v1444 = vld [vmem:[%s1119 + $0xd9] sm:$0xff]
        %v1445 = vld [vmem:[%s1119 + $0xe1] sm:$0xff]
        %v1446 = vld [vmem:[%s1119 + $0xf1] sm:$0xff]
        %v1447 = vld [vmem:[%s1119 + $0xf9] sm:$0xff]
        %v1448 = vld [vmem:[%s1119 + $0x109] sm:$0xff]
        %v1449 = vld [vmem:[%s1119 + $0x111] sm:$0xff]
        %v1450 = vld [vmem:[%s1119 + $0x121] sm:$0xff]
        %v1451 = vld [vmem:[%s1119 + $0x129] sm:$0xff]
        %v1452 = vld [vmem:[%s1119 + $0x139] sm:$0xff]
        %v1453 = vld [vmem:[%s1119 + $0x141] sm:$0xff]
        %v1454 = vld [vmem:[%s1119 + $0x151] sm:$0xff]
        %v1455 = vld [vmem:[%s1119 + $0x159] sm:$0xff]
        %v1456 = vld [vmem:[%s1119 + $0x169] sm:$0xff]
        %v1457 = vld [vmem:[%s1119 + $0x171] sm:$0xff]
        %s1458 = scalar_lea.vmem %s1, 512
        %v1459 = vld [vmem:[%s1458] sm:$0xff]
        %v1460 = vld [vmem:[%s1458 + $0x8] sm:$0xff]
        %v1461 = vld [vmem:[%s1458 + $0x10] sm:$0xff]
        %v1462 = vld [vmem:[%s1458 + $0x18] sm:$0xff]
        %v1463 = vld [vmem:[%s1458 + $0x20] sm:$0xff]
        %v1464 = vld [vmem:[%s1458 + $0x28] sm:$0xff]
        %v1465 = vld [vmem:[%s1458 + $0x30] sm:$0xff]
        %v1466 = vld [vmem:[%s1458 + $0x38] sm:$0xff]
        %v1467 = vld [vmem:[%s1458 + $0x40] sm:$0xff]
        %v1468 = vld [vmem:[%s1458 + $0x48] sm:$0xff]
        %v1469 = vld [vmem:[%s1458 + $0x50] sm:$0xff]
        %v1470 = vld [vmem:[%s1458 + $0x58] sm:$0xff]
        %v1471 = vld [vmem:[%s1458 + $0x60] sm:$0xff]
        %v1472 = vld [vmem:[%s1458 + $0x68] sm:$0xff]
        %v1473 = vld [vmem:[%s1458 + $0x70] sm:$0xff]
        %v1474 = vld [vmem:[%s1458 + $0x78] sm:$0xff]
        %1475 = vmatprep.subr.mxu0 0.0
        %1476 = vmatpush1.msra.mxu0 %v1459
        %1477 = vmatprep.subr.mxu0 0.0
        %1478 = vmatpush1.msra.mxu0 %v1460
        %1479 = vmatprep.subr.mxu0 0.0
        %1480 = vmatpush1.msra.mxu0 %v1461
        %1481 = vmatprep.subr.mxu0 0.0
        %1482 = vmatpush1.msra.mxu0 %v1462
        %1483 = vmatprep.subr.mxu0 0.0
        %1484 = vmatpush1.msra.mxu0 %v1463
        %1485 = vmatprep.subr.mxu0 0.0
        %1486 = vmatpush1.msra.mxu0 %v1464
        %1487 = vmatprep.subr.mxu0 0.0
        %1488 = vmatpush1.msra.mxu0 %v1465
        %1489 = vmatprep.subr.mxu0 0.0
        %1490 = vmatpush1.msra.mxu0 %v1466
        %1491 = vmatprep.subr.mxu0 0.0
        %1492 = vmatpush1.msra.mxu0 %v1467
        %1493 = vmatprep.subr.mxu0 0.0
        %1494 = vmatpush1.msra.mxu0 %v1468
        %1495 = vmatprep.subr.mxu0 0.0
        %1496 = vmatpush1.msra.mxu0 %v1469
        %1497 = vmatprep.subr.mxu0 0.0
        %1498 = vmatpush1.msra.mxu0 %v1470
        %1499 = vmatprep.subr.mxu0 0.0
        %1500 = vmatpush1.msra.mxu0 %v1471
        %1501 = vmatprep.subr.mxu0 0.0
        %1502 = vmatpush1.msra.mxu0 %v1472
        %1503 = vmatprep.subr.mxu0 0.0
        %1504 = vmatpush1.msra.mxu0 %v1473
        %1505 = vmatprep.subr.mxu0 0.0
        %1506 = vmatpush1.msra.mxu0 %v1474
        %1507 = vmatprep.subr.mxu0 0.0
        %1508 = vmatpush1.msra.mxu0 0.0
        %1509 = vmatprep.subr.mxu0 0.0
        %1510 = vmatpush1.msra.mxu0 0.0
        %1511 = vmatprep.subr.mxu0 0.0
        %1512 = vmatpush1.msra.mxu0 0.0
        %1513 = vmatprep.subr.mxu0 0.0
        %1514 = vmatpush1.msra.mxu0 0.0
        %1515 = vmatprep.subr.mxu0 0.0
        %1516 = vmatpush1.msra.mxu0 0.0
        %1517 = vmatprep.subr.mxu0 0.0
        %1518 = vmatpush1.msra.mxu0 0.0
        %1519 = vmatprep.subr.mxu0 0.0
        %1520 = vmatpush1.msra.mxu0 0.0
        %1521 = vmatprep.subr.mxu0 0.0
        %1522 = vmatpush1.msra.mxu0 0.0
        %1523 = vmatprep.subr.mxu0 0.0
        %1524 = vmatpush1.msra.mxu0 0.0
        %1525 = vmatprep.subr.mxu0 0.0
        %1526 = vmatpush1.msra.mxu0 0.0
        %1527 = vmatprep.subr.mxu0 0.0
        %1528 = vmatpush1.msra.mxu0 0.0
        %1529 = vmatprep.subr.mxu0 0.0
        %1530 = vmatpush1.msra.mxu0 0.0
        %1531 = vmatprep.subr.mxu0 0.0
        %1532 = vmatpush1.msra.mxu0 0.0
        %1533 = vmatprep.subr.mxu0 0.0
        %1534 = vmatpush1.msra.mxu0 0.0
        %1535 = vmatprep.subr.mxu0 0.0
        %1536 = vmatpush1.msra.mxu0 0.0
        %1537 = vmatprep.subr.mxu0 0.0
        %1538 = vmatpush1.msra.mxu0 0.0
        %1539 = vmatprep.mubr.f32.mxu0 0.0
        %1540 = vmatmul.mubr.f32.gmra.mrb[0].mxu0 %v1426
        %v1541 = vpop.f32.mrb[0].mxu0
        %v1542 = vadd.f32 0.0, %v1541
        %v1543 = vpop.f32.mrb[0].mxu0
        %1544 = vmatprep.mubr.f32.mxu0 0.0
        %1545 = vmatmul.mubr.f32.gmra.mrb[0].mxu0 %v1427
        %v1546 = vpop.f32.mrb[0].mxu0
        %v1547 = vadd.f32 0.0, %v1546
        %v1548 = vpop.f32.mrb[0].mxu0
        %1549 = vmatprep.mubr.f32.mxu0 0.0
        %1550 = vmatmul.mubr.f32.gmra.mrb[0].mxu0 %v1428
        %v1551 = vpop.f32.mrb[0].mxu0
        %v1552 = vadd.f32 0.0, %v1551
        %v1553 = vpop.f32.mrb[0].mxu0
        %1554 = vmatprep.mubr.f32.mxu0 0.0
        %1555 = vmatmul.mubr.f32.gmra.mrb[0].mxu0 %v1429
        %v1556 = vpop.f32.mrb[0].mxu0
        %v1557 = vadd.f32 0.0, %v1556
        %v1558 = vpop.f32.mrb[0].mxu0
        %1559 = vmatprep.mubr.f32.mxu0 0.0
        %1560 = vmatmul.mubr.f32.gmra.mrb[0].mxu0 %v1430
        %v1561 = vpop.f32.mrb[0].mxu0
        %v1562 = vadd.f32 0.0, %v1561
        %v1563 = vpop.f32.mrb[0].mxu0
        %1564 = vmatprep.mubr.f32.mxu0 0.0
        %1565 = vmatmul.mubr.f32.gmra.mrb[0].mxu0 %v1431
        %v1566 = vpop.f32.mrb[0].mxu0
        %v1567 = vadd.f32 0.0, %v1566
        %v1568 = vpop.f32.mrb[0].mxu0
        %1569 = vmatprep.mubr.f32.mxu0 0.0
        %1570 = vmatmul.mubr.f32.gmra.mrb[0].mxu0 %v1432
        %v1571 = vpop.f32.mrb[0].mxu0
        %v1572 = vadd.f32 0.0, %v1571
        %v1573 = vpop.f32.mrb[0].mxu0
        %1574 = vmatprep.mubr.f32.mxu0 0.0
        %1575 = vmatmul.mubr.f32.gmra.mrb[0].mxu0 %v1433
        %v1576 = vpop.f32.mrb[0].mxu0
        %v1577 = vadd.f32 0.0, %v1576
        %v1578 = vpop.f32.mrb[0].mxu0
        %1579 = vmatprep.mubr.f32.mxu0 0.0
        %1580 = vmatmul.mubr.f32.gmra.mrb[0].mxu0 %v1434
        %v1581 = vpop.f32.mrb[0].mxu0
        %v1582 = vadd.f32 0.0, %v1581
        %v1583 = vpop.f32.mrb[0].mxu0
        %1584 = vmatprep.mubr.f32.mxu0 0.0
        %1585 = vmatmul.mubr.f32.gmra.mrb[0].mxu0 %v1435
        %v1586 = vpop.f32.mrb[0].mxu0
        %v1587 = vadd.f32 0.0, %v1586
        %v1588 = vpop.f32.mrb[0].mxu0
        %1589 = vmatprep.mubr.f32.mxu0 0.0
        %1590 = vmatmul.mubr.f32.gmra.mrb[0].mxu0 %v1436
        %v1591 = vpop.f32.mrb[0].mxu0
        %v1592 = vadd.f32 0.0, %v1591
        %v1593 = vpop.f32.mrb[0].mxu0
        %1594 = vmatprep.mubr.f32.mxu0 0.0
        %1595 = vmatmul.mubr.f32.gmra.mrb[0].mxu0 %v1437
        %v1596 = vpop.f32.mrb[0].mxu0
        %v1597 = vadd.f32 0.0, %v1596
        %v1598 = vpop.f32.mrb[0].mxu0
        %1599 = vmatprep.mubr.f32.mxu0 0.0
        %1600 = vmatmul.mubr.f32.gmra.mrb[0].mxu0 %v1438
        %v1601 = vpop.f32.mrb[0].mxu0
        %v1602 = vadd.f32 0.0, %v1601
        %v1603 = vpop.f32.mrb[0].mxu0
        %1604 = vmatprep.mubr.f32.mxu0 0.0
        %1605 = vmatmul.mubr.f32.gmra.mrb[0].mxu0 %v1439
        %v1606 = vpop.f32.mrb[0].mxu0
        %v1607 = vadd.f32 0.0, %v1606
        %v1608 = vpop.f32.mrb[0].mxu0
        %1609 = vmatprep.mubr.f32.mxu0 0.0
        %1610 = vmatmul.mubr.f32.gmra.mrb[0].mxu0 %v1440
        %v1611 = vpop.f32.mrb[0].mxu0
        %v1612 = vadd.f32 0.0, %v1611
        %v1613 = vpop.f32.mrb[0].mxu0
        %1614 = vmatprep.mubr.f32.mxu0 0.0
        %1615 = vmatmul.mubr.f32.gmra.mrb[0].mxu0 %v1441
        %v1616 = vpop.f32.mrb[0].mxu0
        %v1617 = vadd.f32 0.0, %v1616
        %v1618 = vpop.f32.mrb[0].mxu0
        %1619 = vmatprep.mubr.f32.mxu0 0.0
        %1620 = vmatmul.mubr.f32.gmra.mrb[0].mxu0 %v1442
        %v1621 = vpop.f32.mrb[0].mxu0
        %v1622 = vadd.f32 0.0, %v1621
        %v1623 = vpop.f32.mrb[0].mxu0
        %1624 = vmatprep.mubr.f32.mxu0 0.0
        %1625 = vmatmul.mubr.f32.gmra.mrb[0].mxu0 %v1443
        %v1626 = vpop.f32.mrb[0].mxu0
        %v1627 = vadd.f32 0.0, %v1626
        %v1628 = vpop.f32.mrb[0].mxu0
        %1629 = vmatprep.mubr.f32.mxu0 0.0
        %1630 = vmatmul.mubr.f32.gmra.mrb[0].mxu0 %v1444
        %v1631 = vpop.f32.mrb[0].mxu0
        %v1632 = vadd.f32 0.0, %v1631
        %v1633 = vpop.f32.mrb[0].mxu0
        %1634 = vmatprep.mubr.f32.mxu0 0.0
        %1635 = vmatmul.mubr.f32.gmra.mrb[0].mxu0 %v1445
        %v1636 = vpop.f32.mrb[0].mxu0
        %v1637 = vadd.f32 0.0, %v1636
        %v1638 = vpop.f32.mrb[0].mxu0
        %1639 = vmatprep.mubr.f32.mxu0 0.0
        %1640 = vmatmul.mubr.f32.gmra.mrb[0].mxu0 %v1446
        %v1641 = vpop.f32.mrb[0].mxu0
        %v1642 = vadd.f32 0.0, %v1641
        %v1643 = vpop.f32.mrb[0].mxu0
        %1644 = vmatprep.mubr.f32.mxu0 0.0
        %1645 = vmatmul.mubr.f32.gmra.mrb[0].mxu0 %v1447
        %v1646 = vpop.f32.mrb[0].mxu0
        %v1647 = vadd.f32 0.0, %v1646
        %v1648 = vpop.f32.mrb[0].mxu0
        %1649 = vmatprep.mubr.f32.mxu0 0.0
        %1650 = vmatmul.mubr.f32.gmra.mrb[0].mxu0 %v1448
        %v1651 = vpop.f32.mrb[0].mxu0
        %v1652 = vadd.f32 0.0, %v1651
        %v1653 = vpop.f32.mrb[0].mxu0
        %1654 = vmatprep.mubr.f32.mxu0 0.0
        %1655 = vmatmul.mubr.f32.gmra.mrb[0].mxu0 %v1449
        %v1656 = vpop.f32.mrb[0].mxu0
        %v1657 = vadd.f32 0.0, %v1656
        %v1658 = vpop.f32.mrb[0].mxu0
        %1659 = vmatprep.mubr.f32.mxu0 0.0
        %1660 = vmatmul.mubr.f32.gmra.mrb[0].mxu0 %v1450
        %v1661 = vpop.f32.mrb[0].mxu0
        %v1662 = vadd.f32 0.0, %v1661
        %v1663 = vpop.f32.mrb[0].mxu0
        %1664 = vmatprep.mubr.f32.mxu0 0.0
        %1665 = vmatmul.mubr.f32.gmra.mrb[0].mxu0 %v1451
        %v1666 = vpop.f32.mrb[0].mxu0
        %v1667 = vadd.f32 0.0, %v1666
        %v1668 = vpop.f32.mrb[0].mxu0
        %1669 = vmatprep.mubr.f32.mxu0 0.0
        %1670 = vmatmul.mubr.f32.gmra.mrb[0].mxu0 %v1452
        %v1671 = vpop.f32.mrb[0].mxu0
        %v1672 = vadd.f32 0.0, %v1671
        %v1673 = vpop.f32.mrb[0].mxu0
        %1674 = vmatprep.mubr.f32.mxu0 0.0
        %1675 = vmatmul.mubr.f32.gmra.mrb[0].mxu0 %v1453
        %v1676 = vpop.f32.mrb[0].mxu0
        %v1677 = vadd.f32 0.0, %v1676
        %v1678 = vpop.f32.mrb[0].mxu0
        %1679 = vmatprep.mubr.f32.mxu0 0.0
        %1680 = vmatmul.mubr.f32.gmra.mrb[0].mxu0 %v1454
        %v1681 = vpop.f32.mrb[0].mxu0
        %v1682 = vadd.f32 0.0, %v1681
        %v1683 = vpop.f32.mrb[0].mxu0
        %1684 = vmatprep.mubr.f32.mxu0 0.0
        %1685 = vmatmul.mubr.f32.gmra.mrb[0].mxu0 %v1455
        %v1686 = vpop.f32.mrb[0].mxu0
        %v1687 = vadd.f32 0.0, %v1686
        %v1688 = vpop.f32.mrb[0].mxu0
        %1689 = vmatprep.mubr.f32.mxu0 0.0
        %1690 = vmatmul.mubr.f32.gmra.mrb[0].mxu0 %v1456
        %v1691 = vpop.f32.mrb[0].mxu0
        %v1692 = vadd.f32 0.0, %v1691
        %v1693 = vpop.f32.mrb[0].mxu0
        %1694 = vmatprep.mubr.f32.mxu0 0.0
        %1695 = vmatmul.mubr.f32.gmra.mrb[0].mxu0 %v1457
        %v1696 = vpop.f32.mrb[0].mxu0
        %v1697 = vadd.f32 0.0, %v1696
        %v1698 = vpop.f32.mrb[0].mxu0
        %1699 = vdwg.mxu0
        %v1700 = vadd.f32 %v1394, %v1542
        %v1701 = vadd.f32 %v1395, %v1547
        %v1702 = vadd.f32 %v1396, %v1552
        %v1703 = vadd.f32 %v1397, %v1557
        %v1704 = vadd.f32 %v1398, %v1562
        %v1705 = vadd.f32 %v1399, %v1567
        %v1706 = vadd.f32 %v1400, %v1572
        %v1707 = vadd.f32 %v1401, %v1577
        %v1708 = vadd.f32 %v1402, %v1582
        %v1709 = vadd.f32 %v1403, %v1587
        %v1710 = vadd.f32 %v1404, %v1592
        %v1711 = vadd.f32 %v1405, %v1597
        %v1712 = vadd.f32 %v1406, %v1602
        %v1713 = vadd.f32 %v1407, %v1607
        %v1714 = vadd.f32 %v1408, %v1612
        %v1715 = vadd.f32 %v1409, %v1617
        %v1716 = vadd.f32 %v1410, %v1622
        %v1717 = vadd.f32 %v1411, %v1627
        %v1718 = vadd.f32 %v1412, %v1632
        %v1719 = vadd.f32 %v1413, %v1637
        %v1720 = vadd.f32 %v1414, %v1642
        %v1721 = vadd.f32 %v1415, %v1647
        %v1722 = vadd.f32 %v1416, %v1652
        %v1723 = vadd.f32 %v1417, %v1657
        %v1724 = vadd.f32 %v1418, %v1662
        %v1725 = vadd.f32 %v1419, %v1667
        %v1726 = vadd.f32 %v1420, %v1672
        %v1727 = vadd.f32 %v1421, %v1677
        %v1728 = vadd.f32 %v1422, %v1682
        %v1729 = vadd.f32 %v1423, %v1687
        %v1730 = vadd.f32 %v1424, %v1692
        %v1731 = vadd.f32 %v1425, %v1697
        %v1732 = vld [vmem:[%s1119 + $0x2] sm:$0xff]
        %v1733 = vld [vmem:[%s1119 + $0xa] sm:$0xff]
        %v1734 = vld [vmem:[%s1119 + $0x1a] sm:$0xff]
        %v1735 = vld [vmem:[%s1119 + $0x22] sm:$0xff]
        %v1736 = vld [vmem:[%s1119 + $0x32] sm:$0xff]
        %v1737 = vld [vmem:[%s1119 + $0x3a] sm:$0xff]
        %v1738 = vld [vmem:[%s1119 + $0x4a] sm:$0xff]
        %v1739 = vld [vmem:[%s1119 + $0x52] sm:$0xff]
        %v1740 = vld [vmem:[%s1119 + $0x62] sm:$0xff]
        %v1741 = vld [vmem:[%s1119 + $0x6a] sm:$0xff]
        %v1742 = vld [vmem:[%s1119 + $0x7a] sm:$0xff]
        %v1743 = vld [vmem:[%s1119 + $0x82] sm:$0xff]
        %v1744 = vld [vmem:[%s1119 + $0x92] sm:$0xff]
        %v1745 = vld [vmem:[%s1119 + $0x9a] sm:$0xff]
        %v1746 = vld [vmem:[%s1119 + $0xaa] sm:$0xff]
        %v1747 = vld [vmem:[%s1119 + $0xb2] sm:$0xff]
        %v1748 = vld [vmem:[%s1119 + $0xc2] sm:$0xff]
        %v1749 = vld [vmem:[%s1119 + $0xca] sm:$0xff]
        %v1750 = vld [vmem:[%s1119 + $0xda] sm:$0xff]
        %v1751 = vld [vmem:[%s1119 + $0xe2] sm:$0xff]
        %v1752 = vld [vmem:[%s1119 + $0xf2] sm:$0xff]
        %v1753 = vld [vmem:[%s1119 + $0xfa] sm:$0xff]
        %v1754 = vld [vmem:[%s1119 + $0x10a] sm:$0xff]
        %v1755 = vld [vmem:[%s1119 + $0x112] sm:$0xff]
        %v1756 = vld [vmem:[%s1119 + $0x122] sm:$0xff]
        %v1757 = vld [vmem:[%s1119 + $0x12a] sm:$0xff]
        %v1758 = vld [vmem:[%s1119 + $0x13a] sm:$0xff]
        %v1759 = vld [vmem:[%s1119 + $0x142] sm:$0xff]
        %v1760 = vld [vmem:[%s1119 + $0x152] sm:$0xff]
        %v1761 = vld [vmem:[%s1119 + $0x15a] sm:$0xff]
        %v1762 = vld [vmem:[%s1119 + $0x16a] sm:$0xff]
        %v1763 = vld [vmem:[%s1119 + $0x172] sm:$0xff]
        %s1764 = scalar_lea.vmem %s1, 640
        %v1765 = vld [vmem:[%s1764] sm:$0xff]
        %v1766 = vld [vmem:[%s1764 + $0x8] sm:$0xff]
        %v1767 = vld [vmem:[%s1764 + $0x10] sm:$0xff]
        %v1768 = vld [vmem:[%s1764 + $0x18] sm:$0xff]
        %v1769 = vld [vmem:[%s1764 + $0x20] sm:$0xff]
        %v1770 = vld [vmem:[%s1764 + $0x28] sm:$0xff]
        %v1771 = vld [vmem:[%s1764 + $0x30] sm:$0xff]
        %v1772 = vld [vmem:[%s1764 + $0x38] sm:$0xff]
        %v1773 = vld [vmem:[%s1764 + $0x40] sm:$0xff]
        %v1774 = vld [vmem:[%s1764 + $0x48] sm:$0xff]
        %v1775 = vld [vmem:[%s1764 + $0x50] sm:$0xff]
        %v1776 = vld [vmem:[%s1764 + $0x58] sm:$0xff]
        %v1777 = vld [vmem:[%s1764 + $0x60] sm:$0xff]
        %v1778 = vld [vmem:[%s1764 + $0x68] sm:$0xff]
        %v1779 = vld [vmem:[%s1764 + $0x70] sm:$0xff]
        %v1780 = vld [vmem:[%s1764 + $0x78] sm:$0xff]
        %1781 = vmatprep.subr.mxu0 0.0
        %1782 = vmatpush1.msra.mxu0 %v1765
        %1783 = vmatprep.subr.mxu0 0.0
        %1784 = vmatpush1.msra.mxu0 %v1766
        %1785 = vmatprep.subr.mxu0 0.0
        %1786 = vmatpush1.msra.mxu0 %v1767
        %1787 = vmatprep.subr.mxu0 0.0
        %1788 = vmatpush1.msra.mxu0 %v1768
        %1789 = vmatprep.subr.mxu0 0.0
        %1790 = vmatpush1.msra.mxu0 %v1769
        %1791 = vmatprep.subr.mxu0 0.0
        %1792 = vmatpush1.msra.mxu0 %v1770
        %1793 = vmatprep.subr.mxu0 0.0
        %1794 = vmatpush1.msra.mxu0 %v1771
        %1795 = vmatprep.subr.mxu0 0.0
        %1796 = vmatpush1.msra.mxu0 %v1772
        %1797 = vmatprep.subr.mxu0 0.0
        %1798 = vmatpush1.msra.mxu0 %v1773
        %1799 = vmatprep.subr.mxu0 0.0
        %1800 = vmatpush1.msra.mxu0 %v1774
        %1801 = vmatprep.subr.mxu0 0.0
        %1802 = vmatpush1.msra.mxu0 %v1775
        %1803 = vmatprep.subr.mxu0 0.0
        %1804 = vmatpush1.msra.mxu0 %v1776
        %1805 = vmatprep.subr.mxu0 0.0
        %1806 = vmatpush1.msra.mxu0 %v1777
        %1807 = vmatprep.subr.mxu0 0.0
        %1808 = vmatpush1.msra.mxu0 %v1778
        %1809 = vmatprep.subr.mxu0 0.0
        %1810 = vmatpush1.msra.mxu0 %v1779
        %1811 = vmatprep.subr.mxu0 0.0
        %1812 = vmatpush1.msra.mxu0 %v1780
        %1813 = vmatprep.subr.mxu0 0.0
        %1814 = vmatpush1.msra.mxu0 0.0
        %1815 = vmatprep.subr.mxu0 0.0
        %1816 = vmatpush1.msra.mxu0 0.0
        %1817 = vmatprep.subr.mxu0 0.0
        %1818 = vmatpush1.msra.mxu0 0.0
        %1819 = vmatprep.subr.mxu0 0.0
        %1820 = vmatpush1.msra.mxu0 0.0
        %1821 = vmatprep.subr.mxu0 0.0
        %1822 = vmatpush1.msra.mxu0 0.0
        %1823 = vmatprep.subr.mxu0 0.0
        %1824 = vmatpush1.msra.mxu0 0.0
        %1825 = vmatprep.subr.mxu0 0.0
        %1826 = vmatpush1.msra.mxu0 0.0
        %1827 = vmatprep.subr.mxu0 0.0
        %1828 = vmatpush1.msra.mxu0 0.0
        %1829 = vmatprep.subr.mxu0 0.0
        %1830 = vmatpush1.msra.mxu0 0.0
        %1831 = vmatprep.subr.mxu0 0.0
        %1832 = vmatpush1.msra.mxu0 0.0
        %1833 = vmatprep.subr.mxu0 0.0
        %1834 = vmatpush1.msra.mxu0 0.0
        %1835 = vmatprep.subr.mxu0 0.0
        %1836 = vmatpush1.msra.mxu0 0.0
        %1837 = vmatprep.subr.mxu0 0.0
        %1838 = vmatpush1.msra.mxu0 0.0
        %1839 = vmatprep.subr.mxu0 0.0
        %1840 = vmatpush1.msra.mxu0 0.0
        %1841 = vmatprep.subr.mxu0 0.0
        %1842 = vmatpush1.msra.mxu0 0.0
        %1843 = vmatprep.subr.mxu0 0.0
        %1844 = vmatpush1.msra.mxu0 0.0
        %1845 = vmatprep.mubr.f32.mxu0 0.0
        %1846 = vmatmul.mubr.f32.gmra.mrb[0].mxu0 %v1732
        %v1847 = vpop.f32.mrb[0].mxu0
        %v1848 = vadd.f32 0.0, %v1847
        %v1849 = vpop.f32.mrb[0].mxu0
        %1850 = vmatprep.mubr.f32.mxu0 0.0
        %1851 = vmatmul.mubr.f32.gmra.mrb[0].mxu0 %v1733
        %v1852 = vpop.f32.mrb[0].mxu0
        %v1853 = vadd.f32 0.0, %v1852
        %v1854 = vpop.f32.mrb[0].mxu0
        %1855 = vmatprep.mubr.f32.mxu0 0.0
        %1856 = vmatmul.mubr.f32.gmra.mrb[0].mxu0 %v1734
        %v1857 = vpop.f32.mrb[0].mxu0
        %v1858 = vadd.f32 0.0, %v1857
        %v1859 = vpop.f32.mrb[0].mxu0
        %1860 = vmatprep.mubr.f32.mxu0 0.0
        %1861 = vmatmul.mubr.f32.gmra.mrb[0].mxu0 %v1735
        %v1862 = vpop.f32.mrb[0].mxu0
        %v1863 = vadd.f32 0.0, %v1862
        %v1864 = vpop.f32.mrb[0].mxu0
        %1865 = vmatprep.mubr.f32.mxu0 0.0
        %1866 = vmatmul.mubr.f32.gmra.mrb[0].mxu0 %v1736
        %v1867 = vpop.f32.mrb[0].mxu0
        %v1868 = vadd.f32 0.0, %v1867
        %v1869 = vpop.f32.mrb[0].mxu0
        %1870 = vmatprep.mubr.f32.mxu0 0.0
        %1871 = vmatmul.mubr.f32.gmra.mrb[0].mxu0 %v1737
        %v1872 = vpop.f32.mrb[0].mxu0
        %v1873 = vadd.f32 0.0, %v1872
        %v1874 = vpop.f32.mrb[0].mxu0
        %1875 = vmatprep.mubr.f32.mxu0 0.0
        %1876 = vmatmul.mubr.f32.gmra.mrb[0].mxu0 %v1738
        %v1877 = vpop.f32.mrb[0].mxu0
        %v1878 = vadd.f32 0.0, %v1877
        %v1879 = vpop.f32.mrb[0].mxu0
        %1880 = vmatprep.mubr.f32.mxu0 0.0
        %1881 = vmatmul.mubr.f32.gmra.mrb[0].mxu0 %v1739
        %v1882 = vpop.f32.mrb[0].mxu0
        %v1883 = vadd.f32 0.0, %v1882
        %v1884 = vpop.f32.mrb[0].mxu0
        %1885 = vmatprep.mubr.f32.mxu0 0.0
        %1886 = vmatmul.mubr.f32.gmra.mrb[0].mxu0 %v1740
        %v1887 = vpop.f32.mrb[0].mxu0
        %v1888 = vadd.f32 0.0, %v1887
        %v1889 = vpop.f32.mrb[0].mxu0
        %1890 = vmatprep.mubr.f32.mxu0 0.0
        %1891 = vmatmul.mubr.f32.gmra.mrb[0].mxu0 %v1741
        %v1892 = vpop.f32.mrb[0].mxu0
        %v1893 = vadd.f32 0.0, %v1892
        %v1894 = vpop.f32.mrb[0].mxu0
        %1895 = vmatprep.mubr.f32.mxu0 0.0
        %1896 = vmatmul.mubr.f32.gmra.mrb[0].mxu0 %v1742
        %v1897 = vpop.f32.mrb[0].mxu0
        %v1898 = vadd.f32 0.0, %v1897
        %v1899 = vpop.f32.mrb[0].mxu0
        %1900 = vmatprep.mubr.f32.mxu0 0.0
        %1901 = vmatmul.mubr.f32.gmra.mrb[0].mxu0 %v1743
        %v1902 = vpop.f32.mrb[0].mxu0
        %v1903 = vadd.f32 0.0, %v1902
        %v1904 = vpop.f32.mrb[0].mxu0
        %1905 = vmatprep.mubr.f32.mxu0 0.0
        %1906 = vmatmul.mubr.f32.gmra.mrb[0].mxu0 %v1744
        %v1907 = vpop.f32.mrb[0].mxu0
        %v1908 = vadd.f32 0.0, %v1907
        %v1909 = vpop.f32.mrb[0].mxu0
        %1910 = vmatprep.mubr.f32.mxu0 0.0
        %1911 = vmatmul.mubr.f32.gmra.mrb[0].mxu0 %v1745
        %v1912 = vpop.f32.mrb[0].mxu0
        %v1913 = vadd.f32 0.0, %v1912
        %v1914 = vpop.f32.mrb[0].mxu0
        %1915 = vmatprep.mubr.f32.mxu0 0.0
        %1916 = vmatmul.mubr.f32.gmra.mrb[0].mxu0 %v1746
        %v1917 = vpop.f32.mrb[0].mxu0
        %v1918 = vadd.f32 0.0, %v1917
        %v1919 = vpop.f32.mrb[0].mxu0
        %1920 = vmatprep.mubr.f32.mxu0 0.0
        %1921 = vmatmul.mubr.f32.gmra.mrb[0].mxu0 %v1747
        %v1922 = vpop.f32.mrb[0].mxu0
        %v1923 = vadd.f32 0.0, %v1922
        %v1924 = vpop.f32.mrb[0].mxu0
        %1925 = vmatprep.mubr.f32.mxu0 0.0
        %1926 = vmatmul.mubr.f32.gmra.mrb[0].mxu0 %v1748
        %v1927 = vpop.f32.mrb[0].mxu0
        %v1928 = vadd.f32 0.0, %v1927
        %v1929 = vpop.f32.mrb[0].mxu0
        %1930 = vmatprep.mubr.f32.mxu0 0.0
        %1931 = vmatmul.mubr.f32.gmra.mrb[0].mxu0 %v1749
        %v1932 = vpop.f32.mrb[0].mxu0
        %v1933 = vadd.f32 0.0, %v1932
        %v1934 = vpop.f32.mrb[0].mxu0
        %1935 = vmatprep.mubr.f32.mxu0 0.0
        %1936 = vmatmul.mubr.f32.gmra.mrb[0].mxu0 %v1750
        %v1937 = vpop.f32.mrb[0].mxu0
        %v1938 = vadd.f32 0.0, %v1937
        %v1939 = vpop.f32.mrb[0].mxu0
        %1940 = vmatprep.mubr.f32.mxu0 0.0
        %1941 = vmatmul.mubr.f32.gmra.mrb[0].mxu0 %v1751
        %v1942 = vpop.f32.mrb[0].mxu0
        %v1943 = vadd.f32 0.0, %v1942
        %v1944 = vpop.f32.mrb[0].mxu0
        %1945 = vmatprep.mubr.f32.mxu0 0.0
        %1946 = vmatmul.mubr.f32.gmra.mrb[0].mxu0 %v1752
        %v1947 = vpop.f32.mrb[0].mxu0
        %v1948 = vadd.f32 0.0, %v1947
        %v1949 = vpop.f32.mrb[0].mxu0
        %1950 = vmatprep.mubr.f32.mxu0 0.0
        %1951 = vmatmul.mubr.f32.gmra.mrb[0].mxu0 %v1753
        %v1952 = vpop.f32.mrb[0].mxu0
        %v1953 = vadd.f32 0.0, %v1952
        %v1954 = vpop.f32.mrb[0].mxu0
        %1955 = vmatprep.mubr.f32.mxu0 0.0
        %1956 = vmatmul.mubr.f32.gmra.mrb[0].mxu0 %v1754
        %v1957 = vpop.f32.mrb[0].mxu0
        %v1958 = vadd.f32 0.0, %v1957
        %v1959 = vpop.f32.mrb[0].mxu0
        %1960 = vmatprep.mubr.f32.mxu0 0.0
        %1961 = vmatmul.mubr.f32.gmra.mrb[0].mxu0 %v1755
        %v1962 = vpop.f32.mrb[0].mxu0
        %v1963 = vadd.f32 0.0, %v1962
        %v1964 = vpop.f32.mrb[0].mxu0
        %1965 = vmatprep.mubr.f32.mxu0 0.0
        %1966 = vmatmul.mubr.f32.gmra.mrb[0].mxu0 %v1756
        %v1967 = vpop.f32.mrb[0].mxu0
        %v1968 = vadd.f32 0.0, %v1967
        %v1969 = vpop.f32.mrb[0].mxu0
        %1970 = vmatprep.mubr.f32.mxu0 0.0
        %1971 = vmatmul.mubr.f32.gmra.mrb[0].mxu0 %v1757
        %v1972 = vpop.f32.mrb[0].mxu0
        %v1973 = vadd.f32 0.0, %v1972
        %v1974 = vpop.f32.mrb[0].mxu0
        %1975 = vmatprep.mubr.f32.mxu0 0.0
        %1976 = vmatmul.mubr.f32.gmra.mrb[0].mxu0 %v1758
        %v1977 = vpop.f32.mrb[0].mxu0
        %v1978 = vadd.f32 0.0, %v1977
        %v1979 = vpop.f32.mrb[0].mxu0
        %1980 = vmatprep.mubr.f32.mxu0 0.0
        %1981 = vmatmul.mubr.f32.gmra.mrb[0].mxu0 %v1759
        %v1982 = vpop.f32.mrb[0].mxu0
        %v1983 = vadd.f32 0.0, %v1982
        %v1984 = vpop.f32.mrb[0].mxu0
        %1985 = vmatprep.mubr.f32.mxu0 0.0
        %1986 = vmatmul.mubr.f32.gmra.mrb[0].mxu0 %v1760
        %v1987 = vpop.f32.mrb[0].mxu0
        %v1988 = vadd.f32 0.0, %v1987
        %v1989 = vpop.f32.mrb[0].mxu0
        %1990 = vmatprep.mubr.f32.mxu0 0.0
        %1991 = vmatmul.mubr.f32.gmra.mrb[0].mxu0 %v1761
        %v1992 = vpop.f32.mrb[0].mxu0
        %v1993 = vadd.f32 0.0, %v1992
        %v1994 = vpop.f32.mrb[0].mxu0
        %1995 = vmatprep.mubr.f32.mxu0 0.0
        %1996 = vmatmul.mubr.f32.gmra.mrb[0].mxu0 %v1762
        %v1997 = vpop.f32.mrb[0].mxu0
        %v1998 = vadd.f32 0.0, %v1997
        %v1999 = vpop.f32.mrb[0].mxu0
        %2000 = vmatprep.mubr.f32.mxu0 0.0
        %2001 = vmatmul.mubr.f32.gmra.mrb[0].mxu0 %v1763
        %v2002 = vpop.f32.mrb[0].mxu0
        %v2003 = vadd.f32 0.0, %v2002
        %v2004 = vpop.f32.mrb[0].mxu0
        %2005 = vdwg.mxu0
        %v2006 = vadd.f32 %v1700, %v1848
        %v2007 = vadd.f32 %v1701, %v1853
        %v2008 = vadd.f32 %v1702, %v1858
        %v2009 = vadd.f32 %v1703, %v1863
        %v2010 = vadd.f32 %v1704, %v1868
        %v2011 = vadd.f32 %v1705, %v1873
        %v2012 = vadd.f32 %v1706, %v1878
        %v2013 = vadd.f32 %v1707, %v1883
        %v2014 = vadd.f32 %v1708, %v1888
        %v2015 = vadd.f32 %v1709, %v1893
        %v2016 = vadd.f32 %v1710, %v1898
        %v2017 = vadd.f32 %v1711, %v1903
        %v2018 = vadd.f32 %v1712, %v1908
        %v2019 = vadd.f32 %v1713, %v1913
        %v2020 = vadd.f32 %v1714, %v1918
        %v2021 = vadd.f32 %v1715, %v1923
        %v2022 = vadd.f32 %v1716, %v1928
        %v2023 = vadd.f32 %v1717, %v1933
        %v2024 = vadd.f32 %v1718, %v1938
        %v2025 = vadd.f32 %v1719, %v1943
        %v2026 = vadd.f32 %v1720, %v1948
        %v2027 = vadd.f32 %v1721, %v1953
        %v2028 = vadd.f32 %v1722, %v1958
        %v2029 = vadd.f32 %v1723, %v1963
        %v2030 = vadd.f32 %v1724, %v1968
        %v2031 = vadd.f32 %v1725, %v1973
        %v2032 = vadd.f32 %v1726, %v1978
        %v2033 = vadd.f32 %v1727, %v1983
        %v2034 = vadd.f32 %v1728, %v1988
        %v2035 = vadd.f32 %v1729, %v1993
        %v2036 = vadd.f32 %v1730, %v1998
        %v2037 = vadd.f32 %v1731, %v2003
        %s2038 = scalar_lea.vmem %s265, 48
        %v2039 = vld [vmem:[%s2038] sm:$0xff]
        %v2040 = vld [vmem:[%s2038 + $0x8] sm:$0xff]
        %v2041 = vld [vmem:[%s2038 + $0x18] sm:$0xff]
        %v2042 = vld [vmem:[%s2038 + $0x20] sm:$0xff]
        %v2043 = vld [vmem:[%s2038 + $0x30] sm:$0xff]
        %v2044 = vld [vmem:[%s2038 + $0x38] sm:$0xff]
        %v2045 = vld [vmem:[%s2038 + $0x48] sm:$0xff]
        %v2046 = vld [vmem:[%s2038 + $0x50] sm:$0xff]
        %v2047 = vld [vmem:[%s2038 + $0x60] sm:$0xff]
        %v2048 = vld [vmem:[%s2038 + $0x68] sm:$0xff]
        %v2049 = vld [vmem:[%s2038 + $0x78] sm:$0xff]
        %v2050 = vld [vmem:[%s2038 + $0x80] sm:$0xff]
        %v2051 = vld [vmem:[%s2038 + $0x90] sm:$0xff]
        %v2052 = vld [vmem:[%s2038 + $0x98] sm:$0xff]
        %v2053 = vld [vmem:[%s2038 + $0xa8] sm:$0xff]
        %v2054 = vld [vmem:[%s2038 + $0xb0] sm:$0xff]
        %v2055 = vld [vmem:[%s2038 + $0xc0] sm:$0xff]
        %v2056 = vld [vmem:[%s2038 + $0xc8] sm:$0xff]
        %v2057 = vld [vmem:[%s2038 + $0xd8] sm:$0xff]
        %v2058 = vld [vmem:[%s2038 + $0xe0] sm:$0xff]
        %v2059 = vld [vmem:[%s2038 + $0xf0] sm:$0xff]
        %v2060 = vld [vmem:[%s2038 + $0xf8] sm:$0xff]
        %v2061 = vld [vmem:[%s2038 + $0x108] sm:$0xff]
        %v2062 = vld [vmem:[%s2038 + $0x110] sm:$0xff]
        %v2063 = vld [vmem:[%s2038 + $0x120] sm:$0xff]
        %v2064 = vld [vmem:[%s2038 + $0x128] sm:$0xff]
        %v2065 = vld [vmem:[%s2038 + $0x138] sm:$0xff]
        %v2066 = vld [vmem:[%s2038 + $0x140] sm:$0xff]
        %v2067 = vld [vmem:[%s2038 + $0x150] sm:$0xff]
        %v2068 = vld [vmem:[%s2038 + $0x158] sm:$0xff]
        %v2069 = vld [vmem:[%s2038 + $0x168] sm:$0xff]
        %v2070 = vld [vmem:[%s2038 + $0x170] sm:$0xff]
        %s2071 = scalar_lea.vmem %s1, 768
        %v2072 = vld [vmem:[%s2071] sm:$0xff]
        %v2073 = vld [vmem:[%s2071 + $0x8] sm:$0xff]
        %v2074 = vld [vmem:[%s2071 + $0x10] sm:$0xff]
        %v2075 = vld [vmem:[%s2071 + $0x18] sm:$0xff]
        %v2076 = vld [vmem:[%s2071 + $0x20] sm:$0xff]
        %v2077 = vld [vmem:[%s2071 + $0x28] sm:$0xff]
        %v2078 = vld [vmem:[%s2071 + $0x30] sm:$0xff]
        %v2079 = vld [vmem:[%s2071 + $0x38] sm:$0xff]
        %v2080 = vld [vmem:[%s2071 + $0x40] sm:$0xff]
        %v2081 = vld [vmem:[%s2071 + $0x48] sm:$0xff]
        %v2082 = vld [vmem:[%s2071 + $0x50] sm:$0xff]
        %v2083 = vld [vmem:[%s2071 + $0x58] sm:$0xff]
        %v2084 = vld [vmem:[%s2071 + $0x60] sm:$0xff]
        %v2085 = vld [vmem:[%s2071 + $0x68] sm:$0xff]
        %v2086 = vld [vmem:[%s2071 + $0x70] sm:$0xff]
        %v2087 = vld [vmem:[%s2071 + $0x78] sm:$0xff]
        %2088 = vmatprep.subr.mxu0 0.0
        %2089 = vmatpush1.msra.mxu0 %v2072
        %2090 = vmatprep.subr.mxu0 0.0
        %2091 = vmatpush1.msra.mxu0 %v2073
        %2092 = vmatprep.subr.mxu0 0.0
        %2093 = vmatpush1.msra.mxu0 %v2074
        %2094 = vmatprep.subr.mxu0 0.0
        %2095 = vmatpush1.msra.mxu0 %v2075
        %2096 = vmatprep.subr.mxu0 0.0
        %2097 = vmatpush1.msra.mxu0 %v2076
        %2098 = vmatprep.subr.mxu0 0.0
        %2099 = vmatpush1.msra.mxu0 %v2077
        %2100 = vmatprep.subr.mxu0 0.0
        %2101 = vmatpush1.msra.mxu0 %v2078
        %2102 = vmatprep.subr.mxu0 0.0
        %2103 = vmatpush1.msra.mxu0 %v2079
        %2104 = vmatprep.subr.mxu0 0.0
        %2105 = vmatpush1.msra.mxu0 %v2080
        %2106 = vmatprep.subr.mxu0 0.0
        %2107 = vmatpush1.msra.mxu0 %v2081
        %2108 = vmatprep.subr.mxu0 0.0
        %2109 = vmatpush1.msra.mxu0 %v2082
        %2110 = vmatprep.subr.mxu0 0.0
        %2111 = vmatpush1.msra.mxu0 %v2083
        %2112 = vmatprep.subr.mxu0 0.0
        %2113 = vmatpush1.msra.mxu0 %v2084
        %2114 = vmatprep.subr.mxu0 0.0
        %2115 = vmatpush1.msra.mxu0 %v2085
        %2116 = vmatprep.subr.mxu0 0.0
        %2117 = vmatpush1.msra.mxu0 %v2086
        %2118 = vmatprep.subr.mxu0 0.0
        %2119 = vmatpush1.msra.mxu0 %v2087
        %2120 = vmatprep.subr.mxu0 0.0
        %2121 = vmatpush1.msra.mxu0 0.0
        %2122 = vmatprep.subr.mxu0 0.0
        %2123 = vmatpush1.msra.mxu0 0.0
        %2124 = vmatprep.subr.mxu0 0.0
        %2125 = vmatpush1.msra.mxu0 0.0
        %2126 = vmatprep.subr.mxu0 0.0
        %2127 = vmatpush1.msra.mxu0 0.0
        %2128 = vmatprep.subr.mxu0 0.0
        %2129 = vmatpush1.msra.mxu0 0.0
        %2130 = vmatprep.subr.mxu0 0.0
        %2131 = vmatpush1.msra.mxu0 0.0
        %2132 = vmatprep.subr.mxu0 0.0
        %2133 = vmatpush1.msra.mxu0 0.0
        %2134 = vmatprep.subr.mxu0 0.0
        %2135 = vmatpush1.msra.mxu0 0.0
        %2136 = vmatprep.subr.mxu0 0.0
        %2137 = vmatpush1.msra.mxu0 0.0
        %2138 = vmatprep.subr.mxu0 0.0
        %2139 = vmatpush1.msra.mxu0 0.0
        %2140 = vmatprep.subr.mxu0 0.0
        %2141 = vmatpush1.msra.mxu0 0.0
        %2142 = vmatprep.subr.mxu0 0.0
        %2143 = vmatpush1.msra.mxu0 0.0
        %2144 = vmatprep.subr.mxu0 0.0
        %2145 = vmatpush1.msra.mxu0 0.0
        %2146 = vmatprep.subr.mxu0 0.0
        %2147 = vmatpush1.msra.mxu0 0.0
        %2148 = vmatprep.subr.mxu0 0.0
        %2149 = vmatpush1.msra.mxu0 0.0
        %2150 = vmatprep.subr.mxu0 0.0
        %2151 = vmatpush1.msra.mxu0 0.0
        %2152 = vmatprep.mubr.f32.mxu0 0.0
        %2153 = vmatmul.mubr.f32.gmra.mrb[0].mxu0 %v2039
        %v2154 = vpop.f32.mrb[0].mxu0
        %v2155 = vadd.f32 0.0, %v2154
        %v2156 = vpop.f32.mrb[0].mxu0
        %2157 = vmatprep.mubr.f32.mxu0 0.0
        %2158 = vmatmul.mubr.f32.gmra.mrb[0].mxu0 %v2040
        %v2159 = vpop.f32.mrb[0].mxu0
        %v2160 = vadd.f32 0.0, %v2159
        %v2161 = vpop.f32.mrb[0].mxu0
        %2162 = vmatprep.mubr.f32.mxu0 0.0
        %2163 = vmatmul.mubr.f32.gmra.mrb[0].mxu0 %v2041
        %v2164 = vpop.f32.mrb[0].mxu0
        %v2165 = vadd.f32 0.0, %v2164
        %v2166 = vpop.f32.mrb[0].mxu0
        %2167 = vmatprep.mubr.f32.mxu0 0.0
        %2168 = vmatmul.mubr.f32.gmra.mrb[0].mxu0 %v2042
        %v2169 = vpop.f32.mrb[0].mxu0
        %v2170 = vadd.f32 0.0, %v2169
        %v2171 = vpop.f32.mrb[0].mxu0
        %2172 = vmatprep.mubr.f32.mxu0 0.0
        %2173 = vmatmul.mubr.f32.gmra.mrb[0].mxu0 %v2043
        %v2174 = vpop.f32.mrb[0].mxu0
        %v2175 = vadd.f32 0.0, %v2174
        %v2176 = vpop.f32.mrb[0].mxu0
        %2177 = vmatprep.mubr.f32.mxu0 0.0
        %2178 = vmatmul.mubr.f32.gmra.mrb[0].mxu0 %v2044
        %v2179 = vpop.f32.mrb[0].mxu0
        %v2180 = vadd.f32 0.0, %v2179
        %v2181 = vpop.f32.mrb[0].mxu0
        %2182 = vmatprep.mubr.f32.mxu0 0.0
        %2183 = vmatmul.mubr.f32.gmra.mrb[0].mxu0 %v2045
        %v2184 = vpop.f32.mrb[0].mxu0
        %v2185 = vadd.f32 0.0, %v2184
        %v2186 = vpop.f32.mrb[0].mxu0
        %2187 = vmatprep.mubr.f32.mxu0 0.0
        %2188 = vmatmul.mubr.f32.gmra.mrb[0].mxu0 %v2046
        %v2189 = vpop.f32.mrb[0].mxu0
        %v2190 = vadd.f32 0.0, %v2189
        %v2191 = vpop.f32.mrb[0].mxu0
        %2192 = vmatprep.mubr.f32.mxu0 0.0
        %2193 = vmatmul.mubr.f32.gmra.mrb[0].mxu0 %v2047
        %v2194 = vpop.f32.mrb[0].mxu0
        %v2195 = vadd.f32 0.0, %v2194
        %v2196 = vpop.f32.mrb[0].mxu0
        %2197 = vmatprep.mubr.f32.mxu0 0.0
        %2198 = vmatmul.mubr.f32.gmra.mrb[0].mxu0 %v2048
        %v2199 = vpop.f32.mrb[0].mxu0
        %v2200 = vadd.f32 0.0, %v2199
        %v2201 = vpop.f32.mrb[0].mxu0
        %2202 = vmatprep.mubr.f32.mxu0 0.0
        %2203 = vmatmul.mubr.f32.gmra.mrb[0].mxu0 %v2049
        %v2204 = vpop.f32.mrb[0].mxu0
        %v2205 = vadd.f32 0.0, %v2204
        %v2206 = vpop.f32.mrb[0].mxu0
        %2207 = vmatprep.mubr.f32.mxu0 0.0
        %2208 = vmatmul.mubr.f32.gmra.mrb[0].mxu0 %v2050
        %v2209 = vpop.f32.mrb[0].mxu0
        %v2210 = vadd.f32 0.0, %v2209
        %v2211 = vpop.f32.mrb[0].mxu0
        %2212 = vmatprep.mubr.f32.mxu0 0.0
        %2213 = vmatmul.mubr.f32.gmra.mrb[0].mxu0 %v2051
        %v2214 = vpop.f32.mrb[0].mxu0
        %v2215 = vadd.f32 0.0, %v2214
        %v2216 = vpop.f32.mrb[0].mxu0
        %2217 = vmatprep.mubr.f32.mxu0 0.0
        %2218 = vmatmul.mubr.f32.gmra.mrb[0].mxu0 %v2052
        %v2219 = vpop.f32.mrb[0].mxu0
        %v2220 = vadd.f32 0.0, %v2219
        %v2221 = vpop.f32.mrb[0].mxu0
        %2222 = vmatprep.mubr.f32.mxu0 0.0
        %2223 = vmatmul.mubr.f32.gmra.mrb[0].mxu0 %v2053
        %v2224 = vpop.f32.mrb[0].mxu0
        %v2225 = vadd.f32 0.0, %v2224
        %v2226 = vpop.f32.mrb[0].mxu0
        %2227 = vmatprep.mubr.f32.mxu0 0.0
        %2228 = vmatmul.mubr.f32.gmra.mrb[0].mxu0 %v2054
        %v2229 = vpop.f32.mrb[0].mxu0
        %v2230 = vadd.f32 0.0, %v2229
        %v2231 = vpop.f32.mrb[0].mxu0
        %2232 = vmatprep.mubr.f32.mxu0 0.0
        %2233 = vmatmul.mubr.f32.gmra.mrb[0].mxu0 %v2055
        %v2234 = vpop.f32.mrb[0].mxu0
        %v2235 = vadd.f32 0.0, %v2234
        %v2236 = vpop.f32.mrb[0].mxu0
        %2237 = vmatprep.mubr.f32.mxu0 0.0
        %2238 = vmatmul.mubr.f32.gmra.mrb[0].mxu0 %v2056
        %v2239 = vpop.f32.mrb[0].mxu0
        %v2240 = vadd.f32 0.0, %v2239
        %v2241 = vpop.f32.mrb[0].mxu0
        %2242 = vmatprep.mubr.f32.mxu0 0.0
        %2243 = vmatmul.mubr.f32.gmra.mrb[0].mxu0 %v2057
        %v2244 = vpop.f32.mrb[0].mxu0
        %v2245 = vadd.f32 0.0, %v2244
        %v2246 = vpop.f32.mrb[0].mxu0
        %2247 = vmatprep.mubr.f32.mxu0 0.0
        %2248 = vmatmul.mubr.f32.gmra.mrb[0].mxu0 %v2058
        %v2249 = vpop.f32.mrb[0].mxu0
        %v2250 = vadd.f32 0.0, %v2249
        %v2251 = vpop.f32.mrb[0].mxu0
        %2252 = vmatprep.mubr.f32.mxu0 0.0
        %2253 = vmatmul.mubr.f32.gmra.mrb[0].mxu0 %v2059
        %v2254 = vpop.f32.mrb[0].mxu0
        %v2255 = vadd.f32 0.0, %v2254
        %v2256 = vpop.f32.mrb[0].mxu0
        %2257 = vmatprep.mubr.f32.mxu0 0.0
        %2258 = vmatmul.mubr.f32.gmra.mrb[0].mxu0 %v2060
        %v2259 = vpop.f32.mrb[0].mxu0
        %v2260 = vadd.f32 0.0, %v2259
        %v2261 = vpop.f32.mrb[0].mxu0
        %2262 = vmatprep.mubr.f32.mxu0 0.0
        %2263 = vmatmul.mubr.f32.gmra.mrb[0].mxu0 %v2061
        %v2264 = vpop.f32.mrb[0].mxu0
        %v2265 = vadd.f32 0.0, %v2264
        %v2266 = vpop.f32.mrb[0].mxu0
        %2267 = vmatprep.mubr.f32.mxu0 0.0
        %2268 = vmatmul.mubr.f32.gmra.mrb[0].mxu0 %v2062
        %v2269 = vpop.f32.mrb[0].mxu0
        %v2270 = vadd.f32 0.0, %v2269
        %v2271 = vpop.f32.mrb[0].mxu0
        %2272 = vmatprep.mubr.f32.mxu0 0.0
        %2273 = vmatmul.mubr.f32.gmra.mrb[0].mxu0 %v2063
        %v2274 = vpop.f32.mrb[0].mxu0
        %v2275 = vadd.f32 0.0, %v2274
        %v2276 = vpop.f32.mrb[0].mxu0
        %2277 = vmatprep.mubr.f32.mxu0 0.0
        %2278 = vmatmul.mubr.f32.gmra.mrb[0].mxu0 %v2064
        %v2279 = vpop.f32.mrb[0].mxu0
        %v2280 = vadd.f32 0.0, %v2279
        %v2281 = vpop.f32.mrb[0].mxu0
        %2282 = vmatprep.mubr.f32.mxu0 0.0
        %2283 = vmatmul.mubr.f32.gmra.mrb[0].mxu0 %v2065
        %v2284 = vpop.f32.mrb[0].mxu0
        %v2285 = vadd.f32 0.0, %v2284
        %v2286 = vpop.f32.mrb[0].mxu0
        %2287 = vmatprep.mubr.f32.mxu0 0.0
        %2288 = vmatmul.mubr.f32.gmra.mrb[0].mxu0 %v2066
        %v2289 = vpop.f32.mrb[0].mxu0
        %v2290 = vadd.f32 0.0, %v2289
        %v2291 = vpop.f32.mrb[0].mxu0
        %2292 = vmatprep.mubr.f32.mxu0 0.0
        %2293 = vmatmul.mubr.f32.gmra.mrb[0].mxu0 %v2067
        %v2294 = vpop.f32.mrb[0].mxu0
        %v2295 = vadd.f32 0.0, %v2294
        %v2296 = vpop.f32.mrb[0].mxu0
        %2297 = vmatprep.mubr.f32.mxu0 0.0
        %2298 = vmatmul.mubr.f32.gmra.mrb[0].mxu0 %v2068
        %v2299 = vpop.f32.mrb[0].mxu0
        %v2300 = vadd.f32 0.0, %v2299
        %v2301 = vpop.f32.mrb[0].mxu0
        %2302 = vmatprep.mubr.f32.mxu0 0.0
        %2303 = vmatmul.mubr.f32.gmra.mrb[0].mxu0 %v2069
        %v2304 = vpop.f32.mrb[0].mxu0
        %v2305 = vadd.f32 0.0, %v2304
        %v2306 = vpop.f32.mrb[0].mxu0
        %2307 = vmatprep.mubr.f32.mxu0 0.0
        %2308 = vmatmul.mubr.f32.gmra.mrb[0].mxu0 %v2070
        %v2309 = vpop.f32.mrb[0].mxu0
        %v2310 = vadd.f32 0.0, %v2309
        %v2311 = vpop.f32.mrb[0].mxu0
        %2312 = vdwg.mxu0
        %v2313 = vadd.f32 %v2006, %v2155
        %v2314 = vadd.f32 %v2007, %v2160
        %v2315 = vadd.f32 %v2008, %v2165
        %v2316 = vadd.f32 %v2009, %v2170
        %v2317 = vadd.f32 %v2010, %v2175
        %v2318 = vadd.f32 %v2011, %v2180
        %v2319 = vadd.f32 %v2012, %v2185
        %v2320 = vadd.f32 %v2013, %v2190
        %v2321 = vadd.f32 %v2014, %v2195
        %v2322 = vadd.f32 %v2015, %v2200
        %v2323 = vadd.f32 %v2016, %v2205
        %v2324 = vadd.f32 %v2017, %v2210
        %v2325 = vadd.f32 %v2018, %v2215
        %v2326 = vadd.f32 %v2019, %v2220
        %v2327 = vadd.f32 %v2020, %v2225
        %v2328 = vadd.f32 %v2021, %v2230
        %v2329 = vadd.f32 %v2022, %v2235
        %v2330 = vadd.f32 %v2023, %v2240
        %v2331 = vadd.f32 %v2024, %v2245
        %v2332 = vadd.f32 %v2025, %v2250
        %v2333 = vadd.f32 %v2026, %v2255
        %v2334 = vadd.f32 %v2027, %v2260
        %v2335 = vadd.f32 %v2028, %v2265
        %v2336 = vadd.f32 %v2029, %v2270
        %v2337 = vadd.f32 %v2030, %v2275
        %v2338 = vadd.f32 %v2031, %v2280
        %v2339 = vadd.f32 %v2032, %v2285
        %v2340 = vadd.f32 %v2033, %v2290
        %v2341 = vadd.f32 %v2034, %v2295
        %v2342 = vadd.f32 %v2035, %v2300
        %v2343 = vadd.f32 %v2036, %v2305
        %v2344 = vadd.f32 %v2037, %v2310
        %v2345 = vld [vmem:[%s2038 + $0x1] sm:$0xff]
        %v2346 = vld [vmem:[%s2038 + $0x9] sm:$0xff]
        %v2347 = vld [vmem:[%s2038 + $0x19] sm:$0xff]
        %v2348 = vld [vmem:[%s2038 + $0x21] sm:$0xff]
        %v2349 = vld [vmem:[%s2038 + $0x31] sm:$0xff]
        %v2350 = vld [vmem:[%s2038 + $0x39] sm:$0xff]
        %v2351 = vld [vmem:[%s2038 + $0x49] sm:$0xff]
        %v2352 = vld [vmem:[%s2038 + $0x51] sm:$0xff]
        %v2353 = vld [vmem:[%s2038 + $0x61] sm:$0xff]
        %v2354 = vld [vmem:[%s2038 + $0x69] sm:$0xff]
        %v2355 = vld [vmem:[%s2038 + $0x79] sm:$0xff]
        %v2356 = vld [vmem:[%s2038 + $0x81] sm:$0xff]
        %v2357 = vld [vmem:[%s2038 + $0x91] sm:$0xff]
        %v2358 = vld [vmem:[%s2038 + $0x99] sm:$0xff]
        %v2359 = vld [vmem:[%s2038 + $0xa9] sm:$0xff]
        %v2360 = vld [vmem:[%s2038 + $0xb1] sm:$0xff]
        %v2361 = vld [vmem:[%s2038 + $0xc1] sm:$0xff]
        %v2362 = vld [vmem:[%s2038 + $0xc9] sm:$0xff]
        %v2363 = vld [vmem:[%s2038 + $0xd9] sm:$0xff]
        %v2364 = vld [vmem:[%s2038 + $0xe1] sm:$0xff]
        %v2365 = vld [vmem:[%s2038 + $0xf1] sm:$0xff]
        %v2366 = vld [vmem:[%s2038 + $0xf9] sm:$0xff]
        %v2367 = vld [vmem:[%s2038 + $0x109] sm:$0xff]
        %v2368 = vld [vmem:[%s2038 + $0x111] sm:$0xff]
        %v2369 = vld [vmem:[%s2038 + $0x121] sm:$0xff]
        %v2370 = vld [vmem:[%s2038 + $0x129] sm:$0xff]
        %v2371 = vld [vmem:[%s2038 + $0x139] sm:$0xff]
        %v2372 = vld [vmem:[%s2038 + $0x141] sm:$0xff]
        %v2373 = vld [vmem:[%s2038 + $0x151] sm:$0xff]
        %v2374 = vld [vmem:[%s2038 + $0x159] sm:$0xff]
        %v2375 = vld [vmem:[%s2038 + $0x169] sm:$0xff]
        %v2376 = vld [vmem:[%s2038 + $0x171] sm:$0xff]
        %s2377 = scalar_lea.vmem %s1, 896
        %v2378 = vld [vmem:[%s2377] sm:$0xff]
        %v2379 = vld [vmem:[%s2377 + $0x8] sm:$0xff]
        %v2380 = vld [vmem:[%s2377 + $0x10] sm:$0xff]
        %v2381 = vld [vmem:[%s2377 + $0x18] sm:$0xff]
        %v2382 = vld [vmem:[%s2377 + $0x20] sm:$0xff]
        %v2383 = vld [vmem:[%s2377 + $0x28] sm:$0xff]
        %v2384 = vld [vmem:[%s2377 + $0x30] sm:$0xff]
        %v2385 = vld [vmem:[%s2377 + $0x38] sm:$0xff]
        %v2386 = vld [vmem:[%s2377 + $0x40] sm:$0xff]
        %v2387 = vld [vmem:[%s2377 + $0x48] sm:$0xff]
        %v2388 = vld [vmem:[%s2377 + $0x50] sm:$0xff]
        %v2389 = vld [vmem:[%s2377 + $0x58] sm:$0xff]
        %v2390 = vld [vmem:[%s2377 + $0x60] sm:$0xff]
        %v2391 = vld [vmem:[%s2377 + $0x68] sm:$0xff]
        %v2392 = vld [vmem:[%s2377 + $0x70] sm:$0xff]
        %v2393 = vld [vmem:[%s2377 + $0x78] sm:$0xff]
        %2394 = vmatprep.subr.mxu0 0.0
        %2395 = vmatpush1.msra.mxu0 %v2378
        %2396 = vmatprep.subr.mxu0 0.0
        %2397 = vmatpush1.msra.mxu0 %v2379
        %2398 = vmatprep.subr.mxu0 0.0
        %2399 = vmatpush1.msra.mxu0 %v2380
        %2400 = vmatprep.subr.mxu0 0.0
        %2401 = vmatpush1.msra.mxu0 %v2381
        %2402 = vmatprep.subr.mxu0 0.0
        %2403 = vmatpush1.msra.mxu0 %v2382
        %2404 = vmatprep.subr.mxu0 0.0
        %2405 = vmatpush1.msra.mxu0 %v2383
        %2406 = vmatprep.subr.mxu0 0.0
        %2407 = vmatpush1.msra.mxu0 %v2384
        %2408 = vmatprep.subr.mxu0 0.0
        %2409 = vmatpush1.msra.mxu0 %v2385
        %2410 = vmatprep.subr.mxu0 0.0
        %2411 = vmatpush1.msra.mxu0 %v2386
        %2412 = vmatprep.subr.mxu0 0.0
        %2413 = vmatpush1.msra.mxu0 %v2387
        %2414 = vmatprep.subr.mxu0 0.0
        %2415 = vmatpush1.msra.mxu0 %v2388
        %2416 = vmatprep.subr.mxu0 0.0
        %2417 = vmatpush1.msra.mxu0 %v2389
        %2418 = vmatprep.subr.mxu0 0.0
        %2419 = vmatpush1.msra.mxu0 %v2390
        %2420 = vmatprep.subr.mxu0 0.0
        %2421 = vmatpush1.msra.mxu0 %v2391
        %2422 = vmatprep.subr.mxu0 0.0
        %2423 = vmatpush1.msra.mxu0 %v2392
        %2424 = vmatprep.subr.mxu0 0.0
        %2425 = vmatpush1.msra.mxu0 %v2393
        %2426 = vmatprep.subr.mxu0 0.0
        %2427 = vmatpush1.msra.mxu0 0.0
        %2428 = vmatprep.subr.mxu0 0.0
        %2429 = vmatpush1.msra.mxu0 0.0
        %2430 = vmatprep.subr.mxu0 0.0
        %2431 = vmatpush1.msra.mxu0 0.0
        %2432 = vmatprep.subr.mxu0 0.0
        %2433 = vmatpush1.msra.mxu0 0.0
        %2434 = vmatprep.subr.mxu0 0.0
        %2435 = vmatpush1.msra.mxu0 0.0
        %2436 = vmatprep.subr.mxu0 0.0
        %2437 = vmatpush1.msra.mxu0 0.0
        %2438 = vmatprep.subr.mxu0 0.0
        %2439 = vmatpush1.msra.mxu0 0.0
        %2440 = vmatprep.subr.mxu0 0.0
        %2441 = vmatpush1.msra.mxu0 0.0
        %2442 = vmatprep.subr.mxu0 0.0
        %2443 = vmatpush1.msra.mxu0 0.0
        %2444 = vmatprep.subr.mxu0 0.0
        %2445 = vmatpush1.msra.mxu0 0.0
        %2446 = vmatprep.subr.mxu0 0.0
        %2447 = vmatpush1.msra.mxu0 0.0
        %2448 = vmatprep.subr.mxu0 0.0
        %2449 = vmatpush1.msra.mxu0 0.0
        %2450 = vmatprep.subr.mxu0 0.0
        %2451 = vmatpush1.msra.mxu0 0.0
        %2452 = vmatprep.subr.mxu0 0.0
        %2453 = vmatpush1.msra.mxu0 0.0
        %2454 = vmatprep.subr.mxu0 0.0
        %2455 = vmatpush1.msra.mxu0 0.0
        %2456 = vmatprep.subr.mxu0 0.0
        %2457 = vmatpush1.msra.mxu0 0.0
        %2458 = vmatprep.mubr.f32.mxu0 0.0
        %2459 = vmatmul.mubr.f32.gmra.mrb[0].mxu0 %v2345
        %v2460 = vpop.f32.mrb[0].mxu0
        %v2461 = vadd.f32 0.0, %v2460
        %v2462 = vpop.f32.mrb[0].mxu0
        %2463 = vmatprep.mubr.f32.mxu0 0.0
        %2464 = vmatmul.mubr.f32.gmra.mrb[0].mxu0 %v2346
        %v2465 = vpop.f32.mrb[0].mxu0
        %v2466 = vadd.f32 0.0, %v2465
        %v2467 = vpop.f32.mrb[0].mxu0
        %2468 = vmatprep.mubr.f32.mxu0 0.0
        %2469 = vmatmul.mubr.f32.gmra.mrb[0].mxu0 %v2347
        %v2470 = vpop.f32.mrb[0].mxu0
        %v2471 = vadd.f32 0.0, %v2470
        %v2472 = vpop.f32.mrb[0].mxu0
        %2473 = vmatprep.mubr.f32.mxu0 0.0
        %2474 = vmatmul.mubr.f32.gmra.mrb[0].mxu0 %v2348
        %v2475 = vpop.f32.mrb[0].mxu0
        %v2476 = vadd.f32 0.0, %v2475
        %v2477 = vpop.f32.mrb[0].mxu0
        %2478 = vmatprep.mubr.f32.mxu0 0.0
        %2479 = vmatmul.mubr.f32.gmra.mrb[0].mxu0 %v2349
        %v2480 = vpop.f32.mrb[0].mxu0
        %v2481 = vadd.f32 0.0, %v2480
        %v2482 = vpop.f32.mrb[0].mxu0
        %2483 = vmatprep.mubr.f32.mxu0 0.0
        %2484 = vmatmul.mubr.f32.gmra.mrb[0].mxu0 %v2350
        %v2485 = vpop.f32.mrb[0].mxu0
        %v2486 = vadd.f32 0.0, %v2485
        %v2487 = vpop.f32.mrb[0].mxu0
        %2488 = vmatprep.mubr.f32.mxu0 0.0
        %2489 = vmatmul.mubr.f32.gmra.mrb[0].mxu0 %v2351
        %v2490 = vpop.f32.mrb[0].mxu0
        %v2491 = vadd.f32 0.0, %v2490
        %v2492 = vpop.f32.mrb[0].mxu0
        %2493 = vmatprep.mubr.f32.mxu0 0.0
        %2494 = vmatmul.mubr.f32.gmra.mrb[0].mxu0 %v2352
        %v2495 = vpop.f32.mrb[0].mxu0
        %v2496 = vadd.f32 0.0, %v2495
        %v2497 = vpop.f32.mrb[0].mxu0
        %2498 = vmatprep.mubr.f32.mxu0 0.0
        %2499 = vmatmul.mubr.f32.gmra.mrb[0].mxu0 %v2353
        %v2500 = vpop.f32.mrb[0].mxu0
        %v2501 = vadd.f32 0.0, %v2500
        %v2502 = vpop.f32.mrb[0].mxu0
        %2503 = vmatprep.mubr.f32.mxu0 0.0
        %2504 = vmatmul.mubr.f32.gmra.mrb[0].mxu0 %v2354
        %v2505 = vpop.f32.mrb[0].mxu0
        %v2506 = vadd.f32 0.0, %v2505
        %v2507 = vpop.f32.mrb[0].mxu0
        %2508 = vmatprep.mubr.f32.mxu0 0.0
        %2509 = vmatmul.mubr.f32.gmra.mrb[0].mxu0 %v2355
        %v2510 = vpop.f32.mrb[0].mxu0
        %v2511 = vadd.f32 0.0, %v2510
        %v2512 = vpop.f32.mrb[0].mxu0
        %2513 = vmatprep.mubr.f32.mxu0 0.0
        %2514 = vmatmul.mubr.f32.gmra.mrb[0].mxu0 %v2356
        %v2515 = vpop.f32.mrb[0].mxu0
        %v2516 = vadd.f32 0.0, %v2515
        %v2517 = vpop.f32.mrb[0].mxu0
        %2518 = vmatprep.mubr.f32.mxu0 0.0
        %2519 = vmatmul.mubr.f32.gmra.mrb[0].mxu0 %v2357
        %v2520 = vpop.f32.mrb[0].mxu0
        %v2521 = vadd.f32 0.0, %v2520
        %v2522 = vpop.f32.mrb[0].mxu0
        %2523 = vmatprep.mubr.f32.mxu0 0.0
        %2524 = vmatmul.mubr.f32.gmra.mrb[0].mxu0 %v2358
        %v2525 = vpop.f32.mrb[0].mxu0
        %v2526 = vadd.f32 0.0, %v2525
        %v2527 = vpop.f32.mrb[0].mxu0
        %2528 = vmatprep.mubr.f32.mxu0 0.0
        %2529 = vmatmul.mubr.f32.gmra.mrb[0].mxu0 %v2359
        %v2530 = vpop.f32.mrb[0].mxu0
        %v2531 = vadd.f32 0.0, %v2530
        %v2532 = vpop.f32.mrb[0].mxu0
        %2533 = vmatprep.mubr.f32.mxu0 0.0
        %2534 = vmatmul.mubr.f32.gmra.mrb[0].mxu0 %v2360
        %v2535 = vpop.f32.mrb[0].mxu0
        %v2536 = vadd.f32 0.0, %v2535
        %v2537 = vpop.f32.mrb[0].mxu0
        %2538 = vmatprep.mubr.f32.mxu0 0.0
        %2539 = vmatmul.mubr.f32.gmra.mrb[0].mxu0 %v2361
        %v2540 = vpop.f32.mrb[0].mxu0
        %v2541 = vadd.f32 0.0, %v2540
        %v2542 = vpop.f32.mrb[0].mxu0
        %2543 = vmatprep.mubr.f32.mxu0 0.0
        %2544 = vmatmul.mubr.f32.gmra.mrb[0].mxu0 %v2362
        %v2545 = vpop.f32.mrb[0].mxu0
        %v2546 = vadd.f32 0.0, %v2545
        %v2547 = vpop.f32.mrb[0].mxu0
        %2548 = vmatprep.mubr.f32.mxu0 0.0
        %2549 = vmatmul.mubr.f32.gmra.mrb[0].mxu0 %v2363
        %v2550 = vpop.f32.mrb[0].mxu0
        %v2551 = vadd.f32 0.0, %v2550
        %v2552 = vpop.f32.mrb[0].mxu0
        %2553 = vmatprep.mubr.f32.mxu0 0.0
        %2554 = vmatmul.mubr.f32.gmra.mrb[0].mxu0 %v2364
        %v2555 = vpop.f32.mrb[0].mxu0
        %v2556 = vadd.f32 0.0, %v2555
        %v2557 = vpop.f32.mrb[0].mxu0
        %2558 = vmatprep.mubr.f32.mxu0 0.0
        %2559 = vmatmul.mubr.f32.gmra.mrb[0].mxu0 %v2365
        %v2560 = vpop.f32.mrb[0].mxu0
        %v2561 = vadd.f32 0.0, %v2560
        %v2562 = vpop.f32.mrb[0].mxu0
        %2563 = vmatprep.mubr.f32.mxu0 0.0
        %2564 = vmatmul.mubr.f32.gmra.mrb[0].mxu0 %v2366
        %v2565 = vpop.f32.mrb[0].mxu0
        %v2566 = vadd.f32 0.0, %v2565
        %v2567 = vpop.f32.mrb[0].mxu0
        %2568 = vmatprep.mubr.f32.mxu0 0.0
        %2569 = vmatmul.mubr.f32.gmra.mrb[0].mxu0 %v2367
        %v2570 = vpop.f32.mrb[0].mxu0
        %v2571 = vadd.f32 0.0, %v2570
        %v2572 = vpop.f32.mrb[0].mxu0
        %2573 = vmatprep.mubr.f32.mxu0 0.0
        %2574 = vmatmul.mubr.f32.gmra.mrb[0].mxu0 %v2368
        %v2575 = vpop.f32.mrb[0].mxu0
        %v2576 = vadd.f32 0.0, %v2575
        %v2577 = vpop.f32.mrb[0].mxu0
        %2578 = vmatprep.mubr.f32.mxu0 0.0
        %2579 = vmatmul.mubr.f32.gmra.mrb[0].mxu0 %v2369
        %v2580 = vpop.f32.mrb[0].mxu0
        %v2581 = vadd.f32 0.0, %v2580
        %v2582 = vpop.f32.mrb[0].mxu0
        %2583 = vmatprep.mubr.f32.mxu0 0.0
        %2584 = vmatmul.mubr.f32.gmra.mrb[0].mxu0 %v2370
        %v2585 = vpop.f32.mrb[0].mxu0
        %v2586 = vadd.f32 0.0, %v2585
        %v2587 = vpop.f32.mrb[0].mxu0
        %2588 = vmatprep.mubr.f32.mxu0 0.0
        %2589 = vmatmul.mubr.f32.gmra.mrb[0].mxu0 %v2371
        %v2590 = vpop.f32.mrb[0].mxu0
        %v2591 = vadd.f32 0.0, %v2590
        %v2592 = vpop.f32.mrb[0].mxu0
        %2593 = vmatprep.mubr.f32.mxu0 0.0
        %2594 = vmatmul.mubr.f32.gmra.mrb[0].mxu0 %v2372
        %v2595 = vpop.f32.mrb[0].mxu0
        %v2596 = vadd.f32 0.0, %v2595
        %v2597 = vpop.f32.mrb[0].mxu0
        %2598 = vmatprep.mubr.f32.mxu0 0.0
        %2599 = vmatmul.mubr.f32.gmra.mrb[0].mxu0 %v2373
        %v2600 = vpop.f32.mrb[0].mxu0
        %v2601 = vadd.f32 0.0, %v2600
        %v2602 = vpop.f32.mrb[0].mxu0
        %2603 = vmatprep.mubr.f32.mxu0 0.0
        %2604 = vmatmul.mubr.f32.gmra.mrb[0].mxu0 %v2374
        %v2605 = vpop.f32.mrb[0].mxu0
        %v2606 = vadd.f32 0.0, %v2605
        %v2607 = vpop.f32.mrb[0].mxu0
        %2608 = vmatprep.mubr.f32.mxu0 0.0
        %2609 = vmatmul.mubr.f32.gmra.mrb[0].mxu0 %v2375
        %v2610 = vpop.f32.mrb[0].mxu0
        %v2611 = vadd.f32 0.0, %v2610
        %v2612 = vpop.f32.mrb[0].mxu0
        %2613 = vmatprep.mubr.f32.mxu0 0.0
        %2614 = vmatmul.mubr.f32.gmra.mrb[0].mxu0 %v2376
        %v2615 = vpop.f32.mrb[0].mxu0
        %v2616 = vadd.f32 0.0, %v2615
        %v2617 = vpop.f32.mrb[0].mxu0
        %2618 = vdwg.mxu0
        %v2619 = vadd.f32 %v2313, %v2461
        %v2620 = vadd.f32 %v2314, %v2466
        %v2621 = vadd.f32 %v2315, %v2471
        %v2622 = vadd.f32 %v2316, %v2476
        %v2623 = vadd.f32 %v2317, %v2481
        %v2624 = vadd.f32 %v2318, %v2486
        %v2625 = vadd.f32 %v2319, %v2491
        %v2626 = vadd.f32 %v2320, %v2496
        %v2627 = vadd.f32 %v2321, %v2501
        %v2628 = vadd.f32 %v2322, %v2506
        %v2629 = vadd.f32 %v2323, %v2511
        %v2630 = vadd.f32 %v2324, %v2516
        %v2631 = vadd.f32 %v2325, %v2521
        %v2632 = vadd.f32 %v2326, %v2526
        %v2633 = vadd.f32 %v2327, %v2531
        %v2634 = vadd.f32 %v2328, %v2536
        %v2635 = vadd.f32 %v2329, %v2541
        %v2636 = vadd.f32 %v2330, %v2546
        %v2637 = vadd.f32 %v2331, %v2551
        %v2638 = vadd.f32 %v2332, %v2556
        %v2639 = vadd.f32 %v2333, %v2561
        %v2640 = vadd.f32 %v2334, %v2566
        %v2641 = vadd.f32 %v2335, %v2571
        %v2642 = vadd.f32 %v2336, %v2576
        %v2643 = vadd.f32 %v2337, %v2581
        %v2644 = vadd.f32 %v2338, %v2586
        %v2645 = vadd.f32 %v2339, %v2591
        %v2646 = vadd.f32 %v2340, %v2596
        %v2647 = vadd.f32 %v2341, %v2601
        %v2648 = vadd.f32 %v2342, %v2606
        %v2649 = vadd.f32 %v2343, %v2611
        %v2650 = vadd.f32 %v2344, %v2616
        %v2651 = vld [vmem:[%s2038 + $0x2] sm:$0xff]
        %v2652 = vld [vmem:[%s2038 + $0xa] sm:$0xff]
        %v2653 = vld [vmem:[%s2038 + $0x1a] sm:$0xff]
        %v2654 = vld [vmem:[%s2038 + $0x22] sm:$0xff]
        %v2655 = vld [vmem:[%s2038 + $0x32] sm:$0xff]
        %v2656 = vld [vmem:[%s2038 + $0x3a] sm:$0xff]
        %v2657 = vld [vmem:[%s2038 + $0x4a] sm:$0xff]
        %v2658 = vld [vmem:[%s2038 + $0x52] sm:$0xff]
        %v2659 = vld [vmem:[%s2038 + $0x62] sm:$0xff]
        %v2660 = vld [vmem:[%s2038 + $0x6a] sm:$0xff]
        %v2661 = vld [vmem:[%s2038 + $0x7a] sm:$0xff]
        %v2662 = vld [vmem:[%s2038 + $0x82] sm:$0xff]
        %v2663 = vld [vmem:[%s2038 + $0x92] sm:$0xff]
        %v2664 = vld [vmem:[%s2038 + $0x9a] sm:$0xff]
        %v2665 = vld [vmem:[%s2038 + $0xaa] sm:$0xff]
        %v2666 = vld [vmem:[%s2038 + $0xb2] sm:$0xff]
        %v2667 = vld [vmem:[%s2038 + $0xc2] sm:$0xff]
        %v2668 = vld [vmem:[%s2038 + $0xca] sm:$0xff]
        %v2669 = vld [vmem:[%s2038 + $0xda] sm:$0xff]
        %v2670 = vld [vmem:[%s2038 + $0xe2] sm:$0xff]
        %v2671 = vld [vmem:[%s2038 + $0xf2] sm:$0xff]
        %v2672 = vld [vmem:[%s2038 + $0xfa] sm:$0xff]
        %v2673 = vld [vmem:[%s2038 + $0x10a] sm:$0xff]
        %v2674 = vld [vmem:[%s2038 + $0x112] sm:$0xff]
        %v2675 = vld [vmem:[%s2038 + $0x122] sm:$0xff]
        %v2676 = vld [vmem:[%s2038 + $0x12a] sm:$0xff]
        %v2677 = vld [vmem:[%s2038 + $0x13a] sm:$0xff]
        %v2678 = vld [vmem:[%s2038 + $0x142] sm:$0xff]
        %v2679 = vld [vmem:[%s2038 + $0x152] sm:$0xff]
        %v2680 = vld [vmem:[%s2038 + $0x15a] sm:$0xff]
        %v2681 = vld [vmem:[%s2038 + $0x16a] sm:$0xff]
        %v2682 = vld [vmem:[%s2038 + $0x172] sm:$0xff]
        %s2683 = scalar_lea.vmem %s1, 1024
        %v2684 = vld [vmem:[%s2683] sm:$0xff]
        %v2685 = vld [vmem:[%s2683 + $0x8] sm:$0xff]
        %v2686 = vld [vmem:[%s2683 + $0x10] sm:$0xff]
        %v2687 = vld [vmem:[%s2683 + $0x18] sm:$0xff]
        %v2688 = vld [vmem:[%s2683 + $0x20] sm:$0xff]
        %v2689 = vld [vmem:[%s2683 + $0x28] sm:$0xff]
        %v2690 = vld [vmem:[%s2683 + $0x30] sm:$0xff]
        %v2691 = vld [vmem:[%s2683 + $0x38] sm:$0xff]
        %v2692 = vld [vmem:[%s2683 + $0x40] sm:$0xff]
        %v2693 = vld [vmem:[%s2683 + $0x48] sm:$0xff]
        %v2694 = vld [vmem:[%s2683 + $0x50] sm:$0xff]
        %v2695 = vld [vmem:[%s2683 + $0x58] sm:$0xff]
        %v2696 = vld [vmem:[%s2683 + $0x60] sm:$0xff]
        %v2697 = vld [vmem:[%s2683 + $0x68] sm:$0xff]
        %v2698 = vld [vmem:[%s2683 + $0x70] sm:$0xff]
        %v2699 = vld [vmem:[%s2683 + $0x78] sm:$0xff]
        %2700 = vmatprep.subr.mxu0 0.0
        %2701 = vmatpush1.msra.mxu0 %v2684
        %2702 = vmatprep.subr.mxu0 0.0
        %2703 = vmatpush1.msra.mxu0 %v2685
        %2704 = vmatprep.subr.mxu0 0.0
        %2705 = vmatpush1.msra.mxu0 %v2686
        %2706 = vmatprep.subr.mxu0 0.0
        %2707 = vmatpush1.msra.mxu0 %v2687
        %2708 = vmatprep.subr.mxu0 0.0
        %2709 = vmatpush1.msra.mxu0 %v2688
        %2710 = vmatprep.subr.mxu0 0.0
        %2711 = vmatpush1.msra.mxu0 %v2689
        %2712 = vmatprep.subr.mxu0 0.0
        %2713 = vmatpush1.msra.mxu0 %v2690
        %2714 = vmatprep.subr.mxu0 0.0
        %2715 = vmatpush1.msra.mxu0 %v2691
        %2716 = vmatprep.subr.mxu0 0.0
        %2717 = vmatpush1.msra.mxu0 %v2692
        %2718 = vmatprep.subr.mxu0 0.0
        %2719 = vmatpush1.msra.mxu0 %v2693
        %2720 = vmatprep.subr.mxu0 0.0
        %2721 = vmatpush1.msra.mxu0 %v2694
        %2722 = vmatprep.subr.mxu0 0.0
        %2723 = vmatpush1.msra.mxu0 %v2695
        %2724 = vmatprep.subr.mxu0 0.0
        %2725 = vmatpush1.msra.mxu0 %v2696
        %2726 = vmatprep.subr.mxu0 0.0
        %2727 = vmatpush1.msra.mxu0 %v2697
        %2728 = vmatprep.subr.mxu0 0.0
        %2729 = vmatpush1.msra.mxu0 %v2698
        %2730 = vmatprep.subr.mxu0 0.0
        %2731 = vmatpush1.msra.mxu0 %v2699
        %2732 = vmatprep.subr.mxu0 0.0
        %2733 = vmatpush1.msra.mxu0 0.0
        %2734 = vmatprep.subr.mxu0 0.0
        %2735 = vmatpush1.msra.mxu0 0.0
        %2736 = vmatprep.subr.mxu0 0.0
        %2737 = vmatpush1.msra.mxu0 0.0
        %2738 = vmatprep.subr.mxu0 0.0
        %2739 = vmatpush1.msra.mxu0 0.0
        %2740 = vmatprep.subr.mxu0 0.0
        %2741 = vmatpush1.msra.mxu0 0.0
        %2742 = vmatprep.subr.mxu0 0.0
        %2743 = vmatpush1.msra.mxu0 0.0
        %2744 = vmatprep.subr.mxu0 0.0
        %2745 = vmatpush1.msra.mxu0 0.0
        %2746 = vmatprep.subr.mxu0 0.0
        %2747 = vmatpush1.msra.mxu0 0.0
        %2748 = vmatprep.subr.mxu0 0.0
        %2749 = vmatpush1.msra.mxu0 0.0
        %2750 = vmatprep.subr.mxu0 0.0
        %2751 = vmatpush1.msra.mxu0 0.0
        %2752 = vmatprep.subr.mxu0 0.0
        %2753 = vmatpush1.msra.mxu0 0.0
        %2754 = vmatprep.subr.mxu0 0.0
        %2755 = vmatpush1.msra.mxu0 0.0
        %2756 = vmatprep.subr.mxu0 0.0
        %2757 = vmatpush1.msra.mxu0 0.0
        %2758 = vmatprep.subr.mxu0 0.0
        %2759 = vmatpush1.msra.mxu0 0.0
        %2760 = vmatprep.subr.mxu0 0.0
        %2761 = vmatpush1.msra.mxu0 0.0
        %2762 = vmatprep.subr.mxu0 0.0
        %2763 = vmatpush1.msra.mxu0 0.0
        %2764 = vmatprep.mubr.f32.mxu0 0.0
        %2765 = vmatmul.mubr.f32.gmra.mrb[0].mxu0 %v2651
        %v2766 = vpop.f32.mrb[0].mxu0
        %v2767 = vadd.f32 0.0, %v2766
        %v2768 = vpop.f32.mrb[0].mxu0
        %2769 = vmatprep.mubr.f32.mxu0 0.0
        %2770 = vmatmul.mubr.f32.gmra.mrb[0].mxu0 %v2652
        %v2771 = vpop.f32.mrb[0].mxu0
        %v2772 = vadd.f32 0.0, %v2771
        %v2773 = vpop.f32.mrb[0].mxu0
        %2774 = vmatprep.mubr.f32.mxu0 0.0
        %2775 = vmatmul.mubr.f32.gmra.mrb[0].mxu0 %v2653
        %v2776 = vpop.f32.mrb[0].mxu0
        %v2777 = vadd.f32 0.0, %v2776
        %v2778 = vpop.f32.mrb[0].mxu0
        %2779 = vmatprep.mubr.f32.mxu0 0.0
        %2780 = vmatmul.mubr.f32.gmra.mrb[0].mxu0 %v2654
        %v2781 = vpop.f32.mrb[0].mxu0
        %v2782 = vadd.f32 0.0, %v2781
        %v2783 = vpop.f32.mrb[0].mxu0
        %2784 = vmatprep.mubr.f32.mxu0 0.0
        %2785 = vmatmul.mubr.f32.gmra.mrb[0].mxu0 %v2655
        %v2786 = vpop.f32.mrb[0].mxu0
        %v2787 = vadd.f32 0.0, %v2786
        %v2788 = vpop.f32.mrb[0].mxu0
        %2789 = vmatprep.mubr.f32.mxu0 0.0
        %2790 = vmatmul.mubr.f32.gmra.mrb[0].mxu0 %v2656
        %v2791 = vpop.f32.mrb[0].mxu0
        %v2792 = vadd.f32 0.0, %v2791
        %v2793 = vpop.f32.mrb[0].mxu0
        %2794 = vmatprep.mubr.f32.mxu0 0.0
        %2795 = vmatmul.mubr.f32.gmra.mrb[0].mxu0 %v2657
        %v2796 = vpop.f32.mrb[0].mxu0
        %v2797 = vadd.f32 0.0, %v2796
        %v2798 = vpop.f32.mrb[0].mxu0
        %2799 = vmatprep.mubr.f32.mxu0 0.0
        %2800 = vmatmul.mubr.f32.gmra.mrb[0].mxu0 %v2658
        %v2801 = vpop.f32.mrb[0].mxu0
        %v2802 = vadd.f32 0.0, %v2801
        %v2803 = vpop.f32.mrb[0].mxu0
        %2804 = vmatprep.mubr.f32.mxu0 0.0
        %2805 = vmatmul.mubr.f32.gmra.mrb[0].mxu0 %v2659
        %v2806 = vpop.f32.mrb[0].mxu0
        %v2807 = vadd.f32 0.0, %v2806
        %v2808 = vpop.f32.mrb[0].mxu0
        %2809 = vmatprep.mubr.f32.mxu0 0.0
        %2810 = vmatmul.mubr.f32.gmra.mrb[0].mxu0 %v2660
        %v2811 = vpop.f32.mrb[0].mxu0
        %v2812 = vadd.f32 0.0, %v2811
        %v2813 = vpop.f32.mrb[0].mxu0
        %2814 = vmatprep.mubr.f32.mxu0 0.0
        %2815 = vmatmul.mubr.f32.gmra.mrb[0].mxu0 %v2661
        %v2816 = vpop.f32.mrb[0].mxu0
        %v2817 = vadd.f32 0.0, %v2816
        %v2818 = vpop.f32.mrb[0].mxu0
        %2819 = vmatprep.mubr.f32.mxu0 0.0
        %2820 = vmatmul.mubr.f32.gmra.mrb[0].mxu0 %v2662
        %v2821 = vpop.f32.mrb[0].mxu0
        %v2822 = vadd.f32 0.0, %v2821
        %v2823 = vpop.f32.mrb[0].mxu0
        %2824 = vmatprep.mubr.f32.mxu0 0.0
        %2825 = vmatmul.mubr.f32.gmra.mrb[0].mxu0 %v2663
        %v2826 = vpop.f32.mrb[0].mxu0
        %v2827 = vadd.f32 0.0, %v2826
        %v2828 = vpop.f32.mrb[0].mxu0
        %2829 = vmatprep.mubr.f32.mxu0 0.0
        %2830 = vmatmul.mubr.f32.gmra.mrb[0].mxu0 %v2664
        %v2831 = vpop.f32.mrb[0].mxu0
        %v2832 = vadd.f32 0.0, %v2831
        %v2833 = vpop.f32.mrb[0].mxu0
        %2834 = vmatprep.mubr.f32.mxu0 0.0
        %2835 = vmatmul.mubr.f32.gmra.mrb[0].mxu0 %v2665
        %v2836 = vpop.f32.mrb[0].mxu0
        %v2837 = vadd.f32 0.0, %v2836
        %v2838 = vpop.f32.mrb[0].mxu0
        %2839 = vmatprep.mubr.f32.mxu0 0.0
        %2840 = vmatmul.mubr.f32.gmra.mrb[0].mxu0 %v2666
        %v2841 = vpop.f32.mrb[0].mxu0
        %v2842 = vadd.f32 0.0, %v2841
        %v2843 = vpop.f32.mrb[0].mxu0
        %2844 = vmatprep.mubr.f32.mxu0 0.0
        %2845 = vmatmul.mubr.f32.gmra.mrb[0].mxu0 %v2667
        %v2846 = vpop.f32.mrb[0].mxu0
        %v2847 = vadd.f32 0.0, %v2846
        %v2848 = vpop.f32.mrb[0].mxu0
        %2849 = vmatprep.mubr.f32.mxu0 0.0
        %2850 = vmatmul.mubr.f32.gmra.mrb[0].mxu0 %v2668
        %v2851 = vpop.f32.mrb[0].mxu0
        %v2852 = vadd.f32 0.0, %v2851
        %v2853 = vpop.f32.mrb[0].mxu0
        %2854 = vmatprep.mubr.f32.mxu0 0.0
        %2855 = vmatmul.mubr.f32.gmra.mrb[0].mxu0 %v2669
        %v2856 = vpop.f32.mrb[0].mxu0
        %v2857 = vadd.f32 0.0, %v2856
        %v2858 = vpop.f32.mrb[0].mxu0
        %2859 = vmatprep.mubr.f32.mxu0 0.0
        %2860 = vmatmul.mubr.f32.gmra.mrb[0].mxu0 %v2670
        %v2861 = vpop.f32.mrb[0].mxu0
        %v2862 = vadd.f32 0.0, %v2861
        %v2863 = vpop.f32.mrb[0].mxu0
        %2864 = vmatprep.mubr.f32.mxu0 0.0
        %2865 = vmatmul.mubr.f32.gmra.mrb[0].mxu0 %v2671
        %v2866 = vpop.f32.mrb[0].mxu0
        %v2867 = vadd.f32 0.0, %v2866
        %v2868 = vpop.f32.mrb[0].mxu0
        %2869 = vmatprep.mubr.f32.mxu0 0.0
        %2870 = vmatmul.mubr.f32.gmra.mrb[0].mxu0 %v2672
        %v2871 = vpop.f32.mrb[0].mxu0
        %v2872 = vadd.f32 0.0, %v2871
        %v2873 = vpop.f32.mrb[0].mxu0
        %2874 = vmatprep.mubr.f32.mxu0 0.0
        %2875 = vmatmul.mubr.f32.gmra.mrb[0].mxu0 %v2673
        %v2876 = vpop.f32.mrb[0].mxu0
        %v2877 = vadd.f32 0.0, %v2876
        %v2878 = vpop.f32.mrb[0].mxu0
        %2879 = vmatprep.mubr.f32.mxu0 0.0
        %2880 = vmatmul.mubr.f32.gmra.mrb[0].mxu0 %v2674
        %v2881 = vpop.f32.mrb[0].mxu0
        %v2882 = vadd.f32 0.0, %v2881
        %v2883 = vpop.f32.mrb[0].mxu0
        %2884 = vmatprep.mubr.f32.mxu0 0.0
        %2885 = vmatmul.mubr.f32.gmra.mrb[0].mxu0 %v2675
        %v2886 = vpop.f32.mrb[0].mxu0
        %v2887 = vadd.f32 0.0, %v2886
        %v2888 = vpop.f32.mrb[0].mxu0
        %2889 = vmatprep.mubr.f32.mxu0 0.0
        %2890 = vmatmul.mubr.f32.gmra.mrb[0].mxu0 %v2676
        %v2891 = vpop.f32.mrb[0].mxu0
        %v2892 = vadd.f32 0.0, %v2891
        %v2893 = vpop.f32.mrb[0].mxu0
        %2894 = vmatprep.mubr.f32.mxu0 0.0
        %2895 = vmatmul.mubr.f32.gmra.mrb[0].mxu0 %v2677
        %v2896 = vpop.f32.mrb[0].mxu0
        %v2897 = vadd.f32 0.0, %v2896
        %v2898 = vpop.f32.mrb[0].mxu0
        %2899 = vmatprep.mubr.f32.mxu0 0.0
        %2900 = vmatmul.mubr.f32.gmra.mrb[0].mxu0 %v2678
        %v2901 = vpop.f32.mrb[0].mxu0
        %v2902 = vadd.f32 0.0, %v2901
        %v2903 = vpop.f32.mrb[0].mxu0
        %2904 = vmatprep.mubr.f32.mxu0 0.0
        %2905 = vmatmul.mubr.f32.gmra.mrb[0].mxu0 %v2679
        %v2906 = vpop.f32.mrb[0].mxu0
        %v2907 = vadd.f32 0.0, %v2906
        %v2908 = vpop.f32.mrb[0].mxu0
        %2909 = vmatprep.mubr.f32.mxu0 0.0
        %2910 = vmatmul.mubr.f32.gmra.mrb[0].mxu0 %v2680
        %v2911 = vpop.f32.mrb[0].mxu0
        %v2912 = vadd.f32 0.0, %v2911
        %v2913 = vpop.f32.mrb[0].mxu0
        %2914 = vmatprep.mubr.f32.mxu0 0.0
        %2915 = vmatmul.mubr.f32.gmra.mrb[0].mxu0 %v2681
        %v2916 = vpop.f32.mrb[0].mxu0
        %v2917 = vadd.f32 0.0, %v2916
        %v2918 = vpop.f32.mrb[0].mxu0
        %2919 = vmatprep.mubr.f32.mxu0 0.0
        %2920 = vmatmul.mubr.f32.gmra.mrb[0].mxu0 %v2682
        %v2921 = vpop.f32.mrb[0].mxu0
        %v2922 = vadd.f32 0.0, %v2921
        %v2923 = vpop.f32.mrb[0].mxu0
        %2924 = vdwg.mxu0
        %v2925 = vadd.f32 %v2619, %v2767
        %v2926 = vadd.f32 %v2620, %v2772
        %v2927 = vadd.f32 %v2621, %v2777
        %v2928 = vadd.f32 %v2622, %v2782
        %v2929 = vadd.f32 %v2623, %v2787
        %v2930 = vadd.f32 %v2624, %v2792
        %v2931 = vadd.f32 %v2625, %v2797
        %v2932 = vadd.f32 %v2626, %v2802
        %v2933 = vadd.f32 %v2627, %v2807
        %v2934 = vadd.f32 %v2628, %v2812
        %v2935 = vadd.f32 %v2629, %v2817
        %v2936 = vadd.f32 %v2630, %v2822
        %v2937 = vadd.f32 %v2631, %v2827
        %v2938 = vadd.f32 %v2632, %v2832
        %v2939 = vadd.f32 %v2633, %v2837
        %v2940 = vadd.f32 %v2634, %v2842
        %v2941 = vadd.f32 %v2635, %v2847
        %v2942 = vadd.f32 %v2636, %v2852
        %v2943 = vadd.f32 %v2637, %v2857
        %v2944 = vadd.f32 %v2638, %v2862
        %v2945 = vadd.f32 %v2639, %v2867
        %v2946 = vadd.f32 %v2640, %v2872
        %v2947 = vadd.f32 %v2641, %v2877
        %v2948 = vadd.f32 %v2642, %v2882
        %v2949 = vadd.f32 %v2643, %v2887
        %v2950 = vadd.f32 %v2644, %v2892
        %v2951 = vadd.f32 %v2645, %v2897
        %v2952 = vadd.f32 %v2646, %v2902
        %v2953 = vadd.f32 %v2647, %v2907
        %v2954 = vadd.f32 %v2648, %v2912
        %v2955 = vadd.f32 %v2649, %v2917
        %v2956 = vadd.f32 %v2650, %v2922
        %v2957 = vld [vmem:[%s2] sm:$0x1]
        %v2959 = vlaneseq
        %v2960 = vshrl.u32 %v2959, 7
        %v2961 = vsub.s32 0, %v2960
        %v2962 = vrot.slane %v2957, %v2961
        %v2964 = vadd.f32 %v2925, %v2962
        %v2965 = vadd.f32 %v2926, %v2962
        %v2966 = vadd.f32 %v2927, %v2962
        %v2967 = vadd.f32 %v2928, %v2962
        %v2968 = vadd.f32 %v2929, %v2962
        %v2969 = vadd.f32 %v2930, %v2962
        %v2970 = vadd.f32 %v2931, %v2962
        %v2971 = vadd.f32 %v2932, %v2962
        %v2972 = vadd.f32 %v2933, %v2962
        %v2973 = vadd.f32 %v2934, %v2962
        %v2974 = vadd.f32 %v2935, %v2962
        %v2975 = vadd.f32 %v2936, %v2962
        %v2976 = vadd.f32 %v2937, %v2962
        %v2977 = vadd.f32 %v2938, %v2962
        %v2978 = vadd.f32 %v2939, %v2962
        %v2979 = vadd.f32 %v2940, %v2962
        %v2980 = vadd.f32 %v2941, %v2962
        %v2981 = vadd.f32 %v2942, %v2962
        %v2982 = vadd.f32 %v2943, %v2962
        %v2983 = vadd.f32 %v2944, %v2962
        %v2984 = vadd.f32 %v2945, %v2962
        %v2985 = vadd.f32 %v2946, %v2962
        %v2986 = vadd.f32 %v2947, %v2962
        %v2987 = vadd.f32 %v2948, %v2962
        %v2988 = vadd.f32 %v2949, %v2962
        %v2989 = vadd.f32 %v2950, %v2962
        %v2990 = vadd.f32 %v2951, %v2962
        %v2991 = vadd.f32 %v2952, %v2962
        %v2992 = vadd.f32 %v2953, %v2962
        %v2993 = vadd.f32 %v2954, %v2962
        %v2994 = vadd.f32 %v2955, %v2962
        %v2995 = vadd.f32 %v2956, %v2962
        %v2996 = vmax.f32 %v2964, 0.0
        %v2997 = vmax.f32 %v2965, 0.0
        %v2998 = vmax.f32 %v2966, 0.0
        %v2999 = vmax.f32 %v2967, 0.0
        %v3000 = vmax.f32 %v2968, 0.0
        %v3001 = vmax.f32 %v2969, 0.0
        %v3002 = vmax.f32 %v2970, 0.0
        %v3003 = vmax.f32 %v2971, 0.0
        %v3004 = vmax.f32 %v2972, 0.0
        %v3005 = vmax.f32 %v2973, 0.0
        %v3006 = vmax.f32 %v2974, 0.0
        %v3007 = vmax.f32 %v2975, 0.0
        %v3008 = vmax.f32 %v2976, 0.0
        %v3009 = vmax.f32 %v2977, 0.0
        %v3010 = vmax.f32 %v2978, 0.0
        %v3011 = vmax.f32 %v2979, 0.0
        %v3012 = vmax.f32 %v2980, 0.0
        %v3013 = vmax.f32 %v2981, 0.0
        %v3014 = vmax.f32 %v2982, 0.0
        %v3015 = vmax.f32 %v2983, 0.0
        %v3016 = vmax.f32 %v2984, 0.0
        %v3017 = vmax.f32 %v2985, 0.0
        %v3018 = vmax.f32 %v2986, 0.0
        %v3019 = vmax.f32 %v2987, 0.0
        %v3020 = vmax.f32 %v2988, 0.0
        %v3021 = vmax.f32 %v2989, 0.0
        %v3022 = vmax.f32 %v2990, 0.0
        %v3023 = vmax.f32 %v2991, 0.0
        %v3024 = vmax.f32 %v2992, 0.0
        %v3025 = vmax.f32 %v2993, 0.0
        %v3026 = vmax.f32 %v2994, 0.0
        %v3027 = vmax.f32 %v2995, 0.0
        %3028 = vst [vmem:[#allocation2] sm:$0xff] 0.0
        %3029 = vst [vmem:[#allocation2 + $0x8] sm:$0xff] 0.0
        %3030 = vst [vmem:[#allocation2 + $0x10] sm:$0x3] 0.0
        %3031 = vst [vmem:[#allocation2 + $0x18] sm:$0xff] 0.0
        %3032 = vst [vmem:[#allocation2 + $0x20] sm:$0xff] 0.0
        %3033 = vst [vmem:[#allocation2 + $0x28] sm:$0x3] 0.0
        %3034 = vst [vmem:[#allocation2 + $0x30] sm:$0xff] 0.0
        %3035 = vst [vmem:[#allocation2 + $0x38] sm:$0xff] 0.0
        %3036 = vst [vmem:[#allocation2 + $0x40] sm:$0x3] 0.0
        %3037 = vst [vmem:[#allocation2 + $0x48] sm:$0xff] 0.0
        %3038 = vst [vmem:[#allocation2 + $0x50] sm:$0xff] 0.0
        %3039 = vst [vmem:[#allocation2 + $0x58] sm:$0x3] 0.0
        %3040 = vst [vmem:[#allocation2 + $0x60] sm:$0xff] 0.0
        %3041 = vst [vmem:[#allocation2 + $0x68] sm:$0xff] 0.0
        %3042 = vst [vmem:[#allocation2 + $0x70] sm:$0x3] 0.0
        %3043 = vst [vmem:[#allocation2 + $0x78] sm:$0xff] 0.0
        %3044 = vst [vmem:[#allocation2 + $0x80] sm:$0xff] 0.0
        %3045 = vst [vmem:[#allocation2 + $0x88] sm:$0x3] 0.0
        %3046 = vst [vmem:[#allocation2 + $0x90] sm:$0xff] 0.0
        %3047 = vst [vmem:[#allocation2 + $0x98] sm:$0xff] 0.0
        %3048 = vst [vmem:[#allocation2 + $0xa0] sm:$0x3] 0.0
        %3049 = vst [vmem:[#allocation2 + $0xa8] sm:$0xff] 0.0
        %3050 = vst [vmem:[#allocation2 + $0xb0] sm:$0xff] 0.0
        %3051 = vst [vmem:[#allocation2 + $0xb8] sm:$0x3] 0.0
        %3052 = vst [vmem:[#allocation2 + $0xc0] sm:$0xff] 0.0
        %3053 = vst [vmem:[#allocation2 + $0xc8] sm:$0xff] 0.0
        %3054 = vst [vmem:[#allocation2 + $0xd0] sm:$0x3] 0.0
        %3055 = vst [vmem:[#allocation2 + $0xd8] sm:$0xff] 0.0
        %3056 = vst [vmem:[#allocation2 + $0xe0] sm:$0xff] 0.0
        %3057 = vst [vmem:[#allocation2 + $0xe8] sm:$0x3] 0.0
        %3058 = vst [vmem:[#allocation2 + $0xf0] sm:$0xff] 0.0
        %3059 = vst [vmem:[#allocation2 + $0xf8] sm:$0xff] 0.0
        %3060 = vst [vmem:[#allocation2 + $0x100] sm:$0x3] 0.0
        %3061 = vst [vmem:[#allocation2 + $0x108] sm:$0xff] 0.0
        %3062 = vst [vmem:[#allocation2 + $0x110] sm:$0xff] 0.0
        %3063 = vst [vmem:[#allocation2 + $0x118] sm:$0x3] 0.0
        %3064 = vst [vmem:[#allocation2 + $0x120] sm:$0xff] 0.0
        %3065 = vst [vmem:[#allocation2 + $0x128] sm:$0xff] 0.0
        %3066 = vst [vmem:[#allocation2 + $0x130] sm:$0x3] 0.0
        %3067 = vst [vmem:[#allocation2 + $0x138] sm:$0xff] 0.0
        %3068 = vst [vmem:[#allocation2 + $0x140] sm:$0xff] 0.0
        %3069 = vst [vmem:[#allocation2 + $0x148] sm:$0x3] 0.0
        %3070 = vst [vmem:[#allocation2 + $0x150] sm:$0xff] 0.0
        %3071 = vst [vmem:[#allocation2 + $0x158] sm:$0xff] 0.0
        %3072 = vst [vmem:[#allocation2 + $0x160] sm:$0x3] 0.0
        %3073 = vst [vmem:[#allocation2 + $0x168] sm:$0xff] 0.0
        %3074 = vst [vmem:[#allocation2 + $0x170] sm:$0xff] 0.0
        %3075 = vst [vmem:[#allocation2 + $0x178] sm:$0x3] 0.0
        %3076 = vst [vmem:[#allocation2 + $0x180] sm:$0xff] 0.0
        %3077 = vst [vmem:[#allocation2 + $0x188] sm:$0xff] 0.0
        %3078 = vst [vmem:[#allocation2 + $0x190] sm:$0x3] 0.0
        %3079 = vst [vmem:[#allocation2 + $0x198] sm:$0xff] 0.0
        %3080 = vst [vmem:[#allocation2 + $0x1a0] sm:$0xff] 0.0
        %3081 = vst [vmem:[#allocation2 + $0x1a8] sm:$0x3] 0.0
        %s3082 = scalar_lea.vmem [#allocation2], 24
        %3083 = vst [vmem:[%s3082 + $0x1] sm:$0xff] %v2996
        %3084 = vst [vmem:[%s3082 + $0x9] sm:$0xff] %v2997
        %3085 = vst [vmem:[%s3082 + $0x19] sm:$0xff] %v2998
        %3086 = vst [vmem:[%s3082 + $0x21] sm:$0xff] %v2999
        %3087 = vst [vmem:[%s3082 + $0x31] sm:$0xff] %v3000
        %3088 = vst [vmem:[%s3082 + $0x39] sm:$0xff] %v3001
        %3089 = vst [vmem:[%s3082 + $0x49] sm:$0xff] %v3002
        %3090 = vst [vmem:[%s3082 + $0x51] sm:$0xff] %v3003
        %3091 = vst [vmem:[%s3082 + $0x61] sm:$0xff] %v3004
        %3092 = vst [vmem:[%s3082 + $0x69] sm:$0xff] %v3005
        %3093 = vst [vmem:[%s3082 + $0x79] sm:$0xff] %v3006
        %3094 = vst [vmem:[%s3082 + $0x81] sm:$0xff] %v3007
        %3095 = vst [vmem:[%s3082 + $0x91] sm:$0xff] %v3008
        %3096 = vst [vmem:[%s3082 + $0x99] sm:$0xff] %v3009
        %3097 = vst [vmem:[%s3082 + $0xa9] sm:$0xff] %v3010
        %3098 = vst [vmem:[%s3082 + $0xb1] sm:$0xff] %v3011
        %3099 = vst [vmem:[%s3082 + $0xc1] sm:$0xff] %v3012
        %3100 = vst [vmem:[%s3082 + $0xc9] sm:$0xff] %v3013
        %3101 = vst [vmem:[%s3082 + $0xd9] sm:$0xff] %v3014
        %3102 = vst [vmem:[%s3082 + $0xe1] sm:$0xff] %v3015
        %3103 = vst [vmem:[%s3082 + $0xf1] sm:$0xff] %v3016
        %3104 = vst [vmem:[%s3082 + $0xf9] sm:$0xff] %v3017
        %3105 = vst [vmem:[%s3082 + $0x109] sm:$0xff] %v3018
        %3106 = vst [vmem:[%s3082 + $0x111] sm:$0xff] %v3019
        %3107 = vst [vmem:[%s3082 + $0x121] sm:$0xff] %v3020
        %3108 = vst [vmem:[%s3082 + $0x129] sm:$0xff] %v3021
        %3109 = vst [vmem:[%s3082 + $0x139] sm:$0xff] %v3022
        %3110 = vst [vmem:[%s3082 + $0x141] sm:$0xff] %v3023
        %3111 = vst [vmem:[%s3082 + $0x151] sm:$0xff] %v3024
        %3112 = vst [vmem:[%s3082 + $0x159] sm:$0xff] %v3025
        %3113 = vst [vmem:[%s3082 + $0x169] sm:$0xff] %v3026
        %3114 = vst [vmem:[%s3082 + $0x171] sm:$0xff] %v3027
        %v3115 = vld [vmem:[#allocation2] sm:$0xff]
        %v3116 = vld [vmem:[#allocation2 + $0x8] sm:$0xff]
        %v3117 = vld [vmem:[#allocation2 + $0x18] sm:$0xff]
        %v3118 = vld [vmem:[#allocation2 + $0x20] sm:$0xff]
        %v3119 = vld [vmem:[#allocation2 + $0x30] sm:$0xff]
        %v3120 = vld [vmem:[#allocation2 + $0x38] sm:$0xff]
        %v3121 = vld [vmem:[#allocation2 + $0x48] sm:$0xff]
        %v3122 = vld [vmem:[#allocation2 + $0x50] sm:$0xff]
        %v3123 = vld [vmem:[#allocation2 + $0x60] sm:$0xff]
        %v3124 = vld [vmem:[#allocation2 + $0x68] sm:$0xff]
        %v3125 = vld [vmem:[#allocation2 + $0x78] sm:$0xff]
        %v3126 = vld [vmem:[#allocation2 + $0x80] sm:$0xff]
        %v3127 = vld [vmem:[#allocation2 + $0x90] sm:$0xff]
        %v3128 = vld [vmem:[#allocation2 + $0x98] sm:$0xff]
        %v3129 = vld [vmem:[#allocation2 + $0xa8] sm:$0xff]
        %v3130 = vld [vmem:[#allocation2 + $0xb0] sm:$0xff]
        %v3131 = vld [vmem:[#allocation2 + $0xc0] sm:$0xff]
        %v3132 = vld [vmem:[#allocation2 + $0xc8] sm:$0xff]
        %v3133 = vld [vmem:[#allocation2 + $0xd8] sm:$0xff]
        %v3134 = vld [vmem:[#allocation2 + $0xe0] sm:$0xff]
        %v3135 = vld [vmem:[#allocation2 + $0xf0] sm:$0xff]
        %v3136 = vld [vmem:[#allocation2 + $0xf8] sm:$0xff]
        %v3137 = vld [vmem:[#allocation2 + $0x108] sm:$0xff]
        %v3138 = vld [vmem:[#allocation2 + $0x110] sm:$0xff]
        %v3139 = vld [vmem:[#allocation2 + $0x120] sm:$0xff]
        %v3140 = vld [vmem:[#allocation2 + $0x128] sm:$0xff]
        %v3141 = vld [vmem:[#allocation2 + $0x138] sm:$0xff]
        %v3142 = vld [vmem:[#allocation2 + $0x140] sm:$0xff]
        %v3143 = vld [vmem:[#allocation2 + $0x150] sm:$0xff]
        %v3144 = vld [vmem:[#allocation2 + $0x158] sm:$0xff]
        %v3145 = vld [vmem:[#allocation2 + $0x168] sm:$0xff]
        %v3146 = vld [vmem:[#allocation2 + $0x170] sm:$0xff]
        %v3147 = vld [vmem:[#allocation3] sm:$0xff]
        %v3148 = vld [vmem:[#allocation3 + $0x8] sm:$0xff]
        %v3149 = vld [vmem:[#allocation3 + $0x10] sm:$0xff]
        %v3150 = vld [vmem:[#allocation3 + $0x18] sm:$0xff]
        %v3151 = vld [vmem:[#allocation3 + $0x20] sm:$0xff]
        %v3152 = vld [vmem:[#allocation3 + $0x28] sm:$0xff]
        %v3153 = vld [vmem:[#allocation3 + $0x30] sm:$0xff]
        %v3154 = vld [vmem:[#allocation3 + $0x38] sm:$0xff]
        %v3155 = vld [vmem:[#allocation3 + $0x40] sm:$0xff]
        %v3156 = vld [vmem:[#allocation3 + $0x48] sm:$0xff]
        %v3157 = vld [vmem:[#allocation3 + $0x50] sm:$0xff]
        %v3158 = vld [vmem:[#allocation3 + $0x58] sm:$0xff]
        %v3159 = vld [vmem:[#allocation3 + $0x60] sm:$0xff]
        %v3160 = vld [vmem:[#allocation3 + $0x68] sm:$0xff]
        %v3161 = vld [vmem:[#allocation3 + $0x70] sm:$0xff]
        %v3162 = vld [vmem:[#allocation3 + $0x78] sm:$0xff]
        %v3163 = vld [vmem:[#allocation2 + $0x1] sm:$0xff]
        %v3164 = vld [vmem:[#allocation2 + $0x9] sm:$0xff]
        %v3165 = vld [vmem:[#allocation2 + $0x19] sm:$0xff]
        %v3166 = vld [vmem:[#allocation2 + $0x21] sm:$0xff]
        %v3167 = vld [vmem:[#allocation2 + $0x31] sm:$0xff]
        %v3168 = vld [vmem:[#allocation2 + $0x39] sm:$0xff]
        %v3169 = vld [vmem:[#allocation2 + $0x49] sm:$0xff]
        %v3170 = vld [vmem:[#allocation2 + $0x51] sm:$0xff]
        %v3171 = vld [vmem:[#allocation2 + $0x61] sm:$0xff]
        %v3172 = vld [vmem:[#allocation2 + $0x69] sm:$0xff]
        %v3173 = vld [vmem:[#allocation2 + $0x79] sm:$0xff]
        %v3174 = vld [vmem:[#allocation2 + $0x81] sm:$0xff]
        %v3175 = vld [vmem:[#allocation2 + $0x91] sm:$0xff]
        %v3176 = vld [vmem:[#allocation2 + $0x99] sm:$0xff]
        %v3177 = vld [vmem:[#allocation2 + $0xa9] sm:$0xff]
        %v3178 = vld [vmem:[#allocation2 + $0xb1] sm:$0xff]
        %v3179 = vld [vmem:[#allocation2 + $0xc1] sm:$0xff]
        %v3180 = vld [vmem:[#allocation2 + $0xc9] sm:$0xff]
        %v3181 = vld [vmem:[#allocation2 + $0xd9] sm:$0xff]
        %v3182 = vld [vmem:[#allocation2 + $0xe1] sm:$0xff]
        %v3183 = vld [vmem:[#allocation2 + $0xf1] sm:$0xff]
        %v3184 = vld [vmem:[#allocation2 + $0xf9] sm:$0xff]
        %v3185 = vld [vmem:[#allocation2 + $0x109] sm:$0xff]
        %v3186 = vld [vmem:[#allocation2 + $0x111] sm:$0xff]
        %v3187 = vld [vmem:[#allocation2 + $0x121] sm:$0xff]
        %v3188 = vld [vmem:[#allocation2 + $0x129] sm:$0xff]
        %v3189 = vld [vmem:[#allocation2 + $0x139] sm:$0xff]
        %v3190 = vld [vmem:[#allocation2 + $0x141] sm:$0xff]
        %v3191 = vld [vmem:[#allocation2 + $0x151] sm:$0xff]
        %v3192 = vld [vmem:[#allocation2 + $0x159] sm:$0xff]
        %v3193 = vld [vmem:[#allocation2 + $0x169] sm:$0xff]
        %v3194 = vld [vmem:[#allocation2 + $0x171] sm:$0xff]
        %s3195 = scalar_lea.vmem [#allocation3], 128
        %v3196 = vld [vmem:[%s3195] sm:$0xff]
        %v3197 = vld [vmem:[%s3195 + $0x8] sm:$0xff]
        %v3198 = vld [vmem:[%s3195 + $0x10] sm:$0xff]
        %v3199 = vld [vmem:[%s3195 + $0x18] sm:$0xff]
        %v3200 = vld [vmem:[%s3195 + $0x20] sm:$0xff]
        %v3201 = vld [vmem:[%s3195 + $0x28] sm:$0xff]
        %v3202 = vld [vmem:[%s3195 + $0x30] sm:$0xff]
        %v3203 = vld [vmem:[%s3195 + $0x38] sm:$0xff]
        %v3204 = vld [vmem:[%s3195 + $0x40] sm:$0xff]
        %v3205 = vld [vmem:[%s3195 + $0x48] sm:$0xff]
        %v3206 = vld [vmem:[%s3195 + $0x50] sm:$0xff]
        %v3207 = vld [vmem:[%s3195 + $0x58] sm:$0xff]
        %v3208 = vld [vmem:[%s3195 + $0x60] sm:$0xff]
        %v3209 = vld [vmem:[%s3195 + $0x68] sm:$0xff]
        %v3210 = vld [vmem:[%s3195 + $0x70] sm:$0xff]
        %v3211 = vld [vmem:[%s3195 + $0x78] sm:$0xff]
        %3212 = vmatprep.subr.mxu0 0.0
        %3213 = vmatpush1.msra.mxu0 %v3196
        %3214 = vmatprep.subr.mxu0 0.0
        %3215 = vmatpush1.msra.mxu0 %v3197
        %3216 = vmatprep.subr.mxu0 0.0
        %3217 = vmatpush1.msra.mxu0 %v3198
        %3218 = vmatprep.subr.mxu0 0.0
        %3219 = vmatpush1.msra.mxu0 %v3199
        %3220 = vmatprep.subr.mxu0 0.0
        %3221 = vmatpush1.msra.mxu0 %v3200
        %3222 = vmatprep.subr.mxu0 0.0
        %3223 = vmatpush1.msra.mxu0 %v3201
        %3224 = vmatprep.subr.mxu0 0.0
        %3225 = vmatpush1.msra.mxu0 %v3202
        %3226 = vmatprep.subr.mxu0 0.0
        %3227 = vmatpush1.msra.mxu0 %v3203
        %3228 = vmatprep.subr.mxu0 0.0
        %3229 = vmatpush1.msra.mxu0 %v3204
        %3230 = vmatprep.subr.mxu0 0.0
        %3231 = vmatpush1.msra.mxu0 %v3205
        %3232 = vmatprep.subr.mxu0 0.0
        %3233 = vmatpush1.msra.mxu0 %v3206
        %3234 = vmatprep.subr.mxu0 0.0
        %3235 = vmatpush1.msra.mxu0 %v3207
        %3236 = vmatprep.subr.mxu0 0.0
        %3237 = vmatpush1.msra.mxu0 %v3208
        %3238 = vmatprep.subr.mxu0 0.0
        %3239 = vmatpush1.msra.mxu0 %v3209
        %3240 = vmatprep.subr.mxu0 0.0
        %3241 = vmatpush1.msra.mxu0 %v3210
        %3242 = vmatprep.subr.mxu0 0.0
        %3243 = vmatpush1.msra.mxu0 %v3211
        %3244 = vmatprep.subr.mxu0 0.0
        %3245 = vmatpush1.msra.mxu0 0.0
        %3246 = vmatprep.subr.mxu0 0.0
        %3247 = vmatpush1.msra.mxu0 0.0
        %3248 = vmatprep.subr.mxu0 0.0
        %3249 = vmatpush1.msra.mxu0 0.0
        %3250 = vmatprep.subr.mxu0 0.0
        %3251 = vmatpush1.msra.mxu0 0.0
        %3252 = vmatprep.subr.mxu0 0.0
        %3253 = vmatpush1.msra.mxu0 0.0
        %3254 = vmatprep.subr.mxu0 0.0
        %3255 = vmatpush1.msra.mxu0 0.0
        %3256 = vmatprep.subr.mxu0 0.0
        %3257 = vmatpush1.msra.mxu0 0.0
        %3258 = vmatprep.subr.mxu0 0.0
        %3259 = vmatpush1.msra.mxu0 0.0
        %3260 = vmatprep.subr.mxu0 0.0
        %3261 = vmatpush1.msra.mxu0 0.0
        %3262 = vmatprep.subr.mxu0 0.0
        %3263 = vmatpush1.msra.mxu0 0.0
        %3264 = vmatprep.subr.mxu0 0.0
        %3265 = vmatpush1.msra.mxu0 0.0
        %3266 = vmatprep.subr.mxu0 0.0
        %3267 = vmatpush1.msra.mxu0 0.0
        %3268 = vmatprep.subr.mxu0 0.0
        %3269 = vmatpush1.msra.mxu0 0.0
        %3270 = vmatprep.subr.mxu0 0.0
        %3271 = vmatpush1.msra.mxu0 0.0
        %3272 = vmatprep.subr.mxu0 0.0
        %3273 = vmatpush1.msra.mxu0 0.0
        %3274 = vmatprep.subr.mxu0 0.0
        %3275 = vmatpush1.msra.mxu0 0.0
        %3276 = vmatprep.mubr.f32.mxu0 0.0
        %3277 = vmatmul.mubr.f32.gmra.mrb[0].mxu0 %v3163
        %v3278 = vpop.f32.mrb[0].mxu0
        %v3279 = vadd.f32 0.0, %v3278
        %v3280 = vpop.f32.mrb[0].mxu0
        %3281 = vmatprep.mubr.f32.mxu0 0.0
        %3282 = vmatmul.mubr.f32.gmra.mrb[0].mxu0 %v3164
        %v3283 = vpop.f32.mrb[0].mxu0
        %v3284 = vadd.f32 0.0, %v3283
        %v3285 = vpop.f32.mrb[0].mxu0
        %3286 = vmatprep.mubr.f32.mxu0 0.0
        %3287 = vmatmul.mubr.f32.gmra.mrb[0].mxu0 %v3165
        %v3288 = vpop.f32.mrb[0].mxu0
        %v3289 = vadd.f32 0.0, %v3288
        %v3290 = vpop.f32.mrb[0].mxu0
        %3291 = vmatprep.mubr.f32.mxu0 0.0
        %3292 = vmatmul.mubr.f32.gmra.mrb[0].mxu0 %v3166
        %v3293 = vpop.f32.mrb[0].mxu0
        %v3294 = vadd.f32 0.0, %v3293
        %v3295 = vpop.f32.mrb[0].mxu0
        %3296 = vmatprep.mubr.f32.mxu0 0.0
        %3297 = vmatmul.mubr.f32.gmra.mrb[0].mxu0 %v3167
        %v3298 = vpop.f32.mrb[0].mxu0
        %v3299 = vadd.f32 0.0, %v3298
        %v3300 = vpop.f32.mrb[0].mxu0
        %3301 = vmatprep.mubr.f32.mxu0 0.0
        %3302 = vmatmul.mubr.f32.gmra.mrb[0].mxu0 %v3168
        %v3303 = vpop.f32.mrb[0].mxu0
        %v3304 = vadd.f32 0.0, %v3303
        %v3305 = vpop.f32.mrb[0].mxu0
        %3306 = vmatprep.mubr.f32.mxu0 0.0
        %3307 = vmatmul.mubr.f32.gmra.mrb[0].mxu0 %v3169
        %v3308 = vpop.f32.mrb[0].mxu0
        %v3309 = vadd.f32 0.0, %v3308
        %v3310 = vpop.f32.mrb[0].mxu0
        %3311 = vmatprep.mubr.f32.mxu0 0.0
        %3312 = vmatmul.mubr.f32.gmra.mrb[0].mxu0 %v3170
        %v3313 = vpop.f32.mrb[0].mxu0
        %v3314 = vadd.f32 0.0, %v3313
        %v3315 = vpop.f32.mrb[0].mxu0
        %3316 = vmatprep.mubr.f32.mxu0 0.0
        %3317 = vmatmul.mubr.f32.gmra.mrb[0].mxu0 %v3171
        %v3318 = vpop.f32.mrb[0].mxu0
        %v3319 = vadd.f32 0.0, %v3318
        %v3320 = vpop.f32.mrb[0].mxu0
        %3321 = vmatprep.mubr.f32.mxu0 0.0
        %3322 = vmatmul.mubr.f32.gmra.mrb[0].mxu0 %v3172
        %v3323 = vpop.f32.mrb[0].mxu0
        %v3324 = vadd.f32 0.0, %v3323
        %v3325 = vpop.f32.mrb[0].mxu0
        %3326 = vmatprep.mubr.f32.mxu0 0.0
        %3327 = vmatmul.mubr.f32.gmra.mrb[0].mxu0 %v3173
        %v3328 = vpop.f32.mrb[0].mxu0
        %v3329 = vadd.f32 0.0, %v3328
        %v3330 = vpop.f32.mrb[0].mxu0
        %3331 = vmatprep.mubr.f32.mxu0 0.0
        %3332 = vmatmul.mubr.f32.gmra.mrb[0].mxu0 %v3174
        %v3333 = vpop.f32.mrb[0].mxu0
        %v3334 = vadd.f32 0.0, %v3333
        %v3335 = vpop.f32.mrb[0].mxu0
        %3336 = vmatprep.mubr.f32.mxu0 0.0
        %3337 = vmatmul.mubr.f32.gmra.mrb[0].mxu0 %v3175
        %v3338 = vpop.f32.mrb[0].mxu0
        %v3339 = vadd.f32 0.0, %v3338
        %v3340 = vpop.f32.mrb[0].mxu0
        %3341 = vmatprep.mubr.f32.mxu0 0.0
        %3342 = vmatmul.mubr.f32.gmra.mrb[0].mxu0 %v3176
        %v3343 = vpop.f32.mrb[0].mxu0
        %v3344 = vadd.f32 0.0, %v3343
        %v3345 = vpop.f32.mrb[0].mxu0
        %3346 = vmatprep.mubr.f32.mxu0 0.0
        %3347 = vmatmul.mubr.f32.gmra.mrb[0].mxu0 %v3177
        %v3348 = vpop.f32.mrb[0].mxu0
        %v3349 = vadd.f32 0.0, %v3348
        %v3350 = vpop.f32.mrb[0].mxu0
        %3351 = vmatprep.mubr.f32.mxu0 0.0
        %3352 = vmatmul.mubr.f32.gmra.mrb[0].mxu0 %v3178
        %v3353 = vpop.f32.mrb[0].mxu0
        %v3354 = vadd.f32 0.0, %v3353
        %v3355 = vpop.f32.mrb[0].mxu0
        %3356 = vmatprep.mubr.f32.mxu0 0.0
        %3357 = vmatmul.mubr.f32.gmra.mrb[0].mxu0 %v3179
        %v3358 = vpop.f32.mrb[0].mxu0
        %v3359 = vadd.f32 0.0, %v3358
        %v3360 = vpop.f32.mrb[0].mxu0
        %3361 = vmatprep.mubr.f32.mxu0 0.0
        %3362 = vmatmul.mubr.f32.gmra.mrb[0].mxu0 %v3180
        %v3363 = vpop.f32.mrb[0].mxu0
        %v3364 = vadd.f32 0.0, %v3363
        %v3365 = vpop.f32.mrb[0].mxu0
        %3366 = vmatprep.mubr.f32.mxu0 0.0
        %3367 = vmatmul.mubr.f32.gmra.mrb[0].mxu0 %v3181
        %v3368 = vpop.f32.mrb[0].mxu0
        %v3369 = vadd.f32 0.0, %v3368
        %v3370 = vpop.f32.mrb[0].mxu0
        %3371 = vmatprep.mubr.f32.mxu0 0.0
        %3372 = vmatmul.mubr.f32.gmra.mrb[0].mxu0 %v3182
        %v3373 = vpop.f32.mrb[0].mxu0
        %v3374 = vadd.f32 0.0, %v3373
        %v3375 = vpop.f32.mrb[0].mxu0
        %3376 = vmatprep.mubr.f32.mxu0 0.0
        %3377 = vmatmul.mubr.f32.gmra.mrb[0].mxu0 %v3183
        %v3378 = vpop.f32.mrb[0].mxu0
        %v3379 = vadd.f32 0.0, %v3378
        %v3380 = vpop.f32.mrb[0].mxu0
        %3381 = vmatprep.mubr.f32.mxu0 0.0
        %3382 = vmatmul.mubr.f32.gmra.mrb[0].mxu0 %v3184
        %v3383 = vpop.f32.mrb[0].mxu0
        %v3384 = vadd.f32 0.0, %v3383
        %v3385 = vpop.f32.mrb[0].mxu0
        %3386 = vmatprep.mubr.f32.mxu0 0.0
        %3387 = vmatmul.mubr.f32.gmra.mrb[0].mxu0 %v3185
        %v3388 = vpop.f32.mrb[0].mxu0
        %v3389 = vadd.f32 0.0, %v3388
        %v3390 = vpop.f32.mrb[0].mxu0
        %3391 = vmatprep.mubr.f32.mxu0 0.0
        %3392 = vmatmul.mubr.f32.gmra.mrb[0].mxu0 %v3186
        %v3393 = vpop.f32.mrb[0].mxu0
        %v3394 = vadd.f32 0.0, %v3393
        %v3395 = vpop.f32.mrb[0].mxu0
        %3396 = vmatprep.mubr.f32.mxu0 0.0
        %3397 = vmatmul.mubr.f32.gmra.mrb[0].mxu0 %v3187
        %v3398 = vpop.f32.mrb[0].mxu0
        %v3399 = vadd.f32 0.0, %v3398
        %v3400 = vpop.f32.mrb[0].mxu0
        %3401 = vmatprep.mubr.f32.mxu0 0.0
        %3402 = vmatmul.mubr.f32.gmra.mrb[0].mxu0 %v3188
        %v3403 = vpop.f32.mrb[0].mxu0
        %v3404 = vadd.f32 0.0, %v3403
        %v3405 = vpop.f32.mrb[0].mxu0
        %3406 = vmatprep.mubr.f32.mxu0 0.0
        %3407 = vmatmul.mubr.f32.gmra.mrb[0].mxu0 %v3189
        %v3408 = vpop.f32.mrb[0].mxu0
        %v3409 = vadd.f32 0.0, %v3408
        %v3410 = vpop.f32.mrb[0].mxu0
        %3411 = vmatprep.mubr.f32.mxu0 0.0
        %3412 = vmatmul.mubr.f32.gmra.mrb[0].mxu0 %v3190
        %v3413 = vpop.f32.mrb[0].mxu0
        %v3414 = vadd.f32 0.0, %v3413
        %v3415 = vpop.f32.mrb[0].mxu0
        %3416 = vmatprep.mubr.f32.mxu0 0.0
        %3417 = vmatmul.mubr.f32.gmra.mrb[0].mxu0 %v3191
        %v3418 = vpop.f32.mrb[0].mxu0
        %v3419 = vadd.f32 0.0, %v3418
        %v3420 = vpop.f32.mrb[0].mxu0
        %3421 = vmatprep.mubr.f32.mxu0 0.0
        %3422 = vmatmul.mubr.f32.gmra.mrb[0].mxu0 %v3192
        %v3423 = vpop.f32.mrb[0].mxu0
        %v3424 = vadd.f32 0.0, %v3423
        %v3425 = vpop.f32.mrb[0].mxu0
        %3426 = vmatprep.mubr.f32.mxu0 0.0
        %3427 = vmatmul.mubr.f32.gmra.mrb[0].mxu0 %v3193
        %v3428 = vpop.f32.mrb[0].mxu0
        %v3429 = vadd.f32 0.0, %v3428
        %v3430 = vpop.f32.mrb[0].mxu0
        %3431 = vmatprep.mubr.f32.mxu0 0.0
        %3432 = vmatmul.mubr.f32.gmra.mrb[0].mxu0 %v3194
        %v3433 = vpop.f32.mrb[0].mxu0
        %v3434 = vadd.f32 0.0, %v3433
        %v3435 = vpop.f32.mrb[0].mxu0
        %3436 = vdwg.mxu0
        %3437 = vmatprep.subr.mxu0 0.0
        %3438 = vmatpush1.msra.mxu0 %v3147
        %3439 = vmatprep.subr.mxu0 0.0
        %3440 = vmatpush1.msra.mxu0 %v3148
        %3441 = vmatprep.subr.mxu0 0.0
        %3442 = vmatpush1.msra.mxu0 %v3149
        %3443 = vmatprep.subr.mxu0 0.0
        %3444 = vmatpush1.msra.mxu0 %v3150
        %3445 = vmatprep.subr.mxu0 0.0
        %3446 = vmatpush1.msra.mxu0 %v3151
        %3447 = vmatprep.subr.mxu0 0.0
        %3448 = vmatpush1.msra.mxu0 %v3152
        %3449 = vmatprep.subr.mxu0 0.0
        %3450 = vmatpush1.msra.mxu0 %v3153
        %3451 = vmatprep.subr.mxu0 0.0
        %3452 = vmatpush1.msra.mxu0 %v3154
        %3453 = vmatprep.subr.mxu0 0.0
        %3454 = vmatpush1.msra.mxu0 %v3155
        %3455 = vmatprep.subr.mxu0 0.0
        %3456 = vmatpush1.msra.mxu0 %v3156
        %3457 = vmatprep.subr.mxu0 0.0
        %3458 = vmatpush1.msra.mxu0 %v3157
        %3459 = vmatprep.subr.mxu0 0.0
        %3460 = vmatpush1.msra.mxu0 %v3158
        %3461 = vmatprep.subr.mxu0 0.0
        %3462 = vmatpush1.msra.mxu0 %v3159
        %3463 = vmatprep.subr.mxu0 0.0
        %3464 = vmatpush1.msra.mxu0 %v3160
        %3465 = vmatprep.subr.mxu0 0.0
        %3466 = vmatpush1.msra.mxu0 %v3161
        %3467 = vmatprep.subr.mxu0 0.0
        %3468 = vmatpush1.msra.mxu0 %v3162
        %3469 = vmatprep.subr.mxu0 0.0
        %3470 = vmatpush1.msra.mxu0 0.0
        %3471 = vmatprep.subr.mxu0 0.0
        %3472 = vmatpush1.msra.mxu0 0.0
        %3473 = vmatprep.subr.mxu0 0.0
        %3474 = vmatpush1.msra.mxu0 0.0
        %3475 = vmatprep.subr.mxu0 0.0
        %3476 = vmatpush1.msra.mxu0 0.0
        %3477 = vmatprep.subr.mxu0 0.0
        %3478 = vmatpush1.msra.mxu0 0.0
        %3479 = vmatprep.subr.mxu0 0.0
        %3480 = vmatpush1.msra.mxu0 0.0
        %3481 = vmatprep.subr.mxu0 0.0
        %3482 = vmatpush1.msra.mxu0 0.0
        %3483 = vmatprep.subr.mxu0 0.0
        %3484 = vmatpush1.msra.mxu0 0.0
        %3485 = vmatprep.subr.mxu0 0.0
        %3486 = vmatpush1.msra.mxu0 0.0
        %3487 = vmatprep.subr.mxu0 0.0
        %3488 = vmatpush1.msra.mxu0 0.0
        %3489 = vmatprep.subr.mxu0 0.0
        %3490 = vmatpush1.msra.mxu0 0.0
        %3491 = vmatprep.subr.mxu0 0.0
        %3492 = vmatpush1.msra.mxu0 0.0
        %3493 = vmatprep.subr.mxu0 0.0
        %3494 = vmatpush1.msra.mxu0 0.0
        %3495 = vmatprep.subr.mxu0 0.0
        %3496 = vmatpush1.msra.mxu0 0.0
        %3497 = vmatprep.subr.mxu0 0.0
        %3498 = vmatpush1.msra.mxu0 0.0
        %3499 = vmatprep.subr.mxu0 0.0
        %3500 = vmatpush1.msra.mxu0 0.0
        %3501 = vmatprep.mubr.f32.mxu0 0.0
        %3502 = vmatmul.mubr.f32.gmra.mrb[0].mxu0 %v3115
        %v3503 = vpop.f32.mrb[0].mxu0
        %v3504 = vadd.f32 %v3279, %v3503
        %v3505 = vpop.f32.mrb[0].mxu0
        %3506 = vmatprep.mubr.f32.mxu0 0.0
        %3507 = vmatmul.mubr.f32.gmra.mrb[0].mxu0 %v3116
        %v3508 = vpop.f32.mrb[0].mxu0
        %v3509 = vadd.f32 %v3284, %v3508
        %v3510 = vpop.f32.mrb[0].mxu0
        %3511 = vmatprep.mubr.f32.mxu0 0.0
        %3512 = vmatmul.mubr.f32.gmra.mrb[0].mxu0 %v3117
        %v3513 = vpop.f32.mrb[0].mxu0
        %v3514 = vadd.f32 %v3289, %v3513
        %v3515 = vpop.f32.mrb[0].mxu0
        %3516 = vmatprep.mubr.f32.mxu0 0.0
        %3517 = vmatmul.mubr.f32.gmra.mrb[0].mxu0 %v3118
        %v3518 = vpop.f32.mrb[0].mxu0
        %v3519 = vadd.f32 %v3294, %v3518
        %v3520 = vpop.f32.mrb[0].mxu0
        %3521 = vmatprep.mubr.f32.mxu0 0.0
        %3522 = vmatmul.mubr.f32.gmra.mrb[0].mxu0 %v3119
        %v3523 = vpop.f32.mrb[0].mxu0
        %v3524 = vadd.f32 %v3299, %v3523
        %v3525 = vpop.f32.mrb[0].mxu0
        %3526 = vmatprep.mubr.f32.mxu0 0.0
        %3527 = vmatmul.mubr.f32.gmra.mrb[0].mxu0 %v3120
        %v3528 = vpop.f32.mrb[0].mxu0
        %v3529 = vadd.f32 %v3304, %v3528
        %v3530 = vpop.f32.mrb[0].mxu0
        %3531 = vmatprep.mubr.f32.mxu0 0.0
        %3532 = vmatmul.mubr.f32.gmra.mrb[0].mxu0 %v3121
        %v3533 = vpop.f32.mrb[0].mxu0
        %v3534 = vadd.f32 %v3309, %v3533
        %v3535 = vpop.f32.mrb[0].mxu0
        %3536 = vmatprep.mubr.f32.mxu0 0.0
        %3537 = vmatmul.mubr.f32.gmra.mrb[0].mxu0 %v3122
        %v3538 = vpop.f32.mrb[0].mxu0
        %v3539 = vadd.f32 %v3314, %v3538
        %v3540 = vpop.f32.mrb[0].mxu0
        %3541 = vmatprep.mubr.f32.mxu0 0.0
        %3542 = vmatmul.mubr.f32.gmra.mrb[0].mxu0 %v3123
        %v3543 = vpop.f32.mrb[0].mxu0
        %v3544 = vadd.f32 %v3319, %v3543
        %v3545 = vpop.f32.mrb[0].mxu0
        %3546 = vmatprep.mubr.f32.mxu0 0.0
        %3547 = vmatmul.mubr.f32.gmra.mrb[0].mxu0 %v3124
        %v3548 = vpop.f32.mrb[0].mxu0
        %v3549 = vadd.f32 %v3324, %v3548
        %v3550 = vpop.f32.mrb[0].mxu0
        %3551 = vmatprep.mubr.f32.mxu0 0.0
        %3552 = vmatmul.mubr.f32.gmra.mrb[0].mxu0 %v3125
        %v3553 = vpop.f32.mrb[0].mxu0
        %v3554 = vadd.f32 %v3329, %v3553
        %v3555 = vpop.f32.mrb[0].mxu0
        %3556 = vmatprep.mubr.f32.mxu0 0.0
        %3557 = vmatmul.mubr.f32.gmra.mrb[0].mxu0 %v3126
        %v3558 = vpop.f32.mrb[0].mxu0
        %v3559 = vadd.f32 %v3334, %v3558
        %v3560 = vpop.f32.mrb[0].mxu0
        %3561 = vmatprep.mubr.f32.mxu0 0.0
        %3562 = vmatmul.mubr.f32.gmra.mrb[0].mxu0 %v3127
        %v3563 = vpop.f32.mrb[0].mxu0
        %v3564 = vadd.f32 %v3339, %v3563
        %v3565 = vpop.f32.mrb[0].mxu0
        %3566 = vmatprep.mubr.f32.mxu0 0.0
        %3567 = vmatmul.mubr.f32.gmra.mrb[0].mxu0 %v3128
        %v3568 = vpop.f32.mrb[0].mxu0
        %v3569 = vadd.f32 %v3344, %v3568
        %v3570 = vpop.f32.mrb[0].mxu0
        %3571 = vmatprep.mubr.f32.mxu0 0.0
        %3572 = vmatmul.mubr.f32.gmra.mrb[0].mxu0 %v3129
        %v3573 = vpop.f32.mrb[0].mxu0
        %v3574 = vadd.f32 %v3349, %v3573
        %v3575 = vpop.f32.mrb[0].mxu0
        %3576 = vmatprep.mubr.f32.mxu0 0.0
        %3577 = vmatmul.mubr.f32.gmra.mrb[0].mxu0 %v3130
        %v3578 = vpop.f32.mrb[0].mxu0
        %v3579 = vadd.f32 %v3354, %v3578
        %v3580 = vpop.f32.mrb[0].mxu0
        %3581 = vmatprep.mubr.f32.mxu0 0.0
        %3582 = vmatmul.mubr.f32.gmra.mrb[0].mxu0 %v3131
        %v3583 = vpop.f32.mrb[0].mxu0
        %v3584 = vadd.f32 %v3359, %v3583
        %v3585 = vpop.f32.mrb[0].mxu0
        %3586 = vmatprep.mubr.f32.mxu0 0.0
        %3587 = vmatmul.mubr.f32.gmra.mrb[0].mxu0 %v3132
        %v3588 = vpop.f32.mrb[0].mxu0
        %v3589 = vadd.f32 %v3364, %v3588
        %v3590 = vpop.f32.mrb[0].mxu0
        %3591 = vmatprep.mubr.f32.mxu0 0.0
        %3592 = vmatmul.mubr.f32.gmra.mrb[0].mxu0 %v3133
        %v3593 = vpop.f32.mrb[0].mxu0
        %v3594 = vadd.f32 %v3369, %v3593
        %v3595 = vpop.f32.mrb[0].mxu0
        %3596 = vmatprep.mubr.f32.mxu0 0.0
        %3597 = vmatmul.mubr.f32.gmra.mrb[0].mxu0 %v3134
        %v3598 = vpop.f32.mrb[0].mxu0
        %v3599 = vadd.f32 %v3374, %v3598
        %v3600 = vpop.f32.mrb[0].mxu0
        %3601 = vmatprep.mubr.f32.mxu0 0.0
        %3602 = vmatmul.mubr.f32.gmra.mrb[0].mxu0 %v3135
        %v3603 = vpop.f32.mrb[0].mxu0
        %v3604 = vadd.f32 %v3379, %v3603
        %v3605 = vpop.f32.mrb[0].mxu0
        %3606 = vmatprep.mubr.f32.mxu0 0.0
        %3607 = vmatmul.mubr.f32.gmra.mrb[0].mxu0 %v3136
        %v3608 = vpop.f32.mrb[0].mxu0
        %v3609 = vadd.f32 %v3384, %v3608
        %v3610 = vpop.f32.mrb[0].mxu0
        %3611 = vmatprep.mubr.f32.mxu0 0.0
        %3612 = vmatmul.mubr.f32.gmra.mrb[0].mxu0 %v3137
        %v3613 = vpop.f32.mrb[0].mxu0
        %v3614 = vadd.f32 %v3389, %v3613
        %v3615 = vpop.f32.mrb[0].mxu0
        %3616 = vmatprep.mubr.f32.mxu0 0.0
        %3617 = vmatmul.mubr.f32.gmra.mrb[0].mxu0 %v3138
        %v3618 = vpop.f32.mrb[0].mxu0
        %v3619 = vadd.f32 %v3394, %v3618
        %v3620 = vpop.f32.mrb[0].mxu0
        %3621 = vmatprep.mubr.f32.mxu0 0.0
        %3622 = vmatmul.mubr.f32.gmra.mrb[0].mxu0 %v3139
        %v3623 = vpop.f32.mrb[0].mxu0
        %v3624 = vadd.f32 %v3399, %v3623
        %v3625 = vpop.f32.mrb[0].mxu0
        %3626 = vmatprep.mubr.f32.mxu0 0.0
        %3627 = vmatmul.mubr.f32.gmra.mrb[0].mxu0 %v3140
        %v3628 = vpop.f32.mrb[0].mxu0
        %v3629 = vadd.f32 %v3404, %v3628
        %v3630 = vpop.f32.mrb[0].mxu0
        %3631 = vmatprep.mubr.f32.mxu0 0.0
        %3632 = vmatmul.mubr.f32.gmra.mrb[0].mxu0 %v3141
        %v3633 = vpop.f32.mrb[0].mxu0
        %v3634 = vadd.f32 %v3409, %v3633
        %v3635 = vpop.f32.mrb[0].mxu0
        %3636 = vmatprep.mubr.f32.mxu0 0.0
        %3637 = vmatmul.mubr.f32.gmra.mrb[0].mxu0 %v3142
        %v3638 = vpop.f32.mrb[0].mxu0
        %v3639 = vadd.f32 %v3414, %v3638
        %v3640 = vpop.f32.mrb[0].mxu0
        %3641 = vmatprep.mubr.f32.mxu0 0.0
        %3642 = vmatmul.mubr.f32.gmra.mrb[0].mxu0 %v3143
        %v3643 = vpop.f32.mrb[0].mxu0
        %v3644 = vadd.f32 %v3419, %v3643
        %v3645 = vpop.f32.mrb[0].mxu0
        %3646 = vmatprep.mubr.f32.mxu0 0.0
        %3647 = vmatmul.mubr.f32.gmra.mrb[0].mxu0 %v3144
        %v3648 = vpop.f32.mrb[0].mxu0
        %v3649 = vadd.f32 %v3424, %v3648
        %v3650 = vpop.f32.mrb[0].mxu0
        %3651 = vmatprep.mubr.f32.mxu0 0.0
        %3652 = vmatmul.mubr.f32.gmra.mrb[0].mxu0 %v3145
        %v3653 = vpop.f32.mrb[0].mxu0
        %v3654 = vadd.f32 %v3429, %v3653
        %v3655 = vpop.f32.mrb[0].mxu0
        %3656 = vmatprep.mubr.f32.mxu0 0.0
        %3657 = vmatmul.mubr.f32.gmra.mrb[0].mxu0 %v3146
        %v3658 = vpop.f32.mrb[0].mxu0
        %v3659 = vadd.f32 %v3434, %v3658
        %v3660 = vpop.f32.mrb[0].mxu0
        %3661 = vdwg.mxu0
        %v3662 = vld [vmem:[#allocation2 + $0x2] sm:$0xff]
        %v3663 = vld [vmem:[#allocation2 + $0xa] sm:$0xff]
        %v3664 = vld [vmem:[#allocation2 + $0x1a] sm:$0xff]
        %v3665 = vld [vmem:[#allocation2 + $0x22] sm:$0xff]
        %v3666 = vld [vmem:[#allocation2 + $0x32] sm:$0xff]
        %v3667 = vld [vmem:[#allocation2 + $0x3a] sm:$0xff]
        %v3668 = vld [vmem:[#allocation2 + $0x4a] sm:$0xff]
        %v3669 = vld [vmem:[#allocation2 + $0x52] sm:$0xff]
        %v3670 = vld [vmem:[#allocation2 + $0x62] sm:$0xff]
        %v3671 = vld [vmem:[#allocation2 + $0x6a] sm:$0xff]
        %v3672 = vld [vmem:[#allocation2 + $0x7a] sm:$0xff]
        %v3673 = vld [vmem:[#allocation2 + $0x82] sm:$0xff]
        %v3674 = vld [vmem:[#allocation2 + $0x92] sm:$0xff]
        %v3675 = vld [vmem:[#allocation2 + $0x9a] sm:$0xff]
        %v3676 = vld [vmem:[#allocation2 + $0xaa] sm:$0xff]
        %v3677 = vld [vmem:[#allocation2 + $0xb2] sm:$0xff]
        %v3678 = vld [vmem:[#allocation2 + $0xc2] sm:$0xff]
        %v3679 = vld [vmem:[#allocation2 + $0xca] sm:$0xff]
        %v3680 = vld [vmem:[#allocation2 + $0xda] sm:$0xff]
        %v3681 = vld [vmem:[#allocation2 + $0xe2] sm:$0xff]
        %v3682 = vld [vmem:[#allocation2 + $0xf2] sm:$0xff]
        %v3683 = vld [vmem:[#allocation2 + $0xfa] sm:$0xff]
        %v3684 = vld [vmem:[#allocation2 + $0x10a] sm:$0xff]
        %v3685 = vld [vmem:[#allocation2 + $0x112] sm:$0xff]
        %v3686 = vld [vmem:[#allocation2 + $0x122] sm:$0xff]
        %v3687 = vld [vmem:[#allocation2 + $0x12a] sm:$0xff]
        %v3688 = vld [vmem:[#allocation2 + $0x13a] sm:$0xff]
        %v3689 = vld [vmem:[#allocation2 + $0x142] sm:$0xff]
        %v3690 = vld [vmem:[#allocation2 + $0x152] sm:$0xff]
        %v3691 = vld [vmem:[#allocation2 + $0x15a] sm:$0xff]
        %v3692 = vld [vmem:[#allocation2 + $0x16a] sm:$0xff]
        %v3693 = vld [vmem:[#allocation2 + $0x172] sm:$0xff]
        %s3694 = scalar_lea.vmem [#allocation3], 256
        %v3695 = vld [vmem:[%s3694] sm:$0xff]
        %v3696 = vld [vmem:[%s3694 + $0x8] sm:$0xff]
        %v3697 = vld [vmem:[%s3694 + $0x10] sm:$0xff]
        %v3698 = vld [vmem:[%s3694 + $0x18] sm:$0xff]
        %v3699 = vld [vmem:[%s3694 + $0x20] sm:$0xff]
        %v3700 = vld [vmem:[%s3694 + $0x28] sm:$0xff]
        %v3701 = vld [vmem:[%s3694 + $0x30] sm:$0xff]
        %v3702 = vld [vmem:[%s3694 + $0x38] sm:$0xff]
        %v3703 = vld [vmem:[%s3694 + $0x40] sm:$0xff]
        %v3704 = vld [vmem:[%s3694 + $0x48] sm:$0xff]
        %v3705 = vld [vmem:[%s3694 + $0x50] sm:$0xff]
        %v3706 = vld [vmem:[%s3694 + $0x58] sm:$0xff]
        %v3707 = vld [vmem:[%s3694 + $0x60] sm:$0xff]
        %v3708 = vld [vmem:[%s3694 + $0x68] sm:$0xff]
        %v3709 = vld [vmem:[%s3694 + $0x70] sm:$0xff]
        %v3710 = vld [vmem:[%s3694 + $0x78] sm:$0xff]
        %3711 = vmatprep.subr.mxu0 0.0
        %3712 = vmatpush1.msra.mxu0 %v3695
        %3713 = vmatprep.subr.mxu0 0.0
        %3714 = vmatpush1.msra.mxu0 %v3696
        %3715 = vmatprep.subr.mxu0 0.0
        %3716 = vmatpush1.msra.mxu0 %v3697
        %3717 = vmatprep.subr.mxu0 0.0
        %3718 = vmatpush1.msra.mxu0 %v3698
        %3719 = vmatprep.subr.mxu0 0.0
        %3720 = vmatpush1.msra.mxu0 %v3699
        %3721 = vmatprep.subr.mxu0 0.0
        %3722 = vmatpush1.msra.mxu0 %v3700
        %3723 = vmatprep.subr.mxu0 0.0
        %3724 = vmatpush1.msra.mxu0 %v3701
        %3725 = vmatprep.subr.mxu0 0.0
        %3726 = vmatpush1.msra.mxu0 %v3702
        %3727 = vmatprep.subr.mxu0 0.0
        %3728 = vmatpush1.msra.mxu0 %v3703
        %3729 = vmatprep.subr.mxu0 0.0
        %3730 = vmatpush1.msra.mxu0 %v3704
        %3731 = vmatprep.subr.mxu0 0.0
        %3732 = vmatpush1.msra.mxu0 %v3705
        %3733 = vmatprep.subr.mxu0 0.0
        %3734 = vmatpush1.msra.mxu0 %v3706
        %3735 = vmatprep.subr.mxu0 0.0
        %3736 = vmatpush1.msra.mxu0 %v3707
        %3737 = vmatprep.subr.mxu0 0.0
        %3738 = vmatpush1.msra.mxu0 %v3708
        %3739 = vmatprep.subr.mxu0 0.0
        %3740 = vmatpush1.msra.mxu0 %v3709
        %3741 = vmatprep.subr.mxu0 0.0
        %3742 = vmatpush1.msra.mxu0 %v3710
        %3743 = vmatprep.subr.mxu0 0.0
        %3744 = vmatpush1.msra.mxu0 0.0
        %3745 = vmatprep.subr.mxu0 0.0
        %3746 = vmatpush1.msra.mxu0 0.0
        %3747 = vmatprep.subr.mxu0 0.0
        %3748 = vmatpush1.msra.mxu0 0.0
        %3749 = vmatprep.subr.mxu0 0.0
        %3750 = vmatpush1.msra.mxu0 0.0
        %3751 = vmatprep.subr.mxu0 0.0
        %3752 = vmatpush1.msra.mxu0 0.0
        %3753 = vmatprep.subr.mxu0 0.0
        %3754 = vmatpush1.msra.mxu0 0.0
        %3755 = vmatprep.subr.mxu0 0.0
        %3756 = vmatpush1.msra.mxu0 0.0
        %3757 = vmatprep.subr.mxu0 0.0
        %3758 = vmatpush1.msra.mxu0 0.0
        %3759 = vmatprep.subr.mxu0 0.0
        %3760 = vmatpush1.msra.mxu0 0.0
        %3761 = vmatprep.subr.mxu0 0.0
        %3762 = vmatpush1.msra.mxu0 0.0
        %3763 = vmatprep.subr.mxu0 0.0
        %3764 = vmatpush1.msra.mxu0 0.0
        %3765 = vmatprep.subr.mxu0 0.0
        %3766 = vmatpush1.msra.mxu0 0.0
        %3767 = vmatprep.subr.mxu0 0.0
        %3768 = vmatpush1.msra.mxu0 0.0
        %3769 = vmatprep.subr.mxu0 0.0
        %3770 = vmatpush1.msra.mxu0 0.0
        %3771 = vmatprep.subr.mxu0 0.0
        %3772 = vmatpush1.msra.mxu0 0.0
        %3773 = vmatprep.subr.mxu0 0.0
        %3774 = vmatpush1.msra.mxu0 0.0
        %3775 = vmatprep.mubr.f32.mxu0 0.0
        %3776 = vmatmul.mubr.f32.gmra.mrb[0].mxu0 %v3662
        %v3777 = vpop.f32.mrb[0].mxu0
        %v3778 = vadd.f32 0.0, %v3777
        %v3779 = vpop.f32.mrb[0].mxu0
        %3780 = vmatprep.mubr.f32.mxu0 0.0
        %3781 = vmatmul.mubr.f32.gmra.mrb[0].mxu0 %v3663
        %v3782 = vpop.f32.mrb[0].mxu0
        %v3783 = vadd.f32 0.0, %v3782
        %v3784 = vpop.f32.mrb[0].mxu0
        %3785 = vmatprep.mubr.f32.mxu0 0.0
        %3786 = vmatmul.mubr.f32.gmra.mrb[0].mxu0 %v3664
        %v3787 = vpop.f32.mrb[0].mxu0
        %v3788 = vadd.f32 0.0, %v3787
        %v3789 = vpop.f32.mrb[0].mxu0
        %3790 = vmatprep.mubr.f32.mxu0 0.0
        %3791 = vmatmul.mubr.f32.gmra.mrb[0].mxu0 %v3665
        %v3792 = vpop.f32.mrb[0].mxu0
        %v3793 = vadd.f32 0.0, %v3792
        %v3794 = vpop.f32.mrb[0].mxu0
        %3795 = vmatprep.mubr.f32.mxu0 0.0
        %3796 = vmatmul.mubr.f32.gmra.mrb[0].mxu0 %v3666
        %v3797 = vpop.f32.mrb[0].mxu0
        %v3798 = vadd.f32 0.0, %v3797
        %v3799 = vpop.f32.mrb[0].mxu0
        %3800 = vmatprep.mubr.f32.mxu0 0.0
        %3801 = vmatmul.mubr.f32.gmra.mrb[0].mxu0 %v3667
        %v3802 = vpop.f32.mrb[0].mxu0
        %v3803 = vadd.f32 0.0, %v3802
        %v3804 = vpop.f32.mrb[0].mxu0
        %3805 = vmatprep.mubr.f32.mxu0 0.0
        %3806 = vmatmul.mubr.f32.gmra.mrb[0].mxu0 %v3668
        %v3807 = vpop.f32.mrb[0].mxu0
        %v3808 = vadd.f32 0.0, %v3807
        %v3809 = vpop.f32.mrb[0].mxu0
        %3810 = vmatprep.mubr.f32.mxu0 0.0
        %3811 = vmatmul.mubr.f32.gmra.mrb[0].mxu0 %v3669
        %v3812 = vpop.f32.mrb[0].mxu0
        %v3813 = vadd.f32 0.0, %v3812
        %v3814 = vpop.f32.mrb[0].mxu0
        %3815 = vmatprep.mubr.f32.mxu0 0.0
        %3816 = vmatmul.mubr.f32.gmra.mrb[0].mxu0 %v3670
        %v3817 = vpop.f32.mrb[0].mxu0
        %v3818 = vadd.f32 0.0, %v3817
        %v3819 = vpop.f32.mrb[0].mxu0
        %3820 = vmatprep.mubr.f32.mxu0 0.0
        %3821 = vmatmul.mubr.f32.gmra.mrb[0].mxu0 %v3671
        %v3822 = vpop.f32.mrb[0].mxu0
        %v3823 = vadd.f32 0.0, %v3822
        %v3824 = vpop.f32.mrb[0].mxu0
        %3825 = vmatprep.mubr.f32.mxu0 0.0
        %3826 = vmatmul.mubr.f32.gmra.mrb[0].mxu0 %v3672
        %v3827 = vpop.f32.mrb[0].mxu0
        %v3828 = vadd.f32 0.0, %v3827
        %v3829 = vpop.f32.mrb[0].mxu0
        %3830 = vmatprep.mubr.f32.mxu0 0.0
        %3831 = vmatmul.mubr.f32.gmra.mrb[0].mxu0 %v3673
        %v3832 = vpop.f32.mrb[0].mxu0
        %v3833 = vadd.f32 0.0, %v3832
        %v3834 = vpop.f32.mrb[0].mxu0
        %3835 = vmatprep.mubr.f32.mxu0 0.0
        %3836 = vmatmul.mubr.f32.gmra.mrb[0].mxu0 %v3674
        %v3837 = vpop.f32.mrb[0].mxu0
        %v3838 = vadd.f32 0.0, %v3837
        %v3839 = vpop.f32.mrb[0].mxu0
        %3840 = vmatprep.mubr.f32.mxu0 0.0
        %3841 = vmatmul.mubr.f32.gmra.mrb[0].mxu0 %v3675
        %v3842 = vpop.f32.mrb[0].mxu0
        %v3843 = vadd.f32 0.0, %v3842
        %v3844 = vpop.f32.mrb[0].mxu0
        %3845 = vmatprep.mubr.f32.mxu0 0.0
        %3846 = vmatmul.mubr.f32.gmra.mrb[0].mxu0 %v3676
        %v3847 = vpop.f32.mrb[0].mxu0
        %v3848 = vadd.f32 0.0, %v3847
        %v3849 = vpop.f32.mrb[0].mxu0
        %3850 = vmatprep.mubr.f32.mxu0 0.0
        %3851 = vmatmul.mubr.f32.gmra.mrb[0].mxu0 %v3677
        %v3852 = vpop.f32.mrb[0].mxu0
        %v3853 = vadd.f32 0.0, %v3852
        %v3854 = vpop.f32.mrb[0].mxu0
        %3855 = vmatprep.mubr.f32.mxu0 0.0
        %3856 = vmatmul.mubr.f32.gmra.mrb[0].mxu0 %v3678
        %v3857 = vpop.f32.mrb[0].mxu0
        %v3858 = vadd.f32 0.0, %v3857
        %v3859 = vpop.f32.mrb[0].mxu0
        %3860 = vmatprep.mubr.f32.mxu0 0.0
        %3861 = vmatmul.mubr.f32.gmra.mrb[0].mxu0 %v3679
        %v3862 = vpop.f32.mrb[0].mxu0
        %v3863 = vadd.f32 0.0, %v3862
        %v3864 = vpop.f32.mrb[0].mxu0
        %3865 = vmatprep.mubr.f32.mxu0 0.0
        %3866 = vmatmul.mubr.f32.gmra.mrb[0].mxu0 %v3680
        %v3867 = vpop.f32.mrb[0].mxu0
        %v3868 = vadd.f32 0.0, %v3867
        %v3869 = vpop.f32.mrb[0].mxu0
        %3870 = vmatprep.mubr.f32.mxu0 0.0
        %3871 = vmatmul.mubr.f32.gmra.mrb[0].mxu0 %v3681
        %v3872 = vpop.f32.mrb[0].mxu0
        %v3873 = vadd.f32 0.0, %v3872
        %v3874 = vpop.f32.mrb[0].mxu0
        %3875 = vmatprep.mubr.f32.mxu0 0.0
        %3876 = vmatmul.mubr.f32.gmra.mrb[0].mxu0 %v3682
        %v3877 = vpop.f32.mrb[0].mxu0
        %v3878 = vadd.f32 0.0, %v3877
        %v3879 = vpop.f32.mrb[0].mxu0
        %3880 = vmatprep.mubr.f32.mxu0 0.0
        %3881 = vmatmul.mubr.f32.gmra.mrb[0].mxu0 %v3683
        %v3882 = vpop.f32.mrb[0].mxu0
        %v3883 = vadd.f32 0.0, %v3882
        %v3884 = vpop.f32.mrb[0].mxu0
        %3885 = vmatprep.mubr.f32.mxu0 0.0
        %3886 = vmatmul.mubr.f32.gmra.mrb[0].mxu0 %v3684
        %v3887 = vpop.f32.mrb[0].mxu0
        %v3888 = vadd.f32 0.0, %v3887
        %v3889 = vpop.f32.mrb[0].mxu0
        %3890 = vmatprep.mubr.f32.mxu0 0.0
        %3891 = vmatmul.mubr.f32.gmra.mrb[0].mxu0 %v3685
        %v3892 = vpop.f32.mrb[0].mxu0
        %v3893 = vadd.f32 0.0, %v3892
        %v3894 = vpop.f32.mrb[0].mxu0
        %3895 = vmatprep.mubr.f32.mxu0 0.0
        %3896 = vmatmul.mubr.f32.gmra.mrb[0].mxu0 %v3686
        %v3897 = vpop.f32.mrb[0].mxu0
        %v3898 = vadd.f32 0.0, %v3897
        %v3899 = vpop.f32.mrb[0].mxu0
        %3900 = vmatprep.mubr.f32.mxu0 0.0
        %3901 = vmatmul.mubr.f32.gmra.mrb[0].mxu0 %v3687
        %v3902 = vpop.f32.mrb[0].mxu0
        %v3903 = vadd.f32 0.0, %v3902
        %v3904 = vpop.f32.mrb[0].mxu0
        %3905 = vmatprep.mubr.f32.mxu0 0.0
        %3906 = vmatmul.mubr.f32.gmra.mrb[0].mxu0 %v3688
        %v3907 = vpop.f32.mrb[0].mxu0
        %v3908 = vadd.f32 0.0, %v3907
        %v3909 = vpop.f32.mrb[0].mxu0
        %3910 = vmatprep.mubr.f32.mxu0 0.0
        %3911 = vmatmul.mubr.f32.gmra.mrb[0].mxu0 %v3689
        %v3912 = vpop.f32.mrb[0].mxu0
        %v3913 = vadd.f32 0.0, %v3912
        %v3914 = vpop.f32.mrb[0].mxu0
        %3915 = vmatprep.mubr.f32.mxu0 0.0
        %3916 = vmatmul.mubr.f32.gmra.mrb[0].mxu0 %v3690
        %v3917 = vpop.f32.mrb[0].mxu0
        %v3918 = vadd.f32 0.0, %v3917
        %v3919 = vpop.f32.mrb[0].mxu0
        %3920 = vmatprep.mubr.f32.mxu0 0.0
        %3921 = vmatmul.mubr.f32.gmra.mrb[0].mxu0 %v3691
        %v3922 = vpop.f32.mrb[0].mxu0
        %v3923 = vadd.f32 0.0, %v3922
        %v3924 = vpop.f32.mrb[0].mxu0
        %3925 = vmatprep.mubr.f32.mxu0 0.0
        %3926 = vmatmul.mubr.f32.gmra.mrb[0].mxu0 %v3692
        %v3927 = vpop.f32.mrb[0].mxu0
        %v3928 = vadd.f32 0.0, %v3927
        %v3929 = vpop.f32.mrb[0].mxu0
        %3930 = vmatprep.mubr.f32.mxu0 0.0
        %3931 = vmatmul.mubr.f32.gmra.mrb[0].mxu0 %v3693
        %v3932 = vpop.f32.mrb[0].mxu0
        %v3933 = vadd.f32 0.0, %v3932
        %v3934 = vpop.f32.mrb[0].mxu0
        %3935 = vdwg.mxu0
        %v3936 = vadd.f32 %v3504, %v3778
        %v3937 = vadd.f32 %v3509, %v3783
        %v3938 = vadd.f32 %v3514, %v3788
        %v3939 = vadd.f32 %v3519, %v3793
        %v3940 = vadd.f32 %v3524, %v3798
        %v3941 = vadd.f32 %v3529, %v3803
        %v3942 = vadd.f32 %v3534, %v3808
        %v3943 = vadd.f32 %v3539, %v3813
        %v3944 = vadd.f32 %v3544, %v3818
        %v3945 = vadd.f32 %v3549, %v3823
        %v3946 = vadd.f32 %v3554, %v3828
        %v3947 = vadd.f32 %v3559, %v3833
        %v3948 = vadd.f32 %v3564, %v3838
        %v3949 = vadd.f32 %v3569, %v3843
        %v3950 = vadd.f32 %v3574, %v3848
        %v3951 = vadd.f32 %v3579, %v3853
        %v3952 = vadd.f32 %v3584, %v3858
        %v3953 = vadd.f32 %v3589, %v3863
        %v3954 = vadd.f32 %v3594, %v3868
        %v3955 = vadd.f32 %v3599, %v3873
        %v3956 = vadd.f32 %v3604, %v3878
        %v3957 = vadd.f32 %v3609, %v3883
        %v3958 = vadd.f32 %v3614, %v3888
        %v3959 = vadd.f32 %v3619, %v3893
        %v3960 = vadd.f32 %v3624, %v3898
        %v3961 = vadd.f32 %v3629, %v3903
        %v3962 = vadd.f32 %v3634, %v3908
        %v3963 = vadd.f32 %v3639, %v3913
        %v3964 = vadd.f32 %v3644, %v3918
        %v3965 = vadd.f32 %v3649, %v3923
        %v3966 = vadd.f32 %v3654, %v3928
        %v3967 = vadd.f32 %v3659, %v3933
        %v3968 = vld [vmem:[%s3082] sm:$0xff]
        %v3969 = vld [vmem:[%s3082 + $0x8] sm:$0xff]
        %v3970 = vld [vmem:[%s3082 + $0x18] sm:$0xff]
        %v3971 = vld [vmem:[%s3082 + $0x20] sm:$0xff]
        %v3972 = vld [vmem:[%s3082 + $0x30] sm:$0xff]
        %v3973 = vld [vmem:[%s3082 + $0x38] sm:$0xff]
        %v3974 = vld [vmem:[%s3082 + $0x48] sm:$0xff]
        %v3975 = vld [vmem:[%s3082 + $0x50] sm:$0xff]
        %v3976 = vld [vmem:[%s3082 + $0x60] sm:$0xff]
        %v3977 = vld [vmem:[%s3082 + $0x68] sm:$0xff]
        %v3978 = vld [vmem:[%s3082 + $0x78] sm:$0xff]
        %v3979 = vld [vmem:[%s3082 + $0x80] sm:$0xff]
        %v3980 = vld [vmem:[%s3082 + $0x90] sm:$0xff]
        %v3981 = vld [vmem:[%s3082 + $0x98] sm:$0xff]
        %v3982 = vld [vmem:[%s3082 + $0xa8] sm:$0xff]
        %v3983 = vld [vmem:[%s3082 + $0xb0] sm:$0xff]
        %v3984 = vld [vmem:[%s3082 + $0xc0] sm:$0xff]
        %v3985 = vld [vmem:[%s3082 + $0xc8] sm:$0xff]
        %v3986 = vld [vmem:[%s3082 + $0xd8] sm:$0xff]
        %v3987 = vld [vmem:[%s3082 + $0xe0] sm:$0xff]
        %v3988 = vld [vmem:[%s3082 + $0xf0] sm:$0xff]
        %v3989 = vld [vmem:[%s3082 + $0xf8] sm:$0xff]
        %v3990 = vld [vmem:[%s3082 + $0x108] sm:$0xff]
        %v3991 = vld [vmem:[%s3082 + $0x110] sm:$0xff]
        %v3992 = vld [vmem:[%s3082 + $0x120] sm:$0xff]
        %v3993 = vld [vmem:[%s3082 + $0x128] sm:$0xff]
        %v3994 = vld [vmem:[%s3082 + $0x138] sm:$0xff]
        %v3995 = vld [vmem:[%s3082 + $0x140] sm:$0xff]
        %v3996 = vld [vmem:[%s3082 + $0x150] sm:$0xff]
        %v3997 = vld [vmem:[%s3082 + $0x158] sm:$0xff]
        %v3998 = vld [vmem:[%s3082 + $0x168] sm:$0xff]
        %v3999 = vld [vmem:[%s3082 + $0x170] sm:$0xff]
        %s4000 = scalar_lea.vmem [#allocation3], 384
        %v4001 = vld [vmem:[%s4000] sm:$0xff]
        %v4002 = vld [vmem:[%s4000 + $0x8] sm:$0xff]
        %v4003 = vld [vmem:[%s4000 + $0x10] sm:$0xff]
        %v4004 = vld [vmem:[%s4000 + $0x18] sm:$0xff]
        %v4005 = vld [vmem:[%s4000 + $0x20] sm:$0xff]
        %v4006 = vld [vmem:[%s4000 + $0x28] sm:$0xff]
        %v4007 = vld [vmem:[%s4000 + $0x30] sm:$0xff]
        %v4008 = vld [vmem:[%s4000 + $0x38] sm:$0xff]
        %v4009 = vld [vmem:[%s4000 + $0x40] sm:$0xff]
        %v4010 = vld [vmem:[%s4000 + $0x48] sm:$0xff]
        %v4011 = vld [vmem:[%s4000 + $0x50] sm:$0xff]
        %v4012 = vld [vmem:[%s4000 + $0x58] sm:$0xff]
        %v4013 = vld [vmem:[%s4000 + $0x60] sm:$0xff]
        %v4014 = vld [vmem:[%s4000 + $0x68] sm:$0xff]
        %v4015 = vld [vmem:[%s4000 + $0x70] sm:$0xff]
        %v4016 = vld [vmem:[%s4000 + $0x78] sm:$0xff]
        %4017 = vmatprep.subr.mxu0 0.0
        %4018 = vmatpush1.msra.mxu0 %v4001
        %4019 = vmatprep.subr.mxu0 0.0
        %4020 = vmatpush1.msra.mxu0 %v4002
        %4021 = vmatprep.subr.mxu0 0.0
        %4022 = vmatpush1.msra.mxu0 %v4003
        %4023 = vmatprep.subr.mxu0 0.0
        %4024 = vmatpush1.msra.mxu0 %v4004
        %4025 = vmatprep.subr.mxu0 0.0
        %4026 = vmatpush1.msra.mxu0 %v4005
        %4027 = vmatprep.subr.mxu0 0.0
        %4028 = vmatpush1.msra.mxu0 %v4006
        %4029 = vmatprep.subr.mxu0 0.0
        %4030 = vmatpush1.msra.mxu0 %v4007
        %4031 = vmatprep.subr.mxu0 0.0
        %4032 = vmatpush1.msra.mxu0 %v4008
        %4033 = vmatprep.subr.mxu0 0.0
        %4034 = vmatpush1.msra.mxu0 %v4009
        %4035 = vmatprep.subr.mxu0 0.0
        %4036 = vmatpush1.msra.mxu0 %v4010
        %4037 = vmatprep.subr.mxu0 0.0
        %4038 = vmatpush1.msra.mxu0 %v4011
        %4039 = vmatprep.subr.mxu0 0.0
        %4040 = vmatpush1.msra.mxu0 %v4012
        %4041 = vmatprep.subr.mxu0 0.0
        %4042 = vmatpush1.msra.mxu0 %v4013
        %4043 = vmatprep.subr.mxu0 0.0
        %4044 = vmatpush1.msra.mxu0 %v4014
        %4045 = vmatprep.subr.mxu0 0.0
        %4046 = vmatpush1.msra.mxu0 %v4015
        %4047 = vmatprep.subr.mxu0 0.0
        %4048 = vmatpush1.msra.mxu0 %v4016
        %4049 = vmatprep.subr.mxu0 0.0
        %4050 = vmatpush1.msra.mxu0 0.0
        %4051 = vmatprep.subr.mxu0 0.0
        %4052 = vmatpush1.msra.mxu0 0.0
        %4053 = vmatprep.subr.mxu0 0.0
        %4054 = vmatpush1.msra.mxu0 0.0
        %4055 = vmatprep.subr.mxu0 0.0
        %4056 = vmatpush1.msra.mxu0 0.0
        %4057 = vmatprep.subr.mxu0 0.0
        %4058 = vmatpush1.msra.mxu0 0.0
        %4059 = vmatprep.subr.mxu0 0.0
        %4060 = vmatpush1.msra.mxu0 0.0
        %4061 = vmatprep.subr.mxu0 0.0
        %4062 = vmatpush1.msra.mxu0 0.0
        %4063 = vmatprep.subr.mxu0 0.0
        %4064 = vmatpush1.msra.mxu0 0.0
        %4065 = vmatprep.subr.mxu0 0.0
        %4066 = vmatpush1.msra.mxu0 0.0
        %4067 = vmatprep.subr.mxu0 0.0
        %4068 = vmatpush1.msra.mxu0 0.0
        %4069 = vmatprep.subr.mxu0 0.0
        %4070 = vmatpush1.msra.mxu0 0.0
        %4071 = vmatprep.subr.mxu0 0.0
        %4072 = vmatpush1.msra.mxu0 0.0
        %4073 = vmatprep.subr.mxu0 0.0
        %4074 = vmatpush1.msra.mxu0 0.0
        %4075 = vmatprep.subr.mxu0 0.0
        %4076 = vmatpush1.msra.mxu0 0.0
        %4077 = vmatprep.subr.mxu0 0.0
        %4078 = vmatpush1.msra.mxu0 0.0
        %4079 = vmatprep.subr.mxu0 0.0
        %4080 = vmatpush1.msra.mxu0 0.0
        %4081 = vmatprep.mubr.f32.mxu0 0.0
        %4082 = vmatmul.mubr.f32.gmra.mrb[0].mxu0 %v3968
        %v4083 = vpop.f32.mrb[0].mxu0
        %v4084 = vadd.f32 0.0, %v4083
        %v4085 = vpop.f32.mrb[0].mxu0
        %4086 = vmatprep.mubr.f32.mxu0 0.0
        %4087 = vmatmul.mubr.f32.gmra.mrb[0].mxu0 %v3969
        %v4088 = vpop.f32.mrb[0].mxu0
        %v4089 = vadd.f32 0.0, %v4088
        %v4090 = vpop.f32.mrb[0].mxu0
        %4091 = vmatprep.mubr.f32.mxu0 0.0
        %4092 = vmatmul.mubr.f32.gmra.mrb[0].mxu0 %v3970
        %v4093 = vpop.f32.mrb[0].mxu0
        %v4094 = vadd.f32 0.0, %v4093
        %v4095 = vpop.f32.mrb[0].mxu0
        %4096 = vmatprep.mubr.f32.mxu0 0.0
        %4097 = vmatmul.mubr.f32.gmra.mrb[0].mxu0 %v3971
        %v4098 = vpop.f32.mrb[0].mxu0
        %v4099 = vadd.f32 0.0, %v4098
        %v4100 = vpop.f32.mrb[0].mxu0
        %4101 = vmatprep.mubr.f32.mxu0 0.0
        %4102 = vmatmul.mubr.f32.gmra.mrb[0].mxu0 %v3972
        %v4103 = vpop.f32.mrb[0].mxu0
        %v4104 = vadd.f32 0.0, %v4103
        %v4105 = vpop.f32.mrb[0].mxu0
        %4106 = vmatprep.mubr.f32.mxu0 0.0
        %4107 = vmatmul.mubr.f32.gmra.mrb[0].mxu0 %v3973
        %v4108 = vpop.f32.mrb[0].mxu0
        %v4109 = vadd.f32 0.0, %v4108
        %v4110 = vpop.f32.mrb[0].mxu0
        %4111 = vmatprep.mubr.f32.mxu0 0.0
        %4112 = vmatmul.mubr.f32.gmra.mrb[0].mxu0 %v3974
        %v4113 = vpop.f32.mrb[0].mxu0
        %v4114 = vadd.f32 0.0, %v4113
        %v4115 = vpop.f32.mrb[0].mxu0
        %4116 = vmatprep.mubr.f32.mxu0 0.0
        %4117 = vmatmul.mubr.f32.gmra.mrb[0].mxu0 %v3975
        %v4118 = vpop.f32.mrb[0].mxu0
        %v4119 = vadd.f32 0.0, %v4118
        %v4120 = vpop.f32.mrb[0].mxu0
        %4121 = vmatprep.mubr.f32.mxu0 0.0
        %4122 = vmatmul.mubr.f32.gmra.mrb[0].mxu0 %v3976
        %v4123 = vpop.f32.mrb[0].mxu0
        %v4124 = vadd.f32 0.0, %v4123
        %v4125 = vpop.f32.mrb[0].mxu0
        %4126 = vmatprep.mubr.f32.mxu0 0.0
        %4127 = vmatmul.mubr.f32.gmra.mrb[0].mxu0 %v3977
        %v4128 = vpop.f32.mrb[0].mxu0
        %v4129 = vadd.f32 0.0, %v4128
        %v4130 = vpop.f32.mrb[0].mxu0
        %4131 = vmatprep.mubr.f32.mxu0 0.0
        %4132 = vmatmul.mubr.f32.gmra.mrb[0].mxu0 %v3978
        %v4133 = vpop.f32.mrb[0].mxu0
        %v4134 = vadd.f32 0.0, %v4133
        %v4135 = vpop.f32.mrb[0].mxu0
        %4136 = vmatprep.mubr.f32.mxu0 0.0
        %4137 = vmatmul.mubr.f32.gmra.mrb[0].mxu0 %v3979
        %v4138 = vpop.f32.mrb[0].mxu0
        %v4139 = vadd.f32 0.0, %v4138
        %v4140 = vpop.f32.mrb[0].mxu0
        %4141 = vmatprep.mubr.f32.mxu0 0.0
        %4142 = vmatmul.mubr.f32.gmra.mrb[0].mxu0 %v3980
        %v4143 = vpop.f32.mrb[0].mxu0
        %v4144 = vadd.f32 0.0, %v4143
        %v4145 = vpop.f32.mrb[0].mxu0
        %4146 = vmatprep.mubr.f32.mxu0 0.0
        %4147 = vmatmul.mubr.f32.gmra.mrb[0].mxu0 %v3981
        %v4148 = vpop.f32.mrb[0].mxu0
        %v4149 = vadd.f32 0.0, %v4148
        %v4150 = vpop.f32.mrb[0].mxu0
        %4151 = vmatprep.mubr.f32.mxu0 0.0
        %4152 = vmatmul.mubr.f32.gmra.mrb[0].mxu0 %v3982
        %v4153 = vpop.f32.mrb[0].mxu0
        %v4154 = vadd.f32 0.0, %v4153
        %v4155 = vpop.f32.mrb[0].mxu0
        %4156 = vmatprep.mubr.f32.mxu0 0.0
        %4157 = vmatmul.mubr.f32.gmra.mrb[0].mxu0 %v3983
        %v4158 = vpop.f32.mrb[0].mxu0
        %v4159 = vadd.f32 0.0, %v4158
        %v4160 = vpop.f32.mrb[0].mxu0
        %4161 = vmatprep.mubr.f32.mxu0 0.0
        %4162 = vmatmul.mubr.f32.gmra.mrb[0].mxu0 %v3984
        %v4163 = vpop.f32.mrb[0].mxu0
        %v4164 = vadd.f32 0.0, %v4163
        %v4165 = vpop.f32.mrb[0].mxu0
        %4166 = vmatprep.mubr.f32.mxu0 0.0
        %4167 = vmatmul.mubr.f32.gmra.mrb[0].mxu0 %v3985
        %v4168 = vpop.f32.mrb[0].mxu0
        %v4169 = vadd.f32 0.0, %v4168
        %v4170 = vpop.f32.mrb[0].mxu0
        %4171 = vmatprep.mubr.f32.mxu0 0.0
        %4172 = vmatmul.mubr.f32.gmra.mrb[0].mxu0 %v3986
        %v4173 = vpop.f32.mrb[0].mxu0
        %v4174 = vadd.f32 0.0, %v4173
        %v4175 = vpop.f32.mrb[0].mxu0
        %4176 = vmatprep.mubr.f32.mxu0 0.0
        %4177 = vmatmul.mubr.f32.gmra.mrb[0].mxu0 %v3987
        %v4178 = vpop.f32.mrb[0].mxu0
        %v4179 = vadd.f32 0.0, %v4178
        %v4180 = vpop.f32.mrb[0].mxu0
        %4181 = vmatprep.mubr.f32.mxu0 0.0
        %4182 = vmatmul.mubr.f32.gmra.mrb[0].mxu0 %v3988
        %v4183 = vpop.f32.mrb[0].mxu0
        %v4184 = vadd.f32 0.0, %v4183
        %v4185 = vpop.f32.mrb[0].mxu0
        %4186 = vmatprep.mubr.f32.mxu0 0.0
        %4187 = vmatmul.mubr.f32.gmra.mrb[0].mxu0 %v3989
        %v4188 = vpop.f32.mrb[0].mxu0
        %v4189 = vadd.f32 0.0, %v4188
        %v4190 = vpop.f32.mrb[0].mxu0
        %4191 = vmatprep.mubr.f32.mxu0 0.0
        %4192 = vmatmul.mubr.f32.gmra.mrb[0].mxu0 %v3990
        %v4193 = vpop.f32.mrb[0].mxu0
        %v4194 = vadd.f32 0.0, %v4193
        %v4195 = vpop.f32.mrb[0].mxu0
        %4196 = vmatprep.mubr.f32.mxu0 0.0
        %4197 = vmatmul.mubr.f32.gmra.mrb[0].mxu0 %v3991
        %v4198 = vpop.f32.mrb[0].mxu0
        %v4199 = vadd.f32 0.0, %v4198
        %v4200 = vpop.f32.mrb[0].mxu0
        %4201 = vmatprep.mubr.f32.mxu0 0.0
        %4202 = vmatmul.mubr.f32.gmra.mrb[0].mxu0 %v3992
        %v4203 = vpop.f32.mrb[0].mxu0
        %v4204 = vadd.f32 0.0, %v4203
        %v4205 = vpop.f32.mrb[0].mxu0
        %4206 = vmatprep.mubr.f32.mxu0 0.0
        %4207 = vmatmul.mubr.f32.gmra.mrb[0].mxu0 %v3993
        %v4208 = vpop.f32.mrb[0].mxu0
        %v4209 = vadd.f32 0.0, %v4208
        %v4210 = vpop.f32.mrb[0].mxu0
        %4211 = vmatprep.mubr.f32.mxu0 0.0
        %4212 = vmatmul.mubr.f32.gmra.mrb[0].mxu0 %v3994
        %v4213 = vpop.f32.mrb[0].mxu0
        %v4214 = vadd.f32 0.0, %v4213
        %v4215 = vpop.f32.mrb[0].mxu0
        %4216 = vmatprep.mubr.f32.mxu0 0.0
        %4217 = vmatmul.mubr.f32.gmra.mrb[0].mxu0 %v3995
        %v4218 = vpop.f32.mrb[0].mxu0
        %v4219 = vadd.f32 0.0, %v4218
        %v4220 = vpop.f32.mrb[0].mxu0
        %4221 = vmatprep.mubr.f32.mxu0 0.0
        %4222 = vmatmul.mubr.f32.gmra.mrb[0].mxu0 %v3996
        %v4223 = vpop.f32.mrb[0].mxu0
        %v4224 = vadd.f32 0.0, %v4223
        %v4225 = vpop.f32.mrb[0].mxu0
        %4226 = vmatprep.mubr.f32.mxu0 0.0
        %4227 = vmatmul.mubr.f32.gmra.mrb[0].mxu0 %v3997
        %v4228 = vpop.f32.mrb[0].mxu0
        %v4229 = vadd.f32 0.0, %v4228
        %v4230 = vpop.f32.mrb[0].mxu0
        %4231 = vmatprep.mubr.f32.mxu0 0.0
        %4232 = vmatmul.mubr.f32.gmra.mrb[0].mxu0 %v3998
        %v4233 = vpop.f32.mrb[0].mxu0
        %v4234 = vadd.f32 0.0, %v4233
        %v4235 = vpop.f32.mrb[0].mxu0
        %4236 = vmatprep.mubr.f32.mxu0 0.0
        %4237 = vmatmul.mubr.f32.gmra.mrb[0].mxu0 %v3999
        %v4238 = vpop.f32.mrb[0].mxu0
        %v4239 = vadd.f32 0.0, %v4238
        %v4240 = vpop.f32.mrb[0].mxu0
        %4241 = vdwg.mxu0
        %v4242 = vadd.f32 %v3936, %v4084
        %v4243 = vadd.f32 %v3937, %v4089
        %v4244 = vadd.f32 %v3938, %v4094
        %v4245 = vadd.f32 %v3939, %v4099
        %v4246 = vadd.f32 %v3940, %v4104
        %v4247 = vadd.f32 %v3941, %v4109
        %v4248 = vadd.f32 %v3942, %v4114
        %v4249 = vadd.f32 %v3943, %v4119
        %v4250 = vadd.f32 %v3944, %v4124
        %v4251 = vadd.f32 %v3945, %v4129
        %v4252 = vadd.f32 %v3946, %v4134
        %v4253 = vadd.f32 %v3947, %v4139
        %v4254 = vadd.f32 %v3948, %v4144
        %v4255 = vadd.f32 %v3949, %v4149
        %v4256 = vadd.f32 %v3950, %v4154
        %v4257 = vadd.f32 %v3951, %v4159
        %v4258 = vadd.f32 %v3952, %v4164
        %v4259 = vadd.f32 %v3953, %v4169
        %v4260 = vadd.f32 %v3954, %v4174
        %v4261 = vadd.f32 %v3955, %v4179
        %v4262 = vadd.f32 %v3956, %v4184
        %v4263 = vadd.f32 %v3957, %v4189
        %v4264 = vadd.f32 %v3958, %v4194
        %v4265 = vadd.f32 %v3959, %v4199
        %v4266 = vadd.f32 %v3960, %v4204
        %v4267 = vadd.f32 %v3961, %v4209
        %v4268 = vadd.f32 %v3962, %v4214
        %v4269 = vadd.f32 %v3963, %v4219
        %v4270 = vadd.f32 %v3964, %v4224
        %v4271 = vadd.f32 %v3965, %v4229
        %v4272 = vadd.f32 %v3966, %v4234
        %v4273 = vadd.f32 %v3967, %v4239
        %v4274 = vld [vmem:[%s3082 + $0x1] sm:$0xff]
        %v4275 = vld [vmem:[%s3082 + $0x9] sm:$0xff]
        %v4276 = vld [vmem:[%s3082 + $0x19] sm:$0xff]
        %v4277 = vld [vmem:[%s3082 + $0x21] sm:$0xff]
        %v4278 = vld [vmem:[%s3082 + $0x31] sm:$0xff]
        %v4279 = vld [vmem:[%s3082 + $0x39] sm:$0xff]
        %v4280 = vld [vmem:[%s3082 + $0x49] sm:$0xff]
        %v4281 = vld [vmem:[%s3082 + $0x51] sm:$0xff]
        %v4282 = vld [vmem:[%s3082 + $0x61] sm:$0xff]
        %v4283 = vld [vmem:[%s3082 + $0x69] sm:$0xff]
        %v4284 = vld [vmem:[%s3082 + $0x79] sm:$0xff]
        %v4285 = vld [vmem:[%s3082 + $0x81] sm:$0xff]
        %v4286 = vld [vmem:[%s3082 + $0x91] sm:$0xff]
        %v4287 = vld [vmem:[%s3082 + $0x99] sm:$0xff]
        %v4288 = vld [vmem:[%s3082 + $0xa9] sm:$0xff]
        %v4289 = vld [vmem:[%s3082 + $0xb1] sm:$0xff]
        %v4290 = vld [vmem:[%s3082 + $0xc1] sm:$0xff]
        %v4291 = vld [vmem:[%s3082 + $0xc9] sm:$0xff]
        %v4292 = vld [vmem:[%s3082 + $0xd9] sm:$0xff]
        %v4293 = vld [vmem:[%s3082 + $0xe1] sm:$0xff]
        %v4294 = vld [vmem:[%s3082 + $0xf1] sm:$0xff]
        %v4295 = vld [vmem:[%s3082 + $0xf9] sm:$0xff]
        %v4296 = vld [vmem:[%s3082 + $0x109] sm:$0xff]
        %v4297 = vld [vmem:[%s3082 + $0x111] sm:$0xff]
        %v4298 = vld [vmem:[%s3082 + $0x121] sm:$0xff]
        %v4299 = vld [vmem:[%s3082 + $0x129] sm:$0xff]
        %v4300 = vld [vmem:[%s3082 + $0x139] sm:$0xff]
        %v4301 = vld [vmem:[%s3082 + $0x141] sm:$0xff]
        %v4302 = vld [vmem:[%s3082 + $0x151] sm:$0xff]
        %v4303 = vld [vmem:[%s3082 + $0x159] sm:$0xff]
        %v4304 = vld [vmem:[%s3082 + $0x169] sm:$0xff]
        %v4305 = vld [vmem:[%s3082 + $0x171] sm:$0xff]
        %s4306 = scalar_lea.vmem [#allocation3], 512
        %v4307 = vld [vmem:[%s4306] sm:$0xff]
        %v4308 = vld [vmem:[%s4306 + $0x8] sm:$0xff]
        %v4309 = vld [vmem:[%s4306 + $0x10] sm:$0xff]
        %v4310 = vld [vmem:[%s4306 + $0x18] sm:$0xff]
        %v4311 = vld [vmem:[%s4306 + $0x20] sm:$0xff]
        %v4312 = vld [vmem:[%s4306 + $0x28] sm:$0xff]
        %v4313 = vld [vmem:[%s4306 + $0x30] sm:$0xff]
        %v4314 = vld [vmem:[%s4306 + $0x38] sm:$0xff]
        %v4315 = vld [vmem:[%s4306 + $0x40] sm:$0xff]
        %v4316 = vld [vmem:[%s4306 + $0x48] sm:$0xff]
        %v4317 = vld [vmem:[%s4306 + $0x50] sm:$0xff]
        %v4318 = vld [vmem:[%s4306 + $0x58] sm:$0xff]
        %v4319 = vld [vmem:[%s4306 + $0x60] sm:$0xff]
        %v4320 = vld [vmem:[%s4306 + $0x68] sm:$0xff]
        %v4321 = vld [vmem:[%s4306 + $0x70] sm:$0xff]
        %v4322 = vld [vmem:[%s4306 + $0x78] sm:$0xff]
        %4323 = vmatprep.subr.mxu0 0.0
        %4324 = vmatpush1.msra.mxu0 %v4307
        %4325 = vmatprep.subr.mxu0 0.0
        %4326 = vmatpush1.msra.mxu0 %v4308
        %4327 = vmatprep.subr.mxu0 0.0
        %4328 = vmatpush1.msra.mxu0 %v4309
        %4329 = vmatprep.subr.mxu0 0.0
        %4330 = vmatpush1.msra.mxu0 %v4310
        %4331 = vmatprep.subr.mxu0 0.0
        %4332 = vmatpush1.msra.mxu0 %v4311
        %4333 = vmatprep.subr.mxu0 0.0
        %4334 = vmatpush1.msra.mxu0 %v4312
        %4335 = vmatprep.subr.mxu0 0.0
        %4336 = vmatpush1.msra.mxu0 %v4313
        %4337 = vmatprep.subr.mxu0 0.0
        %4338 = vmatpush1.msra.mxu0 %v4314
        %4339 = vmatprep.subr.mxu0 0.0
        %4340 = vmatpush1.msra.mxu0 %v4315
        %4341 = vmatprep.subr.mxu0 0.0
        %4342 = vmatpush1.msra.mxu0 %v4316
        %4343 = vmatprep.subr.mxu0 0.0
        %4344 = vmatpush1.msra.mxu0 %v4317
        %4345 = vmatprep.subr.mxu0 0.0
        %4346 = vmatpush1.msra.mxu0 %v4318
        %4347 = vmatprep.subr.mxu0 0.0
        %4348 = vmatpush1.msra.mxu0 %v4319
        %4349 = vmatprep.subr.mxu0 0.0
        %4350 = vmatpush1.msra.mxu0 %v4320
        %4351 = vmatprep.subr.mxu0 0.0
        %4352 = vmatpush1.msra.mxu0 %v4321
        %4353 = vmatprep.subr.mxu0 0.0
        %4354 = vmatpush1.msra.mxu0 %v4322
        %4355 = vmatprep.subr.mxu0 0.0
        %4356 = vmatpush1.msra.mxu0 0.0
        %4357 = vmatprep.subr.mxu0 0.0
        %4358 = vmatpush1.msra.mxu0 0.0
        %4359 = vmatprep.subr.mxu0 0.0
        %4360 = vmatpush1.msra.mxu0 0.0
        %4361 = vmatprep.subr.mxu0 0.0
        %4362 = vmatpush1.msra.mxu0 0.0
        %4363 = vmatprep.subr.mxu0 0.0
        %4364 = vmatpush1.msra.mxu0 0.0
        %4365 = vmatprep.subr.mxu0 0.0
        %4366 = vmatpush1.msra.mxu0 0.0
        %4367 = vmatprep.subr.mxu0 0.0
        %4368 = vmatpush1.msra.mxu0 0.0
        %4369 = vmatprep.subr.mxu0 0.0
        %4370 = vmatpush1.msra.mxu0 0.0
        %4371 = vmatprep.subr.mxu0 0.0
        %4372 = vmatpush1.msra.mxu0 0.0
        %4373 = vmatprep.subr.mxu0 0.0
        %4374 = vmatpush1.msra.mxu0 0.0
        %4375 = vmatprep.subr.mxu0 0.0
        %4376 = vmatpush1.msra.mxu0 0.0
        %4377 = vmatprep.subr.mxu0 0.0
        %4378 = vmatpush1.msra.mxu0 0.0
        %4379 = vmatprep.subr.mxu0 0.0
        %4380 = vmatpush1.msra.mxu0 0.0
        %4381 = vmatprep.subr.mxu0 0.0
        %4382 = vmatpush1.msra.mxu0 0.0
        %4383 = vmatprep.subr.mxu0 0.0
        %4384 = vmatpush1.msra.mxu0 0.0
        %4385 = vmatprep.subr.mxu0 0.0
        %4386 = vmatpush1.msra.mxu0 0.0
        %4387 = vmatprep.mubr.f32.mxu0 0.0
        %4388 = vmatmul.mubr.f32.gmra.mrb[0].mxu0 %v4274
        %v4389 = vpop.f32.mrb[0].mxu0
        %v4390 = vadd.f32 0.0, %v4389
        %v4391 = vpop.f32.mrb[0].mxu0
        %4392 = vmatprep.mubr.f32.mxu0 0.0
        %4393 = vmatmul.mubr.f32.gmra.mrb[0].mxu0 %v4275
        %v4394 = vpop.f32.mrb[0].mxu0
        %v4395 = vadd.f32 0.0, %v4394
        %v4396 = vpop.f32.mrb[0].mxu0
        %4397 = vmatprep.mubr.f32.mxu0 0.0
        %4398 = vmatmul.mubr.f32.gmra.mrb[0].mxu0 %v4276
        %v4399 = vpop.f32.mrb[0].mxu0
        %v4400 = vadd.f32 0.0, %v4399
        %v4401 = vpop.f32.mrb[0].mxu0
        %4402 = vmatprep.mubr.f32.mxu0 0.0
        %4403 = vmatmul.mubr.f32.gmra.mrb[0].mxu0 %v4277
        %v4404 = vpop.f32.mrb[0].mxu0
        %v4405 = vadd.f32 0.0, %v4404
        %v4406 = vpop.f32.mrb[0].mxu0
        %4407 = vmatprep.mubr.f32.mxu0 0.0
        %4408 = vmatmul.mubr.f32.gmra.mrb[0].mxu0 %v4278
        %v4409 = vpop.f32.mrb[0].mxu0
        %v4410 = vadd.f32 0.0, %v4409
        %v4411 = vpop.f32.mrb[0].mxu0
        %4412 = vmatprep.mubr.f32.mxu0 0.0
        %4413 = vmatmul.mubr.f32.gmra.mrb[0].mxu0 %v4279
        %v4414 = vpop.f32.mrb[0].mxu0
        %v4415 = vadd.f32 0.0, %v4414
        %v4416 = vpop.f32.mrb[0].mxu0
        %4417 = vmatprep.mubr.f32.mxu0 0.0
        %4418 = vmatmul.mubr.f32.gmra.mrb[0].mxu0 %v4280
        %v4419 = vpop.f32.mrb[0].mxu0
        %v4420 = vadd.f32 0.0, %v4419
        %v4421 = vpop.f32.mrb[0].mxu0
        %4422 = vmatprep.mubr.f32.mxu0 0.0
        %4423 = vmatmul.mubr.f32.gmra.mrb[0].mxu0 %v4281
        %v4424 = vpop.f32.mrb[0].mxu0
        %v4425 = vadd.f32 0.0, %v4424
        %v4426 = vpop.f32.mrb[0].mxu0
        %4427 = vmatprep.mubr.f32.mxu0 0.0
        %4428 = vmatmul.mubr.f32.gmra.mrb[0].mxu0 %v4282
        %v4429 = vpop.f32.mrb[0].mxu0
        %v4430 = vadd.f32 0.0, %v4429
        %v4431 = vpop.f32.mrb[0].mxu0
        %4432 = vmatprep.mubr.f32.mxu0 0.0
        %4433 = vmatmul.mubr.f32.gmra.mrb[0].mxu0 %v4283
        %v4434 = vpop.f32.mrb[0].mxu0
        %v4435 = vadd.f32 0.0, %v4434
        %v4436 = vpop.f32.mrb[0].mxu0
        %4437 = vmatprep.mubr.f32.mxu0 0.0
        %4438 = vmatmul.mubr.f32.gmra.mrb[0].mxu0 %v4284
        %v4439 = vpop.f32.mrb[0].mxu0
        %v4440 = vadd.f32 0.0, %v4439
        %v4441 = vpop.f32.mrb[0].mxu0
        %4442 = vmatprep.mubr.f32.mxu0 0.0
        %4443 = vmatmul.mubr.f32.gmra.mrb[0].mxu0 %v4285
        %v4444 = vpop.f32.mrb[0].mxu0
        %v4445 = vadd.f32 0.0, %v4444
        %v4446 = vpop.f32.mrb[0].mxu0
        %4447 = vmatprep.mubr.f32.mxu0 0.0
        %4448 = vmatmul.mubr.f32.gmra.mrb[0].mxu0 %v4286
        %v4449 = vpop.f32.mrb[0].mxu0
        %v4450 = vadd.f32 0.0, %v4449
        %v4451 = vpop.f32.mrb[0].mxu0
        %4452 = vmatprep.mubr.f32.mxu0 0.0
        %4453 = vmatmul.mubr.f32.gmra.mrb[0].mxu0 %v4287
        %v4454 = vpop.f32.mrb[0].mxu0
        %v4455 = vadd.f32 0.0, %v4454
        %v4456 = vpop.f32.mrb[0].mxu0
        %4457 = vmatprep.mubr.f32.mxu0 0.0
        %4458 = vmatmul.mubr.f32.gmra.mrb[0].mxu0 %v4288
        %v4459 = vpop.f32.mrb[0].mxu0
        %v4460 = vadd.f32 0.0, %v4459
        %v4461 = vpop.f32.mrb[0].mxu0
        %4462 = vmatprep.mubr.f32.mxu0 0.0
        %4463 = vmatmul.mubr.f32.gmra.mrb[0].mxu0 %v4289
        %v4464 = vpop.f32.mrb[0].mxu0
        %v4465 = vadd.f32 0.0, %v4464
        %v4466 = vpop.f32.mrb[0].mxu0
        %4467 = vmatprep.mubr.f32.mxu0 0.0
        %4468 = vmatmul.mubr.f32.gmra.mrb[0].mxu0 %v4290
        %v4469 = vpop.f32.mrb[0].mxu0
        %v4470 = vadd.f32 0.0, %v4469
        %v4471 = vpop.f32.mrb[0].mxu0
        %4472 = vmatprep.mubr.f32.mxu0 0.0
        %4473 = vmatmul.mubr.f32.gmra.mrb[0].mxu0 %v4291
        %v4474 = vpop.f32.mrb[0].mxu0
        %v4475 = vadd.f32 0.0, %v4474
        %v4476 = vpop.f32.mrb[0].mxu0
        %4477 = vmatprep.mubr.f32.mxu0 0.0
        %4478 = vmatmul.mubr.f32.gmra.mrb[0].mxu0 %v4292
        %v4479 = vpop.f32.mrb[0].mxu0
        %v4480 = vadd.f32 0.0, %v4479
        %v4481 = vpop.f32.mrb[0].mxu0
        %4482 = vmatprep.mubr.f32.mxu0 0.0
        %4483 = vmatmul.mubr.f32.gmra.mrb[0].mxu0 %v4293
        %v4484 = vpop.f32.mrb[0].mxu0
        %v4485 = vadd.f32 0.0, %v4484
        %v4486 = vpop.f32.mrb[0].mxu0
        %4487 = vmatprep.mubr.f32.mxu0 0.0
        %4488 = vmatmul.mubr.f32.gmra.mrb[0].mxu0 %v4294
        %v4489 = vpop.f32.mrb[0].mxu0
        %v4490 = vadd.f32 0.0, %v4489
        %v4491 = vpop.f32.mrb[0].mxu0
        %4492 = vmatprep.mubr.f32.mxu0 0.0
        %4493 = vmatmul.mubr.f32.gmra.mrb[0].mxu0 %v4295
        %v4494 = vpop.f32.mrb[0].mxu0
        %v4495 = vadd.f32 0.0, %v4494
        %v4496 = vpop.f32.mrb[0].mxu0
        %4497 = vmatprep.mubr.f32.mxu0 0.0
        %4498 = vmatmul.mubr.f32.gmra.mrb[0].mxu0 %v4296
        %v4499 = vpop.f32.mrb[0].mxu0
        %v4500 = vadd.f32 0.0, %v4499
        %v4501 = vpop.f32.mrb[0].mxu0
        %4502 = vmatprep.mubr.f32.mxu0 0.0
        %4503 = vmatmul.mubr.f32.gmra.mrb[0].mxu0 %v4297
        %v4504 = vpop.f32.mrb[0].mxu0
        %v4505 = vadd.f32 0.0, %v4504
        %v4506 = vpop.f32.mrb[0].mxu0
        %4507 = vmatprep.mubr.f32.mxu0 0.0
        %4508 = vmatmul.mubr.f32.gmra.mrb[0].mxu0 %v4298
        %v4509 = vpop.f32.mrb[0].mxu0
        %v4510 = vadd.f32 0.0, %v4509
        %v4511 = vpop.f32.mrb[0].mxu0
        %4512 = vmatprep.mubr.f32.mxu0 0.0
        %4513 = vmatmul.mubr.f32.gmra.mrb[0].mxu0 %v4299
        %v4514 = vpop.f32.mrb[0].mxu0
        %v4515 = vadd.f32 0.0, %v4514
        %v4516 = vpop.f32.mrb[0].mxu0
        %4517 = vmatprep.mubr.f32.mxu0 0.0
        %4518 = vmatmul.mubr.f32.gmra.mrb[0].mxu0 %v4300
        %v4519 = vpop.f32.mrb[0].mxu0
        %v4520 = vadd.f32 0.0, %v4519
        %v4521 = vpop.f32.mrb[0].mxu0
        %4522 = vmatprep.mubr.f32.mxu0 0.0
        %4523 = vmatmul.mubr.f32.gmra.mrb[0].mxu0 %v4301
        %v4524 = vpop.f32.mrb[0].mxu0
        %v4525 = vadd.f32 0.0, %v4524
        %v4526 = vpop.f32.mrb[0].mxu0
        %4527 = vmatprep.mubr.f32.mxu0 0.0
        %4528 = vmatmul.mubr.f32.gmra.mrb[0].mxu0 %v4302
        %v4529 = vpop.f32.mrb[0].mxu0
        %v4530 = vadd.f32 0.0, %v4529
        %v4531 = vpop.f32.mrb[0].mxu0
        %4532 = vmatprep.mubr.f32.mxu0 0.0
        %4533 = vmatmul.mubr.f32.gmra.mrb[0].mxu0 %v4303
        %v4534 = vpop.f32.mrb[0].mxu0
        %v4535 = vadd.f32 0.0, %v4534
        %v4536 = vpop.f32.mrb[0].mxu0
        %4537 = vmatprep.mubr.f32.mxu0 0.0
        %4538 = vmatmul.mubr.f32.gmra.mrb[0].mxu0 %v4304
        %v4539 = vpop.f32.mrb[0].mxu0
        %v4540 = vadd.f32 0.0, %v4539
        %v4541 = vpop.f32.mrb[0].mxu0
        %4542 = vmatprep.mubr.f32.mxu0 0.0
        %4543 = vmatmul.mubr.f32.gmra.mrb[0].mxu0 %v4305
        %v4544 = vpop.f32.mrb[0].mxu0
        %v4545 = vadd.f32 0.0, %v4544
        %v4546 = vpop.f32.mrb[0].mxu0
        %4547 = vdwg.mxu0
        %v4548 = vadd.f32 %v4242, %v4390
        %v4549 = vadd.f32 %v4243, %v4395
        %v4550 = vadd.f32 %v4244, %v4400
        %v4551 = vadd.f32 %v4245, %v4405
        %v4552 = vadd.f32 %v4246, %v4410
        %v4553 = vadd.f32 %v4247, %v4415
        %v4554 = vadd.f32 %v4248, %v4420
        %v4555 = vadd.f32 %v4249, %v4425
        %v4556 = vadd.f32 %v4250, %v4430
        %v4557 = vadd.f32 %v4251, %v4435
        %v4558 = vadd.f32 %v4252, %v4440
        %v4559 = vadd.f32 %v4253, %v4445
        %v4560 = vadd.f32 %v4254, %v4450
        %v4561 = vadd.f32 %v4255, %v4455
        %v4562 = vadd.f32 %v4256, %v4460
        %v4563 = vadd.f32 %v4257, %v4465
        %v4564 = vadd.f32 %v4258, %v4470
        %v4565 = vadd.f32 %v4259, %v4475
        %v4566 = vadd.f32 %v4260, %v4480
        %v4567 = vadd.f32 %v4261, %v4485
        %v4568 = vadd.f32 %v4262, %v4490
        %v4569 = vadd.f32 %v4263, %v4495
        %v4570 = vadd.f32 %v4264, %v4500
        %v4571 = vadd.f32 %v4265, %v4505
        %v4572 = vadd.f32 %v4266, %v4510
        %v4573 = vadd.f32 %v4267, %v4515
        %v4574 = vadd.f32 %v4268, %v4520
        %v4575 = vadd.f32 %v4269, %v4525
        %v4576 = vadd.f32 %v4270, %v4530
        %v4577 = vadd.f32 %v4271, %v4535
        %v4578 = vadd.f32 %v4272, %v4540
        %v4579 = vadd.f32 %v4273, %v4545
        %v4580 = vld [vmem:[%s3082 + $0x2] sm:$0xff]
        %v4581 = vld [vmem:[%s3082 + $0xa] sm:$0xff]
        %v4582 = vld [vmem:[%s3082 + $0x1a] sm:$0xff]
        %v4583 = vld [vmem:[%s3082 + $0x22] sm:$0xff]
        %v4584 = vld [vmem:[%s3082 + $0x32] sm:$0xff]
        %v4585 = vld [vmem:[%s3082 + $0x3a] sm:$0xff]
        %v4586 = vld [vmem:[%s3082 + $0x4a] sm:$0xff]
        %v4587 = vld [vmem:[%s3082 + $0x52] sm:$0xff]
        %v4588 = vld [vmem:[%s3082 + $0x62] sm:$0xff]
        %v4589 = vld [vmem:[%s3082 + $0x6a] sm:$0xff]
        %v4590 = vld [vmem:[%s3082 + $0x7a] sm:$0xff]
        %v4591 = vld [vmem:[%s3082 + $0x82] sm:$0xff]
        %v4592 = vld [vmem:[%s3082 + $0x92] sm:$0xff]
        %v4593 = vld [vmem:[%s3082 + $0x9a] sm:$0xff]
        %v4594 = vld [vmem:[%s3082 + $0xaa] sm:$0xff]
        %v4595 = vld [vmem:[%s3082 + $0xb2] sm:$0xff]
        %v4596 = vld [vmem:[%s3082 + $0xc2] sm:$0xff]
        %v4597 = vld [vmem:[%s3082 + $0xca] sm:$0xff]
        %v4598 = vld [vmem:[%s3082 + $0xda] sm:$0xff]
        %v4599 = vld [vmem:[%s3082 + $0xe2] sm:$0xff]
        %v4600 = vld [vmem:[%s3082 + $0xf2] sm:$0xff]
        %v4601 = vld [vmem:[%s3082 + $0xfa] sm:$0xff]
        %v4602 = vld [vmem:[%s3082 + $0x10a] sm:$0xff]
        %v4603 = vld [vmem:[%s3082 + $0x112] sm:$0xff]
        %v4604 = vld [vmem:[%s3082 + $0x122] sm:$0xff]
        %v4605 = vld [vmem:[%s3082 + $0x12a] sm:$0xff]
        %v4606 = vld [vmem:[%s3082 + $0x13a] sm:$0xff]
        %v4607 = vld [vmem:[%s3082 + $0x142] sm:$0xff]
        %v4608 = vld [vmem:[%s3082 + $0x152] sm:$0xff]
        %v4609 = vld [vmem:[%s3082 + $0x15a] sm:$0xff]
        %v4610 = vld [vmem:[%s3082 + $0x16a] sm:$0xff]
        %v4611 = vld [vmem:[%s3082 + $0x172] sm:$0xff]
        %s4612 = scalar_lea.vmem [#allocation3], 640
        %v4613 = vld [vmem:[%s4612] sm:$0xff]
        %v4614 = vld [vmem:[%s4612 + $0x8] sm:$0xff]
        %v4615 = vld [vmem:[%s4612 + $0x10] sm:$0xff]
        %v4616 = vld [vmem:[%s4612 + $0x18] sm:$0xff]
        %v4617 = vld [vmem:[%s4612 + $0x20] sm:$0xff]
        %v4618 = vld [vmem:[%s4612 + $0x28] sm:$0xff]
        %v4619 = vld [vmem:[%s4612 + $0x30] sm:$0xff]
        %v4620 = vld [vmem:[%s4612 + $0x38] sm:$0xff]
        %v4621 = vld [vmem:[%s4612 + $0x40] sm:$0xff]
        %v4622 = vld [vmem:[%s4612 + $0x48] sm:$0xff]
        %v4623 = vld [vmem:[%s4612 + $0x50] sm:$0xff]
        %v4624 = vld [vmem:[%s4612 + $0x58] sm:$0xff]
        %v4625 = vld [vmem:[%s4612 + $0x60] sm:$0xff]
        %v4626 = vld [vmem:[%s4612 + $0x68] sm:$0xff]
        %v4627 = vld [vmem:[%s4612 + $0x70] sm:$0xff]
        %v4628 = vld [vmem:[%s4612 + $0x78] sm:$0xff]
        %4629 = vmatprep.subr.mxu0 0.0
        %4630 = vmatpush1.msra.mxu0 %v4613
        %4631 = vmatprep.subr.mxu0 0.0
        %4632 = vmatpush1.msra.mxu0 %v4614
        %4633 = vmatprep.subr.mxu0 0.0
        %4634 = vmatpush1.msra.mxu0 %v4615
        %4635 = vmatprep.subr.mxu0 0.0
        %4636 = vmatpush1.msra.mxu0 %v4616
        %4637 = vmatprep.subr.mxu0 0.0
        %4638 = vmatpush1.msra.mxu0 %v4617
        %4639 = vmatprep.subr.mxu0 0.0
        %4640 = vmatpush1.msra.mxu0 %v4618
        %4641 = vmatprep.subr.mxu0 0.0
        %4642 = vmatpush1.msra.mxu0 %v4619
        %4643 = vmatprep.subr.mxu0 0.0
        %4644 = vmatpush1.msra.mxu0 %v4620
        %4645 = vmatprep.subr.mxu0 0.0
        %4646 = vmatpush1.msra.mxu0 %v4621
        %4647 = vmatprep.subr.mxu0 0.0
        %4648 = vmatpush1.msra.mxu0 %v4622
        %4649 = vmatprep.subr.mxu0 0.0
        %4650 = vmatpush1.msra.mxu0 %v4623
        %4651 = vmatprep.subr.mxu0 0.0
        %4652 = vmatpush1.msra.mxu0 %v4624
        %4653 = vmatprep.subr.mxu0 0.0
        %4654 = vmatpush1.msra.mxu0 %v4625
        %4655 = vmatprep.subr.mxu0 0.0
        %4656 = vmatpush1.msra.mxu0 %v4626
        %4657 = vmatprep.subr.mxu0 0.0
        %4658 = vmatpush1.msra.mxu0 %v4627
        %4659 = vmatprep.subr.mxu0 0.0
        %4660 = vmatpush1.msra.mxu0 %v4628
        %4661 = vmatprep.subr.mxu0 0.0
        %4662 = vmatpush1.msra.mxu0 0.0
        %4663 = vmatprep.subr.mxu0 0.0
        %4664 = vmatpush1.msra.mxu0 0.0
        %4665 = vmatprep.subr.mxu0 0.0
        %4666 = vmatpush1.msra.mxu0 0.0
        %4667 = vmatprep.subr.mxu0 0.0
        %4668 = vmatpush1.msra.mxu0 0.0
        %4669 = vmatprep.subr.mxu0 0.0
        %4670 = vmatpush1.msra.mxu0 0.0
        %4671 = vmatprep.subr.mxu0 0.0
        %4672 = vmatpush1.msra.mxu0 0.0
        %4673 = vmatprep.subr.mxu0 0.0
        %4674 = vmatpush1.msra.mxu0 0.0
        %4675 = vmatprep.subr.mxu0 0.0
        %4676 = vmatpush1.msra.mxu0 0.0
        %4677 = vmatprep.subr.mxu0 0.0
        %4678 = vmatpush1.msra.mxu0 0.0
        %4679 = vmatprep.subr.mxu0 0.0
        %4680 = vmatpush1.msra.mxu0 0.0
        %4681 = vmatprep.subr.mxu0 0.0
        %4682 = vmatpush1.msra.mxu0 0.0
        %4683 = vmatprep.subr.mxu0 0.0
        %4684 = vmatpush1.msra.mxu0 0.0
        %4685 = vmatprep.subr.mxu0 0.0
        %4686 = vmatpush1.msra.mxu0 0.0
        %4687 = vmatprep.subr.mxu0 0.0
        %4688 = vmatpush1.msra.mxu0 0.0
        %4689 = vmatprep.subr.mxu0 0.0
        %4690 = vmatpush1.msra.mxu0 0.0
        %4691 = vmatprep.subr.mxu0 0.0
        %4692 = vmatpush1.msra.mxu0 0.0
        %4693 = vmatprep.mubr.f32.mxu0 0.0
        %4694 = vmatmul.mubr.f32.gmra.mrb[0].mxu0 %v4580
        %v4695 = vpop.f32.mrb[0].mxu0
        %v4696 = vadd.f32 0.0, %v4695
        %v4697 = vpop.f32.mrb[0].mxu0
        %4698 = vmatprep.mubr.f32.mxu0 0.0
        %4699 = vmatmul.mubr.f32.gmra.mrb[0].mxu0 %v4581
        %v4700 = vpop.f32.mrb[0].mxu0
        %v4701 = vadd.f32 0.0, %v4700
        %v4702 = vpop.f32.mrb[0].mxu0
        %4703 = vmatprep.mubr.f32.mxu0 0.0
        %4704 = vmatmul.mubr.f32.gmra.mrb[0].mxu0 %v4582
        %v4705 = vpop.f32.mrb[0].mxu0
        %v4706 = vadd.f32 0.0, %v4705
        %v4707 = vpop.f32.mrb[0].mxu0
        %4708 = vmatprep.mubr.f32.mxu0 0.0
        %4709 = vmatmul.mubr.f32.gmra.mrb[0].mxu0 %v4583
        %v4710 = vpop.f32.mrb[0].mxu0
        %v4711 = vadd.f32 0.0, %v4710
        %v4712 = vpop.f32.mrb[0].mxu0
        %4713 = vmatprep.mubr.f32.mxu0 0.0
        %4714 = vmatmul.mubr.f32.gmra.mrb[0].mxu0 %v4584
        %v4715 = vpop.f32.mrb[0].mxu0
        %v4716 = vadd.f32 0.0, %v4715
        %v4717 = vpop.f32.mrb[0].mxu0
        %4718 = vmatprep.mubr.f32.mxu0 0.0
        %4719 = vmatmul.mubr.f32.gmra.mrb[0].mxu0 %v4585
        %v4720 = vpop.f32.mrb[0].mxu0
        %v4721 = vadd.f32 0.0, %v4720
        %v4722 = vpop.f32.mrb[0].mxu0
        %4723 = vmatprep.mubr.f32.mxu0 0.0
        %4724 = vmatmul.mubr.f32.gmra.mrb[0].mxu0 %v4586
        %v4725 = vpop.f32.mrb[0].mxu0
        %v4726 = vadd.f32 0.0, %v4725
        %v4727 = vpop.f32.mrb[0].mxu0
        %4728 = vmatprep.mubr.f32.mxu0 0.0
        %4729 = vmatmul.mubr.f32.gmra.mrb[0].mxu0 %v4587
        %v4730 = vpop.f32.mrb[0].mxu0
        %v4731 = vadd.f32 0.0, %v4730
        %v4732 = vpop.f32.mrb[0].mxu0
        %4733 = vmatprep.mubr.f32.mxu0 0.0
        %4734 = vmatmul.mubr.f32.gmra.mrb[0].mxu0 %v4588
        %v4735 = vpop.f32.mrb[0].mxu0
        %v4736 = vadd.f32 0.0, %v4735
        %v4737 = vpop.f32.mrb[0].mxu0
        %4738 = vmatprep.mubr.f32.mxu0 0.0
        %4739 = vmatmul.mubr.f32.gmra.mrb[0].mxu0 %v4589
        %v4740 = vpop.f32.mrb[0].mxu0
        %v4741 = vadd.f32 0.0, %v4740
        %v4742 = vpop.f32.mrb[0].mxu0
        %4743 = vmatprep.mubr.f32.mxu0 0.0
        %4744 = vmatmul.mubr.f32.gmra.mrb[0].mxu0 %v4590
        %v4745 = vpop.f32.mrb[0].mxu0
        %v4746 = vadd.f32 0.0, %v4745
        %v4747 = vpop.f32.mrb[0].mxu0
        %4748 = vmatprep.mubr.f32.mxu0 0.0
        %4749 = vmatmul.mubr.f32.gmra.mrb[0].mxu0 %v4591
        %v4750 = vpop.f32.mrb[0].mxu0
        %v4751 = vadd.f32 0.0, %v4750
        %v4752 = vpop.f32.mrb[0].mxu0
        %4753 = vmatprep.mubr.f32.mxu0 0.0
        %4754 = vmatmul.mubr.f32.gmra.mrb[0].mxu0 %v4592
        %v4755 = vpop.f32.mrb[0].mxu0
        %v4756 = vadd.f32 0.0, %v4755
        %v4757 = vpop.f32.mrb[0].mxu0
        %4758 = vmatprep.mubr.f32.mxu0 0.0
        %4759 = vmatmul.mubr.f32.gmra.mrb[0].mxu0 %v4593
        %v4760 = vpop.f32.mrb[0].mxu0
        %v4761 = vadd.f32 0.0, %v4760
        %v4762 = vpop.f32.mrb[0].mxu0
        %4763 = vmatprep.mubr.f32.mxu0 0.0
        %4764 = vmatmul.mubr.f32.gmra.mrb[0].mxu0 %v4594
        %v4765 = vpop.f32.mrb[0].mxu0
        %v4766 = vadd.f32 0.0, %v4765
        %v4767 = vpop.f32.mrb[0].mxu0
        %4768 = vmatprep.mubr.f32.mxu0 0.0
        %4769 = vmatmul.mubr.f32.gmra.mrb[0].mxu0 %v4595
        %v4770 = vpop.f32.mrb[0].mxu0
        %v4771 = vadd.f32 0.0, %v4770
        %v4772 = vpop.f32.mrb[0].mxu0
        %4773 = vmatprep.mubr.f32.mxu0 0.0
        %4774 = vmatmul.mubr.f32.gmra.mrb[0].mxu0 %v4596
        %v4775 = vpop.f32.mrb[0].mxu0
        %v4776 = vadd.f32 0.0, %v4775
        %v4777 = vpop.f32.mrb[0].mxu0
        %4778 = vmatprep.mubr.f32.mxu0 0.0
        %4779 = vmatmul.mubr.f32.gmra.mrb[0].mxu0 %v4597
        %v4780 = vpop.f32.mrb[0].mxu0
        %v4781 = vadd.f32 0.0, %v4780
        %v4782 = vpop.f32.mrb[0].mxu0
        %4783 = vmatprep.mubr.f32.mxu0 0.0
        %4784 = vmatmul.mubr.f32.gmra.mrb[0].mxu0 %v4598
        %v4785 = vpop.f32.mrb[0].mxu0
        %v4786 = vadd.f32 0.0, %v4785
        %v4787 = vpop.f32.mrb[0].mxu0
        %4788 = vmatprep.mubr.f32.mxu0 0.0
        %4789 = vmatmul.mubr.f32.gmra.mrb[0].mxu0 %v4599
        %v4790 = vpop.f32.mrb[0].mxu0
        %v4791 = vadd.f32 0.0, %v4790
        %v4792 = vpop.f32.mrb[0].mxu0
        %4793 = vmatprep.mubr.f32.mxu0 0.0
        %4794 = vmatmul.mubr.f32.gmra.mrb[0].mxu0 %v4600
        %v4795 = vpop.f32.mrb[0].mxu0
        %v4796 = vadd.f32 0.0, %v4795
        %v4797 = vpop.f32.mrb[0].mxu0
        %4798 = vmatprep.mubr.f32.mxu0 0.0
        %4799 = vmatmul.mubr.f32.gmra.mrb[0].mxu0 %v4601
        %v4800 = vpop.f32.mrb[0].mxu0
        %v4801 = vadd.f32 0.0, %v4800
        %v4802 = vpop.f32.mrb[0].mxu0
        %4803 = vmatprep.mubr.f32.mxu0 0.0
        %4804 = vmatmul.mubr.f32.gmra.mrb[0].mxu0 %v4602
        %v4805 = vpop.f32.mrb[0].mxu0
        %v4806 = vadd.f32 0.0, %v4805
        %v4807 = vpop.f32.mrb[0].mxu0
        %4808 = vmatprep.mubr.f32.mxu0 0.0
        %4809 = vmatmul.mubr.f32.gmra.mrb[0].mxu0 %v4603
        %v4810 = vpop.f32.mrb[0].mxu0
        %v4811 = vadd.f32 0.0, %v4810
        %v4812 = vpop.f32.mrb[0].mxu0
        %4813 = vmatprep.mubr.f32.mxu0 0.0
        %4814 = vmatmul.mubr.f32.gmra.mrb[0].mxu0 %v4604
        %v4815 = vpop.f32.mrb[0].mxu0
        %v4816 = vadd.f32 0.0, %v4815
        %v4817 = vpop.f32.mrb[0].mxu0
        %4818 = vmatprep.mubr.f32.mxu0 0.0
        %4819 = vmatmul.mubr.f32.gmra.mrb[0].mxu0 %v4605
        %v4820 = vpop.f32.mrb[0].mxu0
        %v4821 = vadd.f32 0.0, %v4820
        %v4822 = vpop.f32.mrb[0].mxu0
        %4823 = vmatprep.mubr.f32.mxu0 0.0
        %4824 = vmatmul.mubr.f32.gmra.mrb[0].mxu0 %v4606
        %v4825 = vpop.f32.mrb[0].mxu0
        %v4826 = vadd.f32 0.0, %v4825
        %v4827 = vpop.f32.mrb[0].mxu0
        %4828 = vmatprep.mubr.f32.mxu0 0.0
        %4829 = vmatmul.mubr.f32.gmra.mrb[0].mxu0 %v4607
        %v4830 = vpop.f32.mrb[0].mxu0
        %v4831 = vadd.f32 0.0, %v4830
        %v4832 = vpop.f32.mrb[0].mxu0
        %4833 = vmatprep.mubr.f32.mxu0 0.0
        %4834 = vmatmul.mubr.f32.gmra.mrb[0].mxu0 %v4608
        %v4835 = vpop.f32.mrb[0].mxu0
        %v4836 = vadd.f32 0.0, %v4835
        %v4837 = vpop.f32.mrb[0].mxu0
        %4838 = vmatprep.mubr.f32.mxu0 0.0
        %4839 = vmatmul.mubr.f32.gmra.mrb[0].mxu0 %v4609
        %v4840 = vpop.f32.mrb[0].mxu0
        %v4841 = vadd.f32 0.0, %v4840
        %v4842 = vpop.f32.mrb[0].mxu0
        %4843 = vmatprep.mubr.f32.mxu0 0.0
        %4844 = vmatmul.mubr.f32.gmra.mrb[0].mxu0 %v4610
        %v4845 = vpop.f32.mrb[0].mxu0
        %v4846 = vadd.f32 0.0, %v4845
        %v4847 = vpop.f32.mrb[0].mxu0
        %4848 = vmatprep.mubr.f32.mxu0 0.0
        %4849 = vmatmul.mubr.f32.gmra.mrb[0].mxu0 %v4611
        %v4850 = vpop.f32.mrb[0].mxu0
        %v4851 = vadd.f32 0.0, %v4850
        %v4852 = vpop.f32.mrb[0].mxu0
        %4853 = vdwg.mxu0
        %v4854 = vadd.f32 %v4548, %v4696
        %v4855 = vadd.f32 %v4549, %v4701
        %v4856 = vadd.f32 %v4550, %v4706
        %v4857 = vadd.f32 %v4551, %v4711
        %v4858 = vadd.f32 %v4552, %v4716
        %v4859 = vadd.f32 %v4553, %v4721
        %v4860 = vadd.f32 %v4554, %v4726
        %v4861 = vadd.f32 %v4555, %v4731
        %v4862 = vadd.f32 %v4556, %v4736
        %v4863 = vadd.f32 %v4557, %v4741
        %v4864 = vadd.f32 %v4558, %v4746
        %v4865 = vadd.f32 %v4559, %v4751
        %v4866 = vadd.f32 %v4560, %v4756
        %v4867 = vadd.f32 %v4561, %v4761
        %v4868 = vadd.f32 %v4562, %v4766
        %v4869 = vadd.f32 %v4563, %v4771
        %v4870 = vadd.f32 %v4564, %v4776
        %v4871 = vadd.f32 %v4565, %v4781
        %v4872 = vadd.f32 %v4566, %v4786
        %v4873 = vadd.f32 %v4567, %v4791
        %v4874 = vadd.f32 %v4568, %v4796
        %v4875 = vadd.f32 %v4569, %v4801
        %v4876 = vadd.f32 %v4570, %v4806
        %v4877 = vadd.f32 %v4571, %v4811
        %v4878 = vadd.f32 %v4572, %v4816
        %v4879 = vadd.f32 %v4573, %v4821
        %v4880 = vadd.f32 %v4574, %v4826
        %v4881 = vadd.f32 %v4575, %v4831
        %v4882 = vadd.f32 %v4576, %v4836
        %v4883 = vadd.f32 %v4577, %v4841
        %v4884 = vadd.f32 %v4578, %v4846
        %v4885 = vadd.f32 %v4579, %v4851
        %s4886 = scalar_lea.vmem [#allocation2], 48
        %v4887 = vld [vmem:[%s4886] sm:$0xff]
        %v4888 = vld [vmem:[%s4886 + $0x8] sm:$0xff]
        %v4889 = vld [vmem:[%s4886 + $0x18] sm:$0xff]
        %v4890 = vld [vmem:[%s4886 + $0x20] sm:$0xff]
        %v4891 = vld [vmem:[%s4886 + $0x30] sm:$0xff]
        %v4892 = vld [vmem:[%s4886 + $0x38] sm:$0xff]
        %v4893 = vld [vmem:[%s4886 + $0x48] sm:$0xff]
        %v4894 = vld [vmem:[%s4886 + $0x50] sm:$0xff]
        %v4895 = vld [vmem:[%s4886 + $0x60] sm:$0xff]
        %v4896 = vld [vmem:[%s4886 + $0x68] sm:$0xff]
        %v4897 = vld [vmem:[%s4886 + $0x78] sm:$0xff]
        %v4898 = vld [vmem:[%s4886 + $0x80] sm:$0xff]
        %v4899 = vld [vmem:[%s4886 + $0x90] sm:$0xff]
        %v4900 = vld [vmem:[%s4886 + $0x98] sm:$0xff]
        %v4901 = vld [vmem:[%s4886 + $0xa8] sm:$0xff]
        %v4902 = vld [vmem:[%s4886 + $0xb0] sm:$0xff]
        %v4903 = vld [vmem:[%s4886 + $0xc0] sm:$0xff]
        %v4904 = vld [vmem:[%s4886 + $0xc8] sm:$0xff]
        %v4905 = vld [vmem:[%s4886 + $0xd8] sm:$0xff]
        %v4906 = vld [vmem:[%s4886 + $0xe0] sm:$0xff]
        %v4907 = vld [vmem:[%s4886 + $0xf0] sm:$0xff]
        %v4908 = vld [vmem:[%s4886 + $0xf8] sm:$0xff]
        %v4909 = vld [vmem:[%s4886 + $0x108] sm:$0xff]
        %v4910 = vld [vmem:[%s4886 + $0x110] sm:$0xff]
        %v4911 = vld [vmem:[%s4886 + $0x120] sm:$0xff]
        %v4912 = vld [vmem:[%s4886 + $0x128] sm:$0xff]
        %v4913 = vld [vmem:[%s4886 + $0x138] sm:$0xff]
        %v4914 = vld [vmem:[%s4886 + $0x140] sm:$0xff]
        %v4915 = vld [vmem:[%s4886 + $0x150] sm:$0xff]
        %v4916 = vld [vmem:[%s4886 + $0x158] sm:$0xff]
        %v4917 = vld [vmem:[%s4886 + $0x168] sm:$0xff]
        %v4918 = vld [vmem:[%s4886 + $0x170] sm:$0xff]
        %s4919 = scalar_lea.vmem [#allocation3], 768
        %v4920 = vld [vmem:[%s4919] sm:$0xff]
        %v4921 = vld [vmem:[%s4919 + $0x8] sm:$0xff]
        %v4922 = vld [vmem:[%s4919 + $0x10] sm:$0xff]
        %v4923 = vld [vmem:[%s4919 + $0x18] sm:$0xff]
        %v4924 = vld [vmem:[%s4919 + $0x20] sm:$0xff]
        %v4925 = vld [vmem:[%s4919 + $0x28] sm:$0xff]
        %v4926 = vld [vmem:[%s4919 + $0x30] sm:$0xff]
        %v4927 = vld [vmem:[%s4919 + $0x38] sm:$0xff]
        %v4928 = vld [vmem:[%s4919 + $0x40] sm:$0xff]
        %v4929 = vld [vmem:[%s4919 + $0x48] sm:$0xff]
        %v4930 = vld [vmem:[%s4919 + $0x50] sm:$0xff]
        %v4931 = vld [vmem:[%s4919 + $0x58] sm:$0xff]
        %v4932 = vld [vmem:[%s4919 + $0x60] sm:$0xff]
        %v4933 = vld [vmem:[%s4919 + $0x68] sm:$0xff]
        %v4934 = vld [vmem:[%s4919 + $0x70] sm:$0xff]
        %v4935 = vld [vmem:[%s4919 + $0x78] sm:$0xff]
        %4936 = vmatprep.subr.mxu0 0.0
        %4937 = vmatpush1.msra.mxu0 %v4920
        %4938 = vmatprep.subr.mxu0 0.0
        %4939 = vmatpush1.msra.mxu0 %v4921
        %4940 = vmatprep.subr.mxu0 0.0
        %4941 = vmatpush1.msra.mxu0 %v4922
        %4942 = vmatprep.subr.mxu0 0.0
        %4943 = vmatpush1.msra.mxu0 %v4923
        %4944 = vmatprep.subr.mxu0 0.0
        %4945 = vmatpush1.msra.mxu0 %v4924
        %4946 = vmatprep.subr.mxu0 0.0
        %4947 = vmatpush1.msra.mxu0 %v4925
        %4948 = vmatprep.subr.mxu0 0.0
        %4949 = vmatpush1.msra.mxu0 %v4926
        %4950 = vmatprep.subr.mxu0 0.0
        %4951 = vmatpush1.msra.mxu0 %v4927
        %4952 = vmatprep.subr.mxu0 0.0
        %4953 = vmatpush1.msra.mxu0 %v4928
        %4954 = vmatprep.subr.mxu0 0.0
        %4955 = vmatpush1.msra.mxu0 %v4929
        %4956 = vmatprep.subr.mxu0 0.0
        %4957 = vmatpush1.msra.mxu0 %v4930
        %4958 = vmatprep.subr.mxu0 0.0
        %4959 = vmatpush1.msra.mxu0 %v4931
        %4960 = vmatprep.subr.mxu0 0.0
        %4961 = vmatpush1.msra.mxu0 %v4932
        %4962 = vmatprep.subr.mxu0 0.0
        %4963 = vmatpush1.msra.mxu0 %v4933
        %4964 = vmatprep.subr.mxu0 0.0
        %4965 = vmatpush1.msra.mxu0 %v4934
        %4966 = vmatprep.subr.mxu0 0.0
        %4967 = vmatpush1.msra.mxu0 %v4935
        %4968 = vmatprep.subr.mxu0 0.0
        %4969 = vmatpush1.msra.mxu0 0.0
        %4970 = vmatprep.subr.mxu0 0.0
        %4971 = vmatpush1.msra.mxu0 0.0
        %4972 = vmatprep.subr.mxu0 0.0
        %4973 = vmatpush1.msra.mxu0 0.0
        %4974 = vmatprep.subr.mxu0 0.0
        %4975 = vmatpush1.msra.mxu0 0.0
        %4976 = vmatprep.subr.mxu0 0.0
        %4977 = vmatpush1.msra.mxu0 0.0
        %4978 = vmatprep.subr.mxu0 0.0
        %4979 = vmatpush1.msra.mxu0 0.0
        %4980 = vmatprep.subr.mxu0 0.0
        %4981 = vmatpush1.msra.mxu0 0.0
        %4982 = vmatprep.subr.mxu0 0.0
        %4983 = vmatpush1.msra.mxu0 0.0
        %4984 = vmatprep.subr.mxu0 0.0
        %4985 = vmatpush1.msra.mxu0 0.0
        %4986 = vmatprep.subr.mxu0 0.0
        %4987 = vmatpush1.msra.mxu0 0.0
        %4988 = vmatprep.subr.mxu0 0.0
        %4989 = vmatpush1.msra.mxu0 0.0
        %4990 = vmatprep.subr.mxu0 0.0
        %4991 = vmatpush1.msra.mxu0 0.0
        %4992 = vmatprep.subr.mxu0 0.0
        %4993 = vmatpush1.msra.mxu0 0.0
        %4994 = vmatprep.subr.mxu0 0.0
        %4995 = vmatpush1.msra.mxu0 0.0
        %4996 = vmatprep.subr.mxu0 0.0
        %4997 = vmatpush1.msra.mxu0 0.0
        %4998 = vmatprep.subr.mxu0 0.0
        %4999 = vmatpush1.msra.mxu0 0.0
        %5000 = vmatprep.mubr.f32.mxu0 0.0
        %5001 = vmatmul.mubr.f32.gmra.mrb[0].mxu0 %v4887
        %v5002 = vpop.f32.mrb[0].mxu0
        %v5003 = vadd.f32 0.0, %v5002
        %v5004 = vpop.f32.mrb[0].mxu0
        %5005 = vmatprep.mubr.f32.mxu0 0.0
        %5006 = vmatmul.mubr.f32.gmra.mrb[0].mxu0 %v4888
        %v5007 = vpop.f32.mrb[0].mxu0
        %v5008 = vadd.f32 0.0, %v5007
        %v5009 = vpop.f32.mrb[0].mxu0
        %5010 = vmatprep.mubr.f32.mxu0 0.0
        %5011 = vmatmul.mubr.f32.gmra.mrb[0].mxu0 %v4889
        %v5012 = vpop.f32.mrb[0].mxu0
        %v5013 = vadd.f32 0.0, %v5012
        %v5014 = vpop.f32.mrb[0].mxu0
        %5015 = vmatprep.mubr.f32.mxu0 0.0
        %5016 = vmatmul.mubr.f32.gmra.mrb[0].mxu0 %v4890
        %v5017 = vpop.f32.mrb[0].mxu0
        %v5018 = vadd.f32 0.0, %v5017
        %v5019 = vpop.f32.mrb[0].mxu0
        %5020 = vmatprep.mubr.f32.mxu0 0.0
        %5021 = vmatmul.mubr.f32.gmra.mrb[0].mxu0 %v4891
        %v5022 = vpop.f32.mrb[0].mxu0
        %v5023 = vadd.f32 0.0, %v5022
        %v5024 = vpop.f32.mrb[0].mxu0
        %5025 = vmatprep.mubr.f32.mxu0 0.0
        %5026 = vmatmul.mubr.f32.gmra.mrb[0].mxu0 %v4892
        %v5027 = vpop.f32.mrb[0].mxu0
        %v5028 = vadd.f32 0.0, %v5027
        %v5029 = vpop.f32.mrb[0].mxu0
        %5030 = vmatprep.mubr.f32.mxu0 0.0
        %5031 = vmatmul.mubr.f32.gmra.mrb[0].mxu0 %v4893
        %v5032 = vpop.f32.mrb[0].mxu0
        %v5033 = vadd.f32 0.0, %v5032
        %v5034 = vpop.f32.mrb[0].mxu0
        %5035 = vmatprep.mubr.f32.mxu0 0.0
        %5036 = vmatmul.mubr.f32.gmra.mrb[0].mxu0 %v4894
        %v5037 = vpop.f32.mrb[0].mxu0
        %v5038 = vadd.f32 0.0, %v5037
        %v5039 = vpop.f32.mrb[0].mxu0
        %5040 = vmatprep.mubr.f32.mxu0 0.0
        %5041 = vmatmul.mubr.f32.gmra.mrb[0].mxu0 %v4895
        %v5042 = vpop.f32.mrb[0].mxu0
        %v5043 = vadd.f32 0.0, %v5042
        %v5044 = vpop.f32.mrb[0].mxu0
        %5045 = vmatprep.mubr.f32.mxu0 0.0
        %5046 = vmatmul.mubr.f32.gmra.mrb[0].mxu0 %v4896
        %v5047 = vpop.f32.mrb[0].mxu0
        %v5048 = vadd.f32 0.0, %v5047
        %v5049 = vpop.f32.mrb[0].mxu0
        %5050 = vmatprep.mubr.f32.mxu0 0.0
        %5051 = vmatmul.mubr.f32.gmra.mrb[0].mxu0 %v4897
        %v5052 = vpop.f32.mrb[0].mxu0
        %v5053 = vadd.f32 0.0, %v5052
        %v5054 = vpop.f32.mrb[0].mxu0
        %5055 = vmatprep.mubr.f32.mxu0 0.0
        %5056 = vmatmul.mubr.f32.gmra.mrb[0].mxu0 %v4898
        %v5057 = vpop.f32.mrb[0].mxu0
        %v5058 = vadd.f32 0.0, %v5057
        %v5059 = vpop.f32.mrb[0].mxu0
        %5060 = vmatprep.mubr.f32.mxu0 0.0
        %5061 = vmatmul.mubr.f32.gmra.mrb[0].mxu0 %v4899
        %v5062 = vpop.f32.mrb[0].mxu0
        %v5063 = vadd.f32 0.0, %v5062
        %v5064 = vpop.f32.mrb[0].mxu0
        %5065 = vmatprep.mubr.f32.mxu0 0.0
        %5066 = vmatmul.mubr.f32.gmra.mrb[0].mxu0 %v4900
        %v5067 = vpop.f32.mrb[0].mxu0
        %v5068 = vadd.f32 0.0, %v5067
        %v5069 = vpop.f32.mrb[0].mxu0
        %5070 = vmatprep.mubr.f32.mxu0 0.0
        %5071 = vmatmul.mubr.f32.gmra.mrb[0].mxu0 %v4901
        %v5072 = vpop.f32.mrb[0].mxu0
        %v5073 = vadd.f32 0.0, %v5072
        %v5074 = vpop.f32.mrb[0].mxu0
        %5075 = vmatprep.mubr.f32.mxu0 0.0
        %5076 = vmatmul.mubr.f32.gmra.mrb[0].mxu0 %v4902
        %v5077 = vpop.f32.mrb[0].mxu0
        %v5078 = vadd.f32 0.0, %v5077
        %v5079 = vpop.f32.mrb[0].mxu0
        %5080 = vmatprep.mubr.f32.mxu0 0.0
        %5081 = vmatmul.mubr.f32.gmra.mrb[0].mxu0 %v4903
        %v5082 = vpop.f32.mrb[0].mxu0
        %v5083 = vadd.f32 0.0, %v5082
        %v5084 = vpop.f32.mrb[0].mxu0
        %5085 = vmatprep.mubr.f32.mxu0 0.0
        %5086 = vmatmul.mubr.f32.gmra.mrb[0].mxu0 %v4904
        %v5087 = vpop.f32.mrb[0].mxu0
        %v5088 = vadd.f32 0.0, %v5087
        %v5089 = vpop.f32.mrb[0].mxu0
        %5090 = vmatprep.mubr.f32.mxu0 0.0
        %5091 = vmatmul.mubr.f32.gmra.mrb[0].mxu0 %v4905
        %v5092 = vpop.f32.mrb[0].mxu0
        %v5093 = vadd.f32 0.0, %v5092
        %v5094 = vpop.f32.mrb[0].mxu0
        %5095 = vmatprep.mubr.f32.mxu0 0.0
        %5096 = vmatmul.mubr.f32.gmra.mrb[0].mxu0 %v4906
        %v5097 = vpop.f32.mrb[0].mxu0
        %v5098 = vadd.f32 0.0, %v5097
        %v5099 = vpop.f32.mrb[0].mxu0
        %5100 = vmatprep.mubr.f32.mxu0 0.0
        %5101 = vmatmul.mubr.f32.gmra.mrb[0].mxu0 %v4907
        %v5102 = vpop.f32.mrb[0].mxu0
        %v5103 = vadd.f32 0.0, %v5102
        %v5104 = vpop.f32.mrb[0].mxu0
        %5105 = vmatprep.mubr.f32.mxu0 0.0
        %5106 = vmatmul.mubr.f32.gmra.mrb[0].mxu0 %v4908
        %v5107 = vpop.f32.mrb[0].mxu0
        %v5108 = vadd.f32 0.0, %v5107
        %v5109 = vpop.f32.mrb[0].mxu0
        %5110 = vmatprep.mubr.f32.mxu0 0.0
        %5111 = vmatmul.mubr.f32.gmra.mrb[0].mxu0 %v4909
        %v5112 = vpop.f32.mrb[0].mxu0
        %v5113 = vadd.f32 0.0, %v5112
        %v5114 = vpop.f32.mrb[0].mxu0
        %5115 = vmatprep.mubr.f32.mxu0 0.0
        %5116 = vmatmul.mubr.f32.gmra.mrb[0].mxu0 %v4910
        %v5117 = vpop.f32.mrb[0].mxu0
        %v5118 = vadd.f32 0.0, %v5117
        %v5119 = vpop.f32.mrb[0].mxu0
        %5120 = vmatprep.mubr.f32.mxu0 0.0
        %5121 = vmatmul.mubr.f32.gmra.mrb[0].mxu0 %v4911
        %v5122 = vpop.f32.mrb[0].mxu0
        %v5123 = vadd.f32 0.0, %v5122
        %v5124 = vpop.f32.mrb[0].mxu0
        %5125 = vmatprep.mubr.f32.mxu0 0.0
        %5126 = vmatmul.mubr.f32.gmra.mrb[0].mxu0 %v4912
        %v5127 = vpop.f32.mrb[0].mxu0
        %v5128 = vadd.f32 0.0, %v5127
        %v5129 = vpop.f32.mrb[0].mxu0
        %5130 = vmatprep.mubr.f32.mxu0 0.0
        %5131 = vmatmul.mubr.f32.gmra.mrb[0].mxu0 %v4913
        %v5132 = vpop.f32.mrb[0].mxu0
        %v5133 = vadd.f32 0.0, %v5132
        %v5134 = vpop.f32.mrb[0].mxu0
        %5135 = vmatprep.mubr.f32.mxu0 0.0
        %5136 = vmatmul.mubr.f32.gmra.mrb[0].mxu0 %v4914
        %v5137 = vpop.f32.mrb[0].mxu0
        %v5138 = vadd.f32 0.0, %v5137
        %v5139 = vpop.f32.mrb[0].mxu0
        %5140 = vmatprep.mubr.f32.mxu0 0.0
        %5141 = vmatmul.mubr.f32.gmra.mrb[0].mxu0 %v4915
        %v5142 = vpop.f32.mrb[0].mxu0
        %v5143 = vadd.f32 0.0, %v5142
        %v5144 = vpop.f32.mrb[0].mxu0
        %5145 = vmatprep.mubr.f32.mxu0 0.0
        %5146 = vmatmul.mubr.f32.gmra.mrb[0].mxu0 %v4916
        %v5147 = vpop.f32.mrb[0].mxu0
        %v5148 = vadd.f32 0.0, %v5147
        %v5149 = vpop.f32.mrb[0].mxu0
        %5150 = vmatprep.mubr.f32.mxu0 0.0
        %5151 = vmatmul.mubr.f32.gmra.mrb[0].mxu0 %v4917
        %v5152 = vpop.f32.mrb[0].mxu0
        %v5153 = vadd.f32 0.0, %v5152
        %v5154 = vpop.f32.mrb[0].mxu0
        %5155 = vmatprep.mubr.f32.mxu0 0.0
        %5156 = vmatmul.mubr.f32.gmra.mrb[0].mxu0 %v4918
        %v5157 = vpop.f32.mrb[0].mxu0
        %v5158 = vadd.f32 0.0, %v5157
        %v5159 = vpop.f32.mrb[0].mxu0
        %5160 = vdwg.mxu0
        %v5161 = vadd.f32 %v4854, %v5003
        %v5162 = vadd.f32 %v4855, %v5008
        %v5163 = vadd.f32 %v4856, %v5013
        %v5164 = vadd.f32 %v4857, %v5018
        %v5165 = vadd.f32 %v4858, %v5023
        %v5166 = vadd.f32 %v4859, %v5028
        %v5167 = vadd.f32 %v4860, %v5033
        %v5168 = vadd.f32 %v4861, %v5038
        %v5169 = vadd.f32 %v4862, %v5043
        %v5170 = vadd.f32 %v4863, %v5048
        %v5171 = vadd.f32 %v4864, %v5053
        %v5172 = vadd.f32 %v4865, %v5058
        %v5173 = vadd.f32 %v4866, %v5063
        %v5174 = vadd.f32 %v4867, %v5068
        %v5175 = vadd.f32 %v4868, %v5073
        %v5176 = vadd.f32 %v4869, %v5078
        %v5177 = vadd.f32 %v4870, %v5083
        %v5178 = vadd.f32 %v4871, %v5088
        %v5179 = vadd.f32 %v4872, %v5093
        %v5180 = vadd.f32 %v4873, %v5098
        %v5181 = vadd.f32 %v4874, %v5103
        %v5182 = vadd.f32 %v4875, %v5108
        %v5183 = vadd.f32 %v4876, %v5113
        %v5184 = vadd.f32 %v4877, %v5118
        %v5185 = vadd.f32 %v4878, %v5123
        %v5186 = vadd.f32 %v4879, %v5128
        %v5187 = vadd.f32 %v4880, %v5133
        %v5188 = vadd.f32 %v4881, %v5138
        %v5189 = vadd.f32 %v4882, %v5143
        %v5190 = vadd.f32 %v4883, %v5148
        %v5191 = vadd.f32 %v4884, %v5153
        %v5192 = vadd.f32 %v4885, %v5158
        %v5193 = vld [vmem:[%s4886 + $0x1] sm:$0xff]
        %v5194 = vld [vmem:[%s4886 + $0x9] sm:$0xff]
        %v5195 = vld [vmem:[%s4886 + $0x19] sm:$0xff]
        %v5196 = vld [vmem:[%s4886 + $0x21] sm:$0xff]
        %v5197 = vld [vmem:[%s4886 + $0x31] sm:$0xff]
        %v5198 = vld [vmem:[%s4886 + $0x39] sm:$0xff]
        %v5199 = vld [vmem:[%s4886 + $0x49] sm:$0xff]
        %v5200 = vld [vmem:[%s4886 + $0x51] sm:$0xff]
        %v5201 = vld [vmem:[%s4886 + $0x61] sm:$0xff]
        %v5202 = vld [vmem:[%s4886 + $0x69] sm:$0xff]
        %v5203 = vld [vmem:[%s4886 + $0x79] sm:$0xff]
        %v5204 = vld [vmem:[%s4886 + $0x81] sm:$0xff]
        %v5205 = vld [vmem:[%s4886 + $0x91] sm:$0xff]
        %v5206 = vld [vmem:[%s4886 + $0x99] sm:$0xff]
        %v5207 = vld [vmem:[%s4886 + $0xa9] sm:$0xff]
        %v5208 = vld [vmem:[%s4886 + $0xb1] sm:$0xff]
        %v5209 = vld [vmem:[%s4886 + $0xc1] sm:$0xff]
        %v5210 = vld [vmem:[%s4886 + $0xc9] sm:$0xff]
        %v5211 = vld [vmem:[%s4886 + $0xd9] sm:$0xff]
        %v5212 = vld [vmem:[%s4886 + $0xe1] sm:$0xff]
        %v5213 = vld [vmem:[%s4886 + $0xf1] sm:$0xff]
        %v5214 = vld [vmem:[%s4886 + $0xf9] sm:$0xff]
        %v5215 = vld [vmem:[%s4886 + $0x109] sm:$0xff]
        %v5216 = vld [vmem:[%s4886 + $0x111] sm:$0xff]
        %v5217 = vld [vmem:[%s4886 + $0x121] sm:$0xff]
        %v5218 = vld [vmem:[%s4886 + $0x129] sm:$0xff]
        %v5219 = vld [vmem:[%s4886 + $0x139] sm:$0xff]
        %v5220 = vld [vmem:[%s4886 + $0x141] sm:$0xff]
        %v5221 = vld [vmem:[%s4886 + $0x151] sm:$0xff]
        %v5222 = vld [vmem:[%s4886 + $0x159] sm:$0xff]
        %v5223 = vld [vmem:[%s4886 + $0x169] sm:$0xff]
        %v5224 = vld [vmem:[%s4886 + $0x171] sm:$0xff]
        %s5225 = scalar_lea.vmem [#allocation3], 896
        %v5226 = vld [vmem:[%s5225] sm:$0xff]
        %v5227 = vld [vmem:[%s5225 + $0x8] sm:$0xff]
        %v5228 = vld [vmem:[%s5225 + $0x10] sm:$0xff]
        %v5229 = vld [vmem:[%s5225 + $0x18] sm:$0xff]
        %v5230 = vld [vmem:[%s5225 + $0x20] sm:$0xff]
        %v5231 = vld [vmem:[%s5225 + $0x28] sm:$0xff]
        %v5232 = vld [vmem:[%s5225 + $0x30] sm:$0xff]
        %v5233 = vld [vmem:[%s5225 + $0x38] sm:$0xff]
        %v5234 = vld [vmem:[%s5225 + $0x40] sm:$0xff]
        %v5235 = vld [vmem:[%s5225 + $0x48] sm:$0xff]
        %v5236 = vld [vmem:[%s5225 + $0x50] sm:$0xff]
        %v5237 = vld [vmem:[%s5225 + $0x58] sm:$0xff]
        %v5238 = vld [vmem:[%s5225 + $0x60] sm:$0xff]
        %v5239 = vld [vmem:[%s5225 + $0x68] sm:$0xff]
        %v5240 = vld [vmem:[%s5225 + $0x70] sm:$0xff]
        %v5241 = vld [vmem:[%s5225 + $0x78] sm:$0xff]
        %5242 = vmatprep.subr.mxu0 0.0
        %5243 = vmatpush1.msra.mxu0 %v5226
        %5244 = vmatprep.subr.mxu0 0.0
        %5245 = vmatpush1.msra.mxu0 %v5227
        %5246 = vmatprep.subr.mxu0 0.0
        %5247 = vmatpush1.msra.mxu0 %v5228
        %5248 = vmatprep.subr.mxu0 0.0
        %5249 = vmatpush1.msra.mxu0 %v5229
        %5250 = vmatprep.subr.mxu0 0.0
        %5251 = vmatpush1.msra.mxu0 %v5230
        %5252 = vmatprep.subr.mxu0 0.0
        %5253 = vmatpush1.msra.mxu0 %v5231
        %5254 = vmatprep.subr.mxu0 0.0
        %5255 = vmatpush1.msra.mxu0 %v5232
        %5256 = vmatprep.subr.mxu0 0.0
        %5257 = vmatpush1.msra.mxu0 %v5233
        %5258 = vmatprep.subr.mxu0 0.0
        %5259 = vmatpush1.msra.mxu0 %v5234
        %5260 = vmatprep.subr.mxu0 0.0
        %5261 = vmatpush1.msra.mxu0 %v5235
        %5262 = vmatprep.subr.mxu0 0.0
        %5263 = vmatpush1.msra.mxu0 %v5236
        %5264 = vmatprep.subr.mxu0 0.0
        %5265 = vmatpush1.msra.mxu0 %v5237
        %5266 = vmatprep.subr.mxu0 0.0
        %5267 = vmatpush1.msra.mxu0 %v5238
        %5268 = vmatprep.subr.mxu0 0.0
        %5269 = vmatpush1.msra.mxu0 %v5239
        %5270 = vmatprep.subr.mxu0 0.0
        %5271 = vmatpush1.msra.mxu0 %v5240
        %5272 = vmatprep.subr.mxu0 0.0
        %5273 = vmatpush1.msra.mxu0 %v5241
        %5274 = vmatprep.subr.mxu0 0.0
        %5275 = vmatpush1.msra.mxu0 0.0
        %5276 = vmatprep.subr.mxu0 0.0
        %5277 = vmatpush1.msra.mxu0 0.0
        %5278 = vmatprep.subr.mxu0 0.0
        %5279 = vmatpush1.msra.mxu0 0.0
        %5280 = vmatprep.subr.mxu0 0.0
        %5281 = vmatpush1.msra.mxu0 0.0
        %5282 = vmatprep.subr.mxu0 0.0
        %5283 = vmatpush1.msra.mxu0 0.0
        %5284 = vmatprep.subr.mxu0 0.0
        %5285 = vmatpush1.msra.mxu0 0.0
        %5286 = vmatprep.subr.mxu0 0.0
        %5287 = vmatpush1.msra.mxu0 0.0
        %5288 = vmatprep.subr.mxu0 0.0
        %5289 = vmatpush1.msra.mxu0 0.0
        %5290 = vmatprep.subr.mxu0 0.0
        %5291 = vmatpush1.msra.mxu0 0.0
        %5292 = vmatprep.subr.mxu0 0.0
        %5293 = vmatpush1.msra.mxu0 0.0
        %5294 = vmatprep.subr.mxu0 0.0
        %5295 = vmatpush1.msra.mxu0 0.0
        %5296 = vmatprep.subr.mxu0 0.0
        %5297 = vmatpush1.msra.mxu0 0.0
        %5298 = vmatprep.subr.mxu0 0.0
        %5299 = vmatpush1.msra.mxu0 0.0
        %5300 = vmatprep.subr.mxu0 0.0
        %5301 = vmatpush1.msra.mxu0 0.0
        %5302 = vmatprep.subr.mxu0 0.0
        %5303 = vmatpush1.msra.mxu0 0.0
        %5304 = vmatprep.subr.mxu0 0.0
        %5305 = vmatpush1.msra.mxu0 0.0
        %5306 = vmatprep.mubr.f32.mxu0 0.0
        %5307 = vmatmul.mubr.f32.gmra.mrb[0].mxu0 %v5193
        %v5308 = vpop.f32.mrb[0].mxu0
        %v5309 = vadd.f32 0.0, %v5308
        %v5310 = vpop.f32.mrb[0].mxu0
        %5311 = vmatprep.mubr.f32.mxu0 0.0
        %5312 = vmatmul.mubr.f32.gmra.mrb[0].mxu0 %v5194
        %v5313 = vpop.f32.mrb[0].mxu0
        %v5314 = vadd.f32 0.0, %v5313
        %v5315 = vpop.f32.mrb[0].mxu0
        %5316 = vmatprep.mubr.f32.mxu0 0.0
        %5317 = vmatmul.mubr.f32.gmra.mrb[0].mxu0 %v5195
        %v5318 = vpop.f32.mrb[0].mxu0
        %v5319 = vadd.f32 0.0, %v5318
        %v5320 = vpop.f32.mrb[0].mxu0
        %5321 = vmatprep.mubr.f32.mxu0 0.0
        %5322 = vmatmul.mubr.f32.gmra.mrb[0].mxu0 %v5196
        %v5323 = vpop.f32.mrb[0].mxu0
        %v5324 = vadd.f32 0.0, %v5323
        %v5325 = vpop.f32.mrb[0].mxu0
        %5326 = vmatprep.mubr.f32.mxu0 0.0
        %5327 = vmatmul.mubr.f32.gmra.mrb[0].mxu0 %v5197
        %v5328 = vpop.f32.mrb[0].mxu0
        %v5329 = vadd.f32 0.0, %v5328
        %v5330 = vpop.f32.mrb[0].mxu0
        %5331 = vmatprep.mubr.f32.mxu0 0.0
        %5332 = vmatmul.mubr.f32.gmra.mrb[0].mxu0 %v5198
        %v5333 = vpop.f32.mrb[0].mxu0
        %v5334 = vadd.f32 0.0, %v5333
        %v5335 = vpop.f32.mrb[0].mxu0
        %5336 = vmatprep.mubr.f32.mxu0 0.0
        %5337 = vmatmul.mubr.f32.gmra.mrb[0].mxu0 %v5199
        %v5338 = vpop.f32.mrb[0].mxu0
        %v5339 = vadd.f32 0.0, %v5338
        %v5340 = vpop.f32.mrb[0].mxu0
        %5341 = vmatprep.mubr.f32.mxu0 0.0
        %5342 = vmatmul.mubr.f32.gmra.mrb[0].mxu0 %v5200
        %v5343 = vpop.f32.mrb[0].mxu0
        %v5344 = vadd.f32 0.0, %v5343
        %v5345 = vpop.f32.mrb[0].mxu0
        %5346 = vmatprep.mubr.f32.mxu0 0.0
        %5347 = vmatmul.mubr.f32.gmra.mrb[0].mxu0 %v5201
        %v5348 = vpop.f32.mrb[0].mxu0
        %v5349 = vadd.f32 0.0, %v5348
        %v5350 = vpop.f32.mrb[0].mxu0
        %5351 = vmatprep.mubr.f32.mxu0 0.0
        %5352 = vmatmul.mubr.f32.gmra.mrb[0].mxu0 %v5202
        %v5353 = vpop.f32.mrb[0].mxu0
        %v5354 = vadd.f32 0.0, %v5353
        %v5355 = vpop.f32.mrb[0].mxu0
        %5356 = vmatprep.mubr.f32.mxu0 0.0
        %5357 = vmatmul.mubr.f32.gmra.mrb[0].mxu0 %v5203
        %v5358 = vpop.f32.mrb[0].mxu0
        %v5359 = vadd.f32 0.0, %v5358
        %v5360 = vpop.f32.mrb[0].mxu0
        %5361 = vmatprep.mubr.f32.mxu0 0.0
        %5362 = vmatmul.mubr.f32.gmra.mrb[0].mxu0 %v5204
        %v5363 = vpop.f32.mrb[0].mxu0
        %v5364 = vadd.f32 0.0, %v5363
        %v5365 = vpop.f32.mrb[0].mxu0
        %5366 = vmatprep.mubr.f32.mxu0 0.0
        %5367 = vmatmul.mubr.f32.gmra.mrb[0].mxu0 %v5205
        %v5368 = vpop.f32.mrb[0].mxu0
        %v5369 = vadd.f32 0.0, %v5368
        %v5370 = vpop.f32.mrb[0].mxu0
        %5371 = vmatprep.mubr.f32.mxu0 0.0
        %5372 = vmatmul.mubr.f32.gmra.mrb[0].mxu0 %v5206
        %v5373 = vpop.f32.mrb[0].mxu0
        %v5374 = vadd.f32 0.0, %v5373
        %v5375 = vpop.f32.mrb[0].mxu0
        %5376 = vmatprep.mubr.f32.mxu0 0.0
        %5377 = vmatmul.mubr.f32.gmra.mrb[0].mxu0 %v5207
        %v5378 = vpop.f32.mrb[0].mxu0
        %v5379 = vadd.f32 0.0, %v5378
        %v5380 = vpop.f32.mrb[0].mxu0
        %5381 = vmatprep.mubr.f32.mxu0 0.0
        %5382 = vmatmul.mubr.f32.gmra.mrb[0].mxu0 %v5208
        %v5383 = vpop.f32.mrb[0].mxu0
        %v5384 = vadd.f32 0.0, %v5383
        %v5385 = vpop.f32.mrb[0].mxu0
        %5386 = vmatprep.mubr.f32.mxu0 0.0
        %5387 = vmatmul.mubr.f32.gmra.mrb[0].mxu0 %v5209
        %v5388 = vpop.f32.mrb[0].mxu0
        %v5389 = vadd.f32 0.0, %v5388
        %v5390 = vpop.f32.mrb[0].mxu0
        %5391 = vmatprep.mubr.f32.mxu0 0.0
        %5392 = vmatmul.mubr.f32.gmra.mrb[0].mxu0 %v5210
        %v5393 = vpop.f32.mrb[0].mxu0
        %v5394 = vadd.f32 0.0, %v5393
        %v5395 = vpop.f32.mrb[0].mxu0
        %5396 = vmatprep.mubr.f32.mxu0 0.0
        %5397 = vmatmul.mubr.f32.gmra.mrb[0].mxu0 %v5211
        %v5398 = vpop.f32.mrb[0].mxu0
        %v5399 = vadd.f32 0.0, %v5398
        %v5400 = vpop.f32.mrb[0].mxu0
        %5401 = vmatprep.mubr.f32.mxu0 0.0
        %5402 = vmatmul.mubr.f32.gmra.mrb[0].mxu0 %v5212
        %v5403 = vpop.f32.mrb[0].mxu0
        %v5404 = vadd.f32 0.0, %v5403
        %v5405 = vpop.f32.mrb[0].mxu0
        %5406 = vmatprep.mubr.f32.mxu0 0.0
        %5407 = vmatmul.mubr.f32.gmra.mrb[0].mxu0 %v5213
        %v5408 = vpop.f32.mrb[0].mxu0
        %v5409 = vadd.f32 0.0, %v5408
        %v5410 = vpop.f32.mrb[0].mxu0
        %5411 = vmatprep.mubr.f32.mxu0 0.0
        %5412 = vmatmul.mubr.f32.gmra.mrb[0].mxu0 %v5214
        %v5413 = vpop.f32.mrb[0].mxu0
        %v5414 = vadd.f32 0.0, %v5413
        %v5415 = vpop.f32.mrb[0].mxu0
        %5416 = vmatprep.mubr.f32.mxu0 0.0
        %5417 = vmatmul.mubr.f32.gmra.mrb[0].mxu0 %v5215
        %v5418 = vpop.f32.mrb[0].mxu0
        %v5419 = vadd.f32 0.0, %v5418
        %v5420 = vpop.f32.mrb[0].mxu0
        %5421 = vmatprep.mubr.f32.mxu0 0.0
        %5422 = vmatmul.mubr.f32.gmra.mrb[0].mxu0 %v5216
        %v5423 = vpop.f32.mrb[0].mxu0
        %v5424 = vadd.f32 0.0, %v5423
        %v5425 = vpop.f32.mrb[0].mxu0
        %5426 = vmatprep.mubr.f32.mxu0 0.0
        %5427 = vmatmul.mubr.f32.gmra.mrb[0].mxu0 %v5217
        %v5428 = vpop.f32.mrb[0].mxu0
        %v5429 = vadd.f32 0.0, %v5428
        %v5430 = vpop.f32.mrb[0].mxu0
        %5431 = vmatprep.mubr.f32.mxu0 0.0
        %5432 = vmatmul.mubr.f32.gmra.mrb[0].mxu0 %v5218
        %v5433 = vpop.f32.mrb[0].mxu0
        %v5434 = vadd.f32 0.0, %v5433
        %v5435 = vpop.f32.mrb[0].mxu0
        %5436 = vmatprep.mubr.f32.mxu0 0.0
        %5437 = vmatmul.mubr.f32.gmra.mrb[0].mxu0 %v5219
        %v5438 = vpop.f32.mrb[0].mxu0
        %v5439 = vadd.f32 0.0, %v5438
        %v5440 = vpop.f32.mrb[0].mxu0
        %5441 = vmatprep.mubr.f32.mxu0 0.0
        %5442 = vmatmul.mubr.f32.gmra.mrb[0].mxu0 %v5220
        %v5443 = vpop.f32.mrb[0].mxu0
        %v5444 = vadd.f32 0.0, %v5443
        %v5445 = vpop.f32.mrb[0].mxu0
        %5446 = vmatprep.mubr.f32.mxu0 0.0
        %5447 = vmatmul.mubr.f32.gmra.mrb[0].mxu0 %v5221
        %v5448 = vpop.f32.mrb[0].mxu0
        %v5449 = vadd.f32 0.0, %v5448
        %v5450 = vpop.f32.mrb[0].mxu0
        %5451 = vmatprep.mubr.f32.mxu0 0.0
        %5452 = vmatmul.mubr.f32.gmra.mrb[0].mxu0 %v5222
        %v5453 = vpop.f32.mrb[0].mxu0
        %v5454 = vadd.f32 0.0, %v5453
        %v5455 = vpop.f32.mrb[0].mxu0
        %5456 = vmatprep.mubr.f32.mxu0 0.0
        %5457 = vmatmul.mubr.f32.gmra.mrb[0].mxu0 %v5223
        %v5458 = vpop.f32.mrb[0].mxu0
        %v5459 = vadd.f32 0.0, %v5458
        %v5460 = vpop.f32.mrb[0].mxu0
        %5461 = vmatprep.mubr.f32.mxu0 0.0
        %5462 = vmatmul.mubr.f32.gmra.mrb[0].mxu0 %v5224
        %v5463 = vpop.f32.mrb[0].mxu0
        %v5464 = vadd.f32 0.0, %v5463
        %v5465 = vpop.f32.mrb[0].mxu0
        %5466 = vdwg.mxu0
        %v5467 = vadd.f32 %v5161, %v5309
        %v5468 = vadd.f32 %v5162, %v5314
        %v5469 = vadd.f32 %v5163, %v5319
        %v5470 = vadd.f32 %v5164, %v5324
        %v5471 = vadd.f32 %v5165, %v5329
        %v5472 = vadd.f32 %v5166, %v5334
        %v5473 = vadd.f32 %v5167, %v5339
        %v5474 = vadd.f32 %v5168, %v5344
        %v5475 = vadd.f32 %v5169, %v5349
        %v5476 = vadd.f32 %v5170, %v5354
        %v5477 = vadd.f32 %v5171, %v5359
        %v5478 = vadd.f32 %v5172, %v5364
        %v5479 = vadd.f32 %v5173, %v5369
        %v5480 = vadd.f32 %v5174, %v5374
        %v5481 = vadd.f32 %v5175, %v5379
        %v5482 = vadd.f32 %v5176, %v5384
        %v5483 = vadd.f32 %v5177, %v5389
        %v5484 = vadd.f32 %v5178, %v5394
        %v5485 = vadd.f32 %v5179, %v5399
        %v5486 = vadd.f32 %v5180, %v5404
        %v5487 = vadd.f32 %v5181, %v5409
        %v5488 = vadd.f32 %v5182, %v5414
        %v5489 = vadd.f32 %v5183, %v5419
        %v5490 = vadd.f32 %v5184, %v5424
        %v5491 = vadd.f32 %v5185, %v5429
        %v5492 = vadd.f32 %v5186, %v5434
        %v5493 = vadd.f32 %v5187, %v5439
        %v5494 = vadd.f32 %v5188, %v5444
        %v5495 = vadd.f32 %v5189, %v5449
        %v5496 = vadd.f32 %v5190, %v5454
        %v5497 = vadd.f32 %v5191, %v5459
        %v5498 = vadd.f32 %v5192, %v5464
        %v5499 = vld [vmem:[%s4886 + $0x2] sm:$0xff]
        %v5500 = vld [vmem:[%s4886 + $0xa] sm:$0xff]
        %v5501 = vld [vmem:[%s4886 + $0x1a] sm:$0xff]
        %v5502 = vld [vmem:[%s4886 + $0x22] sm:$0xff]
        %v5503 = vld [vmem:[%s4886 + $0x32] sm:$0xff]
        %v5504 = vld [vmem:[%s4886 + $0x3a] sm:$0xff]
        %v5505 = vld [vmem:[%s4886 + $0x4a] sm:$0xff]
        %v5506 = vld [vmem:[%s4886 + $0x52] sm:$0xff]
        %v5507 = vld [vmem:[%s4886 + $0x62] sm:$0xff]
        %v5508 = vld [vmem:[%s4886 + $0x6a] sm:$0xff]
        %v5509 = vld [vmem:[%s4886 + $0x7a] sm:$0xff]
        %v5510 = vld [vmem:[%s4886 + $0x82] sm:$0xff]
        %v5511 = vld [vmem:[%s4886 + $0x92] sm:$0xff]
        %v5512 = vld [vmem:[%s4886 + $0x9a] sm:$0xff]
        %v5513 = vld [vmem:[%s4886 + $0xaa] sm:$0xff]
        %v5514 = vld [vmem:[%s4886 + $0xb2] sm:$0xff]
        %v5515 = vld [vmem:[%s4886 + $0xc2] sm:$0xff]
        %v5516 = vld [vmem:[%s4886 + $0xca] sm:$0xff]
        %v5517 = vld [vmem:[%s4886 + $0xda] sm:$0xff]
        %v5518 = vld [vmem:[%s4886 + $0xe2] sm:$0xff]
        %v5519 = vld [vmem:[%s4886 + $0xf2] sm:$0xff]
        %v5520 = vld [vmem:[%s4886 + $0xfa] sm:$0xff]
        %v5521 = vld [vmem:[%s4886 + $0x10a] sm:$0xff]
        %v5522 = vld [vmem:[%s4886 + $0x112] sm:$0xff]
        %v5523 = vld [vmem:[%s4886 + $0x122] sm:$0xff]
        %v5524 = vld [vmem:[%s4886 + $0x12a] sm:$0xff]
        %v5525 = vld [vmem:[%s4886 + $0x13a] sm:$0xff]
        %v5526 = vld [vmem:[%s4886 + $0x142] sm:$0xff]
        %v5527 = vld [vmem:[%s4886 + $0x152] sm:$0xff]
        %v5528 = vld [vmem:[%s4886 + $0x15a] sm:$0xff]
        %v5529 = vld [vmem:[%s4886 + $0x16a] sm:$0xff]
        %v5530 = vld [vmem:[%s4886 + $0x172] sm:$0xff]
        %s5531 = scalar_lea.vmem [#allocation3], 1024
        %v5532 = vld [vmem:[%s5531] sm:$0xff]
        %v5533 = vld [vmem:[%s5531 + $0x8] sm:$0xff]
        %v5534 = vld [vmem:[%s5531 + $0x10] sm:$0xff]
        %v5535 = vld [vmem:[%s5531 + $0x18] sm:$0xff]
        %v5536 = vld [vmem:[%s5531 + $0x20] sm:$0xff]
        %v5537 = vld [vmem:[%s5531 + $0x28] sm:$0xff]
        %v5538 = vld [vmem:[%s5531 + $0x30] sm:$0xff]
        %v5539 = vld [vmem:[%s5531 + $0x38] sm:$0xff]
        %v5540 = vld [vmem:[%s5531 + $0x40] sm:$0xff]
        %v5541 = vld [vmem:[%s5531 + $0x48] sm:$0xff]
        %v5542 = vld [vmem:[%s5531 + $0x50] sm:$0xff]
        %v5543 = vld [vmem:[%s5531 + $0x58] sm:$0xff]
        %v5544 = vld [vmem:[%s5531 + $0x60] sm:$0xff]
        %v5545 = vld [vmem:[%s5531 + $0x68] sm:$0xff]
        %v5546 = vld [vmem:[%s5531 + $0x70] sm:$0xff]
        %v5547 = vld [vmem:[%s5531 + $0x78] sm:$0xff]
        %5548 = vmatprep.subr.mxu0 0.0
        %5549 = vmatpush1.msra.mxu0 %v5532
        %5550 = vmatprep.subr.mxu0 0.0
        %5551 = vmatpush1.msra.mxu0 %v5533
        %5552 = vmatprep.subr.mxu0 0.0
        %5553 = vmatpush1.msra.mxu0 %v5534
        %5554 = vmatprep.subr.mxu0 0.0
        %5555 = vmatpush1.msra.mxu0 %v5535
        %5556 = vmatprep.subr.mxu0 0.0
        %5557 = vmatpush1.msra.mxu0 %v5536
        %5558 = vmatprep.subr.mxu0 0.0
        %5559 = vmatpush1.msra.mxu0 %v5537
        %5560 = vmatprep.subr.mxu0 0.0
        %5561 = vmatpush1.msra.mxu0 %v5538
        %5562 = vmatprep.subr.mxu0 0.0
        %5563 = vmatpush1.msra.mxu0 %v5539
        %5564 = vmatprep.subr.mxu0 0.0
        %5565 = vmatpush1.msra.mxu0 %v5540
        %5566 = vmatprep.subr.mxu0 0.0
        %5567 = vmatpush1.msra.mxu0 %v5541
        %5568 = vmatprep.subr.mxu0 0.0
        %5569 = vmatpush1.msra.mxu0 %v5542
        %5570 = vmatprep.subr.mxu0 0.0
        %5571 = vmatpush1.msra.mxu0 %v5543
        %5572 = vmatprep.subr.mxu0 0.0
        %5573 = vmatpush1.msra.mxu0 %v5544
        %5574 = vmatprep.subr.mxu0 0.0
        %5575 = vmatpush1.msra.mxu0 %v5545
        %5576 = vmatprep.subr.mxu0 0.0
        %5577 = vmatpush1.msra.mxu0 %v5546
        %5578 = vmatprep.subr.mxu0 0.0
        %5579 = vmatpush1.msra.mxu0 %v5547
        %5580 = vmatprep.subr.mxu0 0.0
        %5581 = vmatpush1.msra.mxu0 0.0
        %5582 = vmatprep.subr.mxu0 0.0
        %5583 = vmatpush1.msra.mxu0 0.0
        %5584 = vmatprep.subr.mxu0 0.0
        %5585 = vmatpush1.msra.mxu0 0.0
        %5586 = vmatprep.subr.mxu0 0.0
        %5587 = vmatpush1.msra.mxu0 0.0
        %5588 = vmatprep.subr.mxu0 0.0
        %5589 = vmatpush1.msra.mxu0 0.0
        %5590 = vmatprep.subr.mxu0 0.0
        %5591 = vmatpush1.msra.mxu0 0.0
        %5592 = vmatprep.subr.mxu0 0.0
        %5593 = vmatpush1.msra.mxu0 0.0
        %5594 = vmatprep.subr.mxu0 0.0
        %5595 = vmatpush1.msra.mxu0 0.0
        %5596 = vmatprep.subr.mxu0 0.0
        %5597 = vmatpush1.msra.mxu0 0.0
        %5598 = vmatprep.subr.mxu0 0.0
        %5599 = vmatpush1.msra.mxu0 0.0
        %5600 = vmatprep.subr.mxu0 0.0
        %5601 = vmatpush1.msra.mxu0 0.0
        %5602 = vmatprep.subr.mxu0 0.0
        %5603 = vmatpush1.msra.mxu0 0.0
        %5604 = vmatprep.subr.mxu0 0.0
        %5605 = vmatpush1.msra.mxu0 0.0
        %5606 = vmatprep.subr.mxu0 0.0
        %5607 = vmatpush1.msra.mxu0 0.0
        %5608 = vmatprep.subr.mxu0 0.0
        %5609 = vmatpush1.msra.mxu0 0.0
        %5610 = vmatprep.subr.mxu0 0.0
        %5611 = vmatpush1.msra.mxu0 0.0
        %5612 = vmatprep.mubr.f32.mxu0 0.0
        %5613 = vmatmul.mubr.f32.gmra.mrb[0].mxu0 %v5499
        %v5614 = vpop.f32.mrb[0].mxu0
        %v5615 = vadd.f32 0.0, %v5614
        %v5616 = vpop.f32.mrb[0].mxu0
        %5617 = vmatprep.mubr.f32.mxu0 0.0
        %5618 = vmatmul.mubr.f32.gmra.mrb[0].mxu0 %v5500
        %v5619 = vpop.f32.mrb[0].mxu0
        %v5620 = vadd.f32 0.0, %v5619
        %v5621 = vpop.f32.mrb[0].mxu0
        %5622 = vmatprep.mubr.f32.mxu0 0.0
        %5623 = vmatmul.mubr.f32.gmra.mrb[0].mxu0 %v5501
        %v5624 = vpop.f32.mrb[0].mxu0
        %v5625 = vadd.f32 0.0, %v5624
        %v5626 = vpop.f32.mrb[0].mxu0
        %5627 = vmatprep.mubr.f32.mxu0 0.0
        %5628 = vmatmul.mubr.f32.gmra.mrb[0].mxu0 %v5502
        %v5629 = vpop.f32.mrb[0].mxu0
        %v5630 = vadd.f32 0.0, %v5629
        %v5631 = vpop.f32.mrb[0].mxu0
        %5632 = vmatprep.mubr.f32.mxu0 0.0
        %5633 = vmatmul.mubr.f32.gmra.mrb[0].mxu0 %v5503
        %v5634 = vpop.f32.mrb[0].mxu0
        %v5635 = vadd.f32 0.0, %v5634
        %v5636 = vpop.f32.mrb[0].mxu0
        %5637 = vmatprep.mubr.f32.mxu0 0.0
        %5638 = vmatmul.mubr.f32.gmra.mrb[0].mxu0 %v5504
        %v5639 = vpop.f32.mrb[0].mxu0
        %v5640 = vadd.f32 0.0, %v5639
        %v5641 = vpop.f32.mrb[0].mxu0
        %5642 = vmatprep.mubr.f32.mxu0 0.0
        %5643 = vmatmul.mubr.f32.gmra.mrb[0].mxu0 %v5505
        %v5644 = vpop.f32.mrb[0].mxu0
        %v5645 = vadd.f32 0.0, %v5644
        %v5646 = vpop.f32.mrb[0].mxu0
        %5647 = vmatprep.mubr.f32.mxu0 0.0
        %5648 = vmatmul.mubr.f32.gmra.mrb[0].mxu0 %v5506
        %v5649 = vpop.f32.mrb[0].mxu0
        %v5650 = vadd.f32 0.0, %v5649
        %v5651 = vpop.f32.mrb[0].mxu0
        %5652 = vmatprep.mubr.f32.mxu0 0.0
        %5653 = vmatmul.mubr.f32.gmra.mrb[0].mxu0 %v5507
        %v5654 = vpop.f32.mrb[0].mxu0
        %v5655 = vadd.f32 0.0, %v5654
        %v5656 = vpop.f32.mrb[0].mxu0
        %5657 = vmatprep.mubr.f32.mxu0 0.0
        %5658 = vmatmul.mubr.f32.gmra.mrb[0].mxu0 %v5508
        %v5659 = vpop.f32.mrb[0].mxu0
        %v5660 = vadd.f32 0.0, %v5659
        %v5661 = vpop.f32.mrb[0].mxu0
        %5662 = vmatprep.mubr.f32.mxu0 0.0
        %5663 = vmatmul.mubr.f32.gmra.mrb[0].mxu0 %v5509
        %v5664 = vpop.f32.mrb[0].mxu0
        %v5665 = vadd.f32 0.0, %v5664
        %v5666 = vpop.f32.mrb[0].mxu0
        %5667 = vmatprep.mubr.f32.mxu0 0.0
        %5668 = vmatmul.mubr.f32.gmra.mrb[0].mxu0 %v5510
        %v5669 = vpop.f32.mrb[0].mxu0
        %v5670 = vadd.f32 0.0, %v5669
        %v5671 = vpop.f32.mrb[0].mxu0
        %5672 = vmatprep.mubr.f32.mxu0 0.0
        %5673 = vmatmul.mubr.f32.gmra.mrb[0].mxu0 %v5511
        %v5674 = vpop.f32.mrb[0].mxu0
        %v5675 = vadd.f32 0.0, %v5674
        %v5676 = vpop.f32.mrb[0].mxu0
        %5677 = vmatprep.mubr.f32.mxu0 0.0
        %5678 = vmatmul.mubr.f32.gmra.mrb[0].mxu0 %v5512
        %v5679 = vpop.f32.mrb[0].mxu0
        %v5680 = vadd.f32 0.0, %v5679
        %v5681 = vpop.f32.mrb[0].mxu0
        %5682 = vmatprep.mubr.f32.mxu0 0.0
        %5683 = vmatmul.mubr.f32.gmra.mrb[0].mxu0 %v5513
        %v5684 = vpop.f32.mrb[0].mxu0
        %v5685 = vadd.f32 0.0, %v5684
        %v5686 = vpop.f32.mrb[0].mxu0
        %5687 = vmatprep.mubr.f32.mxu0 0.0
        %5688 = vmatmul.mubr.f32.gmra.mrb[0].mxu0 %v5514
        %v5689 = vpop.f32.mrb[0].mxu0
        %v5690 = vadd.f32 0.0, %v5689
        %v5691 = vpop.f32.mrb[0].mxu0
        %5692 = vmatprep.mubr.f32.mxu0 0.0
        %5693 = vmatmul.mubr.f32.gmra.mrb[0].mxu0 %v5515
        %v5694 = vpop.f32.mrb[0].mxu0
        %v5695 = vadd.f32 0.0, %v5694
        %v5696 = vpop.f32.mrb[0].mxu0
        %5697 = vmatprep.mubr.f32.mxu0 0.0
        %5698 = vmatmul.mubr.f32.gmra.mrb[0].mxu0 %v5516
        %v5699 = vpop.f32.mrb[0].mxu0
        %v5700 = vadd.f32 0.0, %v5699
        %v5701 = vpop.f32.mrb[0].mxu0
        %5702 = vmatprep.mubr.f32.mxu0 0.0
        %5703 = vmatmul.mubr.f32.gmra.mrb[0].mxu0 %v5517
        %v5704 = vpop.f32.mrb[0].mxu0
        %v5705 = vadd.f32 0.0, %v5704
        %v5706 = vpop.f32.mrb[0].mxu0
        %5707 = vmatprep.mubr.f32.mxu0 0.0
        %5708 = vmatmul.mubr.f32.gmra.mrb[0].mxu0 %v5518
        %v5709 = vpop.f32.mrb[0].mxu0
        %v5710 = vadd.f32 0.0, %v5709
        %v5711 = vpop.f32.mrb[0].mxu0
        %5712 = vmatprep.mubr.f32.mxu0 0.0
        %5713 = vmatmul.mubr.f32.gmra.mrb[0].mxu0 %v5519
        %v5714 = vpop.f32.mrb[0].mxu0
        %v5715 = vadd.f32 0.0, %v5714
        %v5716 = vpop.f32.mrb[0].mxu0
        %5717 = vmatprep.mubr.f32.mxu0 0.0
        %5718 = vmatmul.mubr.f32.gmra.mrb[0].mxu0 %v5520
        %v5719 = vpop.f32.mrb[0].mxu0
        %v5720 = vadd.f32 0.0, %v5719
        %v5721 = vpop.f32.mrb[0].mxu0
        %5722 = vmatprep.mubr.f32.mxu0 0.0
        %5723 = vmatmul.mubr.f32.gmra.mrb[0].mxu0 %v5521
        %v5724 = vpop.f32.mrb[0].mxu0
        %v5725 = vadd.f32 0.0, %v5724
        %v5726 = vpop.f32.mrb[0].mxu0
        %5727 = vmatprep.mubr.f32.mxu0 0.0
        %5728 = vmatmul.mubr.f32.gmra.mrb[0].mxu0 %v5522
        %v5729 = vpop.f32.mrb[0].mxu0
        %v5730 = vadd.f32 0.0, %v5729
        %v5731 = vpop.f32.mrb[0].mxu0
        %5732 = vmatprep.mubr.f32.mxu0 0.0
        %5733 = vmatmul.mubr.f32.gmra.mrb[0].mxu0 %v5523
        %v5734 = vpop.f32.mrb[0].mxu0
        %v5735 = vadd.f32 0.0, %v5734
        %v5736 = vpop.f32.mrb[0].mxu0
        %5737 = vmatprep.mubr.f32.mxu0 0.0
        %5738 = vmatmul.mubr.f32.gmra.mrb[0].mxu0 %v5524
        %v5739 = vpop.f32.mrb[0].mxu0
        %v5740 = vadd.f32 0.0, %v5739
        %v5741 = vpop.f32.mrb[0].mxu0
        %5742 = vmatprep.mubr.f32.mxu0 0.0
        %5743 = vmatmul.mubr.f32.gmra.mrb[0].mxu0 %v5525
        %v5744 = vpop.f32.mrb[0].mxu0
        %v5745 = vadd.f32 0.0, %v5744
        %v5746 = vpop.f32.mrb[0].mxu0
        %5747 = vmatprep.mubr.f32.mxu0 0.0
        %5748 = vmatmul.mubr.f32.gmra.mrb[0].mxu0 %v5526
        %v5749 = vpop.f32.mrb[0].mxu0
        %v5750 = vadd.f32 0.0, %v5749
        %v5751 = vpop.f32.mrb[0].mxu0
        %5752 = vmatprep.mubr.f32.mxu0 0.0
        %5753 = vmatmul.mubr.f32.gmra.mrb[0].mxu0 %v5527
        %v5754 = vpop.f32.mrb[0].mxu0
        %v5755 = vadd.f32 0.0, %v5754
        %v5756 = vpop.f32.mrb[0].mxu0
        %5757 = vmatprep.mubr.f32.mxu0 0.0
        %5758 = vmatmul.mubr.f32.gmra.mrb[0].mxu0 %v5528
        %v5759 = vpop.f32.mrb[0].mxu0
        %v5760 = vadd.f32 0.0, %v5759
        %v5761 = vpop.f32.mrb[0].mxu0
        %5762 = vmatprep.mubr.f32.mxu0 0.0
        %5763 = vmatmul.mubr.f32.gmra.mrb[0].mxu0 %v5529
        %v5764 = vpop.f32.mrb[0].mxu0
        %v5765 = vadd.f32 0.0, %v5764
        %v5766 = vpop.f32.mrb[0].mxu0
        %5767 = vmatprep.mubr.f32.mxu0 0.0
        %5768 = vmatmul.mubr.f32.gmra.mrb[0].mxu0 %v5530
        %v5769 = vpop.f32.mrb[0].mxu0
        %v5770 = vadd.f32 0.0, %v5769
        %v5771 = vpop.f32.mrb[0].mxu0
        %5772 = vdwg.mxu0
        %v5773 = vadd.f32 %v5467, %v5615
        %v5774 = vadd.f32 %v5468, %v5620
        %v5775 = vadd.f32 %v5469, %v5625
        %v5776 = vadd.f32 %v5470, %v5630
        %v5777 = vadd.f32 %v5471, %v5635
        %v5778 = vadd.f32 %v5472, %v5640
        %v5779 = vadd.f32 %v5473, %v5645
        %v5780 = vadd.f32 %v5474, %v5650
        %v5781 = vadd.f32 %v5475, %v5655
        %v5782 = vadd.f32 %v5476, %v5660
        %v5783 = vadd.f32 %v5477, %v5665
        %v5784 = vadd.f32 %v5478, %v5670
        %v5785 = vadd.f32 %v5479, %v5675
        %v5786 = vadd.f32 %v5480, %v5680
        %v5787 = vadd.f32 %v5481, %v5685
        %v5788 = vadd.f32 %v5482, %v5690
        %v5789 = vadd.f32 %v5483, %v5695
        %v5790 = vadd.f32 %v5484, %v5700
        %v5791 = vadd.f32 %v5485, %v5705
        %v5792 = vadd.f32 %v5486, %v5710
        %v5793 = vadd.f32 %v5487, %v5715
        %v5794 = vadd.f32 %v5488, %v5720
        %v5795 = vadd.f32 %v5489, %v5725
        %v5796 = vadd.f32 %v5490, %v5730
        %v5797 = vadd.f32 %v5491, %v5735
        %v5798 = vadd.f32 %v5492, %v5740
        %v5799 = vadd.f32 %v5493, %v5745
        %v5800 = vadd.f32 %v5494, %v5750
        %v5801 = vadd.f32 %v5495, %v5755
        %v5802 = vadd.f32 %v5496, %v5760
        %v5803 = vadd.f32 %v5497, %v5765
        %v5804 = vadd.f32 %v5498, %v5770
        %v5805 = vld [vmem:[%s4] sm:$0x1]
        %v5807 = vlaneseq
        %v5808 = vshrl.u32 %v5807, 7
        %v5809 = vsub.s32 0, %v5808
        %v5810 = vrot.slane %v5805, %v5809
        %v5812 = vadd.f32 %v5773, %v5810
        %v5813 = vadd.f32 %v5774, %v5810
        %v5814 = vadd.f32 %v5775, %v5810
        %v5815 = vadd.f32 %v5776, %v5810
        %v5816 = vadd.f32 %v5777, %v5810
        %v5817 = vadd.f32 %v5778, %v5810
        %v5818 = vadd.f32 %v5779, %v5810
        %v5819 = vadd.f32 %v5780, %v5810
        %v5820 = vadd.f32 %v5781, %v5810
        %v5821 = vadd.f32 %v5782, %v5810
        %v5822 = vadd.f32 %v5783, %v5810
        %v5823 = vadd.f32 %v5784, %v5810
        %v5824 = vadd.f32 %v5785, %v5810
        %v5825 = vadd.f32 %v5786, %v5810
        %v5826 = vadd.f32 %v5787, %v5810
        %v5827 = vadd.f32 %v5788, %v5810
        %v5828 = vadd.f32 %v5789, %v5810
        %v5829 = vadd.f32 %v5790, %v5810
        %v5830 = vadd.f32 %v5791, %v5810
        %v5831 = vadd.f32 %v5792, %v5810
        %v5832 = vadd.f32 %v5793, %v5810
        %v5833 = vadd.f32 %v5794, %v5810
        %v5834 = vadd.f32 %v5795, %v5810
        %v5835 = vadd.f32 %v5796, %v5810
        %v5836 = vadd.f32 %v5797, %v5810
        %v5837 = vadd.f32 %v5798, %v5810
        %v5838 = vadd.f32 %v5799, %v5810
        %v5839 = vadd.f32 %v5800, %v5810
        %v5840 = vadd.f32 %v5801, %v5810
        %v5841 = vadd.f32 %v5802, %v5810
        %v5842 = vadd.f32 %v5803, %v5810
        %v5843 = vadd.f32 %v5804, %v5810
        %v5844 = vmax.f32 %v5812, 0.0
        %v5845 = vmax.f32 %v5813, 0.0
        %v5846 = vmax.f32 %v5814, 0.0
        %v5847 = vmax.f32 %v5815, 0.0
        %v5848 = vmax.f32 %v5816, 0.0
        %v5849 = vmax.f32 %v5817, 0.0
        %v5850 = vmax.f32 %v5818, 0.0
        %v5851 = vmax.f32 %v5819, 0.0
        %v5852 = vmax.f32 %v5820, 0.0
        %v5853 = vmax.f32 %v5821, 0.0
        %v5854 = vmax.f32 %v5822, 0.0
        %v5855 = vmax.f32 %v5823, 0.0
        %v5856 = vmax.f32 %v5824, 0.0
        %v5857 = vmax.f32 %v5825, 0.0
        %v5858 = vmax.f32 %v5826, 0.0
        %v5859 = vmax.f32 %v5827, 0.0
        %v5860 = vmax.f32 %v5828, 0.0
        %v5861 = vmax.f32 %v5829, 0.0
        %v5862 = vmax.f32 %v5830, 0.0
        %v5863 = vmax.f32 %v5831, 0.0
        %v5864 = vmax.f32 %v5832, 0.0
        %v5865 = vmax.f32 %v5833, 0.0
        %v5866 = vmax.f32 %v5834, 0.0
        %v5867 = vmax.f32 %v5835, 0.0
        %v5868 = vmax.f32 %v5836, 0.0
        %v5869 = vmax.f32 %v5837, 0.0
        %v5870 = vmax.f32 %v5838, 0.0
        %v5871 = vmax.f32 %v5839, 0.0
        %v5872 = vmax.f32 %v5840, 0.0
        %v5873 = vmax.f32 %v5841, 0.0
        %v5874 = vmax.f32 %v5842, 0.0
        %v5875 = vmax.f32 %v5843, 0.0
        %5876 = vst [vmem:[%s256] sm:$0xff] %v5844
        %5877 = vst [vmem:[%s256 + $0x8] sm:$0xff] %v5845
        %5878 = vst [vmem:[%s256 + $0x10] sm:$0xff] %v5846
        %5879 = vst [vmem:[%s256 + $0x18] sm:$0xff] %v5847
        %5880 = vst [vmem:[%s256 + $0x20] sm:$0xff] %v5848
        %5881 = vst [vmem:[%s256 + $0x28] sm:$0xff] %v5849
        %5882 = vst [vmem:[%s256 + $0x30] sm:$0xff] %v5850
        %5883 = vst [vmem:[%s256 + $0x38] sm:$0xff] %v5851
        %5884 = vst [vmem:[%s256 + $0x40] sm:$0xff] %v5852
        %5885 = vst [vmem:[%s256 + $0x48] sm:$0xff] %v5853
        %5886 = vst [vmem:[%s256 + $0x50] sm:$0xff] %v5854
        %5887 = vst [vmem:[%s256 + $0x58] sm:$0xff] %v5855
        %5888 = vst [vmem:[%s256 + $0x60] sm:$0xff] %v5856
        %5889 = vst [vmem:[%s256 + $0x68] sm:$0xff] %v5857
        %5890 = vst [vmem:[%s256 + $0x70] sm:$0xff] %v5858
        %5891 = vst [vmem:[%s256 + $0x78] sm:$0xff] %v5859
        %5892 = vst [vmem:[%s256 + $0x80] sm:$0xff] %v5860
        %5893 = vst [vmem:[%s256 + $0x88] sm:$0xff] %v5861
        %5894 = vst [vmem:[%s256 + $0x90] sm:$0xff] %v5862
        %5895 = vst [vmem:[%s256 + $0x98] sm:$0xff] %v5863
        %5896 = vst [vmem:[%s256 + $0xa0] sm:$0xff] %v5864
        %5897 = vst [vmem:[%s256 + $0xa8] sm:$0xff] %v5865
        %5898 = vst [vmem:[%s256 + $0xb0] sm:$0xff] %v5866
        %5899 = vst [vmem:[%s256 + $0xb8] sm:$0xff] %v5867
        %5900 = vst [vmem:[%s256 + $0xc0] sm:$0xff] %v5868
        %5901 = vst [vmem:[%s256 + $0xc8] sm:$0xff] %v5869
        %5902 = vst [vmem:[%s256 + $0xd0] sm:$0xff] %v5870
        %5903 = vst [vmem:[%s256 + $0xd8] sm:$0xff] %v5871
        %5904 = vst [vmem:[%s256 + $0xe0] sm:$0xff] %v5872
        %5905 = vst [vmem:[%s256 + $0xe8] sm:$0xff] %v5873
        %5906 = vst [vmem:[%s256 + $0xf0] sm:$0xff] %v5874
        %5907 = vst [vmem:[%s256 + $0xf8] sm:$0xff] %v5875
        %s5908 = sand.u32 %s154, 1
        %s5909 = scalar_lea.sflag [#allocation5], %s5908
        %s5910 = sand.u32 %s154, 1
        %s5911 = smul.addr %s5910, 256
        %s5912 = scalar_lea.vmem [#allocation6], %s5911
        // Predicated region
        $region45: #{tpu_custom_call.1} parent=39 // pred_check
          %p5913 = pneg %p164
        $region46: #{tpu_custom_call.1} parent=39 // pred_check_branch
          %5915 = sbr.rel (%p5913) target = $region48
        $region47: #{tpu_custom_call.1} parent=39 // pred_region
          %s5917 = ssub.s32 4096, 4096
          %5918 = vsyncadd %s5909, %s5917
          %s5919 = smul.addr %s25, 32
          %s5920 = smul.addr %s24, 32
          %s5921 = sadd.s32 %s5919, %s5920
          %s5922 = smul.addr %s5921, 128
          %s5923 = scalar_lea.hbm %s5, %s5922
          %s5924 = sshll.u32 %s5912, 4
          %s5925 = int_to_ptr.vmem [resolvable:$true] %s5924
          %5930 = dma.vmem_to_hbm [thread:$0]  %s5925, 4096, %s5923, %s5909, 128, 128, 8
        $region48: #{tpu_custom_call.1} parent=39 // pred_fallthru
          _
      $region40: #{tpu_custom_call.1} parent=5 // pred_fallthru
        _
      %p5931 = scmp.le.s32.totalorder 2, %s15
      // Predicated region
      $region49: #{tpu_custom_call.1} parent=5 // pred_check
        %p5932 = pneg %p5931
      $region50: #{tpu_custom_call.1} parent=5 // pred_check_branch
        %5934 = sbr.rel (%p5932) target = $region52
      $region51: #{tpu_custom_call.1} parent=5 // pred_region
        %s5935 = ssub.s32 %s15, 2
        // Predicated region
        $region53: #{tpu_custom_call.1} parent=51 // pred_check
          %p5936 = pneg %p170
        $region54: #{tpu_custom_call.1} parent=51 // pred_check_branch
          %5938 = sbr.rel (%p5936) target = $region56
        $region55: #{tpu_custom_call.1} parent=51 // pred_region
          %s5939 = sand.u32 %s155, 1
          %s5940 = scalar_lea.sflag [#allocation5], %s5939
          %s5941 = sand.u32 %s155, 1
          %s5942 = smul.addr %s5941, 256
          %s5943 = scalar_lea.vmem [#allocation6], %s5942
          %5944 = dma.done %s5940, 4096
        $region56: #{tpu_custom_call.1} parent=51 // pred_fallthru
          _
      $region52: #{tpu_custom_call.1} parent=5 // pred_fallthru
        _
    $region6: #{tpu_custom_call.1} parent=1 // loop_footer
      %s19 = sadd.s32 1, %s15
    $region7: #{tpu_custom_call.1} parent=1 // loop_footer_branch
      %14 = sbr.rel target = $region3
    $region8: #{tpu_custom_call.1} parent=1 // loop_exit
      _
    %5945 = vsyncpa [#allocation4], 1
    %s5946 = scalar_lea.sflag [#allocation4], 1
    %5947 = vsyncpa %s5946, 1
    %5948 = vsyncpa [#allocation5], 1
    %s5949 = scalar_lea.sflag [#allocation5], 1
    %5950 = vsyncpa %s5949, 1

</llo_original>
